<compile_context>
chip_gen: v6e
topology: v6e:2x2x1
jax: 0.10.0
libtpu: 0.0.40
codegen_flags: <defaults>
</compile_context>

<pallas_src>
import functools

import jax
import jax.numpy as jnp
from jax.experimental import pallas as pl
from jax.experimental.pallas import tpu as pltpu


C = 128                      # backbone / FPN width (surrogate; lane-dense 128 outputs)
VMEM_LIMIT = 32 * 1024 * 1024  # explicit scoped-VMEM limit, safe on v5e/v6e/v7x
# TODO(synk): real detectron2 FPN width is 256; with C=256 the MXU N-dim would be fully
# used on v6e/v7x (secondary while memory-bound, so kept at 128 here).

PIXEL_MEAN_BGR = (103.53, 116.28, 123.675)  # detectron2 pixel means, BGR order
# The reference does x.flip(1) (RGB->BGR) then subtracts the BGR mean.  Here the flip is
# folded into the stem weight's input-channel row permutation and the mean (and the *255)
# are folded into the stem weight/bias, so no per-pixel preprocessing happens at all.
PIXEL_MEAN_RGB = jnp.array(PIXEL_MEAN_BGR[::-1], jnp.float32)


# ----------------------------------------------------------------------------
# Pallas kernels
# ----------------------------------------------------------------------------

def _stem_fused_kernel(p_ref, w1_ref, b1_ref, w2_ref, b2_ref, o_ref, *, R, Wo):
    # Fused stem1 (2x2/s2 conv on raw 3-ch patches, preproc folded into w1/b1) + stem2
    # (2x2/s2 conv).  p_ref: (2*R*Wo, 24) bf16 "double-wide" patches (two w-adjacent
    # 2x2x3 patches per row).  c1 lives only in registers/VMEM values, never in HBM.
    w1 = w1_ref[...]                       # (24, 2C) block-diagonal stem1 weight
    b1 = b1_ref[...]                       # (1, 2C)  f32 (mean folded in)
    w2a = w2_ref[pl.ds(0, 2 * C), :]       # (2C, C)  dy=0 taps
    w2b = w2_ref[pl.ds(2 * C, 2 * C), :]   # (2C, C)  dy=1 taps
    b2 = b2_ref[...]
    for r in range(R):
        q0 = p_ref[pl.ds(2 * r * Wo, Wo), :]           # c1 row 2r   patches (Wo, 24)
        q1 = p_ref[pl.ds((2 * r + 1) * Wo, Wo), :]      # c1 row 2r+1 patches
        c1a = jnp.maximum(
            jnp.dot(q0, w1, preferred_element_type=jnp.float32) + b1, 0.0
        ).astype(jnp.bfloat16)                           # (Wo, 2C) double-wide c1
        c1b = jnp.maximum(
            jnp.dot(q1, w1, preferred_element_type=jnp.float32) + b1, 0.0
        ).astype(jnp.bfloat16)
        acc = (jnp.dot(c1a, w2a, preferred_element_type=jnp.float32)
               + jnp.dot(c1b, w2b, preferred_element_type=jnp.float32))
        o_ref[pl.ds(r * Wo, Wo), :] = jnp.maximum(acc + b2, 0.0).astype(o_ref.dtype)


def _conv2x2_dw_kernel(x_ref, w_ref, b_ref, o_ref, *, R, Wo):
    # 2x2 stride-2 conv + ReLU.  x_ref: (2*R*Wo, 2C) bf16 double-wide input (the dx=0/1
    # taps are lane-adjacent), so each output row is two contiguous-slab MXU matmuls.
    wa = w_ref[pl.ds(0, 2 * C), :]          # (2C, C) rows [dy0dx0 ; dy0dx1]
    wb = w_ref[pl.ds(2 * C, 2 * C), :]      # (2C, C) rows [dy1dx0 ; dy1dx1]
    b = b_ref[...]
    for r in range(R):
        a0 = x_ref[pl.ds(2 * r * Wo, Wo), :]            # input row 2r   (Wo, 2C)
        a1 = x_ref[pl.ds((2 * r + 1) * Wo, Wo), :]       # input row 2r+1
        acc = (jnp.dot(a0, wa, preferred_element_type=jnp.float32)
               + jnp.dot(a1, wb, preferred_element_type=jnp.float32))
        o_ref[pl.ds(r * Wo, Wo), :] = jnp.maximum(acc + b, 0.0).astype(o_ref.dtype)


def _fpn_loss_kernel(c2g, c2r, c3g, c3r, c4g, c4r, c5g, c5r, w_ref, out_ref,
                     up_scr, hd_scr, p5_scr, *, R5, W5):
    # FPN top-down (1x1 laterals, 2x nearest upsample + add, p6 = stride-2 subsample) is
    # linear, so it is applied to the (GT - recon) feature difference directly (lateral
    # biases cancel).  Tiled over R5 c5-image-rows; the five squared-error partial sums
    # are written to a lane-dense (8,128) output row (normalization is done in JAX).
    def lat(gref, rref, idx):
        dd = gref[...].astype(jnp.float32) - rref[...].astype(jnp.float32)
        # TODO(synk): the small GT-recon difference is cast to bf16 before the MXU
        # lateral; per-level MSEs can drift at ~1e-3 relative vs an f32 reference.
        return jnp.dot(dd.astype(jnp.bfloat16), w_ref[idx],
                       preferred_element_type=jnp.float32)

    def upsample(coarse, rows_c, wc):
        # nearest 2x upsample of a (rows_c*wc, C) value -> (4*rows_c*wc, C):
        # h-duplication via contiguous per-coarse-row stores, w-interleave via two
        # whole-level stride-2 stores into the fine scratch.  Pure data movement.
        for i in range(rows_c):
            slab = coarse[i * wc:(i + 1) * wc, :]
            hd_scr[pl.ds(2 * i * wc, wc), :] = slab
            hd_scr[pl.ds((2 * i + 1) * wc, wc), :] = slab
        nhd = 2 * rows_c * wc
        hd = hd_scr[pl.ds(0, nhd), :]
        up_scr[pl.ds(0, nhd, 2), :] = hd
        up_scr[pl.ds(1, nhd, 2), :] = hd
        return up_scr[pl.ds(0, 2 * nhd), :]

    def ssq(x):
        return jnp.sum(x * x)

    dp5 = lat(c5g, c5r, 3)                               # (R5*W5, C)
    p5_scr[...] = dp5
    s5 = ssq(dp5)

    # p6 = p5[::2, ::2]  (LastLevelMaxPool, kernel 1, stride 2): stride-2 reads of dp5.
    s6 = jnp.float32(0.0)
    for i6 in range(R5 // 2):
        s6 = s6 + ssq(p5_scr[pl.ds(2 * i6 * W5, W5 // 2, 2), :])

    dp4 = lat(c4g, c4r, 2) + upsample(dp5, R5, W5)       # (2*R5*2*W5, C)
    s4 = ssq(dp4)
    dp3 = lat(c3g, c3r, 1) + upsample(dp4, 2 * R5, 2 * W5)
    s3 = ssq(dp3)
    dp2 = lat(c2g, c2r, 0) + upsample(dp3, 4 * R5, 4 * W5)
    s2 = ssq(dp2)

    lane = jax.lax.broadcasted_iota(jnp.int32, (8, 128), 1)
    out_ref[0] = (jnp.where(lane == 0, s2, 0.0)
                  + jnp.where(lane == 1, s3, 0.0)
                  + jnp.where(lane == 2, s4, 0.0)
                  + jnp.where(lane == 3, s5, 0.0)
                  + jnp.where(lane == 4, s6, 0.0))


# ----------------------------------------------------------------------------
# Block-size pickers
# ----------------------------------------------------------------------------

def _pick_block_rows(rows_total, wo, max_unroll=8):
    # R output image-rows per grid step: divides the row count, output block a multiple
    # of 8 sublanes, small in-kernel unroll, and >= 2 grid steps where possible (v7x).
    def ok(r, need_multi):
        return (rows_total % r == 0 and (r * wo) % 8 == 0
                and (not need_multi or rows_total // r >= 2))
    for r in range(min(max_unroll, rows_total), 0, -1):
        if ok(r, True):
            return r
    for r in range(min(max_unroll, rows_total), 0, -1):
        if ok(r, False):
            return r
    return rows_total                     # grid=1, block == full array (always legal)


def _pick_r5(rows5, w5, max_unroll=4):
    # c5 image-rows per FPN block: even (for p6), divides B*Ho5, 8-sublane aligned.
    for r in range(min(max_unroll, rows5), 1, -1):
        if rows5 % r == 0 and r % 2 == 0 and (r * w5) % 8 == 0 and rows5 // r >= 2:
            return r
    for r in range(min(max_unroll, rows5), 1, -1):
        if rows5 % r == 0 and r % 2 == 0 and (r * w5) % 8 == 0:
            return r
    return rows5


# ----------------------------------------------------------------------------
# pallas_call wrappers
# ----------------------------------------------------------------------------

def stem_fused(patches2, w1bd, b1bd, w2, b2, batch, Ho, Wo):
    rows_total = batch * Ho
    R = _pick_block_rows(rows_total, Wo)
    grid = rows_total // R
    return pl.pallas_call(
        functools.partial(_stem_fused_kernel, R=R, Wo=Wo),
        out_shape=jax.ShapeDtypeStruct((rows_total * Wo, C), jnp.bfloat16),
        grid=(grid,),
        in_specs=[pl.BlockSpec((2 * R * Wo, 24), lambda i: (i, 0)),
                  pl.BlockSpec((24, 2 * C), lambda i: (0, 0)),
                  pl.BlockSpec((1, 2 * C), lambda i: (0, 0)),
                  pl.BlockSpec((4 * C, C), lambda i: (0, 0)),
                  pl.BlockSpec((1, C), lambda i: (0, 0))],
        out_specs=pl.BlockSpec((R * Wo, C), lambda i: (i, 0)),
        compiler_params=pltpu.CompilerParams(
            dimension_semantics=("parallel",), vmem_limit_bytes=VMEM_LIMIT),
    )(patches2, w1bd, b1bd, w2, b2)


def conv2x2_dw(x_dw, w, b, batch, Ho, Wo):
    # x_dw: previous layer reshaped to (rows/2, 2C) double-wide (free row-major reshape).
    rows_total = batch * Ho
    R = _pick_block_rows(rows_total, Wo)
    grid = rows_total // R
    return pl.pallas_call(
        functools.partial(_conv2x2_dw_kernel, R=R, Wo=Wo),
        out_shape=jax.ShapeDtypeStruct((rows_total * Wo, C), jnp.bfloat16),
        grid=(grid,),
        in_specs=[pl.BlockSpec((2 * R * Wo, 2 * C), lambda i: (i, 0)),
                  pl.BlockSpec((4 * C, C), lambda i: (0, 0)),
                  pl.BlockSpec((1, C), lambda i: (0, 0))],
        out_specs=pl.BlockSpec((R * Wo, C), lambda i: (i, 0)),
        compiler_params=pltpu.CompilerParams(
            dimension_semantics=("parallel",), vmem_limit_bytes=VMEM_LIMIT),
    )(x_dw, w, b)


def fpn_top_and_loss(c2, c3, c4, c5, lat_w, b, Ho5, Wo5):
    # Returns the five per-level sums of squared (GT - recon) feature errors.
    rows5 = b * Ho5
    R5 = _pick_r5(rows5, Wo5)
    assert rows5 % R5 == 0 and R5 % 2 == 0 and (R5 * Wo5) % 8 == 0
    G = rows5 // R5
    n5b = R5 * Wo5
    n4b, n3b, n2b = 4 * n5b, 16 * n5b, 64 * n5b

    in_specs = []
    for nb in (n2b, n3b, n4b, n5b):          # per level: GT block then recon block
        in_specs.append(pl.BlockSpec((nb, C), lambda i: (i, 0)))
        in_specs.append(pl.BlockSpec((nb, C), lambda i, G=G: (i + G, 0)))
    in_specs.append(pl.BlockSpec((4, C, C), lambda i: (0, 0, 0)))

    out = pl.pallas_call(
        functools.partial(_fpn_loss_kernel, R5=R5, W5=Wo5),
        out_shape=jax.ShapeDtypeStruct((G, 8, 128), jnp.float32),
        grid=(G,),
        in_specs=in_specs,
        out_specs=pl.BlockSpec((1, 8, 128), lambda i: (i, 0, 0)),
        scratch_shapes=[pltpu.VMEM((n2b, C), jnp.float32),        # upsampled fine
                        pltpu.VMEM((n2b // 2, C), jnp.float32),   # h-duplicated coarse
                        pltpu.VMEM((n5b, C), jnp.float32)],       # dp5 (for p6 reads)
        compiler_params=pltpu.CompilerParams(
            dimension_semantics=("parallel",), vmem_limit_bytes=VMEM_LIMIT),
    )(c2, c2, c3, c3, c4, c4, c5, c5, lat_w)
    return out[:, 0, :5].sum(axis=0)          # (5,) partial-sum reduction (tiny, in JAX)


# ----------------------------------------------------------------------------
# Glue: alignment padding
# ----------------------------------------------------------------------------

def _align(xcat, divisor=32):
    # detectron2 Alignment zero-pads the *preprocessed* image.  Preprocessing is folded
    # into the stem weights here, so pad the raw image with pixel_mean/255 instead, which
    # maps to exactly 0 after the folded (*255 - mean).
    b2, c, h, w = xcat.shape
    hp = -(-h // divisor) * divisor
    wp = -(-w // divisor) * divisor
    if hp == h and wp == w:
        return xcat
    bg = jnp.broadcast_to((PIXEL_MEAN_RGB / 255.0).reshape(1, c, 1, 1), (b2, c, hp, wp))
    return jax.lax.dynamic_update_slice(bg, xcat, (0, 0, 0, 0))


# ----------------------------------------------------------------------------
# Frozen surrogate FPN "task net" parameters (deterministic init)
# ----------------------------------------------------------------------------

def init_task_net_params(key):
    def he(k, shape, fan_in):
        return jax.random.normal(k, shape, jnp.float32) * jnp.sqrt(2.0 / fan_in)

    ks = jax.random.split(key, 9)
    # stem1 weight is generated for the flipped (BGR) patch ordering the reference net
    # would see, then its input rows are permuted to RGB order so .flip(1) never touches
    # data; the *255 scale and the pixel-mean subtraction are folded into w1 / b1.
    w1_bgr = he(ks[0], (12, C), 12)
    perm = jnp.array([t * 3 + (2 - c) for t in range(4) for c in range(3)], jnp.int32)
    w1_rgb = w1_bgr[perm]
    mean12 = jnp.tile(PIXEL_MEAN_RGB, 4)                     # (12,), RGB patch order
    b1 = jnp.zeros((C,), jnp.float32)
    b1_fold = (b1 - mean12 @ w1_rgb).reshape(1, C)
    w1_eff = 255.0 * w1_rgb
    w1bd = jnp.zeros((24, 2 * C), jnp.float32)
    w1bd = w1bd.at[:12, :C].set(w1_eff).at[12:, C:].set(w1_eff)

    zeros = lambda: jnp.zeros((1, C), jnp.float32)
    return {
        "stem1_wbd": w1bd.astype(jnp.bfloat16),
        "stem1_bbd": jnp.concatenate([b1_fold, b1_fold], axis=1),          # (1, 2C) f32
        "stem2_w": he(ks[1], (4 * C, C), 4 * C).astype(jnp.bfloat16), "stem2_b": zeros(),
        "c3_w": he(ks[2], (4 * C, C), 4 * C).astype(jnp.bfloat16), "c3_b": zeros(),
        "c4_w": he(ks[3], (4 * C, C), 4 * C).astype(jnp.bfloat16), "c4_b": zeros(),
        "c5_w": he(ks[4], (4 * C, C), 4 * C).astype(jnp.bfloat16), "c5_b": zeros(),
        # lateral 1x1 convs for p2..p5; biases cancel exactly in the GT-recon difference.
        # TODO(synk): the real FPN also has 3x3 output convs (omitted in this surrogate).
        "lat_w": jnp.stack([he(ks[5 + i], (C, C), C)
                            for i in range(4)]).astype(jnp.bfloat16),
    }


# ----------------------------------------------------------------------------
# TaskLoss forward
# ----------------------------------------------------------------------------

def task_loss(x_hat, d, params, train_mode=False):
    # Both branches batched through the frozen net together (GT half first; the GT branch
    # of the reference runs under no_grad - forward values are identical).  Only x_hat is
    # clamped, matching the reference.
    b = d.shape[0]
    xcat = jnp.concatenate([d, jnp.clip(x_hat, 0.0, 1.0)], axis=0)       # (2B, 3, H, W)
    if not train_mode:
        xcat = _align(xcat, 32)
    b2, _, H, W = xcat.shape
    # TODO(synk): this implementation assumes H, W divisible by 64 (even c5 dims) for the
    # flat-row tiling of p6 / the top-down path; the reference only requires divisor 32.
    assert H % 64 == 0 and W % 64 == 0, "H, W must be multiples of 64"

    # TODO(synk): the single remaining plain-JAX layout op - patchify the 3-channel image
    # into non-overlapping 2x2 patches (bf16, lane-sparse 24-wide); could be folded into
    # the stem kernel by reading paired contiguous raw image rows.
    h1, w1 = H // 2, W // 2
    patches = (xcat.reshape(b2, 3, h1, 2, w1, 2)
               .transpose(0, 2, 4, 3, 5, 1)
               .reshape(b2 * h1 * w1, 12).astype(jnp.bfloat16))
    patches2 = patches.reshape(b2 * h1 * (w1 // 2), 24)       # double-wide (free reshape)

    Ho2, Wo2 = h1 // 2, w1 // 2
    c2 = stem_fused(patches2, params["stem1_wbd"], params["stem1_bbd"],
                    params["stem2_w"], params["stem2_b"], b2, Ho2, Wo2)   # stride 4
    Ho3, Wo3 = Ho2 // 2, Wo2 // 2
    c3 = conv2x2_dw(c2.reshape(-1, 2 * C), params["c3_w"], params["c3_b"],
                    b2, Ho3, Wo3)                                          # stride 8
    Ho4, Wo4 = Ho3 // 2, Wo3 // 2
    c4 = conv2x2_dw(c3.reshape(-1, 2 * C), params["c4_w"], params["c4_b"],
                    b2, Ho4, Wo4)                                          # stride 16
    Ho5, Wo5 = Ho4 // 2, Wo4 // 2
    c5 = conv2x2_dw(c4.reshape(-1, 2 * C), params["c5_w"], params["c5_b"],
                    b2, Ho5, Wo5)                                          # stride 32

    sums = fpn_top_and_loss(c2, c3, c4, c5, params["lat_w"], b, Ho5, Wo5)
    numels = jnp.array(
        [b * Ho2 * Wo2 * C, b * Ho3 * Wo3 * C, b * Ho4 * Wo4 * C,
         b * Ho5 * Wo5 * C, b * (Ho5 // 2) * (Wo5 // 2) * C], jnp.float32)
    return 0.2 * jnp.sum(sums / numels)


# ----------------------------------------------------------------------------
# Main
# ----------------------------------------------------------------------------

if __name__ == "__main__":
    key = jax.random.PRNGKey(0)
    k1, k2, k3 = jax.random.split(key, 3)

    B, Cimg, H, W = 2, 3, 64, 64
    d = jax.random.uniform(k1, (B, Cimg, H, W), jnp.float32)                   # GT in [0,1]
    x_hat = jax.random.uniform(k2, (B, Cimg, H, W), jnp.float32) * 1.2 - 0.1   # recon
    params = init_task_net_params(k3)

    loss_fn = jax.jit(functools.partial(task_loss, train_mode=False))
    loss = jax.block_until_ready(loss_fn(x_hat, d, params))

    assert loss.shape == () and bool(jnp.isfinite(loss))
    print("KERNEL_OK")
</pallas_src>

<mosaic_0001>
module attributes {stable_mosaic.version = 11 : i64} {
  func.func @_stem_fused_kernel(%arg0: i32, %arg1: memref<256x24xbf16, #tpu.memory_space<vmem>>, %arg2: memref<24x256xbf16, #tpu.memory_space<vmem>>, %arg3: memref<1x256xf32, #tpu.memory_space<vmem>>, %arg4: memref<512x128xbf16, #tpu.memory_space<vmem>>, %arg5: memref<1x128xf32, #tpu.memory_space<vmem>>, %arg6: memref<128x128xbf16, #tpu.memory_space<vmem>>) attributes {dimension_semantics = [#tpu.dimension_semantics<parallel>], iteration_bounds = array<i64: 8>, scalar_prefetch = 0 : i64, scratch_operands = 0 : i64, tpu.core_type = #tpu.core_type<tc>, window_params = [{transform_indices = @transform_0, window_bounds = array<i64: 256, 24>}, {pipeline_mode = #tpu.pipeline_mode<synchronous>, transform_indices = @transform_1, window_bounds = array<i64: 24, 256>}, {pipeline_mode = #tpu.pipeline_mode<synchronous>, transform_indices = @transform_2, window_bounds = array<i64: 1, 256>}, {pipeline_mode = #tpu.pipeline_mode<synchronous>, transform_indices = @transform_3, window_bounds = array<i64: 512, 128>}, {pipeline_mode = #tpu.pipeline_mode<synchronous>, transform_indices = @transform_4, window_bounds = array<i64: 1, 128>}, {transform_indices = @transform_5, window_bounds = array<i64: 128, 128>}]} {
    %c0 = arith.constant 0 : index
    %c0_0 = arith.constant 0 : index
    %0 = vector.load %arg2[%c0, %c0_0] : memref<24x256xbf16, #tpu.memory_space<vmem>>, vector<24x256xbf16>
    %c0_1 = arith.constant 0 : index
    %c0_2 = arith.constant 0 : index
    %1 = vector.load %arg3[%c0_1, %c0_2] : memref<1x256xf32, #tpu.memory_space<vmem>>, vector<1x256xf32>
    %c0_3 = arith.constant 0 : index
    %c0_4 = arith.constant 0 : index
    %2 = vector.load %arg4[%c0_3, %c0_4] : memref<512x128xbf16, #tpu.memory_space<vmem>>, vector<256x128xbf16>
    %c256 = arith.constant 256 : index
    %c0_5 = arith.constant 0 : index
    %3 = vector.load %arg4[%c256, %c0_5] : memref<512x128xbf16, #tpu.memory_space<vmem>>, vector<256x128xbf16>
    %c0_6 = arith.constant 0 : index
    %c0_7 = arith.constant 0 : index
    %4 = vector.load %arg5[%c0_6, %c0_7] : memref<1x128xf32, #tpu.memory_space<vmem>>, vector<1x128xf32>
    %c0_8 = arith.constant 0 : index
    %c0_9 = arith.constant 0 : index
    %5 = vector.load %arg1[%c0_8, %c0_9] : memref<256x24xbf16, #tpu.memory_space<vmem>>, vector<16x24xbf16>
    %c16 = arith.constant 16 : index
    %c0_10 = arith.constant 0 : index
    %6 = vector.load %arg1[%c16, %c0_10] : memref<256x24xbf16, #tpu.memory_space<vmem>>, vector<16x24xbf16>
    %cst = arith.constant dense<0.000000e+00> : vector<16x256xf32>
    %7 = tpu.matmul %5, %0, %cst {dimension_numbers = #tpu.dot_dimension_numbers<[1], [0], [0], [1], [0, 0, 1, 1], [], []>} : vector<16x24xbf16>, vector<24x256xbf16>, vector<16x256xf32> -> vector<16x256xf32>
    %8 = vector.broadcast %1 : vector<1x256xf32> to vector<16x256xf32>
    %9 = arith.addf %7, %8 : vector<16x256xf32>
    %cst_11 = arith.constant 0.000000e+00 : f32
    %10 = vector.broadcast %cst_11 : f32 to vector<16x256xf32>
    %11 = arith.maximumf %9, %10 : vector<16x256xf32>
    %12 = arith.truncf %11 : vector<16x256xf32> to vector<16x256xbf16>
    %cst_12 = arith.constant dense<0.000000e+00> : vector<16x256xf32>
    %13 = tpu.matmul %6, %0, %cst_12 {dimension_numbers = #tpu.dot_dimension_numbers<[1], [0], [0], [1], [0, 0, 1, 1], [], []>} : vector<16x24xbf16>, vector<24x256xbf16>, vector<16x256xf32> -> vector<16x256xf32>
    %14 = vector.broadcast %1 : vector<1x256xf32> to vector<16x256xf32>
    %15 = arith.addf %13, %14 : vector<16x256xf32>
    %cst_13 = arith.constant 0.000000e+00 : f32
    %16 = vector.broadcast %cst_13 : f32 to vector<16x256xf32>
    %17 = arith.maximumf %15, %16 : vector<16x256xf32>
    %18 = arith.truncf %17 : vector<16x256xf32> to vector<16x256xbf16>
    %cst_14 = arith.constant dense<0.000000e+00> : vector<16x128xf32>
    %19 = tpu.matmul %12, %2, %cst_14 {dimension_numbers = #tpu.dot_dimension_numbers<[1], [0], [0], [1], [0, 0, 1, 1], [], []>} : vector<16x256xbf16>, vector<256x128xbf16>, vector<16x128xf32> -> vector<16x128xf32>
    %cst_15 = arith.constant dense<0.000000e+00> : vector<16x128xf32>
    %20 = tpu.matmul %18, %3, %cst_15 {dimension_numbers = #tpu.dot_dimension_numbers<[1], [0], [0], [1], [0, 0, 1, 1], [], []>} : vector<16x256xbf16>, vector<256x128xbf16>, vector<16x128xf32> -> vector<16x128xf32>
    %21 = arith.addf %19, %20 : vector<16x128xf32>
    %22 = vector.broadcast %4 : vector<1x128xf32> to vector<16x128xf32>
    %23 = arith.addf %21, %22 : vector<16x128xf32>
    %cst_16 = arith.constant 0.000000e+00 : f32
    %24 = vector.broadcast %cst_16 : f32 to vector<16x128xf32>
    %25 = arith.maximumf %23, %24 : vector<16x128xf32>
    %26 = arith.truncf %25 : vector<16x128xf32> to vector<16x128xbf16>
    %c0_17 = arith.constant 0 : index
    %c0_18 = arith.constant 0 : index
    %27 = vector.load %arg6[%c0_17, %c0_18] : memref<128x128xbf16, #tpu.memory_space<vmem>>, vector<16x128xbf16>
    tpu.vector_store %arg6[%c0_17, %c0_18], %26 {strides = array<i32>} : memref<128x128xbf16, #tpu.memory_space<vmem>>, vector<16x128xbf16>,
    %c32 = arith.constant 32 : index
    %c0_19 = arith.constant 0 : index
    %28 = vector.load %arg1[%c32, %c0_19] : memref<256x24xbf16, #tpu.memory_space<vmem>>, vector<16x24xbf16>
    %c48 = arith.constant 48 : index
    %c0_20 = arith.constant 0 : index
    %29 = vector.load %arg1[%c48, %c0_20] : memref<256x24xbf16, #tpu.memory_space<vmem>>, vector<16x24xbf16>
    %cst_21 = arith.constant dense<0.000000e+00> : vector<16x256xf32>
    %30 = tpu.matmul %28, %0, %cst_21 {dimension_numbers = #tpu.dot_dimension_numbers<[1], [0], [0], [1], [0, 0, 1, 1], [], []>} : vector<16x24xbf16>, vector<24x256xbf16>, vector<16x256xf32> -> vector<16x256xf32>
    %31 = vector.broadcast %1 : vector<1x256xf32> to vector<16x256xf32>
    %32 = arith.addf %30, %31 : vector<16x256xf32>
    %cst_22 = arith.constant 0.000000e+00 : f32
    %33 = vector.broadcast %cst_22 : f32 to vector<16x256xf32>
    %34 = arith.maximumf %32, %33 : vector<16x256xf32>
    %35 = arith.truncf %34 : vector<16x256xf32> to vector<16x256xbf16>
    %cst_23 = arith.constant dense<0.000000e+00> : vector<16x256xf32>
    %36 = tpu.matmul %29, %0, %cst_23 {dimension_numbers = #tpu.dot_dimension_numbers<[1], [0], [0], [1], [0, 0, 1, 1], [], []>} : vector<16x24xbf16>, vector<24x256xbf16>, vector<16x256xf32> -> vector<16x256xf32>
    %37 = vector.broadcast %1 : vector<1x256xf32> to vector<16x256xf32>
    %38 = arith.addf %36, %37 : vector<16x256xf32>
    %cst_24 = arith.constant 0.000000e+00 : f32
    %39 = vector.broadcast %cst_24 : f32 to vector<16x256xf32>
    %40 = arith.maximumf %38, %39 : vector<16x256xf32>
    %41 = arith.truncf %40 : vector<16x256xf32> to vector<16x256xbf16>
    %cst_25 = arith.constant dense<0.000000e+00> : vector<16x128xf32>
    %42 = tpu.matmul %35, %2, %cst_25 {dimension_numbers = #tpu.dot_dimension_numbers<[1], [0], [0], [1], [0, 0, 1, 1], [], []>} : vector<16x256xbf16>, vector<256x128xbf16>, vector<16x128xf32> -> vector<16x128xf32>
    %cst_26 = arith.constant dense<0.000000e+00> : vector<16x128xf32>
    %43 = tpu.matmul %41, %3, %cst_26 {dimension_numbers = #tpu.dot_dimension_numbers<[1], [0], [0], [1], [0, 0, 1, 1], [], []>} : vector<16x256xbf16>, vector<256x128xbf16>, vector<16x128xf32> -> vector<16x128xf32>
    %44 = arith.addf %42, %43 : vector<16x128xf32>
    %45 = vector.broadcast %4 : vector<1x128xf32> to vector<16x128xf32>
    %46 = arith.addf %44, %45 : vector<16x128xf32>
    %cst_27 = arith.constant 0.000000e+00 : f32
    %47 = vector.broadcast %cst_27 : f32 to vector<16x128xf32>
    %48 = arith.maximumf %46, %47 : vector<16x128xf32>
    %49 = arith.truncf %48 : vector<16x128xf32> to vector<16x128xbf16>
    %c16_28 = arith.constant 16 : index
    %c0_29 = arith.constant 0 : index
    %50 = vector.load %arg6[%c16_28, %c0_29] : memref<128x128xbf16, #tpu.memory_space<vmem>>, vector<16x128xbf16>
    tpu.vector_store %arg6[%c16_28, %c0_29], %49 {strides = array<i32>} : memref<128x128xbf16, #tpu.memory_space<vmem>>, vector<16x128xbf16>,
    %c64 = arith.constant 64 : index
    %c0_30 = arith.constant 0 : index
    %51 = vector.load %arg1[%c64, %c0_30] : memref<256x24xbf16, #tpu.memory_space<vmem>>, vector<16x24xbf16>
    %c80 = arith.constant 80 : index
    %c0_31 = arith.constant 0 : index
    %52 = vector.load %arg1[%c80, %c0_31] : memref<256x24xbf16, #tpu.memory_space<vmem>>, vector<16x24xbf16>
    %cst_32 = arith.constant dense<0.000000e+00> : vector<16x256xf32>
    %53 = tpu.matmul %51, %0, %cst_32 {dimension_numbers = #tpu.dot_dimension_numbers<[1], [0], [0], [1], [0, 0, 1, 1], [], []>} : vector<16x24xbf16>, vector<24x256xbf16>, vector<16x256xf32> -> vector<16x256xf32>
    %54 = vector.broadcast %1 : vector<1x256xf32> to vector<16x256xf32>
    %55 = arith.addf %53, %54 : vector<16x256xf32>
    %cst_33 = arith.constant 0.000000e+00 : f32
    %56 = vector.broadcast %cst_33 : f32 to vector<16x256xf32>
    %57 = arith.maximumf %55, %56 : vector<16x256xf32>
    %58 = arith.truncf %57 : vector<16x256xf32> to vector<16x256xbf16>
    %cst_34 = arith.constant dense<0.000000e+00> : vector<16x256xf32>
    %59 = tpu.matmul %52, %0, %cst_34 {dimension_numbers = #tpu.dot_dimension_numbers<[1], [0], [0], [1], [0, 0, 1, 1], [], []>} : vector<16x24xbf16>, vector<24x256xbf16>, vector<16x256xf32> -> vector<16x256xf32>
    %60 = vector.broadcast %1 : vector<1x256xf32> to vector<16x256xf32>
    %61 = arith.addf %59, %60 : vector<16x256xf32>
    %cst_35 = arith.constant 0.000000e+00 : f32
    %62 = vector.broadcast %cst_35 : f32 to vector<16x256xf32>
    %63 = arith.maximumf %61, %62 : vector<16x256xf32>
    %64 = arith.truncf %63 : vector<16x256xf32> to vector<16x256xbf16>
    %cst_36 = arith.constant dense<0.000000e+00> : vector<16x128xf32>
    %65 = tpu.matmul %58, %2, %cst_36 {dimension_numbers = #tpu.dot_dimension_numbers<[1], [0], [0], [1], [0, 0, 1, 1], [], []>} : vector<16x256xbf16>, vector<256x128xbf16>, vector<16x128xf32> -> vector<16x128xf32>
    %cst_37 = arith.constant dense<0.000000e+00> : vector<16x128xf32>
    %66 = tpu.matmul %64, %3, %cst_37 {dimension_numbers = #tpu.dot_dimension_numbers<[1], [0], [0], [1], [0, 0, 1, 1], [], []>} : vector<16x256xbf16>, vector<256x128xbf16>, vector<16x128xf32> -> vector<16x128xf32>
    %67 = arith.addf %65, %66 : vector<16x128xf32>
    %68 = vector.broadcast %4 : vector<1x128xf32> to vector<16x128xf32>
    %69 = arith.addf %67, %68 : vector<16x128xf32>
    %cst_38 = arith.constant 0.000000e+00 : f32
    %70 = vector.broadcast %cst_38 : f32 to vector<16x128xf32>
    %71 = arith.maximumf %69, %70 : vector<16x128xf32>
    %72 = arith.truncf %71 : vector<16x128xf32> to vector<16x128xbf16>
    %c32_39 = arith.constant 32 : index
    %c0_40 = arith.constant 0 : index
    %73 = vector.load %arg6[%c32_39, %c0_40] : memref<128x128xbf16, #tpu.memory_space<vmem>>, vector<16x128xbf16>
    tpu.vector_store %arg6[%c32_39, %c0_40], %72 {strides = array<i32>} : memref<128x128xbf16, #tpu.memory_space<vmem>>, vector<16x128xbf16>,
    %c96 = arith.constant 96 : index
    %c0_41 = arith.constant 0 : index
    %74 = vector.load %arg1[%c96, %c0_41] : memref<256x24xbf16, #tpu.memory_space<vmem>>, vector<16x24xbf16>
    %c112 = arith.constant 112 : index
    %c0_42 = arith.constant 0 : index
    %75 = vector.load %arg1[%c112, %c0_42] : memref<256x24xbf16, #tpu.memory_space<vmem>>, vector<16x24xbf16>
    %cst_43 = arith.constant dense<0.000000e+00> : vector<16x256xf32>
    %76 = tpu.matmul %74, %0, %cst_43 {dimension_numbers = #tpu.dot_dimension_numbers<[1], [0], [0], [1], [0, 0, 1, 1], [], []>} : vector<16x24xbf16>, vector<24x256xbf16>, vector<16x256xf32> -> vector<16x256xf32>
    %77 = vector.broadcast %1 : vector<1x256xf32> to vector<16x256xf32>
    %78 = arith.addf %76, %77 : vector<16x256xf32>
    %cst_44 = arith.constant 0.000000e+00 : f32
    %79 = vector.broadcast %cst_44 : f32 to vector<16x256xf32>
    %80 = arith.maximumf %78, %79 : vector<16x256xf32>
    %81 = arith.truncf %80 : vector<16x256xf32> to vector<16x256xbf16>
    %cst_45 = arith.constant dense<0.000000e+00> : vector<16x256xf32>
    %82 = tpu.matmul %75, %0, %cst_45 {dimension_numbers = #tpu.dot_dimension_numbers<[1], [0], [0], [1], [0, 0, 1, 1], [], []>} : vector<16x24xbf16>, vector<24x256xbf16>, vector<16x256xf32> -> vector<16x256xf32>
    %83 = vector.broadcast %1 : vector<1x256xf32> to vector<16x256xf32>
    %84 = arith.addf %82, %83 : vector<16x256xf32>
    %cst_46 = arith.constant 0.000000e+00 : f32
    %85 = vector.broadcast %cst_46 : f32 to vector<16x256xf32>
    %86 = arith.maximumf %84, %85 : vector<16x256xf32>
    %87 = arith.truncf %86 : vector<16x256xf32> to vector<16x256xbf16>
    %cst_47 = arith.constant dense<0.000000e+00> : vector<16x128xf32>
    %88 = tpu.matmul %81, %2, %cst_47 {dimension_numbers = #tpu.dot_dimension_numbers<[1], [0], [0], [1], [0, 0, 1, 1], [], []>} : vector<16x256xbf16>, vector<256x128xbf16>, vector<16x128xf32> -> vector<16x128xf32>
    %cst_48 = arith.constant dense<0.000000e+00> : vector<16x128xf32>
    %89 = tpu.matmul %87, %3, %cst_48 {dimension_numbers = #tpu.dot_dimension_numbers<[1], [0], [0], [1], [0, 0, 1, 1], [], []>} : vector<16x256xbf16>, vector<256x128xbf16>, vector<16x128xf32> -> vector<16x128xf32>
    %90 = arith.addf %88, %89 : vector<16x128xf32>
    %91 = vector.broadcast %4 : vector<1x128xf32> to vector<16x128xf32>
    %92 = arith.addf %90, %91 : vector<16x128xf32>
    %cst_49 = arith.constant 0.000000e+00 : f32
    %93 = vector.broadcast %cst_49 : f32 to vector<16x128xf32>
    %94 = arith.maximumf %92, %93 : vector<16x128xf32>
    %95 = arith.truncf %94 : vector<16x128xf32> to vector<16x128xbf16>
    %c48_50 = arith.constant 48 : index
    %c0_51 = arith.constant 0 : index
    %96 = vector.load %arg6[%c48_50, %c0_51] : memref<128x128xbf16, #tpu.memory_space<vmem>>, vector<16x128xbf16>
    tpu.vector_store %arg6[%c48_50, %c0_51], %95 {strides = array<i32>} : memref<128x128xbf16, #tpu.memory_space<vmem>>, vector<16x128xbf16>,
    %c128 = arith.constant 128 : index
    %c0_52 = arith.constant 0 : index
    %97 = vector.load %arg1[%c128, %c0_52] : memref<256x24xbf16, #tpu.memory_space<vmem>>, vector<16x24xbf16>
    %c144 = arith.constant 144 : index
    %c0_53 = arith.constant 0 : index
    %98 = vector.load %arg1[%c144, %c0_53] : memref<256x24xbf16, #tpu.memory_space<vmem>>, vector<16x24xbf16>
    %cst_54 = arith.constant dense<0.000000e+00> : vector<16x256xf32>
    %99 = tpu.matmul %97, %0, %cst_54 {dimension_numbers = #tpu.dot_dimension_numbers<[1], [0], [0], [1], [0, 0, 1, 1], [], []>} : vector<16x24xbf16>, vector<24x256xbf16>, vector<16x256xf32> -> vector<16x256xf32>
    %100 = vector.broadcast %1 : vector<1x256xf32> to vector<16x256xf32>
    %101 = arith.addf %99, %100 : vector<16x256xf32>
    %cst_55 = arith.constant 0.000000e+00 : f32
    %102 = vector.broadcast %cst_55 : f32 to vector<16x256xf32>
    %103 = arith.maximumf %101, %102 : vector<16x256xf32>
    %104 = arith.truncf %103 : vector<16x256xf32> to vector<16x256xbf16>
    %cst_56 = arith.constant dense<0.000000e+00> : vector<16x256xf32>
    %105 = tpu.matmul %98, %0, %cst_56 {dimension_numbers = #tpu.dot_dimension_numbers<[1], [0], [0], [1], [0, 0, 1, 1], [], []>} : vector<16x24xbf16>, vector<24x256xbf16>, vector<16x256xf32> -> vector<16x256xf32>
    %106 = vector.broadcast %1 : vector<1x256xf32> to vector<16x256xf32>
    %107 = arith.addf %105, %106 : vector<16x256xf32>
    %cst_57 = arith.constant 0.000000e+00 : f32
    %108 = vector.broadcast %cst_57 : f32 to vector<16x256xf32>
    %109 = arith.maximumf %107, %108 : vector<16x256xf32>
    %110 = arith.truncf %109 : vector<16x256xf32> to vector<16x256xbf16>
    %cst_58 = arith.constant dense<0.000000e+00> : vector<16x128xf32>
    %111 = tpu.matmul %104, %2, %cst_58 {dimension_numbers = #tpu.dot_dimension_numbers<[1], [0], [0], [1], [0, 0, 1, 1], [], []>} : vector<16x256xbf16>, vector<256x128xbf16>, vector<16x128xf32> -> vector<16x128xf32>
    %cst_59 = arith.constant dense<0.000000e+00> : vector<16x128xf32>
    %112 = tpu.matmul %110, %3, %cst_59 {dimension_numbers = #tpu.dot_dimension_numbers<[1], [0], [0], [1], [0, 0, 1, 1], [], []>} : vector<16x256xbf16>, vector<256x128xbf16>, vector<16x128xf32> -> vector<16x128xf32>
    %113 = arith.addf %111, %112 : vector<16x128xf32>
    %114 = vector.broadcast %4 : vector<1x128xf32> to vector<16x128xf32>
    %115 = arith.addf %113, %114 : vector<16x128xf32>
    %cst_60 = arith.constant 0.000000e+00 : f32
    %116 = vector.broadcast %cst_60 : f32 to vector<16x128xf32>
    %117 = arith.maximumf %115, %116 : vector<16x128xf32>
    %118 = arith.truncf %117 : vector<16x128xf32> to vector<16x128xbf16>
    %c64_61 = arith.constant 64 : index
    %c0_62 = arith.constant 0 : index
    %119 = vector.load %arg6[%c64_61, %c0_62] : memref<128x128xbf16, #tpu.memory_space<vmem>>, vector<16x128xbf16>
    tpu.vector_store %arg6[%c64_61, %c0_62], %118 {strides = array<i32>} : memref<128x128xbf16, #tpu.memory_space<vmem>>, vector<16x128xbf16>,
    %c160 = arith.constant 160 : index
    %c0_63 = arith.constant 0 : index
    %120 = vector.load %arg1[%c160, %c0_63] : memref<256x24xbf16, #tpu.memory_space<vmem>>, vector<16x24xbf16>
    %c176 = arith.constant 176 : index
    %c0_64 = arith.constant 0 : index
    %121 = vector.load %arg1[%c176, %c0_64] : memref<256x24xbf16, #tpu.memory_space<vmem>>, vector<16x24xbf16>
    %cst_65 = arith.constant dense<0.000000e+00> : vector<16x256xf32>
    %122 = tpu.matmul %120, %0, %cst_65 {dimension_numbers = #tpu.dot_dimension_numbers<[1], [0], [0], [1], [0, 0, 1, 1], [], []>} : vector<16x24xbf16>, vector<24x256xbf16>, vector<16x256xf32> -> vector<16x256xf32>
    %123 = vector.broadcast %1 : vector<1x256xf32> to vector<16x256xf32>
    %124 = arith.addf %122, %123 : vector<16x256xf32>
    %cst_66 = arith.constant 0.000000e+00 : f32
    %125 = vector.broadcast %cst_66 : f32 to vector<16x256xf32>
    %126 = arith.maximumf %124, %125 : vector<16x256xf32>
    %127 = arith.truncf %126 : vector<16x256xf32> to vector<16x256xbf16>
    %cst_67 = arith.constant dense<0.000000e+00> : vector<16x256xf32>
    %128 = tpu.matmul %121, %0, %cst_67 {dimension_numbers = #tpu.dot_dimension_numbers<[1], [0], [0], [1], [0, 0, 1, 1], [], []>} : vector<16x24xbf16>, vector<24x256xbf16>, vector<16x256xf32> -> vector<16x256xf32>
    %129 = vector.broadcast %1 : vector<1x256xf32> to vector<16x256xf32>
    %130 = arith.addf %128, %129 : vector<16x256xf32>
    %cst_68 = arith.constant 0.000000e+00 : f32
    %131 = vector.broadcast %cst_68 : f32 to vector<16x256xf32>
    %132 = arith.maximumf %130, %131 : vector<16x256xf32>
    %133 = arith.truncf %132 : vector<16x256xf32> to vector<16x256xbf16>
    %cst_69 = arith.constant dense<0.000000e+00> : vector<16x128xf32>
    %134 = tpu.matmul %127, %2, %cst_69 {dimension_numbers = #tpu.dot_dimension_numbers<[1], [0], [0], [1], [0, 0, 1, 1], [], []>} : vector<16x256xbf16>, vector<256x128xbf16>, vector<16x128xf32> -> vector<16x128xf32>
    %cst_70 = arith.constant dense<0.000000e+00> : vector<16x128xf32>
    %135 = tpu.matmul %133, %3, %cst_70 {dimension_numbers = #tpu.dot_dimension_numbers<[1], [0], [0], [1], [0, 0, 1, 1], [], []>} : vector<16x256xbf16>, vector<256x128xbf16>, vector<16x128xf32> -> vector<16x128xf32>
    %136 = arith.addf %134, %135 : vector<16x128xf32>
    %137 = vector.broadcast %4 : vector<1x128xf32> to vector<16x128xf32>
    %138 = arith.addf %136, %137 : vector<16x128xf32>
    %cst_71 = arith.constant 0.000000e+00 : f32
    %139 = vector.broadcast %cst_71 : f32 to vector<16x128xf32>
    %140 = arith.maximumf %138, %139 : vector<16x128xf32>
    %141 = arith.truncf %140 : vector<16x128xf32> to vector<16x128xbf16>
    %c80_72 = arith.constant 80 : index
    %c0_73 = arith.constant 0 : index
    %142 = vector.load %arg6[%c80_72, %c0_73] : memref<128x128xbf16, #tpu.memory_space<vmem>>, vector<16x128xbf16>
    tpu.vector_store %arg6[%c80_72, %c0_73], %141 {strides = array<i32>} : memref<128x128xbf16, #tpu.memory_space<vmem>>, vector<16x128xbf16>,
    %c192 = arith.constant 192 : index
    %c0_74 = arith.constant 0 : index
    %143 = vector.load %arg1[%c192, %c0_74] : memref<256x24xbf16, #tpu.memory_space<vmem>>, vector<16x24xbf16>
    %c208 = arith.constant 208 : index
    %c0_75 = arith.constant 0 : index
    %144 = vector.load %arg1[%c208, %c0_75] : memref<256x24xbf16, #tpu.memory_space<vmem>>, vector<16x24xbf16>
    %cst_76 = arith.constant dense<0.000000e+00> : vector<16x256xf32>
    %145 = tpu.matmul %143, %0, %cst_76 {dimension_numbers = #tpu.dot_dimension_numbers<[1], [0], [0], [1], [0, 0, 1, 1], [], []>} : vector<16x24xbf16>, vector<24x256xbf16>, vector<16x256xf32> -> vector<16x256xf32>
    %146 = vector.broadcast %1 : vector<1x256xf32> to vector<16x256xf32>
    %147 = arith.addf %145, %146 : vector<16x256xf32>
    %cst_77 = arith.constant 0.000000e+00 : f32
    %148 = vector.broadcast %cst_77 : f32 to vector<16x256xf32>
    %149 = arith.maximumf %147, %148 : vector<16x256xf32>
    %150 = arith.truncf %149 : vector<16x256xf32> to vector<16x256xbf16>
    %cst_78 = arith.constant dense<0.000000e+00> : vector<16x256xf32>
    %151 = tpu.matmul %144, %0, %cst_78 {dimension_numbers = #tpu.dot_dimension_numbers<[1], [0], [0], [1], [0, 0, 1, 1], [], []>} : vector<16x24xbf16>, vector<24x256xbf16>, vector<16x256xf32> -> vector<16x256xf32>
    %152 = vector.broadcast %1 : vector<1x256xf32> to vector<16x256xf32>
    %153 = arith.addf %151, %152 : vector<16x256xf32>
    %cst_79 = arith.constant 0.000000e+00 : f32
    %154 = vector.broadcast %cst_79 : f32 to vector<16x256xf32>
    %155 = arith.maximumf %153, %154 : vector<16x256xf32>
    %156 = arith.truncf %155 : vector<16x256xf32> to vector<16x256xbf16>
    %cst_80 = arith.constant dense<0.000000e+00> : vector<16x128xf32>
    %157 = tpu.matmul %150, %2, %cst_80 {dimension_numbers = #tpu.dot_dimension_numbers<[1], [0], [0], [1], [0, 0, 1, 1], [], []>} : vector<16x256xbf16>, vector<256x128xbf16>, vector<16x128xf32> -> vector<16x128xf32>
    %cst_81 = arith.constant dense<0.000000e+00> : vector<16x128xf32>
    %158 = tpu.matmul %156, %3, %cst_81 {dimension_numbers = #tpu.dot_dimension_numbers<[1], [0], [0], [1], [0, 0, 1, 1], [], []>} : vector<16x256xbf16>, vector<256x128xbf16>, vector<16x128xf32> -> vector<16x128xf32>
    %159 = arith.addf %157, %158 : vector<16x128xf32>
    %160 = vector.broadcast %4 : vector<1x128xf32> to vector<16x128xf32>
    %161 = arith.addf %159, %160 : vector<16x128xf32>
    %cst_82 = arith.constant 0.000000e+00 : f32
    %162 = vector.broadcast %cst_82 : f32 to vector<16x128xf32>
    %163 = arith.maximumf %161, %162 : vector<16x128xf32>
    %164 = arith.truncf %163 : vector<16x128xf32> to vector<16x128xbf16>
    %c96_83 = arith.constant 96 : index
    %c0_84 = arith.constant 0 : index
    %165 = vector.load %arg6[%c96_83, %c0_84] : memref<128x128xbf16, #tpu.memory_space<vmem>>, vector<16x128xbf16>
    tpu.vector_store %arg6[%c96_83, %c0_84], %164 {strides = array<i32>} : memref<128x128xbf16, #tpu.memory_space<vmem>>, vector<16x128xbf16>,
    %c224 = arith.constant 224 : index
    %c0_85 = arith.constant 0 : index
    %166 = vector.load %arg1[%c224, %c0_85] : memref<256x24xbf16, #tpu.memory_space<vmem>>, vector<16x24xbf16>
    %c240 = arith.constant 240 : index
    %c0_86 = arith.constant 0 : index
    %167 = vector.load %arg1[%c240, %c0_86] : memref<256x24xbf16, #tpu.memory_space<vmem>>, vector<16x24xbf16>
    %cst_87 = arith.constant dense<0.000000e+00> : vector<16x256xf32>
    %168 = tpu.matmul %166, %0, %cst_87 {dimension_numbers = #tpu.dot_dimension_numbers<[1], [0], [0], [1], [0, 0, 1, 1], [], []>} : vector<16x24xbf16>, vector<24x256xbf16>, vector<16x256xf32> -> vector<16x256xf32>
    %169 = vector.broadcast %1 : vector<1x256xf32> to vector<16x256xf32>
    %170 = arith.addf %168, %169 : vector<16x256xf32>
    %cst_88 = arith.constant 0.000000e+00 : f32
    %171 = vector.broadcast %cst_88 : f32 to vector<16x256xf32>
    %172 = arith.maximumf %170, %171 : vector<16x256xf32>
    %173 = arith.truncf %172 : vector<16x256xf32> to vector<16x256xbf16>
    %cst_89 = arith.constant dense<0.000000e+00> : vector<16x256xf32>
    %174 = tpu.matmul %167, %0, %cst_89 {dimension_numbers = #tpu.dot_dimension_numbers<[1], [0], [0], [1], [0, 0, 1, 1], [], []>} : vector<16x24xbf16>, vector<24x256xbf16>, vector<16x256xf32> -> vector<16x256xf32>
    %175 = vector.broadcast %1 : vector<1x256xf32> to vector<16x256xf32>
    %176 = arith.addf %174, %175 : vector<16x256xf32>
    %cst_90 = arith.constant 0.000000e+00 : f32
    %177 = vector.broadcast %cst_90 : f32 to vector<16x256xf32>
    %178 = arith.maximumf %176, %177 : vector<16x256xf32>
    %179 = arith.truncf %178 : vector<16x256xf32> to vector<16x256xbf16>
    %cst_91 = arith.constant dense<0.000000e+00> : vector<16x128xf32>
    %180 = tpu.matmul %173, %2, %cst_91 {dimension_numbers = #tpu.dot_dimension_numbers<[1], [0], [0], [1], [0, 0, 1, 1], [], []>} : vector<16x256xbf16>, vector<256x128xbf16>, vector<16x128xf32> -> vector<16x128xf32>
    %cst_92 = arith.constant dense<0.000000e+00> : vector<16x128xf32>
    %181 = tpu.matmul %179, %3, %cst_92 {dimension_numbers = #tpu.dot_dimension_numbers<[1], [0], [0], [1], [0, 0, 1, 1], [], []>} : vector<16x256xbf16>, vector<256x128xbf16>, vector<16x128xf32> -> vector<16x128xf32>
    %182 = arith.addf %180, %181 : vector<16x128xf32>
    %183 = vector.broadcast %4 : vector<1x128xf32> to vector<16x128xf32>
    %184 = arith.addf %182, %183 : vector<16x128xf32>
    %cst_93 = arith.constant 0.000000e+00 : f32
    %185 = vector.broadcast %cst_93 : f32 to vector<16x128xf32>
    %186 = arith.maximumf %184, %185 : vector<16x128xf32>
    %187 = arith.truncf %186 : vector<16x128xf32> to vector<16x128xbf16>
    %c112_94 = arith.constant 112 : index
    %c0_95 = arith.constant 0 : index
    %188 = vector.load %arg6[%c112_94, %c0_95] : memref<128x128xbf16, #tpu.memory_space<vmem>>, vector<16x128xbf16>
    tpu.vector_store %arg6[%c112_94, %c0_95], %187 {strides = array<i32>} : memref<128x128xbf16, #tpu.memory_space<vmem>>, vector<16x128xbf16>,
    return
  }
  func.func @transform_0(%arg0: i32) -> (i32, i32) {
    %c0_i32 = arith.constant 0 : i32
    %c0_i32_0 = arith.constant 0 : i32
    return %arg0, %c0_i32 : i32, i32
  }
  func.func @transform_1(%arg0: i32) -> (i32, i32) {
    %c0_i32 = arith.constant 0 : i32
    %c0_i32_0 = arith.constant 0 : i32
    %c0_i32_1 = arith.constant 0 : i32
    return %c0_i32, %c0_i32_0 : i32, i32
  }
  func.func @transform_2(%arg0: i32) -> (i32, i32) {
    %c0_i32 = arith.constant 0 : i32
    %c0_i32_0 = arith.constant 0 : i32
    %c0_i32_1 = arith.constant 0 : i32
    return %c0_i32, %c0_i32_0 : i32, i32
  }
  func.func @transform_3(%arg0: i32) -> (i32, i32) {
    %c0_i32 = arith.constant 0 : i32
    %c0_i32_0 = arith.constant 0 : i32
    %c0_i32_1 = arith.constant 0 : i32
    return %c0_i32, %c0_i32_0 : i32, i32
  }
  func.func @transform_4(%arg0: i32) -> (i32, i32) {
    %c0_i32 = arith.constant 0 : i32
    %c0_i32_0 = arith.constant 0 : i32
    %c0_i32_1 = arith.constant 0 : i32
    return %c0_i32, %c0_i32_0 : i32, i32
  }
  func.func @transform_5(%arg0: i32) -> (i32, i32) {
    %c0_i32 = arith.constant 0 : i32
    %c0_i32_0 = arith.constant 0 : i32
    return %arg0, %c0_i32 : i32, i32
  }
}

module attributes {stable_mosaic.version = 11 : i64} {
  func.func @_conv2x2_dw_kernel(%arg0: i32, %arg1: memref<128x256xbf16, #tpu.memory_space<vmem>>, %arg2: memref<512x128xbf16, #tpu.memory_space<vmem>>, %arg3: memref<1x128xf32, #tpu.memory_space<vmem>>, %arg4: memref<64x128xbf16, #tpu.memory_space<vmem>>) attributes {dimension_semantics = [#tpu.dimension_semantics<parallel>], iteration_bounds = array<i64: 4>, scalar_prefetch = 0 : i64, scratch_operands = 0 : i64, tpu.core_type = #tpu.core_type<tc>, window_params = [{transform_indices = @transform_0, window_bounds = array<i64: 128, 256>}, {pipeline_mode = #tpu.pipeline_mode<synchronous>, transform_indices = @transform_1, window_bounds = array<i64: 512, 128>}, {pipeline_mode = #tpu.pipeline_mode<synchronous>, transform_indices = @transform_2, window_bounds = array<i64: 1, 128>}, {transform_indices = @transform_3, window_bounds = array<i64: 64, 128>}]} {
    %c0 = arith.constant 0 : index
    %c0_0 = arith.constant 0 : index
    %0 = vector.load %arg2[%c0, %c0_0] : memref<512x128xbf16, #tpu.memory_space<vmem>>, vector<256x128xbf16>
    %c256 = arith.constant 256 : index
    %c0_1 = arith.constant 0 : index
    %1 = vector.load %arg2[%c256, %c0_1] : memref<512x128xbf16, #tpu.memory_space<vmem>>, vector<256x128xbf16>
    %c0_2 = arith.constant 0 : index
    %c0_3 = arith.constant 0 : index
    %2 = vector.load %arg3[%c0_2, %c0_3] : memref<1x128xf32, #tpu.memory_space<vmem>>, vector<1x128xf32>
    %c0_4 = arith.constant 0 : index
    %c0_5 = arith.constant 0 : index
    %3 = vector.load %arg1[%c0_4, %c0_5] : memref<128x256xbf16, #tpu.memory_space<vmem>>, vector<8x256xbf16>
    %c8 = arith.constant 8 : index
    %c0_6 = arith.constant 0 : index
    %4 = vector.load %arg1[%c8, %c0_6] : memref<128x256xbf16, #tpu.memory_space<vmem>>, vector<8x256xbf16>
    %cst = arith.constant dense<0.000000e+00> : vector<8x128xf32>
    %5 = tpu.matmul %3, %0, %cst {dimension_numbers = #tpu.dot_dimension_numbers<[1], [0], [0], [1], [0, 0, 1, 1], [], []>} : vector<8x256xbf16>, vector<256x128xbf16>, vector<8x128xf32> -> vector<8x128xf32>
    %cst_7 = arith.constant dense<0.000000e+00> : vector<8x128xf32>
    %6 = tpu.matmul %4, %1, %cst_7 {dimension_numbers = #tpu.dot_dimension_numbers<[1], [0], [0], [1], [0, 0, 1, 1], [], []>} : vector<8x256xbf16>, vector<256x128xbf16>, vector<8x128xf32> -> vector<8x128xf32>
    %7 = arith.addf %5, %6 : vector<8x128xf32>
    %8 = vector.broadcast %2 : vector<1x128xf32> to vector<8x128xf32>
    %9 = arith.addf %7, %8 : vector<8x128xf32>
    %cst_8 = arith.constant 0.000000e+00 : f32
    %10 = vector.broadcast %cst_8 : f32 to vector<8x128xf32>
    %11 = arith.maximumf %9, %10 : vector<8x128xf32>
    %12 = arith.truncf %11 : vector<8x128xf32> to vector<8x128xbf16>
    %c0_9 = arith.constant 0 : index
    %c0_10 = arith.constant 0 : index
    %13 = vector.load %arg4[%c0_9, %c0_10] : memref<64x128xbf16, #tpu.memory_space<vmem>>, vector<8x128xbf16>
    tpu.vector_store %arg4[%c0_9, %c0_10], %12 {strides = array<i32>} : memref<64x128xbf16, #tpu.memory_space<vmem>>, vector<8x128xbf16>,
    %c16 = arith.constant 16 : index
    %c0_11 = arith.constant 0 : index
    %14 = vector.load %arg1[%c16, %c0_11] : memref<128x256xbf16, #tpu.memory_space<vmem>>, vector<8x256xbf16>
    %c24 = arith.constant 24 : index
    %c0_12 = arith.constant 0 : index
    %15 = vector.load %arg1[%c24, %c0_12] : memref<128x256xbf16, #tpu.memory_space<vmem>>, vector<8x256xbf16>
    %cst_13 = arith.constant dense<0.000000e+00> : vector<8x128xf32>
    %16 = tpu.matmul %14, %0, %cst_13 {dimension_numbers = #tpu.dot_dimension_numbers<[1], [0], [0], [1], [0, 0, 1, 1], [], []>} : vector<8x256xbf16>, vector<256x128xbf16>, vector<8x128xf32> -> vector<8x128xf32>
    %cst_14 = arith.constant dense<0.000000e+00> : vector<8x128xf32>
    %17 = tpu.matmul %15, %1, %cst_14 {dimension_numbers = #tpu.dot_dimension_numbers<[1], [0], [0], [1], [0, 0, 1, 1], [], []>} : vector<8x256xbf16>, vector<256x128xbf16>, vector<8x128xf32> -> vector<8x128xf32>
    %18 = arith.addf %16, %17 : vector<8x128xf32>
    %19 = vector.broadcast %2 : vector<1x128xf32> to vector<8x128xf32>
    %20 = arith.addf %18, %19 : vector<8x128xf32>
    %cst_15 = arith.constant 0.000000e+00 : f32
    %21 = vector.broadcast %cst_15 : f32 to vector<8x128xf32>
    %22 = arith.maximumf %20, %21 : vector<8x128xf32>
    %23 = arith.truncf %22 : vector<8x128xf32> to vector<8x128xbf16>
    %c8_16 = arith.constant 8 : index
    %c0_17 = arith.constant 0 : index
    %24 = vector.load %arg4[%c8_16, %c0_17] : memref<64x128xbf16, #tpu.memory_space<vmem>>, vector<8x128xbf16>
    tpu.vector_store %arg4[%c8_16, %c0_17], %23 {strides = array<i32>} : memref<64x128xbf16, #tpu.memory_space<vmem>>, vector<8x128xbf16>,
    %c32 = arith.constant 32 : index
    %c0_18 = arith.constant 0 : index
    %25 = vector.load %arg1[%c32, %c0_18] : memref<128x256xbf16, #tpu.memory_space<vmem>>, vector<8x256xbf16>
    %c40 = arith.constant 40 : index
    %c0_19 = arith.constant 0 : index
    %26 = vector.load %arg1[%c40, %c0_19] : memref<128x256xbf16, #tpu.memory_space<vmem>>, vector<8x256xbf16>
    %cst_20 = arith.constant dense<0.000000e+00> : vector<8x128xf32>
    %27 = tpu.matmul %25, %0, %cst_20 {dimension_numbers = #tpu.dot_dimension_numbers<[1], [0], [0], [1], [0, 0, 1, 1], [], []>} : vector<8x256xbf16>, vector<256x128xbf16>, vector<8x128xf32> -> vector<8x128xf32>
    %cst_21 = arith.constant dense<0.000000e+00> : vector<8x128xf32>
    %28 = tpu.matmul %26, %1, %cst_21 {dimension_numbers = #tpu.dot_dimension_numbers<[1], [0], [0], [1], [0, 0, 1, 1], [], []>} : vector<8x256xbf16>, vector<256x128xbf16>, vector<8x128xf32> -> vector<8x128xf32>
    %29 = arith.addf %27, %28 : vector<8x128xf32>
    %30 = vector.broadcast %2 : vector<1x128xf32> to vector<8x128xf32>
    %31 = arith.addf %29, %30 : vector<8x128xf32>
    %cst_22 = arith.constant 0.000000e+00 : f32
    %32 = vector.broadcast %cst_22 : f32 to vector<8x128xf32>
    %33 = arith.maximumf %31, %32 : vector<8x128xf32>
    %34 = arith.truncf %33 : vector<8x128xf32> to vector<8x128xbf16>
    %c16_23 = arith.constant 16 : index
    %c0_24 = arith.constant 0 : index
    %35 = vector.load %arg4[%c16_23, %c0_24] : memref<64x128xbf16, #tpu.memory_space<vmem>>, vector<8x128xbf16>
    tpu.vector_store %arg4[%c16_23, %c0_24], %34 {strides = array<i32>} : memref<64x128xbf16, #tpu.memory_space<vmem>>, vector<8x128xbf16>,
    %c48 = arith.constant 48 : index
    %c0_25 = arith.constant 0 : index
    %36 = vector.load %arg1[%c48, %c0_25] : memref<128x256xbf16, #tpu.memory_space<vmem>>, vector<8x256xbf16>
    %c56 = arith.constant 56 : index
    %c0_26 = arith.constant 0 : index
    %37 = vector.load %arg1[%c56, %c0_26] : memref<128x256xbf16, #tpu.memory_space<vmem>>, vector<8x256xbf16>
    %cst_27 = arith.constant dense<0.000000e+00> : vector<8x128xf32>
    %38 = tpu.matmul %36, %0, %cst_27 {dimension_numbers = #tpu.dot_dimension_numbers<[1], [0], [0], [1], [0, 0, 1, 1], [], []>} : vector<8x256xbf16>, vector<256x128xbf16>, vector<8x128xf32> -> vector<8x128xf32>
    %cst_28 = arith.constant dense<0.000000e+00> : vector<8x128xf32>
    %39 = tpu.matmul %37, %1, %cst_28 {dimension_numbers = #tpu.dot_dimension_numbers<[1], [0], [0], [1], [0, 0, 1, 1], [], []>} : vector<8x256xbf16>, vector<256x128xbf16>, vector<8x128xf32> -> vector<8x128xf32>
    %40 = arith.addf %38, %39 : vector<8x128xf32>
    %41 = vector.broadcast %2 : vector<1x128xf32> to vector<8x128xf32>
    %42 = arith.addf %40, %41 : vector<8x128xf32>
    %cst_29 = arith.constant 0.000000e+00 : f32
    %43 = vector.broadcast %cst_29 : f32 to vector<8x128xf32>
    %44 = arith.maximumf %42, %43 : vector<8x128xf32>
    %45 = arith.truncf %44 : vector<8x128xf32> to vector<8x128xbf16>
    %c24_30 = arith.constant 24 : index
    %c0_31 = arith.constant 0 : index
    %46 = vector.load %arg4[%c24_30, %c0_31] : memref<64x128xbf16, #tpu.memory_space<vmem>>, vector<8x128xbf16>
    tpu.vector_store %arg4[%c24_30, %c0_31], %45 {strides = array<i32>} : memref<64x128xbf16, #tpu.memory_space<vmem>>, vector<8x128xbf16>,
    %c64 = arith.constant 64 : index
    %c0_32 = arith.constant 0 : index
    %47 = vector.load %arg1[%c64, %c0_32] : memref<128x256xbf16, #tpu.memory_space<vmem>>, vector<8x256xbf16>
    %c72 = arith.constant 72 : index
    %c0_33 = arith.constant 0 : index
    %48 = vector.load %arg1[%c72, %c0_33] : memref<128x256xbf16, #tpu.memory_space<vmem>>, vector<8x256xbf16>
    %cst_34 = arith.constant dense<0.000000e+00> : vector<8x128xf32>
    %49 = tpu.matmul %47, %0, %cst_34 {dimension_numbers = #tpu.dot_dimension_numbers<[1], [0], [0], [1], [0, 0, 1, 1], [], []>} : vector<8x256xbf16>, vector<256x128xbf16>, vector<8x128xf32> -> vector<8x128xf32>
    %cst_35 = arith.constant dense<0.000000e+00> : vector<8x128xf32>
    %50 = tpu.matmul %48, %1, %cst_35 {dimension_numbers = #tpu.dot_dimension_numbers<[1], [0], [0], [1], [0, 0, 1, 1], [], []>} : vector<8x256xbf16>, vector<256x128xbf16>, vector<8x128xf32> -> vector<8x128xf32>
    %51 = arith.addf %49, %50 : vector<8x128xf32>
    %52 = vector.broadcast %2 : vector<1x128xf32> to vector<8x128xf32>
    %53 = arith.addf %51, %52 : vector<8x128xf32>
    %cst_36 = arith.constant 0.000000e+00 : f32
    %54 = vector.broadcast %cst_36 : f32 to vector<8x128xf32>
    %55 = arith.maximumf %53, %54 : vector<8x128xf32>
    %56 = arith.truncf %55 : vector<8x128xf32> to vector<8x128xbf16>
    %c32_37 = arith.constant 32 : index
    %c0_38 = arith.constant 0 : index
    %57 = vector.load %arg4[%c32_37, %c0_38] : memref<64x128xbf16, #tpu.memory_space<vmem>>, vector<8x128xbf16>
    tpu.vector_store %arg4[%c32_37, %c0_38], %56 {strides = array<i32>} : memref<64x128xbf16, #tpu.memory_space<vmem>>, vector<8x128xbf16>,
    %c80 = arith.constant 80 : index
    %c0_39 = arith.constant 0 : index
    %58 = vector.load %arg1[%c80, %c0_39] : memref<128x256xbf16, #tpu.memory_space<vmem>>, vector<8x256xbf16>
    %c88 = arith.constant 88 : index
    %c0_40 = arith.constant 0 : index
    %59 = vector.load %arg1[%c88, %c0_40] : memref<128x256xbf16, #tpu.memory_space<vmem>>, vector<8x256xbf16>
    %cst_41 = arith.constant dense<0.000000e+00> : vector<8x128xf32>
    %60 = tpu.matmul %58, %0, %cst_41 {dimension_numbers = #tpu.dot_dimension_numbers<[1], [0], [0], [1], [0, 0, 1, 1], [], []>} : vector<8x256xbf16>, vector<256x128xbf16>, vector<8x128xf32> -> vector<8x128xf32>
    %cst_42 = arith.constant dense<0.000000e+00> : vector<8x128xf32>
    %61 = tpu.matmul %59, %1, %cst_42 {dimension_numbers = #tpu.dot_dimension_numbers<[1], [0], [0], [1], [0, 0, 1, 1], [], []>} : vector<8x256xbf16>, vector<256x128xbf16>, vector<8x128xf32> -> vector<8x128xf32>
    %62 = arith.addf %60, %61 : vector<8x128xf32>
    %63 = vector.broadcast %2 : vector<1x128xf32> to vector<8x128xf32>
    %64 = arith.addf %62, %63 : vector<8x128xf32>
    %cst_43 = arith.constant 0.000000e+00 : f32
    %65 = vector.broadcast %cst_43 : f32 to vector<8x128xf32>
    %66 = arith.maximumf %64, %65 : vector<8x128xf32>
    %67 = arith.truncf %66 : vector<8x128xf32> to vector<8x128xbf16>
    %c40_44 = arith.constant 40 : index
    %c0_45 = arith.constant 0 : index
    %68 = vector.load %arg4[%c40_44, %c0_45] : memref<64x128xbf16, #tpu.memory_space<vmem>>, vector<8x128xbf16>
    tpu.vector_store %arg4[%c40_44, %c0_45], %67 {strides = array<i32>} : memref<64x128xbf16, #tpu.memory_space<vmem>>, vector<8x128xbf16>,
    %c96 = arith.constant 96 : index
    %c0_46 = arith.constant 0 : index
    %69 = vector.load %arg1[%c96, %c0_46] : memref<128x256xbf16, #tpu.memory_space<vmem>>, vector<8x256xbf16>
    %c104 = arith.constant 104 : index
    %c0_47 = arith.constant 0 : index
    %70 = vector.load %arg1[%c104, %c0_47] : memref<128x256xbf16, #tpu.memory_space<vmem>>, vector<8x256xbf16>
    %cst_48 = arith.constant dense<0.000000e+00> : vector<8x128xf32>
    %71 = tpu.matmul %69, %0, %cst_48 {dimension_numbers = #tpu.dot_dimension_numbers<[1], [0], [0], [1], [0, 0, 1, 1], [], []>} : vector<8x256xbf16>, vector<256x128xbf16>, vector<8x128xf32> -> vector<8x128xf32>
    %cst_49 = arith.constant dense<0.000000e+00> : vector<8x128xf32>
    %72 = tpu.matmul %70, %1, %cst_49 {dimension_numbers = #tpu.dot_dimension_numbers<[1], [0], [0], [1], [0, 0, 1, 1], [], []>} : vector<8x256xbf16>, vector<256x128xbf16>, vector<8x128xf32> -> vector<8x128xf32>
    %73 = arith.addf %71, %72 : vector<8x128xf32>
    %74 = vector.broadcast %2 : vector<1x128xf32> to vector<8x128xf32>
    %75 = arith.addf %73, %74 : vector<8x128xf32>
    %cst_50 = arith.constant 0.000000e+00 : f32
    %76 = vector.broadcast %cst_50 : f32 to vector<8x128xf32>
    %77 = arith.maximumf %75, %76 : vector<8x128xf32>
    %78 = arith.truncf %77 : vector<8x128xf32> to vector<8x128xbf16>
    %c48_51 = arith.constant 48 : index
    %c0_52 = arith.constant 0 : index
    %79 = vector.load %arg4[%c48_51, %c0_52] : memref<64x128xbf16, #tpu.memory_space<vmem>>, vector<8x128xbf16>
    tpu.vector_store %arg4[%c48_51, %c0_52], %78 {strides = array<i32>} : memref<64x128xbf16, #tpu.memory_space<vmem>>, vector<8x128xbf16>,
    %c112 = arith.constant 112 : index
    %c0_53 = arith.constant 0 : index
    %80 = vector.load %arg1[%c112, %c0_53] : memref<128x256xbf16, #tpu.memory_space<vmem>>, vector<8x256xbf16>
    %c120 = arith.constant 120 : index
    %c0_54 = arith.constant 0 : index
    %81 = vector.load %arg1[%c120, %c0_54] : memref<128x256xbf16, #tpu.memory_space<vmem>>, vector<8x256xbf16>
    %cst_55 = arith.constant dense<0.000000e+00> : vector<8x128xf32>
    %82 = tpu.matmul %80, %0, %cst_55 {dimension_numbers = #tpu.dot_dimension_numbers<[1], [0], [0], [1], [0, 0, 1, 1], [], []>} : vector<8x256xbf16>, vector<256x128xbf16>, vector<8x128xf32> -> vector<8x128xf32>
    %cst_56 = arith.constant dense<0.000000e+00> : vector<8x128xf32>
    %83 = tpu.matmul %81, %1, %cst_56 {dimension_numbers = #tpu.dot_dimension_numbers<[1], [0], [0], [1], [0, 0, 1, 1], [], []>} : vector<8x256xbf16>, vector<256x128xbf16>, vector<8x128xf32> -> vector<8x128xf32>
    %84 = arith.addf %82, %83 : vector<8x128xf32>
    %85 = vector.broadcast %2 : vector<1x128xf32> to vector<8x128xf32>
    %86 = arith.addf %84, %85 : vector<8x128xf32>
    %cst_57 = arith.constant 0.000000e+00 : f32
    %87 = vector.broadcast %cst_57 : f32 to vector<8x128xf32>
    %88 = arith.maximumf %86, %87 : vector<8x128xf32>
    %89 = arith.truncf %88 : vector<8x128xf32> to vector<8x128xbf16>
    %c56_58 = arith.constant 56 : index
    %c0_59 = arith.constant 0 : index
    %90 = vector.load %arg4[%c56_58, %c0_59] : memref<64x128xbf16, #tpu.memory_space<vmem>>, vector<8x128xbf16>
    tpu.vector_store %arg4[%c56_58, %c0_59], %89 {strides = array<i32>} : memref<64x128xbf16, #tpu.memory_space<vmem>>, vector<8x128xbf16>,
    return
  }
  func.func @transform_0(%arg0: i32) -> (i32, i32) {
    %c0_i32 = arith.constant 0 : i32
    %c0_i32_0 = arith.constant 0 : i32
    return %arg0, %c0_i32 : i32, i32
  }
  func.func @transform_1(%arg0: i32) -> (i32, i32) {
    %c0_i32 = arith.constant 0 : i32
    %c0_i32_0 = arith.constant 0 : i32
    %c0_i32_1 = arith.constant 0 : i32
    return %c0_i32, %c0_i32_0 : i32, i32
  }
  func.func @transform_2(%arg0: i32) -> (i32, i32) {
    %c0_i32 = arith.constant 0 : i32
    %c0_i32_0 = arith.constant 0 : i32
    %c0_i32_1 = arith.constant 0 : i32
    return %c0_i32, %c0_i32_0 : i32, i32
  }
  func.func @transform_3(%arg0: i32) -> (i32, i32) {
    %c0_i32 = arith.constant 0 : i32
    %c0_i32_0 = arith.constant 0 : i32
    return %arg0, %c0_i32 : i32, i32
  }
}

module attributes {stable_mosaic.version = 11 : i64} {
  func.func @_conv2x2_dw_kernel(%arg0: i32, %arg1: memref<64x256xbf16, #tpu.memory_space<vmem>>, %arg2: memref<512x128xbf16, #tpu.memory_space<vmem>>, %arg3: memref<1x128xf32, #tpu.memory_space<vmem>>, %arg4: memref<32x128xbf16, #tpu.memory_space<vmem>>) attributes {dimension_semantics = [#tpu.dimension_semantics<parallel>], iteration_bounds = array<i64: 2>, scalar_prefetch = 0 : i64, scratch_operands = 0 : i64, tpu.core_type = #tpu.core_type<tc>, window_params = [{transform_indices = @transform_0, window_bounds = array<i64: 64, 256>}, {pipeline_mode = #tpu.pipeline_mode<synchronous>, transform_indices = @transform_1, window_bounds = array<i64: 512, 128>}, {pipeline_mode = #tpu.pipeline_mode<synchronous>, transform_indices = @transform_2, window_bounds = array<i64: 1, 128>}, {transform_indices = @transform_3, window_bounds = array<i64: 32, 128>}]} {
    %c0 = arith.constant 0 : index
    %c0_0 = arith.constant 0 : index
    %0 = vector.load %arg2[%c0, %c0_0] : memref<512x128xbf16, #tpu.memory_space<vmem>>, vector<256x128xbf16>
    %c256 = arith.constant 256 : index
    %c0_1 = arith.constant 0 : index
    %1 = vector.load %arg2[%c256, %c0_1] : memref<512x128xbf16, #tpu.memory_space<vmem>>, vector<256x128xbf16>
    %c0_2 = arith.constant 0 : index
    %c0_3 = arith.constant 0 : index
    %2 = vector.load %arg3[%c0_2, %c0_3] : memref<1x128xf32, #tpu.memory_space<vmem>>, vector<1x128xf32>
    %c0_4 = arith.constant 0 : index
    %c0_5 = arith.constant 0 : index
    %3 = vector.load %arg1[%c0_4, %c0_5] : memref<64x256xbf16, #tpu.memory_space<vmem>>, vector<4x256xbf16>
    %c4 = arith.constant 4 : index
    %c0_6 = arith.constant 0 : index
    %4 = vector.load %arg1[%c4, %c0_6] : memref<64x256xbf16, #tpu.memory_space<vmem>>, vector<4x256xbf16>
    %cst = arith.constant dense<0.000000e+00> : vector<4x128xf32>
    %5 = tpu.matmul %3, %0, %cst {dimension_numbers = #tpu.dot_dimension_numbers<[1], [0], [0], [1], [0, 0, 1, 1], [], []>} : vector<4x256xbf16>, vector<256x128xbf16>, vector<4x128xf32> -> vector<4x128xf32>
    %cst_7 = arith.constant dense<0.000000e+00> : vector<4x128xf32>
    %6 = tpu.matmul %4, %1, %cst_7 {dimension_numbers = #tpu.dot_dimension_numbers<[1], [0], [0], [1], [0, 0, 1, 1], [], []>} : vector<4x256xbf16>, vector<256x128xbf16>, vector<4x128xf32> -> vector<4x128xf32>
    %7 = arith.addf %5, %6 : vector<4x128xf32>
    %8 = vector.broadcast %2 : vector<1x128xf32> to vector<4x128xf32>
    %9 = arith.addf %7, %8 : vector<4x128xf32>
    %cst_8 = arith.constant 0.000000e+00 : f32
    %10 = vector.broadcast %cst_8 : f32 to vector<4x128xf32>
    %11 = arith.maximumf %9, %10 : vector<4x128xf32>
    %12 = arith.truncf %11 : vector<4x128xf32> to vector<4x128xbf16>
    %c0_9 = arith.constant 0 : index
    %c0_10 = arith.constant 0 : index
    %13 = vector.load %arg4[%c0_9, %c0_10] : memref<32x128xbf16, #tpu.memory_space<vmem>>, vector<4x128xbf16>
    tpu.vector_store %arg4[%c0_9, %c0_10], %12 {strides = array<i32>} : memref<32x128xbf16, #tpu.memory_space<vmem>>, vector<4x128xbf16>,
    %c8 = arith.constant 8 : index
    %c0_11 = arith.constant 0 : index
    %14 = vector.load %arg1[%c8, %c0_11] : memref<64x256xbf16, #tpu.memory_space<vmem>>, vector<4x256xbf16>
    %c12 = arith.constant 12 : index
    %c0_12 = arith.constant 0 : index
    %15 = vector.load %arg1[%c12, %c0_12] : memref<64x256xbf16, #tpu.memory_space<vmem>>, vector<4x256xbf16>
    %cst_13 = arith.constant dense<0.000000e+00> : vector<4x128xf32>
    %16 = tpu.matmul %14, %0, %cst_13 {dimension_numbers = #tpu.dot_dimension_numbers<[1], [0], [0], [1], [0, 0, 1, 1], [], []>} : vector<4x256xbf16>, vector<256x128xbf16>, vector<4x128xf32> -> vector<4x128xf32>
    %cst_14 = arith.constant dense<0.000000e+00> : vector<4x128xf32>
    %17 = tpu.matmul %15, %1, %cst_14 {dimension_numbers = #tpu.dot_dimension_numbers<[1], [0], [0], [1], [0, 0, 1, 1], [], []>} : vector<4x256xbf16>, vector<256x128xbf16>, vector<4x128xf32> -> vector<4x128xf32>
    %18 = arith.addf %16, %17 : vector<4x128xf32>
    %19 = vector.broadcast %2 : vector<1x128xf32> to vector<4x128xf32>
    %20 = arith.addf %18, %19 : vector<4x128xf32>
    %cst_15 = arith.constant 0.000000e+00 : f32
    %21 = vector.broadcast %cst_15 : f32 to vector<4x128xf32>
    %22 = arith.maximumf %20, %21 : vector<4x128xf32>
    %23 = arith.truncf %22 : vector<4x128xf32> to vector<4x128xbf16>
    %c4_16 = arith.constant 4 : index
    %c0_17 = arith.constant 0 : index
    %24 = vector.load %arg4[%c4_16, %c0_17] : memref<32x128xbf16, #tpu.memory_space<vmem>>, vector<4x128xbf16>
    tpu.vector_store %arg4[%c4_16, %c0_17], %23 {strides = array<i32>} : memref<32x128xbf16, #tpu.memory_space<vmem>>, vector<4x128xbf16>,
    %c16 = arith.constant 16 : index
    %c0_18 = arith.constant 0 : index
    %25 = vector.load %arg1[%c16, %c0_18] : memref<64x256xbf16, #tpu.memory_space<vmem>>, vector<4x256xbf16>
    %c20 = arith.constant 20 : index
    %c0_19 = arith.constant 0 : index
    %26 = vector.load %arg1[%c20, %c0_19] : memref<64x256xbf16, #tpu.memory_space<vmem>>, vector<4x256xbf16>
    %cst_20 = arith.constant dense<0.000000e+00> : vector<4x128xf32>
    %27 = tpu.matmul %25, %0, %cst_20 {dimension_numbers = #tpu.dot_dimension_numbers<[1], [0], [0], [1], [0, 0, 1, 1], [], []>} : vector<4x256xbf16>, vector<256x128xbf16>, vector<4x128xf32> -> vector<4x128xf32>
    %cst_21 = arith.constant dense<0.000000e+00> : vector<4x128xf32>
    %28 = tpu.matmul %26, %1, %cst_21 {dimension_numbers = #tpu.dot_dimension_numbers<[1], [0], [0], [1], [0, 0, 1, 1], [], []>} : vector<4x256xbf16>, vector<256x128xbf16>, vector<4x128xf32> -> vector<4x128xf32>
    %29 = arith.addf %27, %28 : vector<4x128xf32>
    %30 = vector.broadcast %2 : vector<1x128xf32> to vector<4x128xf32>
    %31 = arith.addf %29, %30 : vector<4x128xf32>
    %cst_22 = arith.constant 0.000000e+00 : f32
    %32 = vector.broadcast %cst_22 : f32 to vector<4x128xf32>
    %33 = arith.maximumf %31, %32 : vector<4x128xf32>
    %34 = arith.truncf %33 : vector<4x128xf32> to vector<4x128xbf16>
    %c8_23 = arith.constant 8 : index
    %c0_24 = arith.constant 0 : index
    %35 = vector.load %arg4[%c8_23, %c0_24] : memref<32x128xbf16, #tpu.memory_space<vmem>>, vector<4x128xbf16>
    tpu.vector_store %arg4[%c8_23, %c0_24], %34 {strides = array<i32>} : memref<32x128xbf16, #tpu.memory_space<vmem>>, vector<4x128xbf16>,
    %c24 = arith.constant 24 : index
    %c0_25 = arith.constant 0 : index
    %36 = vector.load %arg1[%c24, %c0_25] : memref<64x256xbf16, #tpu.memory_space<vmem>>, vector<4x256xbf16>
    %c28 = arith.constant 28 : index
    %c0_26 = arith.constant 0 : index
    %37 = vector.load %arg1[%c28, %c0_26] : memref<64x256xbf16, #tpu.memory_space<vmem>>, vector<4x256xbf16>
    %cst_27 = arith.constant dense<0.000000e+00> : vector<4x128xf32>
    %38 = tpu.matmul %36, %0, %cst_27 {dimension_numbers = #tpu.dot_dimension_numbers<[1], [0], [0], [1], [0, 0, 1, 1], [], []>} : vector<4x256xbf16>, vector<256x128xbf16>, vector<4x128xf32> -> vector<4x128xf32>
    %cst_28 = arith.constant dense<0.000000e+00> : vector<4x128xf32>
    %39 = tpu.matmul %37, %1, %cst_28 {dimension_numbers = #tpu.dot_dimension_numbers<[1], [0], [0], [1], [0, 0, 1, 1], [], []>} : vector<4x256xbf16>, vector<256x128xbf16>, vector<4x128xf32> -> vector<4x128xf32>
    %40 = arith.addf %38, %39 : vector<4x128xf32>
    %41 = vector.broadcast %2 : vector<1x128xf32> to vector<4x128xf32>
    %42 = arith.addf %40, %41 : vector<4x128xf32>
    %cst_29 = arith.constant 0.000000e+00 : f32
    %43 = vector.broadcast %cst_29 : f32 to vector<4x128xf32>
    %44 = arith.maximumf %42, %43 : vector<4x128xf32>
    %45 = arith.truncf %44 : vector<4x128xf32> to vector<4x128xbf16>
    %c12_30 = arith.constant 12 : index
    %c0_31 = arith.constant 0 : index
    %46 = vector.load %arg4[%c12_30, %c0_31] : memref<32x128xbf16, #tpu.memory_space<vmem>>, vector<4x128xbf16>
    tpu.vector_store %arg4[%c12_30, %c0_31], %45 {strides = array<i32>} : memref<32x128xbf16, #tpu.memory_space<vmem>>, vector<4x128xbf16>,
    %c32 = arith.constant 32 : index
    %c0_32 = arith.constant 0 : index
    %47 = vector.load %arg1[%c32, %c0_32] : memref<64x256xbf16, #tpu.memory_space<vmem>>, vector<4x256xbf16>
    %c36 = arith.constant 36 : index
    %c0_33 = arith.constant 0 : index
    %48 = vector.load %arg1[%c36, %c0_33] : memref<64x256xbf16, #tpu.memory_space<vmem>>, vector<4x256xbf16>
    %cst_34 = arith.constant dense<0.000000e+00> : vector<4x128xf32>
    %49 = tpu.matmul %47, %0, %cst_34 {dimension_numbers = #tpu.dot_dimension_numbers<[1], [0], [0], [1], [0, 0, 1, 1], [], []>} : vector<4x256xbf16>, vector<256x128xbf16>, vector<4x128xf32> -> vector<4x128xf32>
    %cst_35 = arith.constant dense<0.000000e+00> : vector<4x128xf32>
    %50 = tpu.matmul %48, %1, %cst_35 {dimension_numbers = #tpu.dot_dimension_numbers<[1], [0], [0], [1], [0, 0, 1, 1], [], []>} : vector<4x256xbf16>, vector<256x128xbf16>, vector<4x128xf32> -> vector<4x128xf32>
    %51 = arith.addf %49, %50 : vector<4x128xf32>
    %52 = vector.broadcast %2 : vector<1x128xf32> to vector<4x128xf32>
    %53 = arith.addf %51, %52 : vector<4x128xf32>
    %cst_36 = arith.constant 0.000000e+00 : f32
    %54 = vector.broadcast %cst_36 : f32 to vector<4x128xf32>
    %55 = arith.maximumf %53, %54 : vector<4x128xf32>
    %56 = arith.truncf %55 : vector<4x128xf32> to vector<4x128xbf16>
    %c16_37 = arith.constant 16 : index
    %c0_38 = arith.constant 0 : index
    %57 = vector.load %arg4[%c16_37, %c0_38] : memref<32x128xbf16, #tpu.memory_space<vmem>>, vector<4x128xbf16>
    tpu.vector_store %arg4[%c16_37, %c0_38], %56 {strides = array<i32>} : memref<32x128xbf16, #tpu.memory_space<vmem>>, vector<4x128xbf16>,
    %c40 = arith.constant 40 : index
    %c0_39 = arith.constant 0 : index
    %58 = vector.load %arg1[%c40, %c0_39] : memref<64x256xbf16, #tpu.memory_space<vmem>>, vector<4x256xbf16>
    %c44 = arith.constant 44 : index
    %c0_40 = arith.constant 0 : index
    %59 = vector.load %arg1[%c44, %c0_40] : memref<64x256xbf16, #tpu.memory_space<vmem>>, vector<4x256xbf16>
    %cst_41 = arith.constant dense<0.000000e+00> : vector<4x128xf32>
    %60 = tpu.matmul %58, %0, %cst_41 {dimension_numbers = #tpu.dot_dimension_numbers<[1], [0], [0], [1], [0, 0, 1, 1], [], []>} : vector<4x256xbf16>, vector<256x128xbf16>, vector<4x128xf32> -> vector<4x128xf32>
    %cst_42 = arith.constant dense<0.000000e+00> : vector<4x128xf32>
    %61 = tpu.matmul %59, %1, %cst_42 {dimension_numbers = #tpu.dot_dimension_numbers<[1], [0], [0], [1], [0, 0, 1, 1], [], []>} : vector<4x256xbf16>, vector<256x128xbf16>, vector<4x128xf32> -> vector<4x128xf32>
    %62 = arith.addf %60, %61 : vector<4x128xf32>
    %63 = vector.broadcast %2 : vector<1x128xf32> to vector<4x128xf32>
    %64 = arith.addf %62, %63 : vector<4x128xf32>
    %cst_43 = arith.constant 0.000000e+00 : f32
    %65 = vector.broadcast %cst_43 : f32 to vector<4x128xf32>
    %66 = arith.maximumf %64, %65 : vector<4x128xf32>
    %67 = arith.truncf %66 : vector<4x128xf32> to vector<4x128xbf16>
    %c20_44 = arith.constant 20 : index
    %c0_45 = arith.constant 0 : index
    %68 = vector.load %arg4[%c20_44, %c0_45] : memref<32x128xbf16, #tpu.memory_space<vmem>>, vector<4x128xbf16>
    tpu.vector_store %arg4[%c20_44, %c0_45], %67 {strides = array<i32>} : memref<32x128xbf16, #tpu.memory_space<vmem>>, vector<4x128xbf16>,
    %c48 = arith.constant 48 : index
    %c0_46 = arith.constant 0 : index
    %69 = vector.load %arg1[%c48, %c0_46] : memref<64x256xbf16, #tpu.memory_space<vmem>>, vector<4x256xbf16>
    %c52 = arith.constant 52 : index
    %c0_47 = arith.constant 0 : index
    %70 = vector.load %arg1[%c52, %c0_47] : memref<64x256xbf16, #tpu.memory_space<vmem>>, vector<4x256xbf16>
    %cst_48 = arith.constant dense<0.000000e+00> : vector<4x128xf32>
    %71 = tpu.matmul %69, %0, %cst_48 {dimension_numbers = #tpu.dot_dimension_numbers<[1], [0], [0], [1], [0, 0, 1, 1], [], []>} : vector<4x256xbf16>, vector<256x128xbf16>, vector<4x128xf32> -> vector<4x128xf32>
    %cst_49 = arith.constant dense<0.000000e+00> : vector<4x128xf32>
    %72 = tpu.matmul %70, %1, %cst_49 {dimension_numbers = #tpu.dot_dimension_numbers<[1], [0], [0], [1], [0, 0, 1, 1], [], []>} : vector<4x256xbf16>, vector<256x128xbf16>, vector<4x128xf32> -> vector<4x128xf32>
    %73 = arith.addf %71, %72 : vector<4x128xf32>
    %74 = vector.broadcast %2 : vector<1x128xf32> to vector<4x128xf32>
    %75 = arith.addf %73, %74 : vector<4x128xf32>
    %cst_50 = arith.constant 0.000000e+00 : f32
    %76 = vector.broadcast %cst_50 : f32 to vector<4x128xf32>
    %77 = arith.maximumf %75, %76 : vector<4x128xf32>
    %78 = arith.truncf %77 : vector<4x128xf32> to vector<4x128xbf16>
    %c24_51 = arith.constant 24 : index
    %c0_52 = arith.constant 0 : index
    %79 = vector.load %arg4[%c24_51, %c0_52] : memref<32x128xbf16, #tpu.memory_space<vmem>>, vector<4x128xbf16>
    tpu.vector_store %arg4[%c24_51, %c0_52], %78 {strides = array<i32>} : memref<32x128xbf16, #tpu.memory_space<vmem>>, vector<4x128xbf16>,
    %c56 = arith.constant 56 : index
    %c0_53 = arith.constant 0 : index
    %80 = vector.load %arg1[%c56, %c0_53] : memref<64x256xbf16, #tpu.memory_space<vmem>>, vector<4x256xbf16>
    %c60 = arith.constant 60 : index
    %c0_54 = arith.constant 0 : index
    %81 = vector.load %arg1[%c60, %c0_54] : memref<64x256xbf16, #tpu.memory_space<vmem>>, vector<4x256xbf16>
    %cst_55 = arith.constant dense<0.000000e+00> : vector<4x128xf32>
    %82 = tpu.matmul %80, %0, %cst_55 {dimension_numbers = #tpu.dot_dimension_numbers<[1], [0], [0], [1], [0, 0, 1, 1], [], []>} : vector<4x256xbf16>, vector<256x128xbf16>, vector<4x128xf32> -> vector<4x128xf32>
    %cst_56 = arith.constant dense<0.000000e+00> : vector<4x128xf32>
    %83 = tpu.matmul %81, %1, %cst_56 {dimension_numbers = #tpu.dot_dimension_numbers<[1], [0], [0], [1], [0, 0, 1, 1], [], []>} : vector<4x256xbf16>, vector<256x128xbf16>, vector<4x128xf32> -> vector<4x128xf32>
    %84 = arith.addf %82, %83 : vector<4x128xf32>
    %85 = vector.broadcast %2 : vector<1x128xf32> to vector<4x128xf32>
    %86 = arith.addf %84, %85 : vector<4x128xf32>
    %cst_57 = arith.constant 0.000000e+00 : f32
    %87 = vector.broadcast %cst_57 : f32 to vector<4x128xf32>
    %88 = arith.maximumf %86, %87 : vector<4x128xf32>
    %89 = arith.truncf %88 : vector<4x128xf32> to vector<4x128xbf16>
    %c28_58 = arith.constant 28 : index
    %c0_59 = arith.constant 0 : index
    %90 = vector.load %arg4[%c28_58, %c0_59] : memref<32x128xbf16, #tpu.memory_space<vmem>>, vector<4x128xbf16>
    tpu.vector_store %arg4[%c28_58, %c0_59], %89 {strides = array<i32>} : memref<32x128xbf16, #tpu.memory_space<vmem>>, vector<4x128xbf16>,
    return
  }
  func.func @transform_0(%arg0: i32) -> (i32, i32) {
    %c0_i32 = arith.constant 0 : i32
    %c0_i32_0 = arith.constant 0 : i32
    return %arg0, %c0_i32 : i32, i32
  }
  func.func @transform_1(%arg0: i32) -> (i32, i32) {
    %c0_i32 = arith.constant 0 : i32
    %c0_i32_0 = arith.constant 0 : i32
    %c0_i32_1 = arith.constant 0 : i32
    return %c0_i32, %c0_i32_0 : i32, i32
  }
  func.func @transform_2(%arg0: i32) -> (i32, i32) {
    %c0_i32 = arith.constant 0 : i32
    %c0_i32_0 = arith.constant 0 : i32
    %c0_i32_1 = arith.constant 0 : i32
    return %c0_i32, %c0_i32_0 : i32, i32
  }
  func.func @transform_3(%arg0: i32) -> (i32, i32) {
    %c0_i32 = arith.constant 0 : i32
    %c0_i32_0 = arith.constant 0 : i32
    return %arg0, %c0_i32 : i32, i32
  }
}

module attributes {stable_mosaic.version = 11 : i64} {
  func.func @_conv2x2_dw_kernel(%arg0: i32, %arg1: memref<16x256xbf16, #tpu.memory_space<vmem>>, %arg2: memref<512x128xbf16, #tpu.memory_space<vmem>>, %arg3: memref<1x128xf32, #tpu.memory_space<vmem>>, %arg4: memref<8x128xbf16, #tpu.memory_space<vmem>>) attributes {dimension_semantics = [#tpu.dimension_semantics<parallel>], iteration_bounds = array<i64: 2>, scalar_prefetch = 0 : i64, scratch_operands = 0 : i64, tpu.core_type = #tpu.core_type<tc>, window_params = [{transform_indices = @transform_0, window_bounds = array<i64: 16, 256>}, {pipeline_mode = #tpu.pipeline_mode<synchronous>, transform_indices = @transform_1, window_bounds = array<i64: 512, 128>}, {pipeline_mode = #tpu.pipeline_mode<synchronous>, transform_indices = @transform_2, window_bounds = array<i64: 1, 128>}, {transform_indices = @transform_3, window_bounds = array<i64: 8, 128>}]} {
    %c0 = arith.constant 0 : index
    %c0_0 = arith.constant 0 : index
    %0 = vector.load %arg2[%c0, %c0_0] : memref<512x128xbf16, #tpu.memory_space<vmem>>, vector<256x128xbf16>
    %c256 = arith.constant 256 : index
    %c0_1 = arith.constant 0 : index
    %1 = vector.load %arg2[%c256, %c0_1] : memref<512x128xbf16, #tpu.memory_space<vmem>>, vector<256x128xbf16>
    %c0_2 = arith.constant 0 : index
    %c0_3 = arith.constant 0 : index
    %2 = vector.load %arg3[%c0_2, %c0_3] : memref<1x128xf32, #tpu.memory_space<vmem>>, vector<1x128xf32>
    %c0_4 = arith.constant 0 : index
    %c0_5 = arith.constant 0 : index
    %3 = vector.load %arg1[%c0_4, %c0_5] : memref<16x256xbf16, #tpu.memory_space<vmem>>, vector<2x256xbf16>
    %c2 = arith.constant 2 : index
    %c0_6 = arith.constant 0 : index
    %4 = vector.load %arg1[%c2, %c0_6] : memref<16x256xbf16, #tpu.memory_space<vmem>>, vector<2x256xbf16>
    %cst = arith.constant dense<0.000000e+00> : vector<2x128xf32>
    %5 = tpu.matmul %3, %0, %cst {dimension_numbers = #tpu.dot_dimension_numbers<[1], [0], [0], [1], [0, 0, 1, 1], [], []>} : vector<2x256xbf16>, vector<256x128xbf16>, vector<2x128xf32> -> vector<2x128xf32>
    %cst_7 = arith.constant dense<0.000000e+00> : vector<2x128xf32>
    %6 = tpu.matmul %4, %1, %cst_7 {dimension_numbers = #tpu.dot_dimension_numbers<[1], [0], [0], [1], [0, 0, 1, 1], [], []>} : vector<2x256xbf16>, vector<256x128xbf16>, vector<2x128xf32> -> vector<2x128xf32>
    %7 = arith.addf %5, %6 : vector<2x128xf32>
    %8 = vector.broadcast %2 : vector<1x128xf32> to vector<2x128xf32>
    %9 = arith.addf %7, %8 : vector<2x128xf32>
    %cst_8 = arith.constant 0.000000e+00 : f32
    %10 = vector.broadcast %cst_8 : f32 to vector<2x128xf32>
    %11 = arith.maximumf %9, %10 : vector<2x128xf32>
    %12 = arith.truncf %11 : vector<2x128xf32> to vector<2x128xbf16>
    %c0_9 = arith.constant 0 : index
    %c0_10 = arith.constant 0 : index
    %13 = vector.load %arg4[%c0_9, %c0_10] : memref<8x128xbf16, #tpu.memory_space<vmem>>, vector<2x128xbf16>
    tpu.vector_store %arg4[%c0_9, %c0_10], %12 {strides = array<i32>} : memref<8x128xbf16, #tpu.memory_space<vmem>>, vector<2x128xbf16>,
    %c4 = arith.constant 4 : index
    %c0_11 = arith.constant 0 : index
    %14 = vector.load %arg1[%c4, %c0_11] : memref<16x256xbf16, #tpu.memory_space<vmem>>, vector<2x256xbf16>
    %c6 = arith.constant 6 : index
    %c0_12 = arith.constant 0 : index
    %15 = vector.load %arg1[%c6, %c0_12] : memref<16x256xbf16, #tpu.memory_space<vmem>>, vector<2x256xbf16>
    %cst_13 = arith.constant dense<0.000000e+00> : vector<2x128xf32>
    %16 = tpu.matmul %14, %0, %cst_13 {dimension_numbers = #tpu.dot_dimension_numbers<[1], [0], [0], [1], [0, 0, 1, 1], [], []>} : vector<2x256xbf16>, vector<256x128xbf16>, vector<2x128xf32> -> vector<2x128xf32>
    %cst_14 = arith.constant dense<0.000000e+00> : vector<2x128xf32>
    %17 = tpu.matmul %15, %1, %cst_14 {dimension_numbers = #tpu.dot_dimension_numbers<[1], [0], [0], [1], [0, 0, 1, 1], [], []>} : vector<2x256xbf16>, vector<256x128xbf16>, vector<2x128xf32> -> vector<2x128xf32>
    %18 = arith.addf %16, %17 : vector<2x128xf32>
    %19 = vector.broadcast %2 : vector<1x128xf32> to vector<2x128xf32>
    %20 = arith.addf %18, %19 : vector<2x128xf32>
    %cst_15 = arith.constant 0.000000e+00 : f32
    %21 = vector.broadcast %cst_15 : f32 to vector<2x128xf32>
    %22 = arith.maximumf %20, %21 : vector<2x128xf32>
    %23 = arith.truncf %22 : vector<2x128xf32> to vector<2x128xbf16>
    %c2_16 = arith.constant 2 : index
    %c0_17 = arith.constant 0 : index
    %24 = vector.load %arg4[%c2_16, %c0_17] : memref<8x128xbf16, #tpu.memory_space<vmem>>, vector<2x128xbf16>
    tpu.vector_store %arg4[%c2_16, %c0_17], %23 {strides = array<i32>} : memref<8x128xbf16, #tpu.memory_space<vmem>>, vector<2x128xbf16>,
    %c8 = arith.constant 8 : index
    %c0_18 = arith.constant 0 : index
    %25 = vector.load %arg1[%c8, %c0_18] : memref<16x256xbf16, #tpu.memory_space<vmem>>, vector<2x256xbf16>
    %c10 = arith.constant 10 : index
    %c0_19 = arith.constant 0 : index
    %26 = vector.load %arg1[%c10, %c0_19] : memref<16x256xbf16, #tpu.memory_space<vmem>>, vector<2x256xbf16>
    %cst_20 = arith.constant dense<0.000000e+00> : vector<2x128xf32>
    %27 = tpu.matmul %25, %0, %cst_20 {dimension_numbers = #tpu.dot_dimension_numbers<[1], [0], [0], [1], [0, 0, 1, 1], [], []>} : vector<2x256xbf16>, vector<256x128xbf16>, vector<2x128xf32> -> vector<2x128xf32>
    %cst_21 = arith.constant dense<0.000000e+00> : vector<2x128xf32>
    %28 = tpu.matmul %26, %1, %cst_21 {dimension_numbers = #tpu.dot_dimension_numbers<[1], [0], [0], [1], [0, 0, 1, 1], [], []>} : vector<2x256xbf16>, vector<256x128xbf16>, vector<2x128xf32> -> vector<2x128xf32>
    %29 = arith.addf %27, %28 : vector<2x128xf32>
    %30 = vector.broadcast %2 : vector<1x128xf32> to vector<2x128xf32>
    %31 = arith.addf %29, %30 : vector<2x128xf32>
    %cst_22 = arith.constant 0.000000e+00 : f32
    %32 = vector.broadcast %cst_22 : f32 to vector<2x128xf32>
    %33 = arith.maximumf %31, %32 : vector<2x128xf32>
    %34 = arith.truncf %33 : vector<2x128xf32> to vector<2x128xbf16>
    %c4_23 = arith.constant 4 : index
    %c0_24 = arith.constant 0 : index
    %35 = vector.load %arg4[%c4_23, %c0_24] : memref<8x128xbf16, #tpu.memory_space<vmem>>, vector<2x128xbf16>
    tpu.vector_store %arg4[%c4_23, %c0_24], %34 {strides = array<i32>} : memref<8x128xbf16, #tpu.memory_space<vmem>>, vector<2x128xbf16>,
    %c12 = arith.constant 12 : index
    %c0_25 = arith.constant 0 : index
    %36 = vector.load %arg1[%c12, %c0_25] : memref<16x256xbf16, #tpu.memory_space<vmem>>, vector<2x256xbf16>
    %c14 = arith.constant 14 : index
    %c0_26 = arith.constant 0 : index
    %37 = vector.load %arg1[%c14, %c0_26] : memref<16x256xbf16, #tpu.memory_space<vmem>>, vector<2x256xbf16>
    %cst_27 = arith.constant dense<0.000000e+00> : vector<2x128xf32>
    %38 = tpu.matmul %36, %0, %cst_27 {dimension_numbers = #tpu.dot_dimension_numbers<[1], [0], [0], [1], [0, 0, 1, 1], [], []>} : vector<2x256xbf16>, vector<256x128xbf16>, vector<2x128xf32> -> vector<2x128xf32>
    %cst_28 = arith.constant dense<0.000000e+00> : vector<2x128xf32>
    %39 = tpu.matmul %37, %1, %cst_28 {dimension_numbers = #tpu.dot_dimension_numbers<[1], [0], [0], [1], [0, 0, 1, 1], [], []>} : vector<2x256xbf16>, vector<256x128xbf16>, vector<2x128xf32> -> vector<2x128xf32>
    %40 = arith.addf %38, %39 : vector<2x128xf32>
    %41 = vector.broadcast %2 : vector<1x128xf32> to vector<2x128xf32>
    %42 = arith.addf %40, %41 : vector<2x128xf32>
    %cst_29 = arith.constant 0.000000e+00 : f32
    %43 = vector.broadcast %cst_29 : f32 to vector<2x128xf32>
    %44 = arith.maximumf %42, %43 : vector<2x128xf32>
    %45 = arith.truncf %44 : vector<2x128xf32> to vector<2x128xbf16>
    %c6_30 = arith.constant 6 : index
    %c0_31 = arith.constant 0 : index
    %46 = vector.load %arg4[%c6_30, %c0_31] : memref<8x128xbf16, #tpu.memory_space<vmem>>, vector<2x128xbf16>
    tpu.vector_store %arg4[%c6_30, %c0_31], %45 {strides = array<i32>} : memref<8x128xbf16, #tpu.memory_space<vmem>>, vector<2x128xbf16>,
    return
  }
  func.func @transform_0(%arg0: i32) -> (i32, i32) {
    %c0_i32 = arith.constant 0 : i32
    %c0_i32_0 = arith.constant 0 : i32
    return %arg0, %c0_i32 : i32, i32
  }
  func.func @transform_1(%arg0: i32) -> (i32, i32) {
    %c0_i32 = arith.constant 0 : i32
    %c0_i32_0 = arith.constant 0 : i32
    %c0_i32_1 = arith.constant 0 : i32
    return %c0_i32, %c0_i32_0 : i32, i32
  }
  func.func @transform_2(%arg0: i32) -> (i32, i32) {
    %c0_i32 = arith.constant 0 : i32
    %c0_i32_0 = arith.constant 0 : i32
    %c0_i32_1 = arith.constant 0 : i32
    return %c0_i32, %c0_i32_0 : i32, i32
  }
  func.func @transform_3(%arg0: i32) -> (i32, i32) {
    %c0_i32 = arith.constant 0 : i32
    %c0_i32_0 = arith.constant 0 : i32
    return %arg0, %c0_i32 : i32, i32
  }
}

module attributes {stable_mosaic.version = 11 : i64} {
  func.func @_fpn_loss_kernel(%arg0: i32, %arg1: memref<512x128xbf16, #tpu.memory_space<vmem>>, %arg2: memref<512x128xbf16, #tpu.memory_space<vmem>>, %arg3: memref<128x128xbf16, #tpu.memory_space<vmem>>, %arg4: memref<128x128xbf16, #tpu.memory_space<vmem>>, %arg5: memref<32x128xbf16, #tpu.memory_space<vmem>>, %arg6: memref<32x128xbf16, #tpu.memory_space<vmem>>, %arg7: memref<8x128xbf16, #tpu.memory_space<vmem>>, %arg8: memref<8x128xbf16, #tpu.memory_space<vmem>>, %arg9: memref<4x128x128xbf16, #tpu.memory_space<vmem>>, %arg10: memref<1x8x128xf32, #tpu.memory_space<vmem>>, %arg11: memref<512x128xf32, #tpu.memory_space<vmem>>, %arg12: memref<256x128xf32, #tpu.memory_space<vmem>>, %arg13: memref<8x128xf32, #tpu.memory_space<vmem>>) attributes {dimension_semantics = [#tpu.dimension_semantics<parallel>], iteration_bounds = array<i64: 1>, scalar_prefetch = 0 : i64, scratch_operands = 3 : i64, tpu.core_type = #tpu.core_type<tc>, window_params = [{transform_indices = @transform_0, window_bounds = array<i64: 512, 128>}, {transform_indices = @transform_1, window_bounds = array<i64: 512, 128>}, {transform_indices = @transform_2, window_bounds = array<i64: 128, 128>}, {transform_indices = @transform_3, window_bounds = array<i64: 128, 128>}, {transform_indices = @transform_4, window_bounds = array<i64: 32, 128>}, {transform_indices = @transform_5, window_bounds = array<i64: 32, 128>}, {transform_indices = @transform_6, window_bounds = array<i64: 8, 128>}, {transform_indices = @transform_7, window_bounds = array<i64: 8, 128>}, {pipeline_mode = #tpu.pipeline_mode<synchronous>, transform_indices = @transform_8, window_bounds = array<i64: 4, 128, 128>}, {transform_indices = @transform_9, window_bounds = array<i64: 1, 8, 128>}]} {
    %c0 = arith.constant 0 : index
    %c0_0 = arith.constant 0 : index
    %0 = vector.load %arg7[%c0, %c0_0] : memref<8x128xbf16, #tpu.memory_space<vmem>>, vector<8x128xbf16>
    %1 = arith.extf %0 : vector<8x128xbf16> to vector<8x128xf32>
    %c0_1 = arith.constant 0 : index
    %c0_2 = arith.constant 0 : index
    %2 = vector.load %arg8[%c0_1, %c0_2] : memref<8x128xbf16, #tpu.memory_space<vmem>>, vector<8x128xbf16>
    %3 = arith.extf %2 : vector<8x128xbf16> to vector<8x128xf32>
    %4 = arith.subf %1, %3 : vector<8x128xf32>
    %5 = arith.truncf %4 : vector<8x128xf32> to vector<8x128xbf16>
    %c3 = arith.constant 3 : index
    %c0_3 = arith.constant 0 : index
    %c0_4 = arith.constant 0 : index
    %6 = vector.load %arg9[%c3, %c0_3, %c0_4] : memref<4x128x128xbf16, #tpu.memory_space<vmem>>, vector<1x128x128xbf16>
    %7 = vector.shape_cast %6 : vector<1x128x128xbf16> to vector<128x128xbf16>
    %cst = arith.constant dense<0.000000e+00> : vector<8x128xf32>
    %8 = tpu.matmul %5, %7, %cst {dimension_numbers = #tpu.dot_dimension_numbers<[1], [0], [0], [1], [0, 0, 1, 1], [], []>} : vector<8x128xbf16>, vector<128x128xbf16>, vector<8x128xf32> -> vector<8x128xf32>
    %c0_5 = arith.constant 0 : index
    %c0_6 = arith.constant 0 : index
    %9 = vector.load %arg13[%c0_5, %c0_6] : memref<8x128xf32, #tpu.memory_space<vmem>>, vector<8x128xf32>
    tpu.vector_store %arg13[%c0_5, %c0_6], %8 {strides = array<i32>} : memref<8x128xf32, #tpu.memory_space<vmem>>, vector<8x128xf32>,
    %10 = arith.mulf %8, %8 : vector<8x128xf32>
    %11 = vector.shape_cast %10 : vector<8x128xf32> to vector<1x8x128xf32>
    %cst_7 = arith.constant dense<0.000000e+00> : vector<1xf32>
    %12 = vector.multi_reduction <add>, %11, %cst_7 [1, 2] : vector<1x8x128xf32> to vector<1xf32>
    %13 = vector.shape_cast %12 : vector<1xf32> to vector<1x1x1xf32>
    %14 = vector.extract %13[0, 0, 0] : f32 from vector<1x1x1xf32>
    %c0_8 = arith.constant 0 : index
    %c0_9 = arith.constant 0 : index
    %15 = tpu.strided_load %arg13[%c0_8, %c0_9] {strides = array<i32: 2, 1>} : memref<8x128xf32, #tpu.memory_space<vmem>>, vector<1x128xf32>
    %16 = arith.mulf %15, %15 : vector<1x128xf32>
    %17 = vector.shape_cast %16 : vector<1x128xf32> to vector<1x1x128xf32>
    %cst_10 = arith.constant dense<0.000000e+00> : vector<1xf32>
    %18 = vector.multi_reduction <add>, %17, %cst_10 [1, 2] : vector<1x1x128xf32> to vector<1xf32>
    %19 = vector.shape_cast %18 : vector<1xf32> to vector<1x1x1xf32>
    %20 = vector.extract %19[0, 0, 0] : f32 from vector<1x1x1xf32>
    %cst_11 = arith.constant 0.000000e+00 : f32
    %21 = arith.addf %cst_11, %20 : f32
    %c4 = arith.constant 4 : index
    %c0_12 = arith.constant 0 : index
    %22 = tpu.strided_load %arg13[%c4, %c0_12] {strides = array<i32: 2, 1>} : memref<8x128xf32, #tpu.memory_space<vmem>>, vector<1x128xf32>
    %23 = arith.mulf %22, %22 : vector<1x128xf32>
    %24 = vector.shape_cast %23 : vector<1x128xf32> to vector<1x1x128xf32>
    %cst_13 = arith.constant dense<0.000000e+00> : vector<1xf32>
    %25 = vector.multi_reduction <add>, %24, %cst_13 [1, 2] : vector<1x1x128xf32> to vector<1xf32>
    %26 = vector.shape_cast %25 : vector<1xf32> to vector<1x1x1xf32>
    %27 = vector.extract %26[0, 0, 0] : f32 from vector<1x1x1xf32>
    %28 = arith.addf %21, %27 : f32
    %c0_14 = arith.constant 0 : index
    %c0_15 = arith.constant 0 : index
    %29 = vector.load %arg5[%c0_14, %c0_15] : memref<32x128xbf16, #tpu.memory_space<vmem>>, vector<32x128xbf16>
    %30 = arith.extf %29 : vector<32x128xbf16> to vector<32x128xf32>
    %c0_16 = arith.constant 0 : index
    %c0_17 = arith.constant 0 : index
    %31 = vector.load %arg6[%c0_16, %c0_17] : memref<32x128xbf16, #tpu.memory_space<vmem>>, vector<32x128xbf16>
    %32 = arith.extf %31 : vector<32x128xbf16> to vector<32x128xf32>
    %33 = arith.subf %30, %32 : vector<32x128xf32>
    %34 = arith.truncf %33 : vector<32x128xf32> to vector<32x128xbf16>
    %c2 = arith.constant 2 : index
    %c0_18 = arith.constant 0 : index
    %c0_19 = arith.constant 0 : index
    %35 = vector.load %arg9[%c2, %c0_18, %c0_19] : memref<4x128x128xbf16, #tpu.memory_space<vmem>>, vector<1x128x128xbf16>
    %36 = vector.shape_cast %35 : vector<1x128x128xbf16> to vector<128x128xbf16>
    %cst_20 = arith.constant dense<0.000000e+00> : vector<32x128xf32>
    %37 = tpu.matmul %34, %36, %cst_20 {dimension_numbers = #tpu.dot_dimension_numbers<[1], [0], [0], [1], [0, 0, 1, 1], [], []>} : vector<32x128xbf16>, vector<128x128xbf16>, vector<32x128xf32> -> vector<32x128xf32>
    %38 = vector.extract_strided_slice %8 {offsets = [0, 0], sizes = [2, 128], strides = [1, 1]} : vector<8x128xf32> to vector<2x128xf32>
    %c0_21 = arith.constant 0 : index
    %c0_22 = arith.constant 0 : index
    %39 = vector.load %arg12[%c0_21, %c0_22] : memref<256x128xf32, #tpu.memory_space<vmem>>, vector<2x128xf32>
    tpu.vector_store %arg12[%c0_21, %c0_22], %38 {strides = array<i32>} : memref<256x128xf32, #tpu.memory_space<vmem>>, vector<2x128xf32>,
    %c2_23 = arith.constant 2 : index
    %c0_24 = arith.constant 0 : index
    %40 = vector.load %arg12[%c2_23, %c0_24] : memref<256x128xf32, #tpu.memory_space<vmem>>, vector<2x128xf32>
    tpu.vector_store %arg12[%c2_23, %c0_24], %38 {strides = array<i32>} : memref<256x128xf32, #tpu.memory_space<vmem>>, vector<2x128xf32>,
    %41 = vector.extract_strided_slice %8 {offsets = [2, 0], sizes = [2, 128], strides = [1, 1]} : vector<8x128xf32> to vector<2x128xf32>
    %c4_25 = arith.constant 4 : index
    %c0_26 = arith.constant 0 : index
    %42 = vector.load %arg12[%c4_25, %c0_26] : memref<256x128xf32, #tpu.memory_space<vmem>>, vector<2x128xf32>
    tpu.vector_store %arg12[%c4_25, %c0_26], %41 {strides = array<i32>} : memref<256x128xf32, #tpu.memory_space<vmem>>, vector<2x128xf32>,
    %c6 = arith.constant 6 : index
    %c0_27 = arith.constant 0 : index
    %43 = vector.load %arg12[%c6, %c0_27] : memref<256x128xf32, #tpu.memory_space<vmem>>, vector<2x128xf32>
    tpu.vector_store %arg12[%c6, %c0_27], %41 {strides = array<i32>} : memref<256x128xf32, #tpu.memory_space<vmem>>, vector<2x128xf32>,
    %44 = vector.extract_strided_slice %8 {offsets = [4, 0], sizes = [2, 128], strides = [1, 1]} : vector<8x128xf32> to vector<2x128xf32>
    %c8 = arith.constant 8 : index
    %c0_28 = arith.constant 0 : index
    %45 = vector.load %arg12[%c8, %c0_28] : memref<256x128xf32, #tpu.memory_space<vmem>>, vector<2x128xf32>
    tpu.vector_store %arg12[%c8, %c0_28], %44 {strides = array<i32>} : memref<256x128xf32, #tpu.memory_space<vmem>>, vector<2x128xf32>,
    %c10 = arith.constant 10 : index
    %c0_29 = arith.constant 0 : index
    %46 = vector.load %arg12[%c10, %c0_29] : memref<256x128xf32, #tpu.memory_space<vmem>>, vector<2x128xf32>
    tpu.vector_store %arg12[%c10, %c0_29], %44 {strides = array<i32>} : memref<256x128xf32, #tpu.memory_space<vmem>>, vector<2x128xf32>,
    %47 = vector.extract_strided_slice %8 {offsets = [6, 0], sizes = [2, 128], strides = [1, 1]} : vector<8x128xf32> to vector<2x128xf32>
    %c12 = arith.constant 12 : index
    %c0_30 = arith.constant 0 : index
    %48 = vector.load %arg12[%c12, %c0_30] : memref<256x128xf32, #tpu.memory_space<vmem>>, vector<2x128xf32>
    tpu.vector_store %arg12[%c12, %c0_30], %47 {strides = array<i32>} : memref<256x128xf32, #tpu.memory_space<vmem>>, vector<2x128xf32>,
    %c14 = arith.constant 14 : index
    %c0_31 = arith.constant 0 : index
    %49 = vector.load %arg12[%c14, %c0_31] : memref<256x128xf32, #tpu.memory_space<vmem>>, vector<2x128xf32>
    tpu.vector_store %arg12[%c14, %c0_31], %47 {strides = array<i32>} : memref<256x128xf32, #tpu.memory_space<vmem>>, vector<2x128xf32>,
    %c0_32 = arith.constant 0 : index
    %c0_33 = arith.constant 0 : index
    %50 = vector.load %arg12[%c0_32, %c0_33] : memref<256x128xf32, #tpu.memory_space<vmem>>, vector<16x128xf32>
    %c0_34 = arith.constant 0 : index
    %c0_35 = arith.constant 0 : index
    %51 = tpu.strided_load %arg11[%c0_34, %c0_35] {strides = array<i32: 2, 1>} : memref<512x128xf32, #tpu.memory_space<vmem>>, vector<16x128xf32>
    tpu.strided_store %arg11[%c0_34, %c0_35], %50 {strides = array<i32: 2, 1>} : memref<512x128xf32, #tpu.memory_space<vmem>>, vector<16x128xf32>
    %c1 = arith.constant 1 : index
    %c0_36 = arith.constant 0 : index
    %52 = tpu.strided_load %arg11[%c1, %c0_36] {strides = array<i32: 2, 1>} : memref<512x128xf32, #tpu.memory_space<vmem>>, vector<16x128xf32>
    tpu.strided_store %arg11[%c1, %c0_36], %50 {strides = array<i32: 2, 1>} : memref<512x128xf32, #tpu.memory_space<vmem>>, vector<16x128xf32>
    %c0_37 = arith.constant 0 : index
    %c0_38 = arith.constant 0 : index
    %53 = vector.load %arg11[%c0_37, %c0_38] : memref<512x128xf32, #tpu.memory_space<vmem>>, vector<32x128xf32>
    %54 = arith.addf %37, %53 : vector<32x128xf32>
    %55 = arith.mulf %54, %54 : vector<32x128xf32>
    %56 = vector.shape_cast %55 : vector<32x128xf32> to vector<1x32x128xf32>
    %cst_39 = arith.constant dense<0.000000e+00> : vector<1xf32>
    %57 = vector.multi_reduction <add>, %56, %cst_39 [1, 2] : vector<1x32x128xf32> to vector<1xf32>
    %58 = vector.shape_cast %57 : vector<1xf32> to vector<1x1x1xf32>
    %59 = vector.extract %58[0, 0, 0] : f32 from vector<1x1x1xf32>
    %c0_40 = arith.constant 0 : index
    %c0_41 = arith.constant 0 : index
    %60 = vector.load %arg3[%c0_40, %c0_41] : memref<128x128xbf16, #tpu.memory_space<vmem>>, vector<128x128xbf16>
    %61 = arith.extf %60 : vector<128x128xbf16> to vector<128x128xf32>
    %c0_42 = arith.constant 0 : index
    %c0_43 = arith.constant 0 : index
    %62 = vector.load %arg4[%c0_42, %c0_43] : memref<128x128xbf16, #tpu.memory_space<vmem>>, vector<128x128xbf16>
    %63 = arith.extf %62 : vector<128x128xbf16> to vector<128x128xf32>
    %64 = arith.subf %61, %63 : vector<128x128xf32>
    %65 = arith.truncf %64 : vector<128x128xf32> to vector<128x128xbf16>
    %c1_44 = arith.constant 1 : index
    %c0_45 = arith.constant 0 : index
    %c0_46 = arith.constant 0 : index
    %66 = vector.load %arg9[%c1_44, %c0_45, %c0_46] : memref<4x128x128xbf16, #tpu.memory_space<vmem>>, vector<1x128x128xbf16>
    %67 = vector.shape_cast %66 : vector<1x128x128xbf16> to vector<128x128xbf16>
    %cst_47 = arith.constant dense<0.000000e+00> : vector<128x128xf32>
    %68 = tpu.matmul %65, %67, %cst_47 {dimension_numbers = #tpu.dot_dimension_numbers<[1], [0], [0], [1], [0, 0, 1, 1], [], []>} : vector<128x128xbf16>, vector<128x128xbf16>, vector<128x128xf32> -> vector<128x128xf32>
    %69 = vector.extract_strided_slice %54 {offsets = [0, 0], sizes = [4, 128], strides = [1, 1]} : vector<32x128xf32> to vector<4x128xf32>
    %c0_48 = arith.constant 0 : index
    %c0_49 = arith.constant 0 : index
    %70 = vector.load %arg12[%c0_48, %c0_49] : memref<256x128xf32, #tpu.memory_space<vmem>>, vector<4x128xf32>
    tpu.vector_store %arg12[%c0_48, %c0_49], %69 {strides = array<i32>} : memref<256x128xf32, #tpu.memory_space<vmem>>, vector<4x128xf32>,
    %c4_50 = arith.constant 4 : index
    %c0_51 = arith.constant 0 : index
    %71 = vector.load %arg12[%c4_50, %c0_51] : memref<256x128xf32, #tpu.memory_space<vmem>>, vector<4x128xf32>
    tpu.vector_store %arg12[%c4_50, %c0_51], %69 {strides = array<i32>} : memref<256x128xf32, #tpu.memory_space<vmem>>, vector<4x128xf32>,
    %72 = vector.extract_strided_slice %54 {offsets = [4, 0], sizes = [4, 128], strides = [1, 1]} : vector<32x128xf32> to vector<4x128xf32>
    %c8_52 = arith.constant 8 : index
    %c0_53 = arith.constant 0 : index
    %73 = vector.load %arg12[%c8_52, %c0_53] : memref<256x128xf32, #tpu.memory_space<vmem>>, vector<4x128xf32>
    tpu.vector_store %arg12[%c8_52, %c0_53], %72 {strides = array<i32>} : memref<256x128xf32, #tpu.memory_space<vmem>>, vector<4x128xf32>,
    %c12_54 = arith.constant 12 : index
    %c0_55 = arith.constant 0 : index
    %74 = vector.load %arg12[%c12_54, %c0_55] : memref<256x128xf32, #tpu.memory_space<vmem>>, vector<4x128xf32>
    tpu.vector_store %arg12[%c12_54, %c0_55], %72 {strides = array<i32>} : memref<256x128xf32, #tpu.memory_space<vmem>>, vector<4x128xf32>,
    %75 = vector.extract_strided_slice %54 {offsets = [8, 0], sizes = [4, 128], strides = [1, 1]} : vector<32x128xf32> to vector<4x128xf32>
    %c16 = arith.constant 16 : index
    %c0_56 = arith.constant 0 : index
    %76 = vector.load %arg12[%c16, %c0_56] : memref<256x128xf32, #tpu.memory_space<vmem>>, vector<4x128xf32>
    tpu.vector_store %arg12[%c16, %c0_56], %75 {strides = array<i32>} : memref<256x128xf32, #tpu.memory_space<vmem>>, vector<4x128xf32>,
    %c20 = arith.constant 20 : index
    %c0_57 = arith.constant 0 : index
    %77 = vector.load %arg12[%c20, %c0_57] : memref<256x128xf32, #tpu.memory_space<vmem>>, vector<4x128xf32>
    tpu.vector_store %arg12[%c20, %c0_57], %75 {strides = array<i32>} : memref<256x128xf32, #tpu.memory_space<vmem>>, vector<4x128xf32>,
    %78 = vector.extract_strided_slice %54 {offsets = [12, 0], sizes = [4, 128], strides = [1, 1]} : vector<32x128xf32> to vector<4x128xf32>
    %c24 = arith.constant 24 : index
    %c0_58 = arith.constant 0 : index
    %79 = vector.load %arg12[%c24, %c0_58] : memref<256x128xf32, #tpu.memory_space<vmem>>, vector<4x128xf32>
    tpu.vector_store %arg12[%c24, %c0_58], %78 {strides = array<i32>} : memref<256x128xf32, #tpu.memory_space<vmem>>, vector<4x128xf32>,
    %c28 = arith.constant 28 : index
    %c0_59 = arith.constant 0 : index
    %80 = vector.load %arg12[%c28, %c0_59] : memref<256x128xf32, #tpu.memory_space<vmem>>, vector<4x128xf32>
    tpu.vector_store %arg12[%c28, %c0_59], %78 {strides = array<i32>} : memref<256x128xf32, #tpu.memory_space<vmem>>, vector<4x128xf32>,
    %81 = vector.extract_strided_slice %54 {offsets = [16, 0], sizes = [4, 128], strides = [1, 1]} : vector<32x128xf32> to vector<4x128xf32>
    %c32 = arith.constant 32 : index
    %c0_60 = arith.constant 0 : index
    %82 = vector.load %arg12[%c32, %c0_60] : memref<256x128xf32, #tpu.memory_space<vmem>>, vector<4x128xf32>
    tpu.vector_store %arg12[%c32, %c0_60], %81 {strides = array<i32>} : memref<256x128xf32, #tpu.memory_space<vmem>>, vector<4x128xf32>,
    %c36 = arith.constant 36 : index
    %c0_61 = arith.constant 0 : index
    %83 = vector.load %arg12[%c36, %c0_61] : memref<256x128xf32, #tpu.memory_space<vmem>>, vector<4x128xf32>
    tpu.vector_store %arg12[%c36, %c0_61], %81 {strides = array<i32>} : memref<256x128xf32, #tpu.memory_space<vmem>>, vector<4x128xf32>,
    %84 = vector.extract_strided_slice %54 {offsets = [20, 0], sizes = [4, 128], strides = [1, 1]} : vector<32x128xf32> to vector<4x128xf32>
    %c40 = arith.constant 40 : index
    %c0_62 = arith.constant 0 : index
    %85 = vector.load %arg12[%c40, %c0_62] : memref<256x128xf32, #tpu.memory_space<vmem>>, vector<4x128xf32>
    tpu.vector_store %arg12[%c40, %c0_62], %84 {strides = array<i32>} : memref<256x128xf32, #tpu.memory_space<vmem>>, vector<4x128xf32>,
    %c44 = arith.constant 44 : index
    %c0_63 = arith.constant 0 : index
    %86 = vector.load %arg12[%c44, %c0_63] : memref<256x128xf32, #tpu.memory_space<vmem>>, vector<4x128xf32>
    tpu.vector_store %arg12[%c44, %c0_63], %84 {strides = array<i32>} : memref<256x128xf32, #tpu.memory_space<vmem>>, vector<4x128xf32>,
    %87 = vector.extract_strided_slice %54 {offsets = [24, 0], sizes = [4, 128], strides = [1, 1]} : vector<32x128xf32> to vector<4x128xf32>
    %c48 = arith.constant 48 : index
    %c0_64 = arith.constant 0 : index
    %88 = vector.load %arg12[%c48, %c0_64] : memref<256x128xf32, #tpu.memory_space<vmem>>, vector<4x128xf32>
    tpu.vector_store %arg12[%c48, %c0_64], %87 {strides = array<i32>} : memref<256x128xf32, #tpu.memory_space<vmem>>, vector<4x128xf32>,
    %c52 = arith.constant 52 : index
    %c0_65 = arith.constant 0 : index
    %89 = vector.load %arg12[%c52, %c0_65] : memref<256x128xf32, #tpu.memory_space<vmem>>, vector<4x128xf32>
    tpu.vector_store %arg12[%c52, %c0_65], %87 {strides = array<i32>} : memref<256x128xf32, #tpu.memory_space<vmem>>, vector<4x128xf32>,
    %90 = vector.extract_strided_slice %54 {offsets = [28, 0], sizes = [4, 128], strides = [1, 1]} : vector<32x128xf32> to vector<4x128xf32>
    %c56 = arith.constant 56 : index
    %c0_66 = arith.constant 0 : index
    %91 = vector.load %arg12[%c56, %c0_66] : memref<256x128xf32, #tpu.memory_space<vmem>>, vector<4x128xf32>
    tpu.vector_store %arg12[%c56, %c0_66], %90 {strides = array<i32>} : memref<256x128xf32, #tpu.memory_space<vmem>>, vector<4x128xf32>,
    %c60 = arith.constant 60 : index
    %c0_67 = arith.constant 0 : index
    %92 = vector.load %arg12[%c60, %c0_67] : memref<256x128xf32, #tpu.memory_space<vmem>>, vector<4x128xf32>
    tpu.vector_store %arg12[%c60, %c0_67], %90 {strides = array<i32>} : memref<256x128xf32, #tpu.memory_space<vmem>>, vector<4x128xf32>,
    %c0_68 = arith.constant 0 : index
    %c0_69 = arith.constant 0 : index
    %93 = vector.load %arg12[%c0_68, %c0_69] : memref<256x128xf32, #tpu.memory_space<vmem>>, vector<64x128xf32>
    %c0_70 = arith.constant 0 : index
    %c0_71 = arith.constant 0 : index
    %94 = tpu.strided_load %arg11[%c0_70, %c0_71] {strides = array<i32: 2, 1>} : memref<512x128xf32, #tpu.memory_space<vmem>>, vector<64x128xf32>
    tpu.strided_store %arg11[%c0_70, %c0_71], %93 {strides = array<i32: 2, 1>} : memref<512x128xf32, #tpu.memory_space<vmem>>, vector<64x128xf32>
    %c1_72 = arith.constant 1 : index
    %c0_73 = arith.constant 0 : index
    %95 = tpu.strided_load %arg11[%c1_72, %c0_73] {strides = array<i32: 2, 1>} : memref<512x128xf32, #tpu.memory_space<vmem>>, vector<64x128xf32>
    tpu.strided_store %arg11[%c1_72, %c0_73], %93 {strides = array<i32: 2, 1>} : memref<512x128xf32, #tpu.memory_space<vmem>>, vector<64x128xf32>
    %c0_74 = arith.constant 0 : index
    %c0_75 = arith.constant 0 : index
    %96 = vector.load %arg11[%c0_74, %c0_75] : memref<512x128xf32, #tpu.memory_space<vmem>>, vector<128x128xf32>
    %97 = arith.addf %68, %96 : vector<128x128xf32>
    %98 = arith.mulf %97, %97 : vector<128x128xf32>
    %99 = vector.shape_cast %98 : vector<128x128xf32> to vector<1x128x128xf32>
    %cst_76 = arith.constant dense<0.000000e+00> : vector<1xf32>
    %100 = vector.multi_reduction <add>, %99, %cst_76 [1, 2] : vector<1x128x128xf32> to vector<1xf32>
    %101 = vector.shape_cast %100 : vector<1xf32> to vector<1x1x1xf32>
    %102 = vector.extract %101[0, 0, 0] : f32 from vector<1x1x1xf32>
    %c0_77 = arith.constant 0 : index
    %c0_78 = arith.constant 0 : index
    %103 = vector.load %arg1[%c0_77, %c0_78] : memref<512x128xbf16, #tpu.memory_space<vmem>>, vector<512x128xbf16>
    %104 = arith.extf %103 : vector<512x128xbf16> to vector<512x128xf32>
    %c0_79 = arith.constant 0 : index
    %c0_80 = arith.constant 0 : index
    %105 = vector.load %arg2[%c0_79, %c0_80] : memref<512x128xbf16, #tpu.memory_space<vmem>>, vector<512x128xbf16>
    %106 = arith.extf %105 : vector<512x128xbf16> to vector<512x128xf32>
    %107 = arith.subf %104, %106 : vector<512x128xf32>
    %108 = arith.truncf %107 : vector<512x128xf32> to vector<512x128xbf16>
    %c0_81 = arith.constant 0 : index
    %c0_82 = arith.constant 0 : index
    %c0_83 = arith.constant 0 : index
    %109 = vector.load %arg9[%c0_81, %c0_82, %c0_83] : memref<4x128x128xbf16, #tpu.memory_space<vmem>>, vector<1x128x128xbf16>
    %110 = vector.shape_cast %109 : vector<1x128x128xbf16> to vector<128x128xbf16>
    %cst_84 = arith.constant dense<0.000000e+00> : vector<512x128xf32>
    %111 = tpu.matmul %108, %110, %cst_84 {dimension_numbers = #tpu.dot_dimension_numbers<[1], [0], [0], [1], [0, 0, 1, 1], [], []>} : vector<512x128xbf16>, vector<128x128xbf16>, vector<512x128xf32> -> vector<512x128xf32>
    %112 = vector.extract_strided_slice %97 {offsets = [0, 0], sizes = [8, 128], strides = [1, 1]} : vector<128x128xf32> to vector<8x128xf32>
    %c0_85 = arith.constant 0 : index
    %c0_86 = arith.constant 0 : index
    %113 = vector.load %arg12[%c0_85, %c0_86] : memref<256x128xf32, #tpu.memory_space<vmem>>, vector<8x128xf32>
    tpu.vector_store %arg12[%c0_85, %c0_86], %112 {strides = array<i32>} : memref<256x128xf32, #tpu.memory_space<vmem>>, vector<8x128xf32>,
    %c8_87 = arith.constant 8 : index
    %c0_88 = arith.constant 0 : index
    %114 = vector.load %arg12[%c8_87, %c0_88] : memref<256x128xf32, #tpu.memory_space<vmem>>, vector<8x128xf32>
    tpu.vector_store %arg12[%c8_87, %c0_88], %112 {strides = array<i32>} : memref<256x128xf32, #tpu.memory_space<vmem>>, vector<8x128xf32>,
    %115 = vector.extract_strided_slice %97 {offsets = [8, 0], sizes = [8, 128], strides = [1, 1]} : vector<128x128xf32> to vector<8x128xf32>
    %c16_89 = arith.constant 16 : index
    %c0_90 = arith.constant 0 : index
    %116 = vector.load %arg12[%c16_89, %c0_90] : memref<256x128xf32, #tpu.memory_space<vmem>>, vector<8x128xf32>
    tpu.vector_store %arg12[%c16_89, %c0_90], %115 {strides = array<i32>} : memref<256x128xf32, #tpu.memory_space<vmem>>, vector<8x128xf32>,
    %c24_91 = arith.constant 24 : index
    %c0_92 = arith.constant 0 : index
    %117 = vector.load %arg12[%c24_91, %c0_92] : memref<256x128xf32, #tpu.memory_space<vmem>>, vector<8x128xf32>
    tpu.vector_store %arg12[%c24_91, %c0_92], %115 {strides = array<i32>} : memref<256x128xf32, #tpu.memory_space<vmem>>, vector<8x128xf32>,
    %118 = vector.extract_strided_slice %97 {offsets = [16, 0], sizes = [8, 128], strides = [1, 1]} : vector<128x128xf32> to vector<8x128xf32>
    %c32_93 = arith.constant 32 : index
    %c0_94 = arith.constant 0 : index
    %119 = vector.load %arg12[%c32_93, %c0_94] : memref<256x128xf32, #tpu.memory_space<vmem>>, vector<8x128xf32>
    tpu.vector_store %arg12[%c32_93, %c0_94], %118 {strides = array<i32>} : memref<256x128xf32, #tpu.memory_space<vmem>>, vector<8x128xf32>,
    %c40_95 = arith.constant 40 : index
    %c0_96 = arith.constant 0 : index
    %120 = vector.load %arg12[%c40_95, %c0_96] : memref<256x128xf32, #tpu.memory_space<vmem>>, vector<8x128xf32>
    tpu.vector_store %arg12[%c40_95, %c0_96], %118 {strides = array<i32>} : memref<256x128xf32, #tpu.memory_space<vmem>>, vector<8x128xf32>,
    %121 = vector.extract_strided_slice %97 {offsets = [24, 0], sizes = [8, 128], strides = [1, 1]} : vector<128x128xf32> to vector<8x128xf32>
    %c48_97 = arith.constant 48 : index
    %c0_98 = arith.constant 0 : index
    %122 = vector.load %arg12[%c48_97, %c0_98] : memref<256x128xf32, #tpu.memory_space<vmem>>, vector<8x128xf32>
    tpu.vector_store %arg12[%c48_97, %c0_98], %121 {strides = array<i32>} : memref<256x128xf32, #tpu.memory_space<vmem>>, vector<8x128xf32>,
    %c56_99 = arith.constant 56 : index
    %c0_100 = arith.constant 0 : index
    %123 = vector.load %arg12[%c56_99, %c0_100] : memref<256x128xf32, #tpu.memory_space<vmem>>, vector<8x128xf32>
    tpu.vector_store %arg12[%c56_99, %c0_100], %121 {strides = array<i32>} : memref<256x128xf32, #tpu.memory_space<vmem>>, vector<8x128xf32>,
    %124 = vector.extract_strided_slice %97 {offsets = [32, 0], sizes = [8, 128], strides = [1, 1]} : vector<128x128xf32> to vector<8x128xf32>
    %c64 = arith.constant 64 : index
    %c0_101 = arith.constant 0 : index
    %125 = vector.load %arg12[%c64, %c0_101] : memref<256x128xf32, #tpu.memory_space<vmem>>, vector<8x128xf32>
    tpu.vector_store %arg12[%c64, %c0_101], %124 {strides = array<i32>} : memref<256x128xf32, #tpu.memory_space<vmem>>, vector<8x128xf32>,
    %c72 = arith.constant 72 : index
    %c0_102 = arith.constant 0 : index
    %126 = vector.load %arg12[%c72, %c0_102] : memref<256x128xf32, #tpu.memory_space<vmem>>, vector<8x128xf32>
    tpu.vector_store %arg12[%c72, %c0_102], %124 {strides = array<i32>} : memref<256x128xf32, #tpu.memory_space<vmem>>, vector<8x128xf32>,
    %127 = vector.extract_strided_slice %97 {offsets = [40, 0], sizes = [8, 128], strides = [1, 1]} : vector<128x128xf32> to vector<8x128xf32>
    %c80 = arith.constant 80 : index
    %c0_103 = arith.constant 0 : index
    %128 = vector.load %arg12[%c80, %c0_103] : memref<256x128xf32, #tpu.memory_space<vmem>>, vector<8x128xf32>
    tpu.vector_store %arg12[%c80, %c0_103], %127 {strides = array<i32>} : memref<256x128xf32, #tpu.memory_space<vmem>>, vector<8x128xf32>,
    %c88 = arith.constant 88 : index
    %c0_104 = arith.constant 0 : index
    %129 = vector.load %arg12[%c88, %c0_104] : memref<256x128xf32, #tpu.memory_space<vmem>>, vector<8x128xf32>
    tpu.vector_store %arg12[%c88, %c0_104], %127 {strides = array<i32>} : memref<256x128xf32, #tpu.memory_space<vmem>>, vector<8x128xf32>,
    %130 = vector.extract_strided_slice %97 {offsets = [48, 0], sizes = [8, 128], strides = [1, 1]} : vector<128x128xf32> to vector<8x128xf32>
    %c96 = arith.constant 96 : index
    %c0_105 = arith.constant 0 : index
    %131 = vector.load %arg12[%c96, %c0_105] : memref<256x128xf32, #tpu.memory_space<vmem>>, vector<8x128xf32>
    tpu.vector_store %arg12[%c96, %c0_105], %130 {strides = array<i32>} : memref<256x128xf32, #tpu.memory_space<vmem>>, vector<8x128xf32>,
    %c104 = arith.constant 104 : index
    %c0_106 = arith.constant 0 : index
    %132 = vector.load %arg12[%c104, %c0_106] : memref<256x128xf32, #tpu.memory_space<vmem>>, vector<8x128xf32>
    tpu.vector_store %arg12[%c104, %c0_106], %130 {strides = array<i32>} : memref<256x128xf32, #tpu.memory_space<vmem>>, vector<8x128xf32>,
    %133 = vector.extract_strided_slice %97 {offsets = [56, 0], sizes = [8, 128], strides = [1, 1]} : vector<128x128xf32> to vector<8x128xf32>
    %c112 = arith.constant 112 : index
    %c0_107 = arith.constant 0 : index
    %134 = vector.load %arg12[%c112, %c0_107] : memref<256x128xf32, #tpu.memory_space<vmem>>, vector<8x128xf32>
    tpu.vector_store %arg12[%c112, %c0_107], %133 {strides = array<i32>} : memref<256x128xf32, #tpu.memory_space<vmem>>, vector<8x128xf32>,
    %c120 = arith.constant 120 : index
    %c0_108 = arith.constant 0 : index
    %135 = vector.load %arg12[%c120, %c0_108] : memref<256x128xf32, #tpu.memory_space<vmem>>, vector<8x128xf32>
    tpu.vector_store %arg12[%c120, %c0_108], %133 {strides = array<i32>} : memref<256x128xf32, #tpu.memory_space<vmem>>, vector<8x128xf32>,
    %136 = vector.extract_strided_slice %97 {offsets = [64, 0], sizes = [8, 128], strides = [1, 1]} : vector<128x128xf32> to vector<8x128xf32>
    %c128 = arith.constant 128 : index
    %c0_109 = arith.constant 0 : index
    %137 = vector.load %arg12[%c128, %c0_109] : memref<256x128xf32, #tpu.memory_space<vmem>>, vector<8x128xf32>
    tpu.vector_store %arg12[%c128, %c0_109], %136 {strides = array<i32>} : memref<256x128xf32, #tpu.memory_space<vmem>>, vector<8x128xf32>,
    %c136 = arith.constant 136 : index
    %c0_110 = arith.constant 0 : index
    %138 = vector.load %arg12[%c136, %c0_110] : memref<256x128xf32, #tpu.memory_space<vmem>>, vector<8x128xf32>
    tpu.vector_store %arg12[%c136, %c0_110], %136 {strides = array<i32>} : memref<256x128xf32, #tpu.memory_space<vmem>>, vector<8x128xf32>,
    %139 = vector.extract_strided_slice %97 {offsets = [72, 0], sizes = [8, 128], strides = [1, 1]} : vector<128x128xf32> to vector<8x128xf32>
    %c144 = arith.constant 144 : index
    %c0_111 = arith.constant 0 : index
    %140 = vector.load %arg12[%c144, %c0_111] : memref<256x128xf32, #tpu.memory_space<vmem>>, vector<8x128xf32>
    tpu.vector_store %arg12[%c144, %c0_111], %139 {strides = array<i32>} : memref<256x128xf32, #tpu.memory_space<vmem>>, vector<8x128xf32>,
    %c152 = arith.constant 152 : index
    %c0_112 = arith.constant 0 : index
    %141 = vector.load %arg12[%c152, %c0_112] : memref<256x128xf32, #tpu.memory_space<vmem>>, vector<8x128xf32>
    tpu.vector_store %arg12[%c152, %c0_112], %139 {strides = array<i32>} : memref<256x128xf32, #tpu.memory_space<vmem>>, vector<8x128xf32>,
    %142 = vector.extract_strided_slice %97 {offsets = [80, 0], sizes = [8, 128], strides = [1, 1]} : vector<128x128xf32> to vector<8x128xf32>
    %c160 = arith.constant 160 : index
    %c0_113 = arith.constant 0 : index
    %143 = vector.load %arg12[%c160, %c0_113] : memref<256x128xf32, #tpu.memory_space<vmem>>, vector<8x128xf32>
    tpu.vector_store %arg12[%c160, %c0_113], %142 {strides = array<i32>} : memref<256x128xf32, #tpu.memory_space<vmem>>, vector<8x128xf32>,
    %c168 = arith.constant 168 : index
    %c0_114 = arith.constant 0 : index
    %144 = vector.load %arg12[%c168, %c0_114] : memref<256x128xf32, #tpu.memory_space<vmem>>, vector<8x128xf32>
    tpu.vector_store %arg12[%c168, %c0_114], %142 {strides = array<i32>} : memref<256x128xf32, #tpu.memory_space<vmem>>, vector<8x128xf32>,
    %145 = vector.extract_strided_slice %97 {offsets = [88, 0], sizes = [8, 128], strides = [1, 1]} : vector<128x128xf32> to vector<8x128xf32>
    %c176 = arith.constant 176 : index
    %c0_115 = arith.constant 0 : index
    %146 = vector.load %arg12[%c176, %c0_115] : memref<256x128xf32, #tpu.memory_space<vmem>>, vector<8x128xf32>
    tpu.vector_store %arg12[%c176, %c0_115], %145 {strides = array<i32>} : memref<256x128xf32, #tpu.memory_space<vmem>>, vector<8x128xf32>,
    %c184 = arith.constant 184 : index
    %c0_116 = arith.constant 0 : index
    %147 = vector.load %arg12[%c184, %c0_116] : memref<256x128xf32, #tpu.memory_space<vmem>>, vector<8x128xf32>
    tpu.vector_store %arg12[%c184, %c0_116], %145 {strides = array<i32>} : memref<256x128xf32, #tpu.memory_space<vmem>>, vector<8x128xf32>,
    %148 = vector.extract_strided_slice %97 {offsets = [96, 0], sizes = [8, 128], strides = [1, 1]} : vector<128x128xf32> to vector<8x128xf32>
    %c192 = arith.constant 192 : index
    %c0_117 = arith.constant 0 : index
    %149 = vector.load %arg12[%c192, %c0_117] : memref<256x128xf32, #tpu.memory_space<vmem>>, vector<8x128xf32>
    tpu.vector_store %arg12[%c192, %c0_117], %148 {strides = array<i32>} : memref<256x128xf32, #tpu.memory_space<vmem>>, vector<8x128xf32>,
    %c200 = arith.constant 200 : index
    %c0_118 = arith.constant 0 : index
    %150 = vector.load %arg12[%c200, %c0_118] : memref<256x128xf32, #tpu.memory_space<vmem>>, vector<8x128xf32>
    tpu.vector_store %arg12[%c200, %c0_118], %148 {strides = array<i32>} : memref<256x128xf32, #tpu.memory_space<vmem>>, vector<8x128xf32>,
    %151 = vector.extract_strided_slice %97 {offsets = [104, 0], sizes = [8, 128], strides = [1, 1]} : vector<128x128xf32> to vector<8x128xf32>
    %c208 = arith.constant 208 : index
    %c0_119 = arith.constant 0 : index
    %152 = vector.load %arg12[%c208, %c0_119] : memref<256x128xf32, #tpu.memory_space<vmem>>, vector<8x128xf32>
    tpu.vector_store %arg12[%c208, %c0_119], %151 {strides = array<i32>} : memref<256x128xf32, #tpu.memory_space<vmem>>, vector<8x128xf32>,
    %c216 = arith.constant 216 : index
    %c0_120 = arith.constant 0 : index
    %153 = vector.load %arg12[%c216, %c0_120] : memref<256x128xf32, #tpu.memory_space<vmem>>, vector<8x128xf32>
    tpu.vector_store %arg12[%c216, %c0_120], %151 {strides = array<i32>} : memref<256x128xf32, #tpu.memory_space<vmem>>, vector<8x128xf32>,
    %154 = vector.extract_strided_slice %97 {offsets = [112, 0], sizes = [8, 128], strides = [1, 1]} : vector<128x128xf32> to vector<8x128xf32>
    %c224 = arith.constant 224 : index
    %c0_121 = arith.constant 0 : index
    %155 = vector.load %arg12[%c224, %c0_121] : memref<256x128xf32, #tpu.memory_space<vmem>>, vector<8x128xf32>
    tpu.vector_store %arg12[%c224, %c0_121], %154 {strides = array<i32>} : memref<256x128xf32, #tpu.memory_space<vmem>>, vector<8x128xf32>,
    %c232 = arith.constant 232 : index
    %c0_122 = arith.constant 0 : index
    %156 = vector.load %arg12[%c232, %c0_122] : memref<256x128xf32, #tpu.memory_space<vmem>>, vector<8x128xf32>
    tpu.vector_store %arg12[%c232, %c0_122], %154 {strides = array<i32>} : memref<256x128xf32, #tpu.memory_space<vmem>>, vector<8x128xf32>,
    %157 = vector.extract_strided_slice %97 {offsets = [120, 0], sizes = [8, 128], strides = [1, 1]} : vector<128x128xf32> to vector<8x128xf32>
    %c240 = arith.constant 240 : index
    %c0_123 = arith.constant 0 : index
    %158 = vector.load %arg12[%c240, %c0_123] : memref<256x128xf32, #tpu.memory_space<vmem>>, vector<8x128xf32>
    tpu.vector_store %arg12[%c240, %c0_123], %157 {strides = array<i32>} : memref<256x128xf32, #tpu.memory_space<vmem>>, vector<8x128xf32>,
    %c248 = arith.constant 248 : index
    %c0_124 = arith.constant 0 : index
    %159 = vector.load %arg12[%c248, %c0_124] : memref<256x128xf32, #tpu.memory_space<vmem>>, vector<8x128xf32>
    tpu.vector_store %arg12[%c248, %c0_124], %157 {strides = array<i32>} : memref<256x128xf32, #tpu.memory_space<vmem>>, vector<8x128xf32>,
    %c0_125 = arith.constant 0 : index
    %c0_126 = arith.constant 0 : index
    %160 = vector.load %arg12[%c0_125, %c0_126] : memref<256x128xf32, #tpu.memory_space<vmem>>, vector<256x128xf32>
    %c0_127 = arith.constant 0 : index
    %c0_128 = arith.constant 0 : index
    %161 = tpu.strided_load %arg11[%c0_127, %c0_128] {strides = array<i32: 2, 1>} : memref<512x128xf32, #tpu.memory_space<vmem>>, vector<256x128xf32>
    tpu.strided_store %arg11[%c0_127, %c0_128], %160 {strides = array<i32: 2, 1>} : memref<512x128xf32, #tpu.memory_space<vmem>>, vector<256x128xf32>
    %c1_129 = arith.constant 1 : index
    %c0_130 = arith.constant 0 : index
    %162 = tpu.strided_load %arg11[%c1_129, %c0_130] {strides = array<i32: 2, 1>} : memref<512x128xf32, #tpu.memory_space<vmem>>, vector<256x128xf32>
    tpu.strided_store %arg11[%c1_129, %c0_130], %160 {strides = array<i32: 2, 1>} : memref<512x128xf32, #tpu.memory_space<vmem>>, vector<256x128xf32>
    %c0_131 = arith.constant 0 : index
    %c0_132 = arith.constant 0 : index
    %163 = vector.load %arg11[%c0_131, %c0_132] : memref<512x128xf32, #tpu.memory_space<vmem>>, vector<512x128xf32>
    %164 = arith.addf %111, %163 : vector<512x128xf32>
    %165 = arith.mulf %164, %164 : vector<512x128xf32>
    %166 = vector.shape_cast %165 : vector<512x128xf32> to vector<1x512x128xf32>
    %cst_133 = arith.constant dense<0.000000e+00> : vector<1xf32>
    %167 = vector.multi_reduction <add>, %166, %cst_133 [1, 2] : vector<1x512x128xf32> to vector<1xf32>
    %168 = vector.shape_cast %167 : vector<1xf32> to vector<1x1x1xf32>
    %169 = vector.extract %168[0, 0, 0] : f32 from vector<1x1x1xf32>
    %170 = tpu.iota {dimensions = array<i32: 1>} : vector<8x128xi32>
    %c0_i32 = arith.constant 0 : i32
    %171 = vector.broadcast %c0_i32 : i32 to vector<8x128xi32>
    %172 = arith.cmpi eq, %170, %171 : vector<8x128xi32>
    %cst_134 = arith.constant 0.000000e+00 : f32
    %173 = vector.broadcast %169 : f32 to vector<8x128xf32>
    %174 = vector.broadcast %cst_134 : f32 to vector<8x128xf32>
    %175 = arith.select %172, %173, %174 : vector<8x128xi1>, vector<8x128xf32>
    %c1_i32 = arith.constant 1 : i32
    %176 = vector.broadcast %c1_i32 : i32 to vector<8x128xi32>
    %177 = arith.cmpi eq, %170, %176 : vector<8x128xi32>
    %cst_135 = arith.constant 0.000000e+00 : f32
    %178 = vector.broadcast %102 : f32 to vector<8x128xf32>
    %179 = vector.broadcast %cst_135 : f32 to vector<8x128xf32>
    %180 = arith.select %177, %178, %179 : vector<8x128xi1>, vector<8x128xf32>
    %181 = arith.addf %175, %180 : vector<8x128xf32>
    %c2_i32 = arith.constant 2 : i32
    %182 = vector.broadcast %c2_i32 : i32 to vector<8x128xi32>
    %183 = arith.cmpi eq, %170, %182 : vector<8x128xi32>
    %cst_136 = arith.constant 0.000000e+00 : f32
    %184 = vector.broadcast %59 : f32 to vector<8x128xf32>
    %185 = vector.broadcast %cst_136 : f32 to vector<8x128xf32>
    %186 = arith.select %183, %184, %185 : vector<8x128xi1>, vector<8x128xf32>
    %187 = arith.addf %181, %186 : vector<8x128xf32>
    %c3_i32 = arith.constant 3 : i32
    %188 = vector.broadcast %c3_i32 : i32 to vector<8x128xi32>
    %189 = arith.cmpi eq, %170, %188 : vector<8x128xi32>
    %cst_137 = arith.constant 0.000000e+00 : f32
    %190 = vector.broadcast %14 : f32 to vector<8x128xf32>
    %191 = vector.broadcast %cst_137 : f32 to vector<8x128xf32>
    %192 = arith.select %189, %190, %191 : vector<8x128xi1>, vector<8x128xf32>
    %193 = arith.addf %187, %192 : vector<8x128xf32>
    %c4_i32 = arith.constant 4 : i32
    %194 = vector.broadcast %c4_i32 : i32 to vector<8x128xi32>
    %195 = arith.cmpi eq, %170, %194 : vector<8x128xi32>
    %cst_138 = arith.constant 0.000000e+00 : f32
    %196 = vector.broadcast %28 : f32 to vector<8x128xf32>
    %197 = vector.broadcast %cst_138 : f32 to vector<8x128xf32>
    %198 = arith.select %195, %196, %197 : vector<8x128xi1>, vector<8x128xf32>
    %199 = arith.addf %193, %198 : vector<8x128xf32>
    %c0_139 = arith.constant 0 : index
    %c0_140 = arith.constant 0 : index
    %c0_141 = arith.constant 0 : index
    %200 = vector.load %arg10[%c0_139, %c0_140, %c0_141] : memref<1x8x128xf32, #tpu.memory_space<vmem>>, vector<1x8x128xf32>
    %201 = vector.shape_cast %200 : vector<1x8x128xf32> to vector<8x128xf32>
    %202 = vector.shape_cast %199 : vector<8x128xf32> to vector<1x8x128xf32>
    tpu.vector_store %arg10[%c0_139, %c0_140, %c0_141], %202 {strides = array<i32>} : memref<1x8x128xf32, #tpu.memory_space<vmem>>, vector<1x8x128xf32>,
    return
  }
  func.func @transform_0(%arg0: i32) -> (i32, i32) {
    %c0_i32 = arith.constant 0 : i32
    %c0_i32_0 = arith.constant 0 : i32
    return %arg0, %c0_i32 : i32, i32
  }
  func.func @transform_1(%arg0: i32) -> (i32, i32) {
    %c1_i32 = arith.constant 1 : i32
    %0 = arith.addi %arg0, %c1_i32 : i32
    %c0_i32 = arith.constant 0 : i32
    %c0_i32_0 = arith.constant 0 : i32
    return %0, %c0_i32 : i32, i32
  }
  func.func @transform_2(%arg0: i32) -> (i32, i32) {
    %c0_i32 = arith.constant 0 : i32
    %c0_i32_0 = arith.constant 0 : i32
    return %arg0, %c0_i32 : i32, i32
  }
  func.func @transform_3(%arg0: i32) -> (i32, i32) {
    %c1_i32 = arith.constant 1 : i32
    %0 = arith.addi %arg0, %c1_i32 : i32
    %c0_i32 = arith.constant 0 : i32
    %c0_i32_0 = arith.constant 0 : i32
    return %0, %c0_i32 : i32, i32
  }
  func.func @transform_4(%arg0: i32) -> (i32, i32) {
    %c0_i32 = arith.constant 0 : i32
    %c0_i32_0 = arith.constant 0 : i32
    return %arg0, %c0_i32 : i32, i32
  }
  func.func @transform_5(%arg0: i32) -> (i32, i32) {
    %c1_i32 = arith.constant 1 : i32
    %0 = arith.addi %arg0, %c1_i32 : i32
    %c0_i32 = arith.constant 0 : i32
    %c0_i32_0 = arith.constant 0 : i32
    return %0, %c0_i32 : i32, i32
  }
  func.func @transform_6(%arg0: i32) -> (i32, i32) {
    %c0_i32 = arith.constant 0 : i32
    %c0_i32_0 = arith.constant 0 : i32
    return %arg0, %c0_i32 : i32, i32
  }
  func.func @transform_7(%arg0: i32) -> (i32, i32) {
    %c1_i32 = arith.constant 1 : i32
    %0 = arith.addi %arg0, %c1_i32 : i32
    %c0_i32 = arith.constant 0 : i32
    %c0_i32_0 = arith.constant 0 : i32
    return %0, %c0_i32 : i32, i32
  }
  func.func @transform_8(%arg0: i32) -> (i32, i32, i32) {
    %c0_i32 = arith.constant 0 : i32
    %c0_i32_0 = arith.constant 0 : i32
    %c0_i32_1 = arith.constant 0 : i32
    %c0_i32_2 = arith.constant 0 : i32
    return %c0_i32, %c0_i32_0, %c0_i32_1 : i32, i32, i32
  }
  func.func @transform_9(%arg0: i32) -> (i32, i32, i32) {
    %c0_i32 = arith.constant 0 : i32
    %c0_i32_0 = arith.constant 0 : i32
    %c0_i32_1 = arith.constant 0 : i32
    return %arg0, %c0_i32, %c0_i32_0 : i32, i32, i32
  }
}

</mosaic_0001>

<llo_original>
// kernel: task_loss.5
$region0: #{task_loss.5}
  #allocation0 [shape = 'u32[]', space=smem, size = 0x4, offset = 0x4, fixed_abs, tag = 'smem constant byte address 0x4 - core index']
  #allocation1 [shape = 'u32[144,128]{1,0:T(1,128)}', space=vmem, size = 0x12000, scoped, tag = 'internal scratch']
  %s0 = inlined_call_operand.vmem [shape: bf16[2048,24], index: 0, kind: input, shape index: {}]
  %s1 = inlined_call_operand.vmem [shape: bf16[24,256], index: 1, kind: input, shape index: {}]
  %s2 = inlined_call_operand.vmem [shape: f32[1,256], index: 2, kind: input, shape index: {}]
  %s3 = inlined_call_operand.vmem [shape: bf16[512,128], index: 3, kind: input, shape index: {}]
  %s4 = inlined_call_operand.vmem [shape: f32[1,128], index: 4, kind: input, shape index: {}]
  %s5 = inlined_call_operand.vmem [shape: bf16[1024,128], index: 5, kind: output, shape index: {}]
  %s6 = sld [smem:[#allocation0]]
  $region53: #{task_loss.5} parent=0
    _
  %s8 = ssub.s32 1, %s6
  %s9 = scalar_select 0, %s8, %s6
  loop: start=0, step=1, limit=10
  $region2: #{task_loss.5} parent=0 // loop_pre_header
    _
  $region3: #{task_loss.5} parent=0 // loop_header
    %s11 = sphi 0, %s15
    %p12 = scmp.ge.s32.totalorder %s11, 10
    %s21 = sphi 0, %s23
    %s24 = sphi 0, %s21
    %s25 = sphi 0, %s24
    %s41 = sphi 0, %s25
    %s45 = sphi 0, %s45
    %s47 = sphi 0, %s45
    %s48 = sphi 0, %s47
    %s62 = sphi 0, %s48
    %s66 = sphi 0, %s66
    %s68 = sphi 0, %s66
    %s69 = sphi 0, %s68
    %s83 = sphi 0, %s69
    %s87 = sphi 0, %s87
    %s89 = sphi 0, %s87
    %s90 = sphi 0, %s89
    %s104 = sphi 0, %s90
    %s108 = sphi 0, %s108
    %s110 = sphi 0, %s108
    %s111 = sphi 0, %s110
    %s125 = sphi 0, %s111
    %s131 = sphi 0, %s133
    %s134 = sphi 0, %s131
    %s135 = sphi 0, %s134
    %s151 = sphi 0, %s135
  $region4: #{task_loss.5} parent=0 // loop_header_branch
    %14 = sbr.rel (%p12) target = $region8
  $region5: #{task_loss.5} parent=0 // loop_body
    %s16 = ssub.s32 %s11, 1
    %s17 = ssub.s32 %s11, 2
    %s18 = sadd.s32 %s11, 1
    %s19 = ssub.s32 %s11, %s18
    %p20 = scmp.eq.s32.totalorder %s19, 0
    %s22 = sadd.s32 %s21, 1
    %s23 = scalar_select %p20, %s21, %s22
    %p26 = pneg %p20
    %p27 = scmp.eq.s32.totalorder %s11, 7
    %p28 = por %p26, %p27
    %p29 = scmp.ne.s32.totalorder %s21, %s24
    %p30 = scmp.eq.s32.totalorder %s11, 0
    %p31 = por %p29, %p30
    %p32 = scmp.ne.s32.totalorder %s21, %s24
    %p33 = scmp.eq.s32.totalorder %s16, 7
    %p34 = por %p32, %p33
    %p35 = scmp.ne.s32.totalorder %s24, %s25
    %p36 = scmp.eq.s32.totalorder %s16, 0
    %p37 = por %p35, %p36
    %p38 = scmp.ne.s32.totalorder %s24, %s25
    %p39 = scmp.eq.s32.totalorder %s17, 7
    %p40 = por %p38, %p39
    %p42 = scmp.ne.s32.totalorder %s25, %s41
    %p43 = scmp.eq.s32.totalorder %s17, 0
    %p44 = por %p42, %p43
    %s46 = sadd.s32 %s45, 1
    %p49 = scmp.eq.s32.totalorder %s11, 7
    %p50 = scmp.ne.s32.totalorder %s45, %s47
    %p51 = scmp.eq.s32.totalorder %s11, 0
    %p52 = por %p50, %p51
    %p53 = scmp.ne.s32.totalorder %s45, %s47
    %p54 = scmp.eq.s32.totalorder %s16, 7
    %p55 = por %p53, %p54
    %p56 = scmp.ne.s32.totalorder %s47, %s48
    %p57 = scmp.eq.s32.totalorder %s16, 0
    %p58 = por %p56, %p57
    %p59 = scmp.ne.s32.totalorder %s47, %s48
    %p60 = scmp.eq.s32.totalorder %s17, 7
    %p61 = por %p59, %p60
    %p63 = scmp.ne.s32.totalorder %s48, %s62
    %p64 = scmp.eq.s32.totalorder %s17, 0
    %p65 = por %p63, %p64
    %s67 = sadd.s32 %s66, 1
    %p70 = scmp.eq.s32.totalorder %s11, 7
    %p71 = scmp.ne.s32.totalorder %s66, %s68
    %p72 = scmp.eq.s32.totalorder %s11, 0
    %p73 = por %p71, %p72
    %p74 = scmp.ne.s32.totalorder %s66, %s68
    %p75 = scmp.eq.s32.totalorder %s16, 7
    %p76 = por %p74, %p75
    %p77 = scmp.ne.s32.totalorder %s68, %s69
    %p78 = scmp.eq.s32.totalorder %s16, 0
    %p79 = por %p77, %p78
    %p80 = scmp.ne.s32.totalorder %s68, %s69
    %p81 = scmp.eq.s32.totalorder %s17, 7
    %p82 = por %p80, %p81
    %p84 = scmp.ne.s32.totalorder %s69, %s83
    %p85 = scmp.eq.s32.totalorder %s17, 0
    %p86 = por %p84, %p85
    %s88 = sadd.s32 %s87, 1
    %p91 = scmp.eq.s32.totalorder %s11, 7
    %p92 = scmp.ne.s32.totalorder %s87, %s89
    %p93 = scmp.eq.s32.totalorder %s11, 0
    %p94 = por %p92, %p93
    %p95 = scmp.ne.s32.totalorder %s87, %s89
    %p96 = scmp.eq.s32.totalorder %s16, 7
    %p97 = por %p95, %p96
    %p98 = scmp.ne.s32.totalorder %s89, %s90
    %p99 = scmp.eq.s32.totalorder %s16, 0
    %p100 = por %p98, %p99
    %p101 = scmp.ne.s32.totalorder %s89, %s90
    %p102 = scmp.eq.s32.totalorder %s17, 7
    %p103 = por %p101, %p102
    %p105 = scmp.ne.s32.totalorder %s90, %s104
    %p106 = scmp.eq.s32.totalorder %s17, 0
    %p107 = por %p105, %p106
    %s109 = sadd.s32 %s108, 1
    %p112 = scmp.eq.s32.totalorder %s11, 7
    %p113 = scmp.ne.s32.totalorder %s108, %s110
    %p114 = scmp.eq.s32.totalorder %s11, 0
    %p115 = por %p113, %p114
    %p116 = scmp.ne.s32.totalorder %s108, %s110
    %p117 = scmp.eq.s32.totalorder %s16, 7
    %p118 = por %p116, %p117
    %p119 = scmp.ne.s32.totalorder %s110, %s111
    %p120 = scmp.eq.s32.totalorder %s16, 0
    %p121 = por %p119, %p120
    %p122 = scmp.ne.s32.totalorder %s110, %s111
    %p123 = scmp.eq.s32.totalorder %s17, 7
    %p124 = por %p122, %p123
    %p126 = scmp.ne.s32.totalorder %s111, %s125
    %p127 = scmp.eq.s32.totalorder %s17, 0
    %p128 = por %p126, %p127
    %s129 = ssub.s32 %s11, %s18
    %p130 = scmp.eq.s32.totalorder %s129, 0
    %s132 = sadd.s32 %s131, 1
    %s133 = scalar_select %p130, %s131, %s132
    %p136 = pneg %p130
    %p137 = scmp.eq.s32.totalorder %s11, 7
    %p138 = por %p136, %p137
    %p139 = scmp.ne.s32.totalorder %s131, %s134
    %p140 = scmp.eq.s32.totalorder %s11, 0
    %p141 = por %p139, %p140
    %p142 = scmp.ne.s32.totalorder %s131, %s134
    %p143 = scmp.eq.s32.totalorder %s16, 7
    %p144 = por %p142, %p143
    %p145 = scmp.ne.s32.totalorder %s134, %s135
    %p146 = scmp.eq.s32.totalorder %s16, 0
    %p147 = por %p145, %p146
    %p148 = scmp.ne.s32.totalorder %s134, %s135
    %p149 = scmp.eq.s32.totalorder %s17, 7
    %p150 = por %p148, %p149
    %p152 = scmp.ne.s32.totalorder %s135, %s151
    %p153 = scmp.eq.s32.totalorder %s17, 0
    %p154 = por %p152, %p153
    %p155 = scmp.le.s32.totalorder 1, %s11
    %p156 = scmp.lt.s32.totalorder %s11, 9
    %p157 = pnand %p155, %p156
    %p158 = pneg %p157
    // Predicated region
    $region9: #{task_loss.5} parent=5 // pred_check
      _
    $region10: #{task_loss.5} parent=5 // pred_check_branch
      %160 = sbr.rel (%p157) target = $region12
    $region11: #{task_loss.5} parent=5 // pred_region
      %s161 = ssub.s32 %s11, 1
      // Predicated region
      $region13: #{task_loss.5} parent=11 // pred_check
        %p162 = pneg %p58
      $region14: #{task_loss.5} parent=11 // pred_check_branch
        %164 = sbr.rel (%p162) target = $region16
      $region15: #{task_loss.5} parent=11 // pred_region
        _
      $region16: #{task_loss.5} parent=11 // pred_fallthru
        _
      // Predicated region
      $region17: #{task_loss.5} parent=11 // pred_check
        %p165 = pneg %p79
      $region18: #{task_loss.5} parent=11 // pred_check_branch
        %167 = sbr.rel (%p165) target = $region20
      $region19: #{task_loss.5} parent=11 // pred_region
        _
      $region20: #{task_loss.5} parent=11 // pred_fallthru
        _
      // Predicated region
      $region21: #{task_loss.5} parent=11 // pred_check
        %p168 = pneg %p100
      $region22: #{task_loss.5} parent=11 // pred_check_branch
        %170 = sbr.rel (%p168) target = $region24
      $region23: #{task_loss.5} parent=11 // pred_region
        _
      $region24: #{task_loss.5} parent=11 // pred_fallthru
        _
      // Predicated region
      $region25: #{task_loss.5} parent=11 // pred_check
        %p171 = pneg %p121
      $region26: #{task_loss.5} parent=11 // pred_check_branch
        %173 = sbr.rel (%p171) target = $region28
      $region27: #{task_loss.5} parent=11 // pred_region
        _
      $region28: #{task_loss.5} parent=11 // pred_fallthru
        _
    $region12: #{task_loss.5} parent=5 // pred_fallthru
      _
    %p174 = scmp.lt.s32.totalorder %s11, 8
    // Predicated region
    $region29: #{task_loss.5} parent=5 // pred_check
      %p175 = pneg %p174
    $region30: #{task_loss.5} parent=5 // pred_check_branch
      %177 = sbr.rel (%p175) target = $region32
    $region31: #{task_loss.5} parent=5 // pred_region
      // Predicated region
      $region33: #{task_loss.5} parent=31 // pred_check
        %p178 = pneg %p31
      $region34: #{task_loss.5} parent=31 // pred_check_branch
        %180 = sbr.rel (%p178) target = $region36
      $region35: #{task_loss.5} parent=31 // pred_region
        %s181 = smul.u32 32, %s11
        %p182 = scmp.lt.s32.totalorder %s181, 255
        %s183 = scalar_select %p182, %s181, 255
        %s184 = smul.addr %s183, 4
        %s185 = scalar_lea.vmem %s0, %s184
        %s186 = smul.u32 32, %s11
      $region36: #{task_loss.5} parent=31 // pred_fallthru
        _
    $region32: #{task_loss.5} parent=5 // pred_fallthru
      _
    %p187 = scmp.le.s32.totalorder 1, %s11
    %p188 = scmp.lt.s32.totalorder %s11, 9
    %p189 = pnand %p187, %p188
    %p190 = pneg %p189
    // Predicated region
    $region37: #{task_loss.5} parent=5 // pred_check
      _
    $region38: #{task_loss.5} parent=5 // pred_check_branch
      %192 = sbr.rel (%p189) target = $region40
    $region39: #{task_loss.5} parent=5 // pred_region
      %s193 = ssub.s32 %s11, 1
      %s194 = smul.u32 32, %s16
      %p195 = scmp.lt.s32.totalorder %s194, 255
      %s196 = scalar_select %p195, %s194, 255
      %s197 = smul.addr %s196, 4
      %s198 = scalar_lea.vmem %s0, %s197
      %p199 = pneg %p37
      %p200 = pneg %p34
      %p201 = pneg %p58
      %p202 = pneg %p55
      %p203 = pneg %p79
      %p204 = pneg %p76
      %p205 = pneg %p100
      %p206 = pneg %p97
      %p207 = pneg %p121
      %p208 = pneg %p118
      %p209 = pneg %p147
      %p210 = pneg %p144
      %s211 = smul.u32 16, %s16
      %p212 = scmp.lt.s32.totalorder %s211, 127
      %s213 = scalar_select %p212, %s211, 127
      %s214 = smul.addr %s213, 4
      %s215 = scalar_lea.vmem %s5, %s214
      %s216 = smul.u32 32, %s16
      %p217 = scmp.lt.s32.totalorder %s216, 255
      %s218 = scalar_select %p217, %s216, 255
      %s219 = smul.addr %s218, 4
      %s220 = scalar_lea.vmem %s0, %s219
      %s221 = smul.u32 32, %s16
      %s222 = smul.u32 16, %s16
      %p223 = scmp.lt.s32.totalorder %s222, 127
      %s224 = scalar_select %p223, %s222, 127
      %s225 = smul.addr %s224, 4
      %s226 = scalar_lea.vmem %s5, %s225
      %s227 = smul.u32 16, %s16
      %v229 = vld [vmem:[%s1] sm:$0xff]
      %v230 = vld [vmem:[%s1 + $0x8] sm:$0xff]
      %v231 = vld [vmem:[%s1 + $0x10] sm:$0xff]
      %v232 = vld [vmem:[%s2] sm:$0x3]
      %v233 = vld [vmem:[%s3] sm:$0xf]
      %v234 = vld [vmem:[%s3 + $0x4] sm:$0xf]
      %v235 = vld [vmem:[%s3 + $0x8] sm:$0xf]
      %v236 = vld [vmem:[%s3 + $0xc] sm:$0xf]
      %v237 = vld [vmem:[%s3 + $0x10] sm:$0xf]
      %v238 = vld [vmem:[%s3 + $0x14] sm:$0xf]
      %v239 = vld [vmem:[%s3 + $0x18] sm:$0xf]
      %v240 = vld [vmem:[%s3 + $0x1c] sm:$0xf]
      %v241 = vld [vmem:[%s3 + $0x20] sm:$0xf]
      %v242 = vld [vmem:[%s3 + $0x24] sm:$0xf]
      %v243 = vld [vmem:[%s3 + $0x28] sm:$0xf]
      %v244 = vld [vmem:[%s3 + $0x2c] sm:$0xf]
      %v245 = vld [vmem:[%s3 + $0x30] sm:$0xf]
      %v246 = vld [vmem:[%s3 + $0x34] sm:$0xf]
      %v247 = vld [vmem:[%s3 + $0x38] sm:$0xf]
      %v248 = vld [vmem:[%s3 + $0x3c] sm:$0xf]
      %v249 = vld [vmem:[%s3 + $0x40] sm:$0xf]
      %v250 = vld [vmem:[%s3 + $0x44] sm:$0xf]
      %v251 = vld [vmem:[%s3 + $0x48] sm:$0xf]
      %v252 = vld [vmem:[%s3 + $0x4c] sm:$0xf]
      %v253 = vld [vmem:[%s3 + $0x50] sm:$0xf]
      %v254 = vld [vmem:[%s3 + $0x54] sm:$0xf]
      %v255 = vld [vmem:[%s3 + $0x58] sm:$0xf]
      %v256 = vld [vmem:[%s3 + $0x5c] sm:$0xf]
      %v257 = vld [vmem:[%s3 + $0x60] sm:$0xf]
      %v258 = vld [vmem:[%s3 + $0x64] sm:$0xf]
      %v259 = vld [vmem:[%s3 + $0x68] sm:$0xf]
      %v260 = vld [vmem:[%s3 + $0x6c] sm:$0xf]
      %v261 = vld [vmem:[%s3 + $0x70] sm:$0xf]
      %v262 = vld [vmem:[%s3 + $0x74] sm:$0xf]
      %v263 = vld [vmem:[%s3 + $0x78] sm:$0xf]
      %v264 = vld [vmem:[%s3 + $0x7c] sm:$0xf]
      %v265 = vld [vmem:[%s3 + $0x80] sm:$0xf]
      %v266 = vld [vmem:[%s3 + $0x84] sm:$0xf]
      %v267 = vld [vmem:[%s3 + $0x88] sm:$0xf]
      %v268 = vld [vmem:[%s3 + $0x8c] sm:$0xf]
      %v269 = vld [vmem:[%s3 + $0x90] sm:$0xf]
      %v270 = vld [vmem:[%s3 + $0x94] sm:$0xf]
      %v271 = vld [vmem:[%s3 + $0x98] sm:$0xf]
      %v272 = vld [vmem:[%s3 + $0x9c] sm:$0xf]
      %v273 = vld [vmem:[%s3 + $0xa0] sm:$0xf]
      %v274 = vld [vmem:[%s3 + $0xa4] sm:$0xf]
      %v275 = vld [vmem:[%s3 + $0xa8] sm:$0xf]
      %v276 = vld [vmem:[%s3 + $0xac] sm:$0xf]
      %v277 = vld [vmem:[%s3 + $0xb0] sm:$0xf]
      %v278 = vld [vmem:[%s3 + $0xb4] sm:$0xf]
      %v279 = vld [vmem:[%s3 + $0xb8] sm:$0xf]
      %v280 = vld [vmem:[%s3 + $0xbc] sm:$0xf]
      %v281 = vld [vmem:[%s3 + $0xc0] sm:$0xf]
      %v282 = vld [vmem:[%s3 + $0xc4] sm:$0xf]
      %v283 = vld [vmem:[%s3 + $0xc8] sm:$0xf]
      %v284 = vld [vmem:[%s3 + $0xcc] sm:$0xf]
      %v285 = vld [vmem:[%s3 + $0xd0] sm:$0xf]
      %v286 = vld [vmem:[%s3 + $0xd4] sm:$0xf]
      %v287 = vld [vmem:[%s3 + $0xd8] sm:$0xf]
      %v288 = vld [vmem:[%s3 + $0xdc] sm:$0xf]
      %v289 = vld [vmem:[%s3 + $0xe0] sm:$0xf]
      %v290 = vld [vmem:[%s3 + $0xe4] sm:$0xf]
      %v291 = vld [vmem:[%s3 + $0xe8] sm:$0xf]
      %v292 = vld [vmem:[%s3 + $0xec] sm:$0xf]
      %v293 = vld [vmem:[%s3 + $0xf0] sm:$0xf]
      %v294 = vld [vmem:[%s3 + $0xf4] sm:$0xf]
      %v295 = vld [vmem:[%s3 + $0xf8] sm:$0xf]
      %v296 = vld [vmem:[%s3 + $0xfc] sm:$0xf]
      %v297 = vld [vmem:[%s4] sm:$0x1]
      %v298 = vld [vmem:[%s220] sm:$0xf]
      %v299 = vld [vmem:[%s220 + $0x4] sm:$0xf]
      %v300 = vld [vmem:[%s220 + $0x8] sm:$0xf]
      %v301 = vld [vmem:[%s220 + $0xc] sm:$0xf]
      %v303 = vlaneseq
      %v304 = vshrl.u32 %v303, 7
      %v305 = vsub.s32 0, %v304
      %v306 = vrot.slane %v232, %v305
      %v307 = vlaneseq
      %v308 = vshrl.u32 %v307, 7
      %v309 = vsub.s32 1, %v308
      %v310 = vrot.slane %v232, %v309
      %v315 = vunpack.c.l.b16 %v298
      %v316 = vunpack.c.l.b16 %v299
      %v317 = vpack.c.b16 %v316, %v315
      %v321 = vunpack.c.l.b16 %v229
      %v322 = vunpack.c.h.b16 %v229
      %v323 = vunpack.c.l.b16 %v230
      %v324 = vunpack.c.h.b16 %v230
      %v325 = vunpack.c.l.b16 %v231
      %v326 = vunpack.c.h.b16 %v231
      %v327 = vpack.c.b16 %v323, %v321
      %v328 = vpack.c.b16 %v324, %v322
      %v329 = vpack.c.b16 %v325, %v325
      %v330 = vpack.c.b16 %v326, %v326
      %vm333 = vcmask 195584
      %v335 = vsel %vm333, %v317, 0
      %vm337 = vcmask 1043456
      %v339 = vsel %vm337, %v329, 0
      %v342 = vsel %vm337, %v330, 0
      %344 = vmatprep.subr.bf16.mxu0 0
      %345 = vmatpush1.bf16.msra.mxu0 0
      %346 = vmatprep.subr.bf16.mxu0 0
      %347 = vmatpush1.bf16.msra.mxu0 0
      %348 = vmatprep.subr.bf16.mxu0 0
      %349 = vmatpush1.bf16.msra.mxu0 0
      %350 = vmatprep.subr.bf16.mxu0 0
      %351 = vmatpush1.bf16.msra.mxu0 0
      %352 = vmatprep.subr.bf16.mxu0 0
      %353 = vmatpush1.bf16.msra.mxu0 0
      %354 = vmatprep.subr.bf16.mxu0 0
      %355 = vmatpush1.bf16.msra.mxu0 0
      %356 = vmatprep.subr.bf16.mxu0 %v342
      %357 = vmatpush1.bf16.msra.mxu0 %v339
      %358 = vmatprep.subr.bf16.mxu0 %v328
      %359 = vmatpush1.bf16.msra.mxu0 %v327
      %360 = vmatprep.subr.bf16.mxu0 0
      %361 = vmatpush2.bf16.msra.mxu0 0
      %362 = vmatprep.subr.bf16.mxu0 0
      %363 = vmatpush2.bf16.msra.mxu0 0
      %364 = vmatprep.subr.bf16.mxu0 0
      %365 = vmatpush2.bf16.msra.mxu0 0
      %366 = vmatprep.subr.bf16.mxu0 0
      %367 = vmatpush2.bf16.msra.mxu0 0
      %368 = vmatprep.subr.bf16.mxu0 0
      %369 = vmatpush2.bf16.msra.mxu0 0
      %370 = vmatprep.subr.bf16.mxu0 0
      %371 = vmatpush2.bf16.msra.mxu0 0
      %372 = vmatprep.subr.bf16.mxu0 0
      %373 = vmatpush2.bf16.msra.mxu0 0
      %374 = vmatprep.subr.bf16.mxu0 0
      %375 = vmatpush2.bf16.msra.mxu0 0
      %376 = vmatprep.mubr.bf16.mxu0 0
      %377 = vmatmul.mubr.bf16.gmra.mxu0 %v335
      %v378 = vpop.f32.mrf.mxu0
      %v379 = vadd.f32 %v306, %v378
      %v380 = vpop.f32.mrf.mxu0
      %v381 = vadd.f32 %v310, %v380
      %v382 = vpop.f32.mrf.mxu0
      %v383 = vadd.f32 %v306, %v382
      %v384 = vpop.f32.mrf.mxu0
      %v385 = vadd.f32 %v310, %v384
      %386 = vdwg.mxu0
      %v387 = vmax.f32 %v379, 0.0
      %v388 = vmax.f32 %v381, 0.0
      %v389 = vmax.f32 %v383, 0.0
      %v390 = vmax.f32 %v385, 0.0
      %v391 = vpack.c.bf16 %v389, %v387
      %v392 = vpack.c.bf16 %v390, %v388
      %v395 = vunpack.c.l.b16 %v300
      %v396 = vunpack.c.l.b16 %v301
      %v397 = vpack.c.b16 %v396, %v395
      %v399 = vsel %vm333, %v397, 0
      %401 = vmatprep.subr.bf16.mxu0 0
      %402 = vmatpush1.bf16.msra.mxu0 0
      %403 = vmatprep.subr.bf16.mxu0 0
      %404 = vmatpush1.bf16.msra.mxu0 0
      %405 = vmatprep.subr.bf16.mxu0 0
      %406 = vmatpush1.bf16.msra.mxu0 0
      %407 = vmatprep.subr.bf16.mxu0 0
      %408 = vmatpush1.bf16.msra.mxu0 0
      %409 = vmatprep.subr.bf16.mxu0 0
      %410 = vmatpush1.bf16.msra.mxu0 0
      %411 = vmatprep.subr.bf16.mxu0 0
      %412 = vmatpush1.bf16.msra.mxu0 0
      %413 = vmatprep.subr.bf16.mxu0 %v342
      %414 = vmatpush1.bf16.msra.mxu0 %v339
      %415 = vmatprep.subr.bf16.mxu0 %v328
      %416 = vmatpush1.bf16.msra.mxu0 %v327
      %417 = vmatprep.subr.bf16.mxu0 0
      %418 = vmatpush2.bf16.msra.mxu0 0
      %419 = vmatprep.subr.bf16.mxu0 0
      %420 = vmatpush2.bf16.msra.mxu0 0
      %421 = vmatprep.subr.bf16.mxu0 0
      %422 = vmatpush2.bf16.msra.mxu0 0
      %423 = vmatprep.subr.bf16.mxu0 0
      %424 = vmatpush2.bf16.msra.mxu0 0
      %425 = vmatprep.subr.bf16.mxu0 0
      %426 = vmatpush2.bf16.msra.mxu0 0
      %427 = vmatprep.subr.bf16.mxu0 0
      %428 = vmatpush2.bf16.msra.mxu0 0
      %429 = vmatprep.subr.bf16.mxu0 0
      %430 = vmatpush2.bf16.msra.mxu0 0
      %431 = vmatprep.subr.bf16.mxu0 0
      %432 = vmatpush2.bf16.msra.mxu0 0
      %433 = vmatprep.mubr.bf16.mxu0 0
      %434 = vmatmul.mubr.bf16.gmra.mxu0 %v399
      %v435 = vpop.f32.mrf.mxu0
      %v436 = vadd.f32 %v306, %v435
      %v437 = vpop.f32.mrf.mxu0
      %v438 = vadd.f32 %v310, %v437
      %v439 = vpop.f32.mrf.mxu0
      %v440 = vadd.f32 %v306, %v439
      %v441 = vpop.f32.mrf.mxu0
      %v442 = vadd.f32 %v310, %v441
      %443 = vdwg.mxu0
      %v444 = vmax.f32 %v436, 0.0
      %v445 = vmax.f32 %v438, 0.0
      %v446 = vmax.f32 %v440, 0.0
      %v447 = vmax.f32 %v442, 0.0
      %v448 = vpack.c.bf16 %v446, %v444
      %v449 = vpack.c.bf16 %v447, %v445
      %v482 = vunpack.c.l.b16 %v265
      %v483 = vunpack.c.l.b16 %v266
      %v484 = vunpack.c.l.b16 %v267
      %v485 = vunpack.c.l.b16 %v268
      %v486 = vunpack.c.l.b16 %v269
      %v487 = vunpack.c.l.b16 %v270
      %v488 = vunpack.c.l.b16 %v271
      %v489 = vunpack.c.l.b16 %v272
      %v490 = vunpack.c.l.b16 %v273
      %v491 = vunpack.c.l.b16 %v274
      %v492 = vunpack.c.l.b16 %v275
      %v493 = vunpack.c.l.b16 %v276
      %v494 = vunpack.c.l.b16 %v277
      %v495 = vunpack.c.l.b16 %v278
      %v496 = vunpack.c.l.b16 %v279
      %v497 = vunpack.c.l.b16 %v280
      %v498 = vunpack.c.l.b16 %v281
      %v499 = vunpack.c.l.b16 %v282
      %v500 = vunpack.c.l.b16 %v283
      %v501 = vunpack.c.l.b16 %v284
      %v502 = vunpack.c.l.b16 %v285
      %v503 = vunpack.c.l.b16 %v286
      %v504 = vunpack.c.l.b16 %v287
      %v505 = vunpack.c.l.b16 %v288
      %v506 = vunpack.c.l.b16 %v289
      %v507 = vunpack.c.l.b16 %v290
      %v508 = vunpack.c.l.b16 %v291
      %v509 = vunpack.c.l.b16 %v292
      %v510 = vunpack.c.l.b16 %v293
      %v511 = vunpack.c.l.b16 %v294
      %v512 = vunpack.c.l.b16 %v295
      %v513 = vunpack.c.l.b16 %v296
      %v514 = vpack.c.b16 %v483, %v482
      %v515 = vpack.c.b16 %v485, %v484
      %v516 = vpack.c.b16 %v487, %v486
      %v517 = vpack.c.b16 %v489, %v488
      %v518 = vpack.c.b16 %v491, %v490
      %v519 = vpack.c.b16 %v493, %v492
      %v520 = vpack.c.b16 %v495, %v494
      %v521 = vpack.c.b16 %v497, %v496
      %v522 = vpack.c.b16 %v499, %v498
      %v523 = vpack.c.b16 %v501, %v500
      %v524 = vpack.c.b16 %v503, %v502
      %v525 = vpack.c.b16 %v505, %v504
      %v526 = vpack.c.b16 %v507, %v506
      %v527 = vpack.c.b16 %v509, %v508
      %v528 = vpack.c.b16 %v511, %v510
      %v529 = vpack.c.b16 %v513, %v512
      %546 = vmatprep.subr.bf16.mxu0 0
      %547 = vmatpush1.bf16.msra.mxu0 %v521
      %548 = vmatprep.subr.bf16.mxu0 0
      %549 = vmatpush1.bf16.msra.mxu0 %v520
      %550 = vmatprep.subr.bf16.mxu0 0
      %551 = vmatpush1.bf16.msra.mxu0 %v519
      %552 = vmatprep.subr.bf16.mxu0 0
      %553 = vmatpush1.bf16.msra.mxu0 %v518
      %554 = vmatprep.subr.bf16.mxu0 0
      %555 = vmatpush1.bf16.msra.mxu0 %v517
      %556 = vmatprep.subr.bf16.mxu0 0
      %557 = vmatpush1.bf16.msra.mxu0 %v516
      %558 = vmatprep.subr.bf16.mxu0 0
      %559 = vmatpush1.bf16.msra.mxu0 %v515
      %560 = vmatprep.subr.bf16.mxu0 0
      %561 = vmatpush1.bf16.msra.mxu0 %v514
      %562 = vmatprep.subr.bf16.mxu0 0
      %563 = vmatpush2.bf16.msra.mxu0 %v529
      %564 = vmatprep.subr.bf16.mxu0 0
      %565 = vmatpush2.bf16.msra.mxu0 %v528
      %566 = vmatprep.subr.bf16.mxu0 0
      %567 = vmatpush2.bf16.msra.mxu0 %v527
      %568 = vmatprep.subr.bf16.mxu0 0
      %569 = vmatpush2.bf16.msra.mxu0 %v526
      %570 = vmatprep.subr.bf16.mxu0 0
      %571 = vmatpush2.bf16.msra.mxu0 %v525
      %572 = vmatprep.subr.bf16.mxu0 0
      %573 = vmatpush2.bf16.msra.mxu0 %v524
      %574 = vmatprep.subr.bf16.mxu0 0
      %575 = vmatpush2.bf16.msra.mxu0 %v523
      %576 = vmatprep.subr.bf16.mxu0 0
      %577 = vmatpush2.bf16.msra.mxu0 %v522
      %578 = vmatprep.mubr.bf16.mxu0 %v449
      %579 = vmatmul.mubr.bf16.gmra.mxu0 %v448
      %v580 = vpop.f32.mrf.mxu0
      %v581 = vadd.f32 0.0, %v580
      %v582 = vpop.f32.mrf.mxu0
      %v583 = vpop.f32.mrf.mxu0
      %v584 = vadd.f32 0.0, %v583
      %v585 = vpop.f32.mrf.mxu0
      %586 = vdwg.mxu0
      %v619 = vunpack.c.l.b16 %v233
      %v620 = vunpack.c.l.b16 %v234
      %v621 = vunpack.c.l.b16 %v235
      %v622 = vunpack.c.l.b16 %v236
      %v623 = vunpack.c.l.b16 %v237
      %v624 = vunpack.c.l.b16 %v238
      %v625 = vunpack.c.l.b16 %v239
      %v626 = vunpack.c.l.b16 %v240
      %v627 = vunpack.c.l.b16 %v241
      %v628 = vunpack.c.l.b16 %v242
      %v629 = vunpack.c.l.b16 %v243
      %v630 = vunpack.c.l.b16 %v244
      %v631 = vunpack.c.l.b16 %v245
      %v632 = vunpack.c.l.b16 %v246
      %v633 = vunpack.c.l.b16 %v247
      %v634 = vunpack.c.l.b16 %v248
      %v635 = vunpack.c.l.b16 %v249
      %v636 = vunpack.c.l.b16 %v250
      %v637 = vunpack.c.l.b16 %v251
      %v638 = vunpack.c.l.b16 %v252
      %v639 = vunpack.c.l.b16 %v253
      %v640 = vunpack.c.l.b16 %v254
      %v641 = vunpack.c.l.b16 %v255
      %v642 = vunpack.c.l.b16 %v256
      %v643 = vunpack.c.l.b16 %v257
      %v644 = vunpack.c.l.b16 %v258
      %v645 = vunpack.c.l.b16 %v259
      %v646 = vunpack.c.l.b16 %v260
      %v647 = vunpack.c.l.b16 %v261
      %v648 = vunpack.c.l.b16 %v262
      %v649 = vunpack.c.l.b16 %v263
      %v650 = vunpack.c.l.b16 %v264
      %v651 = vpack.c.b16 %v620, %v619
      %v652 = vpack.c.b16 %v622, %v621
      %v653 = vpack.c.b16 %v624, %v623
      %v654 = vpack.c.b16 %v626, %v625
      %v655 = vpack.c.b16 %v628, %v627
      %v656 = vpack.c.b16 %v630, %v629
      %v657 = vpack.c.b16 %v632, %v631
      %v658 = vpack.c.b16 %v634, %v633
      %v659 = vpack.c.b16 %v636, %v635
      %v660 = vpack.c.b16 %v638, %v637
      %v661 = vpack.c.b16 %v640, %v639
      %v662 = vpack.c.b16 %v642, %v641
      %v663 = vpack.c.b16 %v644, %v643
      %v664 = vpack.c.b16 %v646, %v645
      %v665 = vpack.c.b16 %v648, %v647
      %v666 = vpack.c.b16 %v650, %v649
      %683 = vmatprep.subr.bf16.mxu0 0
      %684 = vmatpush1.bf16.msra.mxu0 %v658
      %685 = vmatprep.subr.bf16.mxu0 0
      %686 = vmatpush1.bf16.msra.mxu0 %v657
      %687 = vmatprep.subr.bf16.mxu0 0
      %688 = vmatpush1.bf16.msra.mxu0 %v656
      %689 = vmatprep.subr.bf16.mxu0 0
      %690 = vmatpush1.bf16.msra.mxu0 %v655
      %691 = vmatprep.subr.bf16.mxu0 0
      %692 = vmatpush1.bf16.msra.mxu0 %v654
      %693 = vmatprep.subr.bf16.mxu0 0
      %694 = vmatpush1.bf16.msra.mxu0 %v653
      %695 = vmatprep.subr.bf16.mxu0 0
      %696 = vmatpush1.bf16.msra.mxu0 %v652
      %697 = vmatprep.subr.bf16.mxu0 0
      %698 = vmatpush1.bf16.msra.mxu0 %v651
      %699 = vmatprep.subr.bf16.mxu0 0
      %700 = vmatpush2.bf16.msra.mxu0 %v666
      %701 = vmatprep.subr.bf16.mxu0 0
      %702 = vmatpush2.bf16.msra.mxu0 %v665
      %703 = vmatprep.subr.bf16.mxu0 0
      %704 = vmatpush2.bf16.msra.mxu0 %v664
      %705 = vmatprep.subr.bf16.mxu0 0
      %706 = vmatpush2.bf16.msra.mxu0 %v663
      %707 = vmatprep.subr.bf16.mxu0 0
      %708 = vmatpush2.bf16.msra.mxu0 %v662
      %709 = vmatprep.subr.bf16.mxu0 0
      %710 = vmatpush2.bf16.msra.mxu0 %v661
      %711 = vmatprep.subr.bf16.mxu0 0
      %712 = vmatpush2.bf16.msra.mxu0 %v660
      %713 = vmatprep.subr.bf16.mxu0 0
      %714 = vmatpush2.bf16.msra.mxu0 %v659
      %715 = vmatprep.mubr.bf16.mxu0 %v392
      %716 = vmatmul.mubr.bf16.gmra.mxu0 %v391
      %v717 = vpop.f32.mrf.mxu0
      %v718 = vadd.f32 %v581, %v717
      %v719 = vpop.f32.mrf.mxu0
      %v720 = vpop.f32.mrf.mxu0
      %v721 = vadd.f32 %v584, %v720
      %v722 = vpop.f32.mrf.mxu0
      %723 = vdwg.mxu0
      %v725 = vlaneseq
      %v726 = vshrl.u32 %v725, 7
      %v727 = vsub.s32 0, %v726
      %v728 = vrot.slane %v297, %v727
      %v730 = vadd.f32 %v718, %v728
      %v731 = vadd.f32 %v721, %v728
      %v732 = vmax.f32 %v730, 0.0
      %v733 = vmax.f32 %v731, 0.0
      %v734 = vpack.c.bf16 %v733, %v732
      %v736 = vunpack.c.l.b16 %v734
      %v737 = vunpack.c.h.b16 %v734
      %v738 = vpack.c.b16 %v736, %v736
      %v739 = vpack.c.b16 %v737, %v737
      %742 = vst [vmem:[%s226] sm:$0xf] %v738
      %743 = vst [vmem:[%s226 + $0x4] sm:$0xf] %v739
      %v744 = vld [vmem:[%s220 + $0x10] sm:$0xf]
      %v745 = vld [vmem:[%s220 + $0x14] sm:$0xf]
      %v746 = vld [vmem:[%s220 + $0x18] sm:$0xf]
      %v747 = vld [vmem:[%s220 + $0x1c] sm:$0xf]
      %v750 = vunpack.c.l.b16 %v744
      %v751 = vunpack.c.l.b16 %v745
      %v752 = vpack.c.b16 %v751, %v750
      %v754 = vsel %vm333, %v752, 0
      %756 = vmatprep.subr.bf16.mxu0 0
      %757 = vmatpush1.bf16.msra.mxu0 0
      %758 = vmatprep.subr.bf16.mxu0 0
      %759 = vmatpush1.bf16.msra.mxu0 0
      %760 = vmatprep.subr.bf16.mxu0 0
      %761 = vmatpush1.bf16.msra.mxu0 0
      %762 = vmatprep.subr.bf16.mxu0 0
      %763 = vmatpush1.bf16.msra.mxu0 0
      %764 = vmatprep.subr.bf16.mxu0 0
      %765 = vmatpush1.bf16.msra.mxu0 0
      %766 = vmatprep.subr.bf16.mxu0 0
      %767 = vmatpush1.bf16.msra.mxu0 0
      %768 = vmatprep.subr.bf16.mxu0 %v342
      %769 = vmatpush1.bf16.msra.mxu0 %v339
      %770 = vmatprep.subr.bf16.mxu0 %v328
      %771 = vmatpush1.bf16.msra.mxu0 %v327
      %772 = vmatprep.subr.bf16.mxu0 0
      %773 = vmatpush2.bf16.msra.mxu0 0
      %774 = vmatprep.subr.bf16.mxu0 0
      %775 = vmatpush2.bf16.msra.mxu0 0
      %776 = vmatprep.subr.bf16.mxu0 0
      %777 = vmatpush2.bf16.msra.mxu0 0
      %778 = vmatprep.subr.bf16.mxu0 0
      %779 = vmatpush2.bf16.msra.mxu0 0
      %780 = vmatprep.subr.bf16.mxu0 0
      %781 = vmatpush2.bf16.msra.mxu0 0
      %782 = vmatprep.subr.bf16.mxu0 0
      %783 = vmatpush2.bf16.msra.mxu0 0
      %784 = vmatprep.subr.bf16.mxu0 0
      %785 = vmatpush2.bf16.msra.mxu0 0
      %786 = vmatprep.subr.bf16.mxu0 0
      %787 = vmatpush2.bf16.msra.mxu0 0
      %788 = vmatprep.mubr.bf16.mxu0 0
      %789 = vmatmul.mubr.bf16.gmra.mxu0 %v754
      %v790 = vpop.f32.mrf.mxu0
      %v791 = vadd.f32 %v306, %v790
      %v792 = vpop.f32.mrf.mxu0
      %v793 = vadd.f32 %v310, %v792
      %v794 = vpop.f32.mrf.mxu0
      %v795 = vadd.f32 %v306, %v794
      %v796 = vpop.f32.mrf.mxu0
      %v797 = vadd.f32 %v310, %v796
      %798 = vdwg.mxu0
      %v799 = vmax.f32 %v791, 0.0
      %v800 = vmax.f32 %v793, 0.0
      %v801 = vmax.f32 %v795, 0.0
      %v802 = vmax.f32 %v797, 0.0
      %v803 = vpack.c.bf16 %v801, %v799
      %v804 = vpack.c.bf16 %v802, %v800
      %v807 = vunpack.c.l.b16 %v746
      %v808 = vunpack.c.l.b16 %v747
      %v809 = vpack.c.b16 %v808, %v807
      %v811 = vsel %vm333, %v809, 0
      %813 = vmatprep.subr.bf16.mxu0 0
      %814 = vmatpush1.bf16.msra.mxu0 0
      %815 = vmatprep.subr.bf16.mxu0 0
      %816 = vmatpush1.bf16.msra.mxu0 0
      %817 = vmatprep.subr.bf16.mxu0 0
      %818 = vmatpush1.bf16.msra.mxu0 0
      %819 = vmatprep.subr.bf16.mxu0 0
      %820 = vmatpush1.bf16.msra.mxu0 0
      %821 = vmatprep.subr.bf16.mxu0 0
      %822 = vmatpush1.bf16.msra.mxu0 0
      %823 = vmatprep.subr.bf16.mxu0 0
      %824 = vmatpush1.bf16.msra.mxu0 0
      %825 = vmatprep.subr.bf16.mxu0 %v342
      %826 = vmatpush1.bf16.msra.mxu0 %v339
      %827 = vmatprep.subr.bf16.mxu0 %v328
      %828 = vmatpush1.bf16.msra.mxu0 %v327
      %829 = vmatprep.subr.bf16.mxu0 0
      %830 = vmatpush2.bf16.msra.mxu0 0
      %831 = vmatprep.subr.bf16.mxu0 0
      %832 = vmatpush2.bf16.msra.mxu0 0
      %833 = vmatprep.subr.bf16.mxu0 0
      %834 = vmatpush2.bf16.msra.mxu0 0
      %835 = vmatprep.subr.bf16.mxu0 0
      %836 = vmatpush2.bf16.msra.mxu0 0
      %837 = vmatprep.subr.bf16.mxu0 0
      %838 = vmatpush2.bf16.msra.mxu0 0
      %839 = vmatprep.subr.bf16.mxu0 0
      %840 = vmatpush2.bf16.msra.mxu0 0
      %841 = vmatprep.subr.bf16.mxu0 0
      %842 = vmatpush2.bf16.msra.mxu0 0
      %843 = vmatprep.subr.bf16.mxu0 0
      %844 = vmatpush2.bf16.msra.mxu0 0
      %845 = vmatprep.mubr.bf16.mxu0 0
      %846 = vmatmul.mubr.bf16.gmra.mxu0 %v811
      %v847 = vpop.f32.mrf.mxu0
      %v848 = vadd.f32 %v306, %v847
      %v849 = vpop.f32.mrf.mxu0
      %v850 = vadd.f32 %v310, %v849
      %v851 = vpop.f32.mrf.mxu0
      %v852 = vadd.f32 %v306, %v851
      %v853 = vpop.f32.mrf.mxu0
      %v854 = vadd.f32 %v310, %v853
      %855 = vdwg.mxu0
      %v856 = vmax.f32 %v848, 0.0
      %v857 = vmax.f32 %v850, 0.0
      %v858 = vmax.f32 %v852, 0.0
      %v859 = vmax.f32 %v854, 0.0
      %v860 = vpack.c.bf16 %v858, %v856
      %v861 = vpack.c.bf16 %v859, %v857
      %862 = vmatprep.subr.bf16.mxu0 0
      %863 = vmatpush1.bf16.msra.mxu0 %v521
      %864 = vmatprep.subr.bf16.mxu0 0
      %865 = vmatpush1.bf16.msra.mxu0 %v520
      %866 = vmatprep.subr.bf16.mxu0 0
      %867 = vmatpush1.bf16.msra.mxu0 %v519
      %868 = vmatprep.subr.bf16.mxu0 0
      %869 = vmatpush1.bf16.msra.mxu0 %v518
      %870 = vmatprep.subr.bf16.mxu0 0
      %871 = vmatpush1.bf16.msra.mxu0 %v517
      %872 = vmatprep.subr.bf16.mxu0 0
      %873 = vmatpush1.bf16.msra.mxu0 %v516
      %874 = vmatprep.subr.bf16.mxu0 0
      %875 = vmatpush1.bf16.msra.mxu0 %v515
      %876 = vmatprep.subr.bf16.mxu0 0
      %877 = vmatpush1.bf16.msra.mxu0 %v514
      %878 = vmatprep.subr.bf16.mxu0 0
      %879 = vmatpush2.bf16.msra.mxu0 %v529
      %880 = vmatprep.subr.bf16.mxu0 0
      %881 = vmatpush2.bf16.msra.mxu0 %v528
      %882 = vmatprep.subr.bf16.mxu0 0
      %883 = vmatpush2.bf16.msra.mxu0 %v527
      %884 = vmatprep.subr.bf16.mxu0 0
      %885 = vmatpush2.bf16.msra.mxu0 %v526
      %886 = vmatprep.subr.bf16.mxu0 0
      %887 = vmatpush2.bf16.msra.mxu0 %v525
      %888 = vmatprep.subr.bf16.mxu0 0
      %889 = vmatpush2.bf16.msra.mxu0 %v524
      %890 = vmatprep.subr.bf16.mxu0 0
      %891 = vmatpush2.bf16.msra.mxu0 %v523
      %892 = vmatprep.subr.bf16.mxu0 0
      %893 = vmatpush2.bf16.msra.mxu0 %v522
      %894 = vmatprep.mubr.bf16.mxu0 %v861
      %895 = vmatmul.mubr.bf16.gmra.mxu0 %v860
      %v896 = vpop.f32.mrf.mxu0
      %v897 = vadd.f32 0.0, %v896
      %v898 = vpop.f32.mrf.mxu0
      %v899 = vpop.f32.mrf.mxu0
      %v900 = vadd.f32 0.0, %v899
      %v901 = vpop.f32.mrf.mxu0
      %902 = vdwg.mxu0
      %903 = vmatprep.subr.bf16.mxu0 0
      %904 = vmatpush1.bf16.msra.mxu0 %v658
      %905 = vmatprep.subr.bf16.mxu0 0
      %906 = vmatpush1.bf16.msra.mxu0 %v657
      %907 = vmatprep.subr.bf16.mxu0 0
      %908 = vmatpush1.bf16.msra.mxu0 %v656
      %909 = vmatprep.subr.bf16.mxu0 0
      %910 = vmatpush1.bf16.msra.mxu0 %v655
      %911 = vmatprep.subr.bf16.mxu0 0
      %912 = vmatpush1.bf16.msra.mxu0 %v654
      %913 = vmatprep.subr.bf16.mxu0 0
      %914 = vmatpush1.bf16.msra.mxu0 %v653
      %915 = vmatprep.subr.bf16.mxu0 0
      %916 = vmatpush1.bf16.msra.mxu0 %v652
      %917 = vmatprep.subr.bf16.mxu0 0
      %918 = vmatpush1.bf16.msra.mxu0 %v651
      %919 = vmatprep.subr.bf16.mxu0 0
      %920 = vmatpush2.bf16.msra.mxu0 %v666
      %921 = vmatprep.subr.bf16.mxu0 0
      %922 = vmatpush2.bf16.msra.mxu0 %v665
      %923 = vmatprep.subr.bf16.mxu0 0
      %924 = vmatpush2.bf16.msra.mxu0 %v664
      %925 = vmatprep.subr.bf16.mxu0 0
      %926 = vmatpush2.bf16.msra.mxu0 %v663
      %927 = vmatprep.subr.bf16.mxu0 0
      %928 = vmatpush2.bf16.msra.mxu0 %v662
      %929 = vmatprep.subr.bf16.mxu0 0
      %930 = vmatpush2.bf16.msra.mxu0 %v661
      %931 = vmatprep.subr.bf16.mxu0 0
      %932 = vmatpush2.bf16.msra.mxu0 %v660
      %933 = vmatprep.subr.bf16.mxu0 0
      %934 = vmatpush2.bf16.msra.mxu0 %v659
      %935 = vmatprep.mubr.bf16.mxu0 %v804
      %936 = vmatmul.mubr.bf16.gmra.mxu0 %v803
      %v937 = vpop.f32.mrf.mxu0
      %v938 = vadd.f32 %v897, %v937
      %v939 = vpop.f32.mrf.mxu0
      %v940 = vpop.f32.mrf.mxu0
      %v941 = vadd.f32 %v900, %v940
      %v942 = vpop.f32.mrf.mxu0
      %943 = vdwg.mxu0
      %v944 = vadd.f32 %v938, %v728
      %v945 = vadd.f32 %v941, %v728
      %v946 = vmax.f32 %v944, 0.0
      %v947 = vmax.f32 %v945, 0.0
      %v948 = vpack.c.bf16 %v947, %v946
      %v950 = vunpack.c.l.b16 %v948
      %v951 = vunpack.c.h.b16 %v948
      %v952 = vpack.c.b16 %v950, %v950
      %v953 = vpack.c.b16 %v951, %v951
      %956 = vst [vmem:[%s226 + $0x8] sm:$0xf] %v952
      %957 = vst [vmem:[%s226 + $0xc] sm:$0xf] %v953
      %v958 = vld [vmem:[%s220 + $0x20] sm:$0xf]
      %v959 = vld [vmem:[%s220 + $0x24] sm:$0xf]
      %v960 = vld [vmem:[%s220 + $0x28] sm:$0xf]
      %v961 = vld [vmem:[%s220 + $0x2c] sm:$0xf]
      %v964 = vunpack.c.l.b16 %v958
      %v965 = vunpack.c.l.b16 %v959
      %v966 = vpack.c.b16 %v965, %v964
      %v968 = vsel %vm333, %v966, 0
      %970 = vmatprep.subr.bf16.mxu0 0
      %971 = vmatpush1.bf16.msra.mxu0 0
      %972 = vmatprep.subr.bf16.mxu0 0
      %973 = vmatpush1.bf16.msra.mxu0 0
      %974 = vmatprep.subr.bf16.mxu0 0
      %975 = vmatpush1.bf16.msra.mxu0 0
      %976 = vmatprep.subr.bf16.mxu0 0
      %977 = vmatpush1.bf16.msra.mxu0 0
      %978 = vmatprep.subr.bf16.mxu0 0
      %979 = vmatpush1.bf16.msra.mxu0 0
      %980 = vmatprep.subr.bf16.mxu0 0
      %981 = vmatpush1.bf16.msra.mxu0 0
      %982 = vmatprep.subr.bf16.mxu0 %v342
      %983 = vmatpush1.bf16.msra.mxu0 %v339
      %984 = vmatprep.subr.bf16.mxu0 %v328
      %985 = vmatpush1.bf16.msra.mxu0 %v327
      %986 = vmatprep.subr.bf16.mxu0 0
      %987 = vmatpush2.bf16.msra.mxu0 0
      %988 = vmatprep.subr.bf16.mxu0 0
      %989 = vmatpush2.bf16.msra.mxu0 0
      %990 = vmatprep.subr.bf16.mxu0 0
      %991 = vmatpush2.bf16.msra.mxu0 0
      %992 = vmatprep.subr.bf16.mxu0 0
      %993 = vmatpush2.bf16.msra.mxu0 0
      %994 = vmatprep.subr.bf16.mxu0 0
      %995 = vmatpush2.bf16.msra.mxu0 0
      %996 = vmatprep.subr.bf16.mxu0 0
      %997 = vmatpush2.bf16.msra.mxu0 0
      %998 = vmatprep.subr.bf16.mxu0 0
      %999 = vmatpush2.bf16.msra.mxu0 0
      %1000 = vmatprep.subr.bf16.mxu0 0
      %1001 = vmatpush2.bf16.msra.mxu0 0
      %1002 = vmatprep.mubr.bf16.mxu0 0
      %1003 = vmatmul.mubr.bf16.gmra.mxu0 %v968
      %v1004 = vpop.f32.mrf.mxu0
      %v1005 = vadd.f32 %v306, %v1004
      %v1006 = vpop.f32.mrf.mxu0
      %v1007 = vadd.f32 %v310, %v1006
      %v1008 = vpop.f32.mrf.mxu0
      %v1009 = vadd.f32 %v306, %v1008
      %v1010 = vpop.f32.mrf.mxu0
      %v1011 = vadd.f32 %v310, %v1010
      %1012 = vdwg.mxu0
      %v1013 = vmax.f32 %v1005, 0.0
      %v1014 = vmax.f32 %v1007, 0.0
      %v1015 = vmax.f32 %v1009, 0.0
      %v1016 = vmax.f32 %v1011, 0.0
      %v1017 = vpack.c.bf16 %v1015, %v1013
      %v1018 = vpack.c.bf16 %v1016, %v1014
      %v1021 = vunpack.c.l.b16 %v960
      %v1022 = vunpack.c.l.b16 %v961
      %v1023 = vpack.c.b16 %v1022, %v1021
      %v1025 = vsel %vm333, %v1023, 0
      %1027 = vmatprep.subr.bf16.mxu0 0
      %1028 = vmatpush1.bf16.msra.mxu0 0
      %1029 = vmatprep.subr.bf16.mxu0 0
      %1030 = vmatpush1.bf16.msra.mxu0 0
      %1031 = vmatprep.subr.bf16.mxu0 0
      %1032 = vmatpush1.bf16.msra.mxu0 0
      %1033 = vmatprep.subr.bf16.mxu0 0
      %1034 = vmatpush1.bf16.msra.mxu0 0
      %1035 = vmatprep.subr.bf16.mxu0 0
      %1036 = vmatpush1.bf16.msra.mxu0 0
      %1037 = vmatprep.subr.bf16.mxu0 0
      %1038 = vmatpush1.bf16.msra.mxu0 0
      %1039 = vmatprep.subr.bf16.mxu0 %v342
      %1040 = vmatpush1.bf16.msra.mxu0 %v339
      %1041 = vmatprep.subr.bf16.mxu0 %v328
      %1042 = vmatpush1.bf16.msra.mxu0 %v327
      %1043 = vmatprep.subr.bf16.mxu0 0
      %1044 = vmatpush2.bf16.msra.mxu0 0
      %1045 = vmatprep.subr.bf16.mxu0 0
      %1046 = vmatpush2.bf16.msra.mxu0 0
      %1047 = vmatprep.subr.bf16.mxu0 0
      %1048 = vmatpush2.bf16.msra.mxu0 0
      %1049 = vmatprep.subr.bf16.mxu0 0
      %1050 = vmatpush2.bf16.msra.mxu0 0
      %1051 = vmatprep.subr.bf16.mxu0 0
      %1052 = vmatpush2.bf16.msra.mxu0 0
      %1053 = vmatprep.subr.bf16.mxu0 0
      %1054 = vmatpush2.bf16.msra.mxu0 0
      %1055 = vmatprep.subr.bf16.mxu0 0
      %1056 = vmatpush2.bf16.msra.mxu0 0
      %1057 = vmatprep.subr.bf16.mxu0 0
      %1058 = vmatpush2.bf16.msra.mxu0 0
      %1059 = vmatprep.mubr.bf16.mxu0 0
      %1060 = vmatmul.mubr.bf16.gmra.mxu0 %v1025
      %v1061 = vpop.f32.mrf.mxu0
      %v1062 = vadd.f32 %v306, %v1061
      %v1063 = vpop.f32.mrf.mxu0
      %v1064 = vadd.f32 %v310, %v1063
      %v1065 = vpop.f32.mrf.mxu0
      %v1066 = vadd.f32 %v306, %v1065
      %v1067 = vpop.f32.mrf.mxu0
      %v1068 = vadd.f32 %v310, %v1067
      %1069 = vdwg.mxu0
      %v1070 = vmax.f32 %v1062, 0.0
      %v1071 = vmax.f32 %v1064, 0.0
      %v1072 = vmax.f32 %v1066, 0.0
      %v1073 = vmax.f32 %v1068, 0.0
      %v1074 = vpack.c.bf16 %v1072, %v1070
      %v1075 = vpack.c.bf16 %v1073, %v1071
      %1076 = vmatprep.subr.bf16.mxu0 0
      %1077 = vmatpush1.bf16.msra.mxu0 %v521
      %1078 = vmatprep.subr.bf16.mxu0 0
      %1079 = vmatpush1.bf16.msra.mxu0 %v520
      %1080 = vmatprep.subr.bf16.mxu0 0
      %1081 = vmatpush1.bf16.msra.mxu0 %v519
      %1082 = vmatprep.subr.bf16.mxu0 0
      %1083 = vmatpush1.bf16.msra.mxu0 %v518
      %1084 = vmatprep.subr.bf16.mxu0 0
      %1085 = vmatpush1.bf16.msra.mxu0 %v517
      %1086 = vmatprep.subr.bf16.mxu0 0
      %1087 = vmatpush1.bf16.msra.mxu0 %v516
      %1088 = vmatprep.subr.bf16.mxu0 0
      %1089 = vmatpush1.bf16.msra.mxu0 %v515
      %1090 = vmatprep.subr.bf16.mxu0 0
      %1091 = vmatpush1.bf16.msra.mxu0 %v514
      %1092 = vmatprep.subr.bf16.mxu0 0
      %1093 = vmatpush2.bf16.msra.mxu0 %v529
      %1094 = vmatprep.subr.bf16.mxu0 0
      %1095 = vmatpush2.bf16.msra.mxu0 %v528
      %1096 = vmatprep.subr.bf16.mxu0 0
      %1097 = vmatpush2.bf16.msra.mxu0 %v527
      %1098 = vmatprep.subr.bf16.mxu0 0
      %1099 = vmatpush2.bf16.msra.mxu0 %v526
      %1100 = vmatprep.subr.bf16.mxu0 0
      %1101 = vmatpush2.bf16.msra.mxu0 %v525
      %1102 = vmatprep.subr.bf16.mxu0 0
      %1103 = vmatpush2.bf16.msra.mxu0 %v524
      %1104 = vmatprep.subr.bf16.mxu0 0
      %1105 = vmatpush2.bf16.msra.mxu0 %v523
      %1106 = vmatprep.subr.bf16.mxu0 0
      %1107 = vmatpush2.bf16.msra.mxu0 %v522
      %1108 = vmatprep.mubr.bf16.mxu0 %v1075
      %1109 = vmatmul.mubr.bf16.gmra.mxu0 %v1074
      %v1110 = vpop.f32.mrf.mxu0
      %v1111 = vadd.f32 0.0, %v1110
      %v1112 = vpop.f32.mrf.mxu0
      %v1113 = vpop.f32.mrf.mxu0
      %v1114 = vadd.f32 0.0, %v1113
      %v1115 = vpop.f32.mrf.mxu0
      %1116 = vdwg.mxu0
      %1117 = vmatprep.subr.bf16.mxu0 0
      %1118 = vmatpush1.bf16.msra.mxu0 %v658
      %1119 = vmatprep.subr.bf16.mxu0 0
      %1120 = vmatpush1.bf16.msra.mxu0 %v657
      %1121 = vmatprep.subr.bf16.mxu0 0
      %1122 = vmatpush1.bf16.msra.mxu0 %v656
      %1123 = vmatprep.subr.bf16.mxu0 0
      %1124 = vmatpush1.bf16.msra.mxu0 %v655
      %1125 = vmatprep.subr.bf16.mxu0 0
      %1126 = vmatpush1.bf16.msra.mxu0 %v654
      %1127 = vmatprep.subr.bf16.mxu0 0
      %1128 = vmatpush1.bf16.msra.mxu0 %v653
      %1129 = vmatprep.subr.bf16.mxu0 0
      %1130 = vmatpush1.bf16.msra.mxu0 %v652
      %1131 = vmatprep.subr.bf16.mxu0 0
      %1132 = vmatpush1.bf16.msra.mxu0 %v651
      %1133 = vmatprep.subr.bf16.mxu0 0
      %1134 = vmatpush2.bf16.msra.mxu0 %v666
      %1135 = vmatprep.subr.bf16.mxu0 0
      %1136 = vmatpush2.bf16.msra.mxu0 %v665
      %1137 = vmatprep.subr.bf16.mxu0 0
      %1138 = vmatpush2.bf16.msra.mxu0 %v664
      %1139 = vmatprep.subr.bf16.mxu0 0
      %1140 = vmatpush2.bf16.msra.mxu0 %v663
      %1141 = vmatprep.subr.bf16.mxu0 0
      %1142 = vmatpush2.bf16.msra.mxu0 %v662
      %1143 = vmatprep.subr.bf16.mxu0 0
      %1144 = vmatpush2.bf16.msra.mxu0 %v661
      %1145 = vmatprep.subr.bf16.mxu0 0
      %1146 = vmatpush2.bf16.msra.mxu0 %v660
      %1147 = vmatprep.subr.bf16.mxu0 0
      %1148 = vmatpush2.bf16.msra.mxu0 %v659
      %1149 = vmatprep.mubr.bf16.mxu0 %v1018
      %1150 = vmatmul.mubr.bf16.gmra.mxu0 %v1017
      %v1151 = vpop.f32.mrf.mxu0
      %v1152 = vadd.f32 %v1111, %v1151
      %v1153 = vpop.f32.mrf.mxu0
      %v1154 = vpop.f32.mrf.mxu0
      %v1155 = vadd.f32 %v1114, %v1154
      %v1156 = vpop.f32.mrf.mxu0
      %1157 = vdwg.mxu0
      %v1158 = vadd.f32 %v1152, %v728
      %v1159 = vadd.f32 %v1155, %v728
      %v1160 = vmax.f32 %v1158, 0.0
      %v1161 = vmax.f32 %v1159, 0.0
      %v1162 = vpack.c.bf16 %v1161, %v1160
      %v1164 = vunpack.c.l.b16 %v1162
      %v1165 = vunpack.c.h.b16 %v1162
      %v1166 = vpack.c.b16 %v1164, %v1164
      %v1167 = vpack.c.b16 %v1165, %v1165
      %1170 = vst [vmem:[%s226 + $0x10] sm:$0xf] %v1166
      %1171 = vst [vmem:[%s226 + $0x14] sm:$0xf] %v1167
      %v1172 = vld [vmem:[%s220 + $0x30] sm:$0xf]
      %v1173 = vld [vmem:[%s220 + $0x34] sm:$0xf]
      %v1174 = vld [vmem:[%s220 + $0x38] sm:$0xf]
      %v1175 = vld [vmem:[%s220 + $0x3c] sm:$0xf]
      %v1178 = vunpack.c.l.b16 %v1172
      %v1179 = vunpack.c.l.b16 %v1173
      %v1180 = vpack.c.b16 %v1179, %v1178
      %v1182 = vsel %vm333, %v1180, 0
      %1184 = vmatprep.subr.bf16.mxu0 0
      %1185 = vmatpush1.bf16.msra.mxu0 0
      %1186 = vmatprep.subr.bf16.mxu0 0
      %1187 = vmatpush1.bf16.msra.mxu0 0
      %1188 = vmatprep.subr.bf16.mxu0 0
      %1189 = vmatpush1.bf16.msra.mxu0 0
      %1190 = vmatprep.subr.bf16.mxu0 0
      %1191 = vmatpush1.bf16.msra.mxu0 0
      %1192 = vmatprep.subr.bf16.mxu0 0
      %1193 = vmatpush1.bf16.msra.mxu0 0
      %1194 = vmatprep.subr.bf16.mxu0 0
      %1195 = vmatpush1.bf16.msra.mxu0 0
      %1196 = vmatprep.subr.bf16.mxu0 %v342
      %1197 = vmatpush1.bf16.msra.mxu0 %v339
      %1198 = vmatprep.subr.bf16.mxu0 %v328
      %1199 = vmatpush1.bf16.msra.mxu0 %v327
      %1200 = vmatprep.subr.bf16.mxu0 0
      %1201 = vmatpush2.bf16.msra.mxu0 0
      %1202 = vmatprep.subr.bf16.mxu0 0
      %1203 = vmatpush2.bf16.msra.mxu0 0
      %1204 = vmatprep.subr.bf16.mxu0 0
      %1205 = vmatpush2.bf16.msra.mxu0 0
      %1206 = vmatprep.subr.bf16.mxu0 0
      %1207 = vmatpush2.bf16.msra.mxu0 0
      %1208 = vmatprep.subr.bf16.mxu0 0
      %1209 = vmatpush2.bf16.msra.mxu0 0
      %1210 = vmatprep.subr.bf16.mxu0 0
      %1211 = vmatpush2.bf16.msra.mxu0 0
      %1212 = vmatprep.subr.bf16.mxu0 0
      %1213 = vmatpush2.bf16.msra.mxu0 0
      %1214 = vmatprep.subr.bf16.mxu0 0
      %1215 = vmatpush2.bf16.msra.mxu0 0
      %1216 = vmatprep.mubr.bf16.mxu0 0
      %1217 = vmatmul.mubr.bf16.gmra.mxu0 %v1182
      %v1218 = vpop.f32.mrf.mxu0
      %v1219 = vadd.f32 %v306, %v1218
      %v1220 = vpop.f32.mrf.mxu0
      %v1221 = vadd.f32 %v310, %v1220
      %v1222 = vpop.f32.mrf.mxu0
      %v1223 = vadd.f32 %v306, %v1222
      %v1224 = vpop.f32.mrf.mxu0
      %v1225 = vadd.f32 %v310, %v1224
      %1226 = vdwg.mxu0
      %v1227 = vmax.f32 %v1219, 0.0
      %v1228 = vmax.f32 %v1221, 0.0
      %v1229 = vmax.f32 %v1223, 0.0
      %v1230 = vmax.f32 %v1225, 0.0
      %v1231 = vpack.c.bf16 %v1229, %v1227
      %v1232 = vpack.c.bf16 %v1230, %v1228
      %v1235 = vunpack.c.l.b16 %v1174
      %v1236 = vunpack.c.l.b16 %v1175
      %v1237 = vpack.c.b16 %v1236, %v1235
      %v1239 = vsel %vm333, %v1237, 0
      %1241 = vmatprep.subr.bf16.mxu0 0
      %1242 = vmatpush1.bf16.msra.mxu0 0
      %1243 = vmatprep.subr.bf16.mxu0 0
      %1244 = vmatpush1.bf16.msra.mxu0 0
      %1245 = vmatprep.subr.bf16.mxu0 0
      %1246 = vmatpush1.bf16.msra.mxu0 0
      %1247 = vmatprep.subr.bf16.mxu0 0
      %1248 = vmatpush1.bf16.msra.mxu0 0
      %1249 = vmatprep.subr.bf16.mxu0 0
      %1250 = vmatpush1.bf16.msra.mxu0 0
      %1251 = vmatprep.subr.bf16.mxu0 0
      %1252 = vmatpush1.bf16.msra.mxu0 0
      %1253 = vmatprep.subr.bf16.mxu0 %v342
      %1254 = vmatpush1.bf16.msra.mxu0 %v339
      %1255 = vmatprep.subr.bf16.mxu0 %v328
      %1256 = vmatpush1.bf16.msra.mxu0 %v327
      %1257 = vmatprep.subr.bf16.mxu0 0
      %1258 = vmatpush2.bf16.msra.mxu0 0
      %1259 = vmatprep.subr.bf16.mxu0 0
      %1260 = vmatpush2.bf16.msra.mxu0 0
      %1261 = vmatprep.subr.bf16.mxu0 0
      %1262 = vmatpush2.bf16.msra.mxu0 0
      %1263 = vmatprep.subr.bf16.mxu0 0
      %1264 = vmatpush2.bf16.msra.mxu0 0
      %1265 = vmatprep.subr.bf16.mxu0 0
      %1266 = vmatpush2.bf16.msra.mxu0 0
      %1267 = vmatprep.subr.bf16.mxu0 0
      %1268 = vmatpush2.bf16.msra.mxu0 0
      %1269 = vmatprep.subr.bf16.mxu0 0
      %1270 = vmatpush2.bf16.msra.mxu0 0
      %1271 = vmatprep.subr.bf16.mxu0 0
      %1272 = vmatpush2.bf16.msra.mxu0 0
      %1273 = vmatprep.mubr.bf16.mxu0 0
      %1274 = vmatmul.mubr.bf16.gmra.mxu0 %v1239
      %v1275 = vpop.f32.mrf.mxu0
      %v1276 = vadd.f32 %v306, %v1275
      %v1277 = vpop.f32.mrf.mxu0
      %v1278 = vadd.f32 %v310, %v1277
      %v1279 = vpop.f32.mrf.mxu0
      %v1280 = vadd.f32 %v306, %v1279
      %v1281 = vpop.f32.mrf.mxu0
      %v1282 = vadd.f32 %v310, %v1281
      %1283 = vdwg.mxu0
      %v1284 = vmax.f32 %v1276, 0.0
      %v1285 = vmax.f32 %v1278, 0.0
      %v1286 = vmax.f32 %v1280, 0.0
      %v1287 = vmax.f32 %v1282, 0.0
      %v1288 = vpack.c.bf16 %v1286, %v1284
      %v1289 = vpack.c.bf16 %v1287, %v1285
      %1290 = vmatprep.subr.bf16.mxu0 0
      %1291 = vmatpush1.bf16.msra.mxu0 %v521
      %1292 = vmatprep.subr.bf16.mxu0 0
      %1293 = vmatpush1.bf16.msra.mxu0 %v520
      %1294 = vmatprep.subr.bf16.mxu0 0
      %1295 = vmatpush1.bf16.msra.mxu0 %v519
      %1296 = vmatprep.subr.bf16.mxu0 0
      %1297 = vmatpush1.bf16.msra.mxu0 %v518
      %1298 = vmatprep.subr.bf16.mxu0 0
      %1299 = vmatpush1.bf16.msra.mxu0 %v517
      %1300 = vmatprep.subr.bf16.mxu0 0
      %1301 = vmatpush1.bf16.msra.mxu0 %v516
      %1302 = vmatprep.subr.bf16.mxu0 0
      %1303 = vmatpush1.bf16.msra.mxu0 %v515
      %1304 = vmatprep.subr.bf16.mxu0 0
      %1305 = vmatpush1.bf16.msra.mxu0 %v514
      %1306 = vmatprep.subr.bf16.mxu0 0
      %1307 = vmatpush2.bf16.msra.mxu0 %v529
      %1308 = vmatprep.subr.bf16.mxu0 0
      %1309 = vmatpush2.bf16.msra.mxu0 %v528
      %1310 = vmatprep.subr.bf16.mxu0 0
      %1311 = vmatpush2.bf16.msra.mxu0 %v527
      %1312 = vmatprep.subr.bf16.mxu0 0
      %1313 = vmatpush2.bf16.msra.mxu0 %v526
      %1314 = vmatprep.subr.bf16.mxu0 0
      %1315 = vmatpush2.bf16.msra.mxu0 %v525
      %1316 = vmatprep.subr.bf16.mxu0 0
      %1317 = vmatpush2.bf16.msra.mxu0 %v524
      %1318 = vmatprep.subr.bf16.mxu0 0
      %1319 = vmatpush2.bf16.msra.mxu0 %v523
      %1320 = vmatprep.subr.bf16.mxu0 0
      %1321 = vmatpush2.bf16.msra.mxu0 %v522
      %1322 = vmatprep.mubr.bf16.mxu0 %v1289
      %1323 = vmatmul.mubr.bf16.gmra.mxu0 %v1288
      %v1324 = vpop.f32.mrf.mxu0
      %v1325 = vadd.f32 0.0, %v1324
      %v1326 = vpop.f32.mrf.mxu0
      %v1327 = vpop.f32.mrf.mxu0
      %v1328 = vadd.f32 0.0, %v1327
      %v1329 = vpop.f32.mrf.mxu0
      %1330 = vdwg.mxu0
      %1331 = vmatprep.subr.bf16.mxu0 0
      %1332 = vmatpush1.bf16.msra.mxu0 %v658
      %1333 = vmatprep.subr.bf16.mxu0 0
      %1334 = vmatpush1.bf16.msra.mxu0 %v657
      %1335 = vmatprep.subr.bf16.mxu0 0
      %1336 = vmatpush1.bf16.msra.mxu0 %v656
      %1337 = vmatprep.subr.bf16.mxu0 0
      %1338 = vmatpush1.bf16.msra.mxu0 %v655
      %1339 = vmatprep.subr.bf16.mxu0 0
      %1340 = vmatpush1.bf16.msra.mxu0 %v654
      %1341 = vmatprep.subr.bf16.mxu0 0
      %1342 = vmatpush1.bf16.msra.mxu0 %v653
      %1343 = vmatprep.subr.bf16.mxu0 0
      %1344 = vmatpush1.bf16.msra.mxu0 %v652
      %1345 = vmatprep.subr.bf16.mxu0 0
      %1346 = vmatpush1.bf16.msra.mxu0 %v651
      %1347 = vmatprep.subr.bf16.mxu0 0
      %1348 = vmatpush2.bf16.msra.mxu0 %v666
      %1349 = vmatprep.subr.bf16.mxu0 0
      %1350 = vmatpush2.bf16.msra.mxu0 %v665
      %1351 = vmatprep.subr.bf16.mxu0 0
      %1352 = vmatpush2.bf16.msra.mxu0 %v664
      %1353 = vmatprep.subr.bf16.mxu0 0
      %1354 = vmatpush2.bf16.msra.mxu0 %v663
      %1355 = vmatprep.subr.bf16.mxu0 0
      %1356 = vmatpush2.bf16.msra.mxu0 %v662
      %1357 = vmatprep.subr.bf16.mxu0 0
      %1358 = vmatpush2.bf16.msra.mxu0 %v661
      %1359 = vmatprep.subr.bf16.mxu0 0
      %1360 = vmatpush2.bf16.msra.mxu0 %v660
      %1361 = vmatprep.subr.bf16.mxu0 0
      %1362 = vmatpush2.bf16.msra.mxu0 %v659
      %1363 = vmatprep.mubr.bf16.mxu0 %v1232
      %1364 = vmatmul.mubr.bf16.gmra.mxu0 %v1231
      %v1365 = vpop.f32.mrf.mxu0
      %v1366 = vadd.f32 %v1325, %v1365
      %v1367 = vpop.f32.mrf.mxu0
      %v1368 = vpop.f32.mrf.mxu0
      %v1369 = vadd.f32 %v1328, %v1368
      %v1370 = vpop.f32.mrf.mxu0
      %1371 = vdwg.mxu0
      %v1372 = vadd.f32 %v1366, %v728
      %v1373 = vadd.f32 %v1369, %v728
      %v1374 = vmax.f32 %v1372, 0.0
      %v1375 = vmax.f32 %v1373, 0.0
      %v1376 = vpack.c.bf16 %v1375, %v1374
      %v1378 = vunpack.c.l.b16 %v1376
      %v1379 = vunpack.c.h.b16 %v1376
      %v1380 = vpack.c.b16 %v1378, %v1378
      %v1381 = vpack.c.b16 %v1379, %v1379
      %1384 = vst [vmem:[%s226 + $0x18] sm:$0xf] %v1380
      %1385 = vst [vmem:[%s226 + $0x1c] sm:$0xf] %v1381
      %v1386 = vld [vmem:[%s220 + $0x40] sm:$0xf]
      %v1387 = vld [vmem:[%s220 + $0x44] sm:$0xf]
      %v1388 = vld [vmem:[%s220 + $0x48] sm:$0xf]
      %v1389 = vld [vmem:[%s220 + $0x4c] sm:$0xf]
      %v1392 = vunpack.c.l.b16 %v1386
      %v1393 = vunpack.c.l.b16 %v1387
      %v1394 = vpack.c.b16 %v1393, %v1392
      %v1396 = vsel %vm333, %v1394, 0
      %1398 = vmatprep.subr.bf16.mxu0 0
      %1399 = vmatpush1.bf16.msra.mxu0 0
      %1400 = vmatprep.subr.bf16.mxu0 0
      %1401 = vmatpush1.bf16.msra.mxu0 0
      %1402 = vmatprep.subr.bf16.mxu0 0
      %1403 = vmatpush1.bf16.msra.mxu0 0
      %1404 = vmatprep.subr.bf16.mxu0 0
      %1405 = vmatpush1.bf16.msra.mxu0 0
      %1406 = vmatprep.subr.bf16.mxu0 0
      %1407 = vmatpush1.bf16.msra.mxu0 0
      %1408 = vmatprep.subr.bf16.mxu0 0
      %1409 = vmatpush1.bf16.msra.mxu0 0
      %1410 = vmatprep.subr.bf16.mxu0 %v342
      %1411 = vmatpush1.bf16.msra.mxu0 %v339
      %1412 = vmatprep.subr.bf16.mxu0 %v328
      %1413 = vmatpush1.bf16.msra.mxu0 %v327
      %1414 = vmatprep.subr.bf16.mxu0 0
      %1415 = vmatpush2.bf16.msra.mxu0 0
      %1416 = vmatprep.subr.bf16.mxu0 0
      %1417 = vmatpush2.bf16.msra.mxu0 0
      %1418 = vmatprep.subr.bf16.mxu0 0
      %1419 = vmatpush2.bf16.msra.mxu0 0
      %1420 = vmatprep.subr.bf16.mxu0 0
      %1421 = vmatpush2.bf16.msra.mxu0 0
      %1422 = vmatprep.subr.bf16.mxu0 0
      %1423 = vmatpush2.bf16.msra.mxu0 0
      %1424 = vmatprep.subr.bf16.mxu0 0
      %1425 = vmatpush2.bf16.msra.mxu0 0
      %1426 = vmatprep.subr.bf16.mxu0 0
      %1427 = vmatpush2.bf16.msra.mxu0 0
      %1428 = vmatprep.subr.bf16.mxu0 0
      %1429 = vmatpush2.bf16.msra.mxu0 0
      %1430 = vmatprep.mubr.bf16.mxu0 0
      %1431 = vmatmul.mubr.bf16.gmra.mxu0 %v1396
      %v1432 = vpop.f32.mrf.mxu0
      %v1433 = vadd.f32 %v306, %v1432
      %v1434 = vpop.f32.mrf.mxu0
      %v1435 = vadd.f32 %v310, %v1434
      %v1436 = vpop.f32.mrf.mxu0
      %v1437 = vadd.f32 %v306, %v1436
      %v1438 = vpop.f32.mrf.mxu0
      %v1439 = vadd.f32 %v310, %v1438
      %1440 = vdwg.mxu0
      %v1441 = vmax.f32 %v1433, 0.0
      %v1442 = vmax.f32 %v1435, 0.0
      %v1443 = vmax.f32 %v1437, 0.0
      %v1444 = vmax.f32 %v1439, 0.0
      %v1445 = vpack.c.bf16 %v1443, %v1441
      %v1446 = vpack.c.bf16 %v1444, %v1442
      %v1449 = vunpack.c.l.b16 %v1388
      %v1450 = vunpack.c.l.b16 %v1389
      %v1451 = vpack.c.b16 %v1450, %v1449
      %v1453 = vsel %vm333, %v1451, 0
      %1455 = vmatprep.subr.bf16.mxu0 0
      %1456 = vmatpush1.bf16.msra.mxu0 0
      %1457 = vmatprep.subr.bf16.mxu0 0
      %1458 = vmatpush1.bf16.msra.mxu0 0
      %1459 = vmatprep.subr.bf16.mxu0 0
      %1460 = vmatpush1.bf16.msra.mxu0 0
      %1461 = vmatprep.subr.bf16.mxu0 0
      %1462 = vmatpush1.bf16.msra.mxu0 0
      %1463 = vmatprep.subr.bf16.mxu0 0
      %1464 = vmatpush1.bf16.msra.mxu0 0
      %1465 = vmatprep.subr.bf16.mxu0 0
      %1466 = vmatpush1.bf16.msra.mxu0 0
      %1467 = vmatprep.subr.bf16.mxu0 %v342
      %1468 = vmatpush1.bf16.msra.mxu0 %v339
      %1469 = vmatprep.subr.bf16.mxu0 %v328
      %1470 = vmatpush1.bf16.msra.mxu0 %v327
      %1471 = vmatprep.subr.bf16.mxu0 0
      %1472 = vmatpush2.bf16.msra.mxu0 0
      %1473 = vmatprep.subr.bf16.mxu0 0
      %1474 = vmatpush2.bf16.msra.mxu0 0
      %1475 = vmatprep.subr.bf16.mxu0 0
      %1476 = vmatpush2.bf16.msra.mxu0 0
      %1477 = vmatprep.subr.bf16.mxu0 0
      %1478 = vmatpush2.bf16.msra.mxu0 0
      %1479 = vmatprep.subr.bf16.mxu0 0
      %1480 = vmatpush2.bf16.msra.mxu0 0
      %1481 = vmatprep.subr.bf16.mxu0 0
      %1482 = vmatpush2.bf16.msra.mxu0 0
      %1483 = vmatprep.subr.bf16.mxu0 0
      %1484 = vmatpush2.bf16.msra.mxu0 0
      %1485 = vmatprep.subr.bf16.mxu0 0
      %1486 = vmatpush2.bf16.msra.mxu0 0
      %1487 = vmatprep.mubr.bf16.mxu0 0
      %1488 = vmatmul.mubr.bf16.gmra.mxu0 %v1453
      %v1489 = vpop.f32.mrf.mxu0
      %v1490 = vadd.f32 %v306, %v1489
      %v1491 = vpop.f32.mrf.mxu0
      %v1492 = vadd.f32 %v310, %v1491
      %v1493 = vpop.f32.mrf.mxu0
      %v1494 = vadd.f32 %v306, %v1493
      %v1495 = vpop.f32.mrf.mxu0
      %v1496 = vadd.f32 %v310, %v1495
      %1497 = vdwg.mxu0
      %v1498 = vmax.f32 %v1490, 0.0
      %v1499 = vmax.f32 %v1492, 0.0
      %v1500 = vmax.f32 %v1494, 0.0
      %v1501 = vmax.f32 %v1496, 0.0
      %v1502 = vpack.c.bf16 %v1500, %v1498
      %v1503 = vpack.c.bf16 %v1501, %v1499
      %1504 = vmatprep.subr.bf16.mxu0 0
      %1505 = vmatpush1.bf16.msra.mxu0 %v521
      %1506 = vmatprep.subr.bf16.mxu0 0
      %1507 = vmatpush1.bf16.msra.mxu0 %v520
      %1508 = vmatprep.subr.bf16.mxu0 0
      %1509 = vmatpush1.bf16.msra.mxu0 %v519
      %1510 = vmatprep.subr.bf16.mxu0 0
      %1511 = vmatpush1.bf16.msra.mxu0 %v518
      %1512 = vmatprep.subr.bf16.mxu0 0
      %1513 = vmatpush1.bf16.msra.mxu0 %v517
      %1514 = vmatprep.subr.bf16.mxu0 0
      %1515 = vmatpush1.bf16.msra.mxu0 %v516
      %1516 = vmatprep.subr.bf16.mxu0 0
      %1517 = vmatpush1.bf16.msra.mxu0 %v515
      %1518 = vmatprep.subr.bf16.mxu0 0
      %1519 = vmatpush1.bf16.msra.mxu0 %v514
      %1520 = vmatprep.subr.bf16.mxu0 0
      %1521 = vmatpush2.bf16.msra.mxu0 %v529
      %1522 = vmatprep.subr.bf16.mxu0 0
      %1523 = vmatpush2.bf16.msra.mxu0 %v528
      %1524 = vmatprep.subr.bf16.mxu0 0
      %1525 = vmatpush2.bf16.msra.mxu0 %v527
      %1526 = vmatprep.subr.bf16.mxu0 0
      %1527 = vmatpush2.bf16.msra.mxu0 %v526
      %1528 = vmatprep.subr.bf16.mxu0 0
      %1529 = vmatpush2.bf16.msra.mxu0 %v525
      %1530 = vmatprep.subr.bf16.mxu0 0
      %1531 = vmatpush2.bf16.msra.mxu0 %v524
      %1532 = vmatprep.subr.bf16.mxu0 0
      %1533 = vmatpush2.bf16.msra.mxu0 %v523
      %1534 = vmatprep.subr.bf16.mxu0 0
      %1535 = vmatpush2.bf16.msra.mxu0 %v522
      %1536 = vmatprep.mubr.bf16.mxu0 %v1503
      %1537 = vmatmul.mubr.bf16.gmra.mxu0 %v1502
      %v1538 = vpop.f32.mrf.mxu0
      %v1539 = vadd.f32 0.0, %v1538
      %v1540 = vpop.f32.mrf.mxu0
      %v1541 = vpop.f32.mrf.mxu0
      %v1542 = vadd.f32 0.0, %v1541
      %v1543 = vpop.f32.mrf.mxu0
      %1544 = vdwg.mxu0
      %1545 = vmatprep.subr.bf16.mxu0 0
      %1546 = vmatpush1.bf16.msra.mxu0 %v658
      %1547 = vmatprep.subr.bf16.mxu0 0
      %1548 = vmatpush1.bf16.msra.mxu0 %v657
      %1549 = vmatprep.subr.bf16.mxu0 0
      %1550 = vmatpush1.bf16.msra.mxu0 %v656
      %1551 = vmatprep.subr.bf16.mxu0 0
      %1552 = vmatpush1.bf16.msra.mxu0 %v655
      %1553 = vmatprep.subr.bf16.mxu0 0
      %1554 = vmatpush1.bf16.msra.mxu0 %v654
      %1555 = vmatprep.subr.bf16.mxu0 0
      %1556 = vmatpush1.bf16.msra.mxu0 %v653
      %1557 = vmatprep.subr.bf16.mxu0 0
      %1558 = vmatpush1.bf16.msra.mxu0 %v652
      %1559 = vmatprep.subr.bf16.mxu0 0
      %1560 = vmatpush1.bf16.msra.mxu0 %v651
      %1561 = vmatprep.subr.bf16.mxu0 0
      %1562 = vmatpush2.bf16.msra.mxu0 %v666
      %1563 = vmatprep.subr.bf16.mxu0 0
      %1564 = vmatpush2.bf16.msra.mxu0 %v665
      %1565 = vmatprep.subr.bf16.mxu0 0
      %1566 = vmatpush2.bf16.msra.mxu0 %v664
      %1567 = vmatprep.subr.bf16.mxu0 0
      %1568 = vmatpush2.bf16.msra.mxu0 %v663
      %1569 = vmatprep.subr.bf16.mxu0 0
      %1570 = vmatpush2.bf16.msra.mxu0 %v662
      %1571 = vmatprep.subr.bf16.mxu0 0
      %1572 = vmatpush2.bf16.msra.mxu0 %v661
      %1573 = vmatprep.subr.bf16.mxu0 0
      %1574 = vmatpush2.bf16.msra.mxu0 %v660
      %1575 = vmatprep.subr.bf16.mxu0 0
      %1576 = vmatpush2.bf16.msra.mxu0 %v659
      %1577 = vmatprep.mubr.bf16.mxu0 %v1446
      %1578 = vmatmul.mubr.bf16.gmra.mxu0 %v1445
      %v1579 = vpop.f32.mrf.mxu0
      %v1580 = vadd.f32 %v1539, %v1579
      %v1581 = vpop.f32.mrf.mxu0
      %v1582 = vpop.f32.mrf.mxu0
      %v1583 = vadd.f32 %v1542, %v1582
      %v1584 = vpop.f32.mrf.mxu0
      %1585 = vdwg.mxu0
      %v1586 = vadd.f32 %v1580, %v728
      %v1587 = vadd.f32 %v1583, %v728
      %v1588 = vmax.f32 %v1586, 0.0
      %v1589 = vmax.f32 %v1587, 0.0
      %v1590 = vpack.c.bf16 %v1589, %v1588
      %v1592 = vunpack.c.l.b16 %v1590
      %v1593 = vunpack.c.h.b16 %v1590
      %v1594 = vpack.c.b16 %v1592, %v1592
      %v1595 = vpack.c.b16 %v1593, %v1593
      %1598 = vst [vmem:[%s226 + $0x20] sm:$0xf] %v1594
      %1599 = vst [vmem:[%s226 + $0x24] sm:$0xf] %v1595
      %v1600 = vld [vmem:[%s220 + $0x50] sm:$0xf]
      %v1601 = vld [vmem:[%s220 + $0x54] sm:$0xf]
      %v1602 = vld [vmem:[%s220 + $0x58] sm:$0xf]
      %v1603 = vld [vmem:[%s220 + $0x5c] sm:$0xf]
      %v1606 = vunpack.c.l.b16 %v1600
      %v1607 = vunpack.c.l.b16 %v1601
      %v1608 = vpack.c.b16 %v1607, %v1606
      %v1610 = vsel %vm333, %v1608, 0
      %1612 = vmatprep.subr.bf16.mxu0 0
      %1613 = vmatpush1.bf16.msra.mxu0 0
      %1614 = vmatprep.subr.bf16.mxu0 0
      %1615 = vmatpush1.bf16.msra.mxu0 0
      %1616 = vmatprep.subr.bf16.mxu0 0
      %1617 = vmatpush1.bf16.msra.mxu0 0
      %1618 = vmatprep.subr.bf16.mxu0 0
      %1619 = vmatpush1.bf16.msra.mxu0 0
      %1620 = vmatprep.subr.bf16.mxu0 0
      %1621 = vmatpush1.bf16.msra.mxu0 0
      %1622 = vmatprep.subr.bf16.mxu0 0
      %1623 = vmatpush1.bf16.msra.mxu0 0
      %1624 = vmatprep.subr.bf16.mxu0 %v342
      %1625 = vmatpush1.bf16.msra.mxu0 %v339
      %1626 = vmatprep.subr.bf16.mxu0 %v328
      %1627 = vmatpush1.bf16.msra.mxu0 %v327
      %1628 = vmatprep.subr.bf16.mxu0 0
      %1629 = vmatpush2.bf16.msra.mxu0 0
      %1630 = vmatprep.subr.bf16.mxu0 0
      %1631 = vmatpush2.bf16.msra.mxu0 0
      %1632 = vmatprep.subr.bf16.mxu0 0
      %1633 = vmatpush2.bf16.msra.mxu0 0
      %1634 = vmatprep.subr.bf16.mxu0 0
      %1635 = vmatpush2.bf16.msra.mxu0 0
      %1636 = vmatprep.subr.bf16.mxu0 0
      %1637 = vmatpush2.bf16.msra.mxu0 0
      %1638 = vmatprep.subr.bf16.mxu0 0
      %1639 = vmatpush2.bf16.msra.mxu0 0
      %1640 = vmatprep.subr.bf16.mxu0 0
      %1641 = vmatpush2.bf16.msra.mxu0 0
      %1642 = vmatprep.subr.bf16.mxu0 0
      %1643 = vmatpush2.bf16.msra.mxu0 0
      %1644 = vmatprep.mubr.bf16.mxu0 0
      %1645 = vmatmul.mubr.bf16.gmra.mxu0 %v1610
      %v1646 = vpop.f32.mrf.mxu0
      %v1647 = vadd.f32 %v306, %v1646
      %v1648 = vpop.f32.mrf.mxu0
      %v1649 = vadd.f32 %v310, %v1648
      %v1650 = vpop.f32.mrf.mxu0
      %v1651 = vadd.f32 %v306, %v1650
      %v1652 = vpop.f32.mrf.mxu0
      %v1653 = vadd.f32 %v310, %v1652
      %1654 = vdwg.mxu0
      %v1655 = vmax.f32 %v1647, 0.0
      %v1656 = vmax.f32 %v1649, 0.0
      %v1657 = vmax.f32 %v1651, 0.0
      %v1658 = vmax.f32 %v1653, 0.0
      %v1659 = vpack.c.bf16 %v1657, %v1655
      %v1660 = vpack.c.bf16 %v1658, %v1656
      %v1663 = vunpack.c.l.b16 %v1602
      %v1664 = vunpack.c.l.b16 %v1603
      %v1665 = vpack.c.b16 %v1664, %v1663
      %v1667 = vsel %vm333, %v1665, 0
      %1669 = vmatprep.subr.bf16.mxu0 0
      %1670 = vmatpush1.bf16.msra.mxu0 0
      %1671 = vmatprep.subr.bf16.mxu0 0
      %1672 = vmatpush1.bf16.msra.mxu0 0
      %1673 = vmatprep.subr.bf16.mxu0 0
      %1674 = vmatpush1.bf16.msra.mxu0 0
      %1675 = vmatprep.subr.bf16.mxu0 0
      %1676 = vmatpush1.bf16.msra.mxu0 0
      %1677 = vmatprep.subr.bf16.mxu0 0
      %1678 = vmatpush1.bf16.msra.mxu0 0
      %1679 = vmatprep.subr.bf16.mxu0 0
      %1680 = vmatpush1.bf16.msra.mxu0 0
      %1681 = vmatprep.subr.bf16.mxu0 %v342
      %1682 = vmatpush1.bf16.msra.mxu0 %v339
      %1683 = vmatprep.subr.bf16.mxu0 %v328
      %1684 = vmatpush1.bf16.msra.mxu0 %v327
      %1685 = vmatprep.subr.bf16.mxu0 0
      %1686 = vmatpush2.bf16.msra.mxu0 0
      %1687 = vmatprep.subr.bf16.mxu0 0
      %1688 = vmatpush2.bf16.msra.mxu0 0
      %1689 = vmatprep.subr.bf16.mxu0 0
      %1690 = vmatpush2.bf16.msra.mxu0 0
      %1691 = vmatprep.subr.bf16.mxu0 0
      %1692 = vmatpush2.bf16.msra.mxu0 0
      %1693 = vmatprep.subr.bf16.mxu0 0
      %1694 = vmatpush2.bf16.msra.mxu0 0
      %1695 = vmatprep.subr.bf16.mxu0 0
      %1696 = vmatpush2.bf16.msra.mxu0 0
      %1697 = vmatprep.subr.bf16.mxu0 0
      %1698 = vmatpush2.bf16.msra.mxu0 0
      %1699 = vmatprep.subr.bf16.mxu0 0
      %1700 = vmatpush2.bf16.msra.mxu0 0
      %1701 = vmatprep.mubr.bf16.mxu0 0
      %1702 = vmatmul.mubr.bf16.gmra.mxu0 %v1667
      %v1703 = vpop.f32.mrf.mxu0
      %v1704 = vadd.f32 %v306, %v1703
      %v1705 = vpop.f32.mrf.mxu0
      %v1706 = vadd.f32 %v310, %v1705
      %v1707 = vpop.f32.mrf.mxu0
      %v1708 = vadd.f32 %v306, %v1707
      %v1709 = vpop.f32.mrf.mxu0
      %v1710 = vadd.f32 %v310, %v1709
      %1711 = vdwg.mxu0
      %v1712 = vmax.f32 %v1704, 0.0
      %v1713 = vmax.f32 %v1706, 0.0
      %v1714 = vmax.f32 %v1708, 0.0
      %v1715 = vmax.f32 %v1710, 0.0
      %v1716 = vpack.c.bf16 %v1714, %v1712
      %v1717 = vpack.c.bf16 %v1715, %v1713
      %1718 = vmatprep.subr.bf16.mxu0 0
      %1719 = vmatpush1.bf16.msra.mxu0 %v521
      %1720 = vmatprep.subr.bf16.mxu0 0
      %1721 = vmatpush1.bf16.msra.mxu0 %v520
      %1722 = vmatprep.subr.bf16.mxu0 0
      %1723 = vmatpush1.bf16.msra.mxu0 %v519
      %1724 = vmatprep.subr.bf16.mxu0 0
      %1725 = vmatpush1.bf16.msra.mxu0 %v518
      %1726 = vmatprep.subr.bf16.mxu0 0
      %1727 = vmatpush1.bf16.msra.mxu0 %v517
      %1728 = vmatprep.subr.bf16.mxu0 0
      %1729 = vmatpush1.bf16.msra.mxu0 %v516
      %1730 = vmatprep.subr.bf16.mxu0 0
      %1731 = vmatpush1.bf16.msra.mxu0 %v515
      %1732 = vmatprep.subr.bf16.mxu0 0
      %1733 = vmatpush1.bf16.msra.mxu0 %v514
      %1734 = vmatprep.subr.bf16.mxu0 0
      %1735 = vmatpush2.bf16.msra.mxu0 %v529
      %1736 = vmatprep.subr.bf16.mxu0 0
      %1737 = vmatpush2.bf16.msra.mxu0 %v528
      %1738 = vmatprep.subr.bf16.mxu0 0
      %1739 = vmatpush2.bf16.msra.mxu0 %v527
      %1740 = vmatprep.subr.bf16.mxu0 0
      %1741 = vmatpush2.bf16.msra.mxu0 %v526
      %1742 = vmatprep.subr.bf16.mxu0 0
      %1743 = vmatpush2.bf16.msra.mxu0 %v525
      %1744 = vmatprep.subr.bf16.mxu0 0
      %1745 = vmatpush2.bf16.msra.mxu0 %v524
      %1746 = vmatprep.subr.bf16.mxu0 0
      %1747 = vmatpush2.bf16.msra.mxu0 %v523
      %1748 = vmatprep.subr.bf16.mxu0 0
      %1749 = vmatpush2.bf16.msra.mxu0 %v522
      %1750 = vmatprep.mubr.bf16.mxu0 %v1717
      %1751 = vmatmul.mubr.bf16.gmra.mxu0 %v1716
      %v1752 = vpop.f32.mrf.mxu0
      %v1753 = vadd.f32 0.0, %v1752
      %v1754 = vpop.f32.mrf.mxu0
      %v1755 = vpop.f32.mrf.mxu0
      %v1756 = vadd.f32 0.0, %v1755
      %v1757 = vpop.f32.mrf.mxu0
      %1758 = vdwg.mxu0
      %1759 = vmatprep.subr.bf16.mxu0 0
      %1760 = vmatpush1.bf16.msra.mxu0 %v658
      %1761 = vmatprep.subr.bf16.mxu0 0
      %1762 = vmatpush1.bf16.msra.mxu0 %v657
      %1763 = vmatprep.subr.bf16.mxu0 0
      %1764 = vmatpush1.bf16.msra.mxu0 %v656
      %1765 = vmatprep.subr.bf16.mxu0 0
      %1766 = vmatpush1.bf16.msra.mxu0 %v655
      %1767 = vmatprep.subr.bf16.mxu0 0
      %1768 = vmatpush1.bf16.msra.mxu0 %v654
      %1769 = vmatprep.subr.bf16.mxu0 0
      %1770 = vmatpush1.bf16.msra.mxu0 %v653
      %1771 = vmatprep.subr.bf16.mxu0 0
      %1772 = vmatpush1.bf16.msra.mxu0 %v652
      %1773 = vmatprep.subr.bf16.mxu0 0
      %1774 = vmatpush1.bf16.msra.mxu0 %v651
      %1775 = vmatprep.subr.bf16.mxu0 0
      %1776 = vmatpush2.bf16.msra.mxu0 %v666
      %1777 = vmatprep.subr.bf16.mxu0 0
      %1778 = vmatpush2.bf16.msra.mxu0 %v665
      %1779 = vmatprep.subr.bf16.mxu0 0
      %1780 = vmatpush2.bf16.msra.mxu0 %v664
      %1781 = vmatprep.subr.bf16.mxu0 0
      %1782 = vmatpush2.bf16.msra.mxu0 %v663
      %1783 = vmatprep.subr.bf16.mxu0 0
      %1784 = vmatpush2.bf16.msra.mxu0 %v662
      %1785 = vmatprep.subr.bf16.mxu0 0
      %1786 = vmatpush2.bf16.msra.mxu0 %v661
      %1787 = vmatprep.subr.bf16.mxu0 0
      %1788 = vmatpush2.bf16.msra.mxu0 %v660
      %1789 = vmatprep.subr.bf16.mxu0 0
      %1790 = vmatpush2.bf16.msra.mxu0 %v659
      %1791 = vmatprep.mubr.bf16.mxu0 %v1660
      %1792 = vmatmul.mubr.bf16.gmra.mxu0 %v1659
      %v1793 = vpop.f32.mrf.mxu0
      %v1794 = vadd.f32 %v1753, %v1793
      %v1795 = vpop.f32.mrf.mxu0
      %v1796 = vpop.f32.mrf.mxu0
      %v1797 = vadd.f32 %v1756, %v1796
      %v1798 = vpop.f32.mrf.mxu0
      %1799 = vdwg.mxu0
      %v1800 = vadd.f32 %v1794, %v728
      %v1801 = vadd.f32 %v1797, %v728
      %v1802 = vmax.f32 %v1800, 0.0
      %v1803 = vmax.f32 %v1801, 0.0
      %v1804 = vpack.c.bf16 %v1803, %v1802
      %v1806 = vunpack.c.l.b16 %v1804
      %v1807 = vunpack.c.h.b16 %v1804
      %v1808 = vpack.c.b16 %v1806, %v1806
      %v1809 = vpack.c.b16 %v1807, %v1807
      %1812 = vst [vmem:[%s226 + $0x28] sm:$0xf] %v1808
      %1813 = vst [vmem:[%s226 + $0x2c] sm:$0xf] %v1809
      %v1814 = vld [vmem:[%s220 + $0x60] sm:$0xf]
      %v1815 = vld [vmem:[%s220 + $0x64] sm:$0xf]
      %v1816 = vld [vmem:[%s220 + $0x68] sm:$0xf]
      %v1817 = vld [vmem:[%s220 + $0x6c] sm:$0xf]
      %v1820 = vunpack.c.l.b16 %v1814
      %v1821 = vunpack.c.l.b16 %v1815
      %v1822 = vpack.c.b16 %v1821, %v1820
      %v1824 = vsel %vm333, %v1822, 0
      %1826 = vmatprep.subr.bf16.mxu0 0
      %1827 = vmatpush1.bf16.msra.mxu0 0
      %1828 = vmatprep.subr.bf16.mxu0 0
      %1829 = vmatpush1.bf16.msra.mxu0 0
      %1830 = vmatprep.subr.bf16.mxu0 0
      %1831 = vmatpush1.bf16.msra.mxu0 0
      %1832 = vmatprep.subr.bf16.mxu0 0
      %1833 = vmatpush1.bf16.msra.mxu0 0
      %1834 = vmatprep.subr.bf16.mxu0 0
      %1835 = vmatpush1.bf16.msra.mxu0 0
      %1836 = vmatprep.subr.bf16.mxu0 0
      %1837 = vmatpush1.bf16.msra.mxu0 0
      %1838 = vmatprep.subr.bf16.mxu0 %v342
      %1839 = vmatpush1.bf16.msra.mxu0 %v339
      %1840 = vmatprep.subr.bf16.mxu0 %v328
      %1841 = vmatpush1.bf16.msra.mxu0 %v327
      %1842 = vmatprep.subr.bf16.mxu0 0
      %1843 = vmatpush2.bf16.msra.mxu0 0
      %1844 = vmatprep.subr.bf16.mxu0 0
      %1845 = vmatpush2.bf16.msra.mxu0 0
      %1846 = vmatprep.subr.bf16.mxu0 0
      %1847 = vmatpush2.bf16.msra.mxu0 0
      %1848 = vmatprep.subr.bf16.mxu0 0
      %1849 = vmatpush2.bf16.msra.mxu0 0
      %1850 = vmatprep.subr.bf16.mxu0 0
      %1851 = vmatpush2.bf16.msra.mxu0 0
      %1852 = vmatprep.subr.bf16.mxu0 0
      %1853 = vmatpush2.bf16.msra.mxu0 0
      %1854 = vmatprep.subr.bf16.mxu0 0
      %1855 = vmatpush2.bf16.msra.mxu0 0
      %1856 = vmatprep.subr.bf16.mxu0 0
      %1857 = vmatpush2.bf16.msra.mxu0 0
      %1858 = vmatprep.mubr.bf16.mxu0 0
      %1859 = vmatmul.mubr.bf16.gmra.mxu0 %v1824
      %v1860 = vpop.f32.mrf.mxu0
      %v1861 = vadd.f32 %v306, %v1860
      %v1862 = vpop.f32.mrf.mxu0
      %v1863 = vadd.f32 %v310, %v1862
      %v1864 = vpop.f32.mrf.mxu0
      %v1865 = vadd.f32 %v306, %v1864
      %v1866 = vpop.f32.mrf.mxu0
      %v1867 = vadd.f32 %v310, %v1866
      %1868 = vdwg.mxu0
      %v1869 = vmax.f32 %v1861, 0.0
      %v1870 = vmax.f32 %v1863, 0.0
      %v1871 = vmax.f32 %v1865, 0.0
      %v1872 = vmax.f32 %v1867, 0.0
      %v1873 = vpack.c.bf16 %v1871, %v1869
      %v1874 = vpack.c.bf16 %v1872, %v1870
      %v1877 = vunpack.c.l.b16 %v1816
      %v1878 = vunpack.c.l.b16 %v1817
      %v1879 = vpack.c.b16 %v1878, %v1877
      %v1881 = vsel %vm333, %v1879, 0
      %1883 = vmatprep.subr.bf16.mxu0 0
      %1884 = vmatpush1.bf16.msra.mxu0 0
      %1885 = vmatprep.subr.bf16.mxu0 0
      %1886 = vmatpush1.bf16.msra.mxu0 0
      %1887 = vmatprep.subr.bf16.mxu0 0
      %1888 = vmatpush1.bf16.msra.mxu0 0
      %1889 = vmatprep.subr.bf16.mxu0 0
      %1890 = vmatpush1.bf16.msra.mxu0 0
      %1891 = vmatprep.subr.bf16.mxu0 0
      %1892 = vmatpush1.bf16.msra.mxu0 0
      %1893 = vmatprep.subr.bf16.mxu0 0
      %1894 = vmatpush1.bf16.msra.mxu0 0
      %1895 = vmatprep.subr.bf16.mxu0 %v342
      %1896 = vmatpush1.bf16.msra.mxu0 %v339
      %1897 = vmatprep.subr.bf16.mxu0 %v328
      %1898 = vmatpush1.bf16.msra.mxu0 %v327
      %1899 = vmatprep.subr.bf16.mxu0 0
      %1900 = vmatpush2.bf16.msra.mxu0 0
      %1901 = vmatprep.subr.bf16.mxu0 0
      %1902 = vmatpush2.bf16.msra.mxu0 0
      %1903 = vmatprep.subr.bf16.mxu0 0
      %1904 = vmatpush2.bf16.msra.mxu0 0
      %1905 = vmatprep.subr.bf16.mxu0 0
      %1906 = vmatpush2.bf16.msra.mxu0 0
      %1907 = vmatprep.subr.bf16.mxu0 0
      %1908 = vmatpush2.bf16.msra.mxu0 0
      %1909 = vmatprep.subr.bf16.mxu0 0
      %1910 = vmatpush2.bf16.msra.mxu0 0
      %1911 = vmatprep.subr.bf16.mxu0 0
      %1912 = vmatpush2.bf16.msra.mxu0 0
      %1913 = vmatprep.subr.bf16.mxu0 0
      %1914 = vmatpush2.bf16.msra.mxu0 0
      %1915 = vmatprep.mubr.bf16.mxu0 0
      %1916 = vmatmul.mubr.bf16.gmra.mxu0 %v1881
      %v1917 = vpop.f32.mrf.mxu0
      %v1918 = vadd.f32 %v306, %v1917
      %v1919 = vpop.f32.mrf.mxu0
      %v1920 = vadd.f32 %v310, %v1919
      %v1921 = vpop.f32.mrf.mxu0
      %v1922 = vadd.f32 %v306, %v1921
      %v1923 = vpop.f32.mrf.mxu0
      %v1924 = vadd.f32 %v310, %v1923
      %1925 = vdwg.mxu0
      %v1926 = vmax.f32 %v1918, 0.0
      %v1927 = vmax.f32 %v1920, 0.0
      %v1928 = vmax.f32 %v1922, 0.0
      %v1929 = vmax.f32 %v1924, 0.0
      %v1930 = vpack.c.bf16 %v1928, %v1926
      %v1931 = vpack.c.bf16 %v1929, %v1927
      %1932 = vmatprep.subr.bf16.mxu0 0
      %1933 = vmatpush1.bf16.msra.mxu0 %v521
      %1934 = vmatprep.subr.bf16.mxu0 0
      %1935 = vmatpush1.bf16.msra.mxu0 %v520
      %1936 = vmatprep.subr.bf16.mxu0 0
      %1937 = vmatpush1.bf16.msra.mxu0 %v519
      %1938 = vmatprep.subr.bf16.mxu0 0
      %1939 = vmatpush1.bf16.msra.mxu0 %v518
      %1940 = vmatprep.subr.bf16.mxu0 0
      %1941 = vmatpush1.bf16.msra.mxu0 %v517
      %1942 = vmatprep.subr.bf16.mxu0 0
      %1943 = vmatpush1.bf16.msra.mxu0 %v516
      %1944 = vmatprep.subr.bf16.mxu0 0
      %1945 = vmatpush1.bf16.msra.mxu0 %v515
      %1946 = vmatprep.subr.bf16.mxu0 0
      %1947 = vmatpush1.bf16.msra.mxu0 %v514
      %1948 = vmatprep.subr.bf16.mxu0 0
      %1949 = vmatpush2.bf16.msra.mxu0 %v529
      %1950 = vmatprep.subr.bf16.mxu0 0
      %1951 = vmatpush2.bf16.msra.mxu0 %v528
      %1952 = vmatprep.subr.bf16.mxu0 0
      %1953 = vmatpush2.bf16.msra.mxu0 %v527
      %1954 = vmatprep.subr.bf16.mxu0 0
      %1955 = vmatpush2.bf16.msra.mxu0 %v526
      %1956 = vmatprep.subr.bf16.mxu0 0
      %1957 = vmatpush2.bf16.msra.mxu0 %v525
      %1958 = vmatprep.subr.bf16.mxu0 0
      %1959 = vmatpush2.bf16.msra.mxu0 %v524
      %1960 = vmatprep.subr.bf16.mxu0 0
      %1961 = vmatpush2.bf16.msra.mxu0 %v523
      %1962 = vmatprep.subr.bf16.mxu0 0
      %1963 = vmatpush2.bf16.msra.mxu0 %v522
      %1964 = vmatprep.mubr.bf16.mxu0 %v1931
      %1965 = vmatmul.mubr.bf16.gmra.mxu0 %v1930
      %v1966 = vpop.f32.mrf.mxu0
      %v1967 = vadd.f32 0.0, %v1966
      %v1968 = vpop.f32.mrf.mxu0
      %v1969 = vpop.f32.mrf.mxu0
      %v1970 = vadd.f32 0.0, %v1969
      %v1971 = vpop.f32.mrf.mxu0
      %1972 = vdwg.mxu0
      %1973 = vmatprep.subr.bf16.mxu0 0
      %1974 = vmatpush1.bf16.msra.mxu0 %v658
      %1975 = vmatprep.subr.bf16.mxu0 0
      %1976 = vmatpush1.bf16.msra.mxu0 %v657
      %1977 = vmatprep.subr.bf16.mxu0 0
      %1978 = vmatpush1.bf16.msra.mxu0 %v656
      %1979 = vmatprep.subr.bf16.mxu0 0
      %1980 = vmatpush1.bf16.msra.mxu0 %v655
      %1981 = vmatprep.subr.bf16.mxu0 0
      %1982 = vmatpush1.bf16.msra.mxu0 %v654
      %1983 = vmatprep.subr.bf16.mxu0 0
      %1984 = vmatpush1.bf16.msra.mxu0 %v653
      %1985 = vmatprep.subr.bf16.mxu0 0
      %1986 = vmatpush1.bf16.msra.mxu0 %v652
      %1987 = vmatprep.subr.bf16.mxu0 0
      %1988 = vmatpush1.bf16.msra.mxu0 %v651
      %1989 = vmatprep.subr.bf16.mxu0 0
      %1990 = vmatpush2.bf16.msra.mxu0 %v666
      %1991 = vmatprep.subr.bf16.mxu0 0
      %1992 = vmatpush2.bf16.msra.mxu0 %v665
      %1993 = vmatprep.subr.bf16.mxu0 0
      %1994 = vmatpush2.bf16.msra.mxu0 %v664
      %1995 = vmatprep.subr.bf16.mxu0 0
      %1996 = vmatpush2.bf16.msra.mxu0 %v663
      %1997 = vmatprep.subr.bf16.mxu0 0
      %1998 = vmatpush2.bf16.msra.mxu0 %v662
      %1999 = vmatprep.subr.bf16.mxu0 0
      %2000 = vmatpush2.bf16.msra.mxu0 %v661
      %2001 = vmatprep.subr.bf16.mxu0 0
      %2002 = vmatpush2.bf16.msra.mxu0 %v660
      %2003 = vmatprep.subr.bf16.mxu0 0
      %2004 = vmatpush2.bf16.msra.mxu0 %v659
      %2005 = vmatprep.mubr.bf16.mxu0 %v1874
      %2006 = vmatmul.mubr.bf16.gmra.mxu0 %v1873
      %v2007 = vpop.f32.mrf.mxu0
      %v2008 = vadd.f32 %v1967, %v2007
      %v2009 = vpop.f32.mrf.mxu0
      %v2010 = vpop.f32.mrf.mxu0
      %v2011 = vadd.f32 %v1970, %v2010
      %v2012 = vpop.f32.mrf.mxu0
      %2013 = vdwg.mxu0
      %v2014 = vadd.f32 %v2008, %v728
      %v2015 = vadd.f32 %v2011, %v728
      %v2016 = vmax.f32 %v2014, 0.0
      %v2017 = vmax.f32 %v2015, 0.0
      %v2018 = vpack.c.bf16 %v2017, %v2016
      %v2020 = vunpack.c.l.b16 %v2018
      %v2021 = vunpack.c.h.b16 %v2018
      %v2022 = vpack.c.b16 %v2020, %v2020
      %v2023 = vpack.c.b16 %v2021, %v2021
      %2026 = vst [vmem:[%s226 + $0x30] sm:$0xf] %v2022
      %2027 = vst [vmem:[%s226 + $0x34] sm:$0xf] %v2023
      %v2028 = vld [vmem:[%s220 + $0x70] sm:$0xf]
      %v2029 = vld [vmem:[%s220 + $0x74] sm:$0xf]
      %v2030 = vld [vmem:[%s220 + $0x78] sm:$0xf]
      %v2031 = vld [vmem:[%s220 + $0x7c] sm:$0xf]
      %v2034 = vunpack.c.l.b16 %v2028
      %v2035 = vunpack.c.l.b16 %v2029
      %v2036 = vpack.c.b16 %v2035, %v2034
      %v2038 = vsel %vm333, %v2036, 0
      %2040 = vmatprep.subr.bf16.mxu0 0
      %2041 = vmatpush1.bf16.msra.mxu0 0
      %2042 = vmatprep.subr.bf16.mxu0 0
      %2043 = vmatpush1.bf16.msra.mxu0 0
      %2044 = vmatprep.subr.bf16.mxu0 0
      %2045 = vmatpush1.bf16.msra.mxu0 0
      %2046 = vmatprep.subr.bf16.mxu0 0
      %2047 = vmatpush1.bf16.msra.mxu0 0
      %2048 = vmatprep.subr.bf16.mxu0 0
      %2049 = vmatpush1.bf16.msra.mxu0 0
      %2050 = vmatprep.subr.bf16.mxu0 0
      %2051 = vmatpush1.bf16.msra.mxu0 0
      %2052 = vmatprep.subr.bf16.mxu0 %v342
      %2053 = vmatpush1.bf16.msra.mxu0 %v339
      %2054 = vmatprep.subr.bf16.mxu0 %v328
      %2055 = vmatpush1.bf16.msra.mxu0 %v327
      %2056 = vmatprep.subr.bf16.mxu0 0
      %2057 = vmatpush2.bf16.msra.mxu0 0
      %2058 = vmatprep.subr.bf16.mxu0 0
      %2059 = vmatpush2.bf16.msra.mxu0 0
      %2060 = vmatprep.subr.bf16.mxu0 0
      %2061 = vmatpush2.bf16.msra.mxu0 0
      %2062 = vmatprep.subr.bf16.mxu0 0
      %2063 = vmatpush2.bf16.msra.mxu0 0
      %2064 = vmatprep.subr.bf16.mxu0 0
      %2065 = vmatpush2.bf16.msra.mxu0 0
      %2066 = vmatprep.subr.bf16.mxu0 0
      %2067 = vmatpush2.bf16.msra.mxu0 0
      %2068 = vmatprep.subr.bf16.mxu0 0
      %2069 = vmatpush2.bf16.msra.mxu0 0
      %2070 = vmatprep.subr.bf16.mxu0 0
      %2071 = vmatpush2.bf16.msra.mxu0 0
      %2072 = vmatprep.mubr.bf16.mxu0 0
      %2073 = vmatmul.mubr.bf16.gmra.mxu0 %v2038
      %v2074 = vpop.f32.mrf.mxu0
      %v2075 = vadd.f32 %v306, %v2074
      %v2076 = vpop.f32.mrf.mxu0
      %v2077 = vadd.f32 %v310, %v2076
      %v2078 = vpop.f32.mrf.mxu0
      %v2079 = vadd.f32 %v306, %v2078
      %v2080 = vpop.f32.mrf.mxu0
      %v2081 = vadd.f32 %v310, %v2080
      %2082 = vdwg.mxu0
      %v2083 = vmax.f32 %v2075, 0.0
      %v2084 = vmax.f32 %v2077, 0.0
      %v2085 = vmax.f32 %v2079, 0.0
      %v2086 = vmax.f32 %v2081, 0.0
      %v2087 = vpack.c.bf16 %v2085, %v2083
      %v2088 = vpack.c.bf16 %v2086, %v2084
      %v2091 = vunpack.c.l.b16 %v2030
      %v2092 = vunpack.c.l.b16 %v2031
      %v2093 = vpack.c.b16 %v2092, %v2091
      %v2095 = vsel %vm333, %v2093, 0
      %2097 = vmatprep.subr.bf16.mxu0 0
      %2098 = vmatpush1.bf16.msra.mxu0 0
      %2099 = vmatprep.subr.bf16.mxu0 0
      %2100 = vmatpush1.bf16.msra.mxu0 0
      %2101 = vmatprep.subr.bf16.mxu0 0
      %2102 = vmatpush1.bf16.msra.mxu0 0
      %2103 = vmatprep.subr.bf16.mxu0 0
      %2104 = vmatpush1.bf16.msra.mxu0 0
      %2105 = vmatprep.subr.bf16.mxu0 0
      %2106 = vmatpush1.bf16.msra.mxu0 0
      %2107 = vmatprep.subr.bf16.mxu0 0
      %2108 = vmatpush1.bf16.msra.mxu0 0
      %2109 = vmatprep.subr.bf16.mxu0 %v342
      %2110 = vmatpush1.bf16.msra.mxu0 %v339
      %2111 = vmatprep.subr.bf16.mxu0 %v328
      %2112 = vmatpush1.bf16.msra.mxu0 %v327
      %2113 = vmatprep.subr.bf16.mxu0 0
      %2114 = vmatpush2.bf16.msra.mxu0 0
      %2115 = vmatprep.subr.bf16.mxu0 0
      %2116 = vmatpush2.bf16.msra.mxu0 0
      %2117 = vmatprep.subr.bf16.mxu0 0
      %2118 = vmatpush2.bf16.msra.mxu0 0
      %2119 = vmatprep.subr.bf16.mxu0 0
      %2120 = vmatpush2.bf16.msra.mxu0 0
      %2121 = vmatprep.subr.bf16.mxu0 0
      %2122 = vmatpush2.bf16.msra.mxu0 0
      %2123 = vmatprep.subr.bf16.mxu0 0
      %2124 = vmatpush2.bf16.msra.mxu0 0
      %2125 = vmatprep.subr.bf16.mxu0 0
      %2126 = vmatpush2.bf16.msra.mxu0 0
      %2127 = vmatprep.subr.bf16.mxu0 0
      %2128 = vmatpush2.bf16.msra.mxu0 0
      %2129 = vmatprep.mubr.bf16.mxu0 0
      %2130 = vmatmul.mubr.bf16.gmra.mxu0 %v2095
      %v2131 = vpop.f32.mrf.mxu0
      %v2132 = vadd.f32 %v306, %v2131
      %v2133 = vpop.f32.mrf.mxu0
      %v2134 = vadd.f32 %v310, %v2133
      %v2135 = vpop.f32.mrf.mxu0
      %v2136 = vadd.f32 %v306, %v2135
      %v2137 = vpop.f32.mrf.mxu0
      %v2138 = vadd.f32 %v310, %v2137
      %2139 = vdwg.mxu0
      %v2140 = vmax.f32 %v2132, 0.0
      %v2141 = vmax.f32 %v2134, 0.0
      %v2142 = vmax.f32 %v2136, 0.0
      %v2143 = vmax.f32 %v2138, 0.0
      %v2144 = vpack.c.bf16 %v2142, %v2140
      %v2145 = vpack.c.bf16 %v2143, %v2141
      %2146 = vmatprep.subr.bf16.mxu0 0
      %2147 = vmatpush1.bf16.msra.mxu0 %v521
      %2148 = vmatprep.subr.bf16.mxu0 0
      %2149 = vmatpush1.bf16.msra.mxu0 %v520
      %2150 = vmatprep.subr.bf16.mxu0 0
      %2151 = vmatpush1.bf16.msra.mxu0 %v519
      %2152 = vmatprep.subr.bf16.mxu0 0
      %2153 = vmatpush1.bf16.msra.mxu0 %v518
      %2154 = vmatprep.subr.bf16.mxu0 0
      %2155 = vmatpush1.bf16.msra.mxu0 %v517
      %2156 = vmatprep.subr.bf16.mxu0 0
      %2157 = vmatpush1.bf16.msra.mxu0 %v516
      %2158 = vmatprep.subr.bf16.mxu0 0
      %2159 = vmatpush1.bf16.msra.mxu0 %v515
      %2160 = vmatprep.subr.bf16.mxu0 0
      %2161 = vmatpush1.bf16.msra.mxu0 %v514
      %2162 = vmatprep.subr.bf16.mxu0 0
      %2163 = vmatpush2.bf16.msra.mxu0 %v529
      %2164 = vmatprep.subr.bf16.mxu0 0
      %2165 = vmatpush2.bf16.msra.mxu0 %v528
      %2166 = vmatprep.subr.bf16.mxu0 0
      %2167 = vmatpush2.bf16.msra.mxu0 %v527
      %2168 = vmatprep.subr.bf16.mxu0 0
      %2169 = vmatpush2.bf16.msra.mxu0 %v526
      %2170 = vmatprep.subr.bf16.mxu0 0
      %2171 = vmatpush2.bf16.msra.mxu0 %v525
      %2172 = vmatprep.subr.bf16.mxu0 0
      %2173 = vmatpush2.bf16.msra.mxu0 %v524
      %2174 = vmatprep.subr.bf16.mxu0 0
      %2175 = vmatpush2.bf16.msra.mxu0 %v523
      %2176 = vmatprep.subr.bf16.mxu0 0
      %2177 = vmatpush2.bf16.msra.mxu0 %v522
      %2178 = vmatprep.mubr.bf16.mxu0 %v2145
      %2179 = vmatmul.mubr.bf16.gmra.mxu0 %v2144
      %v2180 = vpop.f32.mrf.mxu0
      %v2181 = vadd.f32 0.0, %v2180
      %v2182 = vpop.f32.mrf.mxu0
      %v2183 = vpop.f32.mrf.mxu0
      %v2184 = vadd.f32 0.0, %v2183
      %v2185 = vpop.f32.mrf.mxu0
      %2186 = vdwg.mxu0
      %2187 = vmatprep.subr.bf16.mxu0 0
      %2188 = vmatpush1.bf16.msra.mxu0 %v658
      %2189 = vmatprep.subr.bf16.mxu0 0
      %2190 = vmatpush1.bf16.msra.mxu0 %v657
      %2191 = vmatprep.subr.bf16.mxu0 0
      %2192 = vmatpush1.bf16.msra.mxu0 %v656
      %2193 = vmatprep.subr.bf16.mxu0 0
      %2194 = vmatpush1.bf16.msra.mxu0 %v655
      %2195 = vmatprep.subr.bf16.mxu0 0
      %2196 = vmatpush1.bf16.msra.mxu0 %v654
      %2197 = vmatprep.subr.bf16.mxu0 0
      %2198 = vmatpush1.bf16.msra.mxu0 %v653
      %2199 = vmatprep.subr.bf16.mxu0 0
      %2200 = vmatpush1.bf16.msra.mxu0 %v652
      %2201 = vmatprep.subr.bf16.mxu0 0
      %2202 = vmatpush1.bf16.msra.mxu0 %v651
      %2203 = vmatprep.subr.bf16.mxu0 0
      %2204 = vmatpush2.bf16.msra.mxu0 %v666
      %2205 = vmatprep.subr.bf16.mxu0 0
      %2206 = vmatpush2.bf16.msra.mxu0 %v665
      %2207 = vmatprep.subr.bf16.mxu0 0
      %2208 = vmatpush2.bf16.msra.mxu0 %v664
      %2209 = vmatprep.subr.bf16.mxu0 0
      %2210 = vmatpush2.bf16.msra.mxu0 %v663
      %2211 = vmatprep.subr.bf16.mxu0 0
      %2212 = vmatpush2.bf16.msra.mxu0 %v662
      %2213 = vmatprep.subr.bf16.mxu0 0
      %2214 = vmatpush2.bf16.msra.mxu0 %v661
      %2215 = vmatprep.subr.bf16.mxu0 0
      %2216 = vmatpush2.bf16.msra.mxu0 %v660
      %2217 = vmatprep.subr.bf16.mxu0 0
      %2218 = vmatpush2.bf16.msra.mxu0 %v659
      %2219 = vmatprep.mubr.bf16.mxu0 %v2088
      %2220 = vmatmul.mubr.bf16.gmra.mxu0 %v2087
      %v2221 = vpop.f32.mrf.mxu0
      %v2222 = vadd.f32 %v2181, %v2221
      %v2223 = vpop.f32.mrf.mxu0
      %v2224 = vpop.f32.mrf.mxu0
      %v2225 = vadd.f32 %v2184, %v2224
      %v2226 = vpop.f32.mrf.mxu0
      %2227 = vdwg.mxu0
      %v2228 = vadd.f32 %v2222, %v728
      %v2229 = vadd.f32 %v2225, %v728
      %v2230 = vmax.f32 %v2228, 0.0
      %v2231 = vmax.f32 %v2229, 0.0
      %v2232 = vpack.c.bf16 %v2231, %v2230
      %v2234 = vunpack.c.l.b16 %v2232
      %v2235 = vunpack.c.h.b16 %v2232
      %v2236 = vpack.c.b16 %v2234, %v2234
      %v2237 = vpack.c.b16 %v2235, %v2235
      %2240 = vst [vmem:[%s226 + $0x38] sm:$0xf] %v2236
      %2241 = vst [vmem:[%s226 + $0x3c] sm:$0xf] %v2237
      %s2242 = smul.u32 16, %s16
      %p2243 = scmp.lt.s32.totalorder %s2242, 127
      %s2244 = scalar_select %p2243, %s2242, 127
      %s2245 = smul.addr %s2244, 4
      %s2246 = scalar_lea.vmem %s5, %s2245
      // Predicated region
      $region41: #{task_loss.5} parent=39 // pred_check
        %p2247 = pneg %p144
      $region42: #{task_loss.5} parent=39 // pred_check_branch
        %2249 = sbr.rel (%p2247) target = $region44
      $region43: #{task_loss.5} parent=39 // pred_region
        %s2250 = smul.u32 16, %s16
      $region44: #{task_loss.5} parent=39 // pred_fallthru
        _
    $region40: #{task_loss.5} parent=5 // pred_fallthru
      _
    %p2251 = scmp.le.s32.totalorder 2, %s11
    // Predicated region
    $region45: #{task_loss.5} parent=5 // pred_check
      %p2252 = pneg %p2251
    $region46: #{task_loss.5} parent=5 // pred_check_branch
      %2254 = sbr.rel (%p2252) target = $region48
    $region47: #{task_loss.5} parent=5 // pred_region
      %s2255 = ssub.s32 %s11, 2
      // Predicated region
      $region49: #{task_loss.5} parent=47 // pred_check
        %p2256 = pneg %p150
      $region50: #{task_loss.5} parent=47 // pred_check_branch
        %2258 = sbr.rel (%p2256) target = $region52
      $region51: #{task_loss.5} parent=47 // pred_region
        %s2259 = smul.u32 16, %s17
        %p2260 = scmp.lt.s32.totalorder %s2259, 127
        %s2261 = scalar_select %p2260, %s2259, 127
        %s2262 = smul.addr %s2261, 4
        %s2263 = scalar_lea.vmem %s5, %s2262
      $region52: #{task_loss.5} parent=47 // pred_fallthru
        _
    $region48: #{task_loss.5} parent=5 // pred_fallthru
      _
  $region6: #{task_loss.5} parent=0 // loop_footer
    %s15 = sadd.s32 1, %s11
  $region7: #{task_loss.5} parent=0 // loop_footer_branch
    %10 = sbr.rel target = $region3
  $region8: #{task_loss.5} parent=0 // loop_exit
    _

// kernel: task_loss.6
$region0: #{task_loss.6}
  #allocation0 [shape = 'u32[]', space=smem, size = 0x4, offset = 0x4, fixed_abs, tag = 'smem constant byte address 0x4 - core index']
  #allocation1 [shape = 'u32[144,128]{1,0:T(1,128)}', space=vmem, size = 0x12000, scoped, tag = 'internal scratch']
  %s0 = inlined_call_operand.vmem [shape: bf16[512,256], index: 0, kind: input, shape index: {}]
  %s1 = inlined_call_operand.vmem [shape: bf16[512,128], index: 1, kind: input, shape index: {}]
  %s2 = inlined_call_operand.vmem [shape: f32[1,128], index: 2, kind: input, shape index: {}]
  %s3 = inlined_call_operand.vmem [shape: bf16[256,128], index: 3, kind: output, shape index: {}]
  %s4 = sld [smem:[#allocation0]]
  $region45: #{task_loss.6} parent=0
    _
  %s6 = ssub.s32 1, %s4
  %s7 = scalar_select 0, %s6, %s4
  loop: start=0, step=1, limit=6
  $region2: #{task_loss.6} parent=0 // loop_pre_header
    _
  $region3: #{task_loss.6} parent=0 // loop_header
    %s9 = sphi 0, %s13
    %p10 = scmp.ge.s32.totalorder %s9, 6
    %s19 = sphi 0, %s21
    %s22 = sphi 0, %s19
    %s23 = sphi 0, %s22
    %s39 = sphi 0, %s23
    %s43 = sphi 0, %s43
    %s45 = sphi 0, %s43
    %s46 = sphi 0, %s45
    %s60 = sphi 0, %s46
    %s64 = sphi 0, %s64
    %s66 = sphi 0, %s64
    %s67 = sphi 0, %s66
    %s81 = sphi 0, %s67
    %s87 = sphi 0, %s89
    %s90 = sphi 0, %s87
    %s91 = sphi 0, %s90
    %s107 = sphi 0, %s91
  $region4: #{task_loss.6} parent=0 // loop_header_branch
    %12 = sbr.rel (%p10) target = $region8
  $region5: #{task_loss.6} parent=0 // loop_body
    %s14 = ssub.s32 %s9, 1
    %s15 = ssub.s32 %s9, 2
    %s16 = sadd.s32 %s9, 1
    %s17 = ssub.s32 %s9, %s16
    %p18 = scmp.eq.s32.totalorder %s17, 0
    %s20 = sadd.s32 %s19, 1
    %s21 = scalar_select %p18, %s19, %s20
    %p24 = pneg %p18
    %p25 = scmp.eq.s32.totalorder %s9, 3
    %p26 = por %p24, %p25
    %p27 = scmp.ne.s32.totalorder %s19, %s22
    %p28 = scmp.eq.s32.totalorder %s9, 0
    %p29 = por %p27, %p28
    %p30 = scmp.ne.s32.totalorder %s19, %s22
    %p31 = scmp.eq.s32.totalorder %s14, 3
    %p32 = por %p30, %p31
    %p33 = scmp.ne.s32.totalorder %s22, %s23
    %p34 = scmp.eq.s32.totalorder %s14, 0
    %p35 = por %p33, %p34
    %p36 = scmp.ne.s32.totalorder %s22, %s23
    %p37 = scmp.eq.s32.totalorder %s15, 3
    %p38 = por %p36, %p37
    %p40 = scmp.ne.s32.totalorder %s23, %s39
    %p41 = scmp.eq.s32.totalorder %s15, 0
    %p42 = por %p40, %p41
    %s44 = sadd.s32 %s43, 1
    %p47 = scmp.eq.s32.totalorder %s9, 3
    %p48 = scmp.ne.s32.totalorder %s43, %s45
    %p49 = scmp.eq.s32.totalorder %s9, 0
    %p50 = por %p48, %p49
    %p51 = scmp.ne.s32.totalorder %s43, %s45
    %p52 = scmp.eq.s32.totalorder %s14, 3
    %p53 = por %p51, %p52
    %p54 = scmp.ne.s32.totalorder %s45, %s46
    %p55 = scmp.eq.s32.totalorder %s14, 0
    %p56 = por %p54, %p55
    %p57 = scmp.ne.s32.totalorder %s45, %s46
    %p58 = scmp.eq.s32.totalorder %s15, 3
    %p59 = por %p57, %p58
    %p61 = scmp.ne.s32.totalorder %s46, %s60
    %p62 = scmp.eq.s32.totalorder %s15, 0
    %p63 = por %p61, %p62
    %s65 = sadd.s32 %s64, 1
    %p68 = scmp.eq.s32.totalorder %s9, 3
    %p69 = scmp.ne.s32.totalorder %s64, %s66
    %p70 = scmp.eq.s32.totalorder %s9, 0
    %p71 = por %p69, %p70
    %p72 = scmp.ne.s32.totalorder %s64, %s66
    %p73 = scmp.eq.s32.totalorder %s14, 3
    %p74 = por %p72, %p73
    %p75 = scmp.ne.s32.totalorder %s66, %s67
    %p76 = scmp.eq.s32.totalorder %s14, 0
    %p77 = por %p75, %p76
    %p78 = scmp.ne.s32.totalorder %s66, %s67
    %p79 = scmp.eq.s32.totalorder %s15, 3
    %p80 = por %p78, %p79
    %p82 = scmp.ne.s32.totalorder %s67, %s81
    %p83 = scmp.eq.s32.totalorder %s15, 0
    %p84 = por %p82, %p83
    %s85 = ssub.s32 %s9, %s16
    %p86 = scmp.eq.s32.totalorder %s85, 0
    %s88 = sadd.s32 %s87, 1
    %s89 = scalar_select %p86, %s87, %s88
    %p92 = pneg %p86
    %p93 = scmp.eq.s32.totalorder %s9, 3
    %p94 = por %p92, %p93
    %p95 = scmp.ne.s32.totalorder %s87, %s90
    %p96 = scmp.eq.s32.totalorder %s9, 0
    %p97 = por %p95, %p96
    %p98 = scmp.ne.s32.totalorder %s87, %s90
    %p99 = scmp.eq.s32.totalorder %s14, 3
    %p100 = por %p98, %p99
    %p101 = scmp.ne.s32.totalorder %s90, %s91
    %p102 = scmp.eq.s32.totalorder %s14, 0
    %p103 = por %p101, %p102
    %p104 = scmp.ne.s32.totalorder %s90, %s91
    %p105 = scmp.eq.s32.totalorder %s15, 3
    %p106 = por %p104, %p105
    %p108 = scmp.ne.s32.totalorder %s91, %s107
    %p109 = scmp.eq.s32.totalorder %s15, 0
    %p110 = por %p108, %p109
    %p111 = scmp.le.s32.totalorder 1, %s9
    %p112 = scmp.lt.s32.totalorder %s9, 5
    %p113 = pnand %p111, %p112
    %p114 = pneg %p113
    // Predicated region
    $region9: #{task_loss.6} parent=5 // pred_check
      _
    $region10: #{task_loss.6} parent=5 // pred_check_branch
      %116 = sbr.rel (%p113) target = $region12
    $region11: #{task_loss.6} parent=5 // pred_region
      %s117 = ssub.s32 %s9, 1
      // Predicated region
      $region13: #{task_loss.6} parent=11 // pred_check
        %p118 = pneg %p56
      $region14: #{task_loss.6} parent=11 // pred_check_branch
        %120 = sbr.rel (%p118) target = $region16
      $region15: #{task_loss.6} parent=11 // pred_region
        _
      $region16: #{task_loss.6} parent=11 // pred_fallthru
        _
      // Predicated region
      $region17: #{task_loss.6} parent=11 // pred_check
        %p121 = pneg %p77
      $region18: #{task_loss.6} parent=11 // pred_check_branch
        %123 = sbr.rel (%p121) target = $region20
      $region19: #{task_loss.6} parent=11 // pred_region
        _
      $region20: #{task_loss.6} parent=11 // pred_fallthru
        _
    $region12: #{task_loss.6} parent=5 // pred_fallthru
      _
    %p124 = scmp.lt.s32.totalorder %s9, 4
    // Predicated region
    $region21: #{task_loss.6} parent=5 // pred_check
      %p125 = pneg %p124
    $region22: #{task_loss.6} parent=5 // pred_check_branch
      %127 = sbr.rel (%p125) target = $region24
    $region23: #{task_loss.6} parent=5 // pred_region
      // Predicated region
      $region25: #{task_loss.6} parent=23 // pred_check
        %p128 = pneg %p29
      $region26: #{task_loss.6} parent=23 // pred_check_branch
        %130 = sbr.rel (%p128) target = $region28
      $region27: #{task_loss.6} parent=23 // pred_region
        %s131 = smul.u32 16, %s9
        %p132 = scmp.lt.s32.totalorder %s131, 63
        %s133 = scalar_select %p132, %s131, 63
        %s134 = smul.addr %s133, 2
        %s135 = smul.addr %s134, 4
        %s136 = scalar_lea.vmem %s0, %s135
        %s137 = smul.u32 16, %s9
      $region28: #{task_loss.6} parent=23 // pred_fallthru
        _
    $region24: #{task_loss.6} parent=5 // pred_fallthru
      _
    %p138 = scmp.le.s32.totalorder 1, %s9
    %p139 = scmp.lt.s32.totalorder %s9, 5
    %p140 = pnand %p138, %p139
    %p141 = pneg %p140
    // Predicated region
    $region29: #{task_loss.6} parent=5 // pred_check
      _
    $region30: #{task_loss.6} parent=5 // pred_check_branch
      %143 = sbr.rel (%p140) target = $region32
    $region31: #{task_loss.6} parent=5 // pred_region
      %s144 = ssub.s32 %s9, 1
      %s145 = smul.u32 16, %s14
      %p146 = scmp.lt.s32.totalorder %s145, 63
      %s147 = scalar_select %p146, %s145, 63
      %s148 = smul.addr %s147, 2
      %s149 = smul.addr %s148, 4
      %s150 = scalar_lea.vmem %s0, %s149
      %p151 = pneg %p35
      %p152 = pneg %p32
      %p153 = pneg %p56
      %p154 = pneg %p53
      %p155 = pneg %p77
      %p156 = pneg %p74
      %p157 = pneg %p103
      %p158 = pneg %p100
      %s159 = smul.u32 8, %s14
      %p160 = scmp.lt.s32.totalorder %s159, 31
      %s161 = scalar_select %p160, %s159, 31
      %s162 = smul.addr %s161, 4
      %s163 = scalar_lea.vmem %s3, %s162
      %s164 = smul.u32 16, %s14
      %p165 = scmp.lt.s32.totalorder %s164, 63
      %s166 = scalar_select %p165, %s164, 63
      %s167 = smul.addr %s166, 2
      %s168 = smul.addr %s167, 4
      %s169 = scalar_lea.vmem %s0, %s168
      %s170 = smul.u32 16, %s14
      %s171 = smul.u32 8, %s14
      %p172 = scmp.lt.s32.totalorder %s171, 31
      %s173 = scalar_select %p172, %s171, 31
      %s174 = smul.addr %s173, 4
      %s175 = scalar_lea.vmem %s3, %s174
      %s176 = smul.u32 8, %s14
      %v178 = vld [vmem:[%s1] sm:$0xf]
      %v179 = vld [vmem:[%s1 + $0x4] sm:$0xf]
      %v180 = vld [vmem:[%s1 + $0x8] sm:$0xf]
      %v181 = vld [vmem:[%s1 + $0xc] sm:$0xf]
      %v182 = vld [vmem:[%s1 + $0x10] sm:$0xf]
      %v183 = vld [vmem:[%s1 + $0x14] sm:$0xf]
      %v184 = vld [vmem:[%s1 + $0x18] sm:$0xf]
      %v185 = vld [vmem:[%s1 + $0x1c] sm:$0xf]
      %v186 = vld [vmem:[%s1 + $0x20] sm:$0xf]
      %v187 = vld [vmem:[%s1 + $0x24] sm:$0xf]
      %v188 = vld [vmem:[%s1 + $0x28] sm:$0xf]
      %v189 = vld [vmem:[%s1 + $0x2c] sm:$0xf]
      %v190 = vld [vmem:[%s1 + $0x30] sm:$0xf]
      %v191 = vld [vmem:[%s1 + $0x34] sm:$0xf]
      %v192 = vld [vmem:[%s1 + $0x38] sm:$0xf]
      %v193 = vld [vmem:[%s1 + $0x3c] sm:$0xf]
      %v194 = vld [vmem:[%s1 + $0x40] sm:$0xf]
      %v195 = vld [vmem:[%s1 + $0x44] sm:$0xf]
      %v196 = vld [vmem:[%s1 + $0x48] sm:$0xf]
      %v197 = vld [vmem:[%s1 + $0x4c] sm:$0xf]
      %v198 = vld [vmem:[%s1 + $0x50] sm:$0xf]
      %v199 = vld [vmem:[%s1 + $0x54] sm:$0xf]
      %v200 = vld [vmem:[%s1 + $0x58] sm:$0xf]
      %v201 = vld [vmem:[%s1 + $0x5c] sm:$0xf]
      %v202 = vld [vmem:[%s1 + $0x60] sm:$0xf]
      %v203 = vld [vmem:[%s1 + $0x64] sm:$0xf]
      %v204 = vld [vmem:[%s1 + $0x68] sm:$0xf]
      %v205 = vld [vmem:[%s1 + $0x6c] sm:$0xf]
      %v206 = vld [vmem:[%s1 + $0x70] sm:$0xf]
      %v207 = vld [vmem:[%s1 + $0x74] sm:$0xf]
      %v208 = vld [vmem:[%s1 + $0x78] sm:$0xf]
      %v209 = vld [vmem:[%s1 + $0x7c] sm:$0xf]
      %v210 = vld [vmem:[%s1 + $0x80] sm:$0xf]
      %v211 = vld [vmem:[%s1 + $0x84] sm:$0xf]
      %v212 = vld [vmem:[%s1 + $0x88] sm:$0xf]
      %v213 = vld [vmem:[%s1 + $0x8c] sm:$0xf]
      %v214 = vld [vmem:[%s1 + $0x90] sm:$0xf]
      %v215 = vld [vmem:[%s1 + $0x94] sm:$0xf]
      %v216 = vld [vmem:[%s1 + $0x98] sm:$0xf]
      %v217 = vld [vmem:[%s1 + $0x9c] sm:$0xf]
      %v218 = vld [vmem:[%s1 + $0xa0] sm:$0xf]
      %v219 = vld [vmem:[%s1 + $0xa4] sm:$0xf]
      %v220 = vld [vmem:[%s1 + $0xa8] sm:$0xf]
      %v221 = vld [vmem:[%s1 + $0xac] sm:$0xf]
      %v222 = vld [vmem:[%s1 + $0xb0] sm:$0xf]
      %v223 = vld [vmem:[%s1 + $0xb4] sm:$0xf]
      %v224 = vld [vmem:[%s1 + $0xb8] sm:$0xf]
      %v225 = vld [vmem:[%s1 + $0xbc] sm:$0xf]
      %v226 = vld [vmem:[%s1 + $0xc0] sm:$0xf]
      %v227 = vld [vmem:[%s1 + $0xc4] sm:$0xf]
      %v228 = vld [vmem:[%s1 + $0xc8] sm:$0xf]
      %v229 = vld [vmem:[%s1 + $0xcc] sm:$0xf]
      %v230 = vld [vmem:[%s1 + $0xd0] sm:$0xf]
      %v231 = vld [vmem:[%s1 + $0xd4] sm:$0xf]
      %v232 = vld [vmem:[%s1 + $0xd8] sm:$0xf]
      %v233 = vld [vmem:[%s1 + $0xdc] sm:$0xf]
      %v234 = vld [vmem:[%s1 + $0xe0] sm:$0xf]
      %v235 = vld [vmem:[%s1 + $0xe4] sm:$0xf]
      %v236 = vld [vmem:[%s1 + $0xe8] sm:$0xf]
      %v237 = vld [vmem:[%s1 + $0xec] sm:$0xf]
      %v238 = vld [vmem:[%s1 + $0xf0] sm:$0xf]
      %v239 = vld [vmem:[%s1 + $0xf4] sm:$0xf]
      %v240 = vld [vmem:[%s1 + $0xf8] sm:$0xf]
      %v241 = vld [vmem:[%s1 + $0xfc] sm:$0xf]
      %v242 = vld [vmem:[%s2] sm:$0x1]
      %v243 = vld [vmem:[%s169] sm:$0xff]
      %v244 = vld [vmem:[%s169 + $0x8] sm:$0xff]
      %v246 = vunpack.c.l.b16 %v244
      %v247 = vunpack.c.h.b16 %v244
      %v248 = vpack.c.b16 %v246, %v246
      %v249 = vpack.c.b16 %v247, %v247
      %v284 = vunpack.c.l.b16 %v210
      %v285 = vunpack.c.l.b16 %v211
      %v286 = vunpack.c.l.b16 %v212
      %v287 = vunpack.c.l.b16 %v213
      %v288 = vunpack.c.l.b16 %v214
      %v289 = vunpack.c.l.b16 %v215
      %v290 = vunpack.c.l.b16 %v216
      %v291 = vunpack.c.l.b16 %v217
      %v292 = vunpack.c.l.b16 %v218
      %v293 = vunpack.c.l.b16 %v219
      %v294 = vunpack.c.l.b16 %v220
      %v295 = vunpack.c.l.b16 %v221
      %v296 = vunpack.c.l.b16 %v222
      %v297 = vunpack.c.l.b16 %v223
      %v298 = vunpack.c.l.b16 %v224
      %v299 = vunpack.c.l.b16 %v225
      %v300 = vunpack.c.l.b16 %v226
      %v301 = vunpack.c.l.b16 %v227
      %v302 = vunpack.c.l.b16 %v228
      %v303 = vunpack.c.l.b16 %v229
      %v304 = vunpack.c.l.b16 %v230
      %v305 = vunpack.c.l.b16 %v231
      %v306 = vunpack.c.l.b16 %v232
      %v307 = vunpack.c.l.b16 %v233
      %v308 = vunpack.c.l.b16 %v234
      %v309 = vunpack.c.l.b16 %v235
      %v310 = vunpack.c.l.b16 %v236
      %v311 = vunpack.c.l.b16 %v237
      %v312 = vunpack.c.l.b16 %v238
      %v313 = vunpack.c.l.b16 %v239
      %v314 = vunpack.c.l.b16 %v240
      %v315 = vunpack.c.l.b16 %v241
      %v316 = vpack.c.b16 %v285, %v284
      %v317 = vpack.c.b16 %v287, %v286
      %v318 = vpack.c.b16 %v289, %v288
      %v319 = vpack.c.b16 %v291, %v290
      %v320 = vpack.c.b16 %v293, %v292
      %v321 = vpack.c.b16 %v295, %v294
      %v322 = vpack.c.b16 %v297, %v296
      %v323 = vpack.c.b16 %v299, %v298
      %v324 = vpack.c.b16 %v301, %v300
      %v325 = vpack.c.b16 %v303, %v302
      %v326 = vpack.c.b16 %v305, %v304
      %v327 = vpack.c.b16 %v307, %v306
      %v328 = vpack.c.b16 %v309, %v308
      %v329 = vpack.c.b16 %v311, %v310
      %v330 = vpack.c.b16 %v313, %v312
      %v331 = vpack.c.b16 %v315, %v314
      %348 = vmatprep.subr.bf16.mxu0 0
      %349 = vmatpush1.bf16.msra.mxu0 %v323
      %350 = vmatprep.subr.bf16.mxu0 0
      %351 = vmatpush1.bf16.msra.mxu0 %v322
      %352 = vmatprep.subr.bf16.mxu0 0
      %353 = vmatpush1.bf16.msra.mxu0 %v321
      %354 = vmatprep.subr.bf16.mxu0 0
      %355 = vmatpush1.bf16.msra.mxu0 %v320
      %356 = vmatprep.subr.bf16.mxu0 0
      %357 = vmatpush1.bf16.msra.mxu0 %v319
      %358 = vmatprep.subr.bf16.mxu0 0
      %359 = vmatpush1.bf16.msra.mxu0 %v318
      %360 = vmatprep.subr.bf16.mxu0 0
      %361 = vmatpush1.bf16.msra.mxu0 %v317
      %362 = vmatprep.subr.bf16.mxu0 0
      %363 = vmatpush1.bf16.msra.mxu0 %v316
      %364 = vmatprep.subr.bf16.mxu0 0
      %365 = vmatpush2.bf16.msra.mxu0 %v331
      %366 = vmatprep.subr.bf16.mxu0 0
      %367 = vmatpush2.bf16.msra.mxu0 %v330
      %368 = vmatprep.subr.bf16.mxu0 0
      %369 = vmatpush2.bf16.msra.mxu0 %v329
      %370 = vmatprep.subr.bf16.mxu0 0
      %371 = vmatpush2.bf16.msra.mxu0 %v328
      %372 = vmatprep.subr.bf16.mxu0 0
      %373 = vmatpush2.bf16.msra.mxu0 %v327
      %374 = vmatprep.subr.bf16.mxu0 0
      %375 = vmatpush2.bf16.msra.mxu0 %v326
      %376 = vmatprep.subr.bf16.mxu0 0
      %377 = vmatpush2.bf16.msra.mxu0 %v325
      %378 = vmatprep.subr.bf16.mxu0 0
      %379 = vmatpush2.bf16.msra.mxu0 %v324
      %380 = vmatprep.mubr.bf16.mxu0 %v249
      %381 = vmatmul.mubr.bf16.gmra.mxu0 %v248
      %v382 = vpop.f32.mrf.mxu0
      %v383 = vadd.f32 0.0, %v382
      %v384 = vpop.f32.mrf.mxu0
      %v385 = vpop.f32.mrf.mxu0
      %v386 = vpop.f32.mrf.mxu0
      %387 = vdwg.mxu0
      %v389 = vunpack.c.l.b16 %v243
      %v390 = vunpack.c.h.b16 %v243
      %v391 = vpack.c.b16 %v389, %v389
      %v392 = vpack.c.b16 %v390, %v390
      %v427 = vunpack.c.l.b16 %v178
      %v428 = vunpack.c.l.b16 %v179
      %v429 = vunpack.c.l.b16 %v180
      %v430 = vunpack.c.l.b16 %v181
      %v431 = vunpack.c.l.b16 %v182
      %v432 = vunpack.c.l.b16 %v183
      %v433 = vunpack.c.l.b16 %v184
      %v434 = vunpack.c.l.b16 %v185
      %v435 = vunpack.c.l.b16 %v186
      %v436 = vunpack.c.l.b16 %v187
      %v437 = vunpack.c.l.b16 %v188
      %v438 = vunpack.c.l.b16 %v189
      %v439 = vunpack.c.l.b16 %v190
      %v440 = vunpack.c.l.b16 %v191
      %v441 = vunpack.c.l.b16 %v192
      %v442 = vunpack.c.l.b16 %v193
      %v443 = vunpack.c.l.b16 %v194
      %v444 = vunpack.c.l.b16 %v195
      %v445 = vunpack.c.l.b16 %v196
      %v446 = vunpack.c.l.b16 %v197
      %v447 = vunpack.c.l.b16 %v198
      %v448 = vunpack.c.l.b16 %v199
      %v449 = vunpack.c.l.b16 %v200
      %v450 = vunpack.c.l.b16 %v201
      %v451 = vunpack.c.l.b16 %v202
      %v452 = vunpack.c.l.b16 %v203
      %v453 = vunpack.c.l.b16 %v204
      %v454 = vunpack.c.l.b16 %v205
      %v455 = vunpack.c.l.b16 %v206
      %v456 = vunpack.c.l.b16 %v207
      %v457 = vunpack.c.l.b16 %v208
      %v458 = vunpack.c.l.b16 %v209
      %v459 = vpack.c.b16 %v428, %v427
      %v460 = vpack.c.b16 %v430, %v429
      %v461 = vpack.c.b16 %v432, %v431
      %v462 = vpack.c.b16 %v434, %v433
      %v463 = vpack.c.b16 %v436, %v435
      %v464 = vpack.c.b16 %v438, %v437
      %v465 = vpack.c.b16 %v440, %v439
      %v466 = vpack.c.b16 %v442, %v441
      %v467 = vpack.c.b16 %v444, %v443
      %v468 = vpack.c.b16 %v446, %v445
      %v469 = vpack.c.b16 %v448, %v447
      %v470 = vpack.c.b16 %v450, %v449
      %v471 = vpack.c.b16 %v452, %v451
      %v472 = vpack.c.b16 %v454, %v453
      %v473 = vpack.c.b16 %v456, %v455
      %v474 = vpack.c.b16 %v458, %v457
      %491 = vmatprep.subr.bf16.mxu0 0
      %492 = vmatpush1.bf16.msra.mxu0 %v466
      %493 = vmatprep.subr.bf16.mxu0 0
      %494 = vmatpush1.bf16.msra.mxu0 %v465
      %495 = vmatprep.subr.bf16.mxu0 0
      %496 = vmatpush1.bf16.msra.mxu0 %v464
      %497 = vmatprep.subr.bf16.mxu0 0
      %498 = vmatpush1.bf16.msra.mxu0 %v463
      %499 = vmatprep.subr.bf16.mxu0 0
      %500 = vmatpush1.bf16.msra.mxu0 %v462
      %501 = vmatprep.subr.bf16.mxu0 0
      %502 = vmatpush1.bf16.msra.mxu0 %v461
      %503 = vmatprep.subr.bf16.mxu0 0
      %504 = vmatpush1.bf16.msra.mxu0 %v460
      %505 = vmatprep.subr.bf16.mxu0 0
      %506 = vmatpush1.bf16.msra.mxu0 %v459
      %507 = vmatprep.subr.bf16.mxu0 0
      %508 = vmatpush2.bf16.msra.mxu0 %v474
      %509 = vmatprep.subr.bf16.mxu0 0
      %510 = vmatpush2.bf16.msra.mxu0 %v473
      %511 = vmatprep.subr.bf16.mxu0 0
      %512 = vmatpush2.bf16.msra.mxu0 %v472
      %513 = vmatprep.subr.bf16.mxu0 0
      %514 = vmatpush2.bf16.msra.mxu0 %v471
      %515 = vmatprep.subr.bf16.mxu0 0
      %516 = vmatpush2.bf16.msra.mxu0 %v470
      %517 = vmatprep.subr.bf16.mxu0 0
      %518 = vmatpush2.bf16.msra.mxu0 %v469
      %519 = vmatprep.subr.bf16.mxu0 0
      %520 = vmatpush2.bf16.msra.mxu0 %v468
      %521 = vmatprep.subr.bf16.mxu0 0
      %522 = vmatpush2.bf16.msra.mxu0 %v467
      %523 = vmatprep.mubr.bf16.mxu0 %v392
      %524 = vmatmul.mubr.bf16.gmra.mxu0 %v391
      %v525 = vpop.f32.mrf.mxu0
      %v526 = vadd.f32 %v383, %v525
      %v527 = vpop.f32.mrf.mxu0
      %v528 = vpop.f32.mrf.mxu0
      %v529 = vpop.f32.mrf.mxu0
      %530 = vdwg.mxu0
      %v532 = vlaneseq
      %v533 = vshrl.u32 %v532, 7
      %v534 = vsub.s32 0, %v533
      %v535 = vrot.slane %v242, %v534
      %v537 = vadd.f32 %v526, %v535
      %v538 = vmax.f32 %v537, 0.0
      %v539 = vpack.c.bf16 %v538, %v538
      %540 = vst [vmem:[%s175] sm:$0xf] %v539
      %v541 = vld [vmem:[%s169 + $0x10] sm:$0xff]
      %v542 = vld [vmem:[%s169 + $0x18] sm:$0xff]
      %v544 = vunpack.c.l.b16 %v542
      %v545 = vunpack.c.h.b16 %v542
      %v546 = vpack.c.b16 %v544, %v544
      %v547 = vpack.c.b16 %v545, %v545
      %550 = vmatprep.subr.bf16.mxu0 0
      %551 = vmatpush1.bf16.msra.mxu0 %v323
      %552 = vmatprep.subr.bf16.mxu0 0
      %553 = vmatpush1.bf16.msra.mxu0 %v322
      %554 = vmatprep.subr.bf16.mxu0 0
      %555 = vmatpush1.bf16.msra.mxu0 %v321
      %556 = vmatprep.subr.bf16.mxu0 0
      %557 = vmatpush1.bf16.msra.mxu0 %v320
      %558 = vmatprep.subr.bf16.mxu0 0
      %559 = vmatpush1.bf16.msra.mxu0 %v319
      %560 = vmatprep.subr.bf16.mxu0 0
      %561 = vmatpush1.bf16.msra.mxu0 %v318
      %562 = vmatprep.subr.bf16.mxu0 0
      %563 = vmatpush1.bf16.msra.mxu0 %v317
      %564 = vmatprep.subr.bf16.mxu0 0
      %565 = vmatpush1.bf16.msra.mxu0 %v316
      %566 = vmatprep.subr.bf16.mxu0 0
      %567 = vmatpush2.bf16.msra.mxu0 %v331
      %568 = vmatprep.subr.bf16.mxu0 0
      %569 = vmatpush2.bf16.msra.mxu0 %v330
      %570 = vmatprep.subr.bf16.mxu0 0
      %571 = vmatpush2.bf16.msra.mxu0 %v329
      %572 = vmatprep.subr.bf16.mxu0 0
      %573 = vmatpush2.bf16.msra.mxu0 %v328
      %574 = vmatprep.subr.bf16.mxu0 0
      %575 = vmatpush2.bf16.msra.mxu0 %v327
      %576 = vmatprep.subr.bf16.mxu0 0
      %577 = vmatpush2.bf16.msra.mxu0 %v326
      %578 = vmatprep.subr.bf16.mxu0 0
      %579 = vmatpush2.bf16.msra.mxu0 %v325
      %580 = vmatprep.subr.bf16.mxu0 0
      %581 = vmatpush2.bf16.msra.mxu0 %v324
      %582 = vmatprep.mubr.bf16.mxu0 %v547
      %583 = vmatmul.mubr.bf16.gmra.mxu0 %v546
      %v584 = vpop.f32.mrf.mxu0
      %v585 = vadd.f32 0.0, %v584
      %v586 = vpop.f32.mrf.mxu0
      %v587 = vpop.f32.mrf.mxu0
      %v588 = vpop.f32.mrf.mxu0
      %589 = vdwg.mxu0
      %v591 = vunpack.c.l.b16 %v541
      %v592 = vunpack.c.h.b16 %v541
      %v593 = vpack.c.b16 %v591, %v591
      %v594 = vpack.c.b16 %v592, %v592
      %597 = vmatprep.subr.bf16.mxu0 0
      %598 = vmatpush1.bf16.msra.mxu0 %v466
      %599 = vmatprep.subr.bf16.mxu0 0
      %600 = vmatpush1.bf16.msra.mxu0 %v465
      %601 = vmatprep.subr.bf16.mxu0 0
      %602 = vmatpush1.bf16.msra.mxu0 %v464
      %603 = vmatprep.subr.bf16.mxu0 0
      %604 = vmatpush1.bf16.msra.mxu0 %v463
      %605 = vmatprep.subr.bf16.mxu0 0
      %606 = vmatpush1.bf16.msra.mxu0 %v462
      %607 = vmatprep.subr.bf16.mxu0 0
      %608 = vmatpush1.bf16.msra.mxu0 %v461
      %609 = vmatprep.subr.bf16.mxu0 0
      %610 = vmatpush1.bf16.msra.mxu0 %v460
      %611 = vmatprep.subr.bf16.mxu0 0
      %612 = vmatpush1.bf16.msra.mxu0 %v459
      %613 = vmatprep.subr.bf16.mxu0 0
      %614 = vmatpush2.bf16.msra.mxu0 %v474
      %615 = vmatprep.subr.bf16.mxu0 0
      %616 = vmatpush2.bf16.msra.mxu0 %v473
      %617 = vmatprep.subr.bf16.mxu0 0
      %618 = vmatpush2.bf16.msra.mxu0 %v472
      %619 = vmatprep.subr.bf16.mxu0 0
      %620 = vmatpush2.bf16.msra.mxu0 %v471
      %621 = vmatprep.subr.bf16.mxu0 0
      %622 = vmatpush2.bf16.msra.mxu0 %v470
      %623 = vmatprep.subr.bf16.mxu0 0
      %624 = vmatpush2.bf16.msra.mxu0 %v469
      %625 = vmatprep.subr.bf16.mxu0 0
      %626 = vmatpush2.bf16.msra.mxu0 %v468
      %627 = vmatprep.subr.bf16.mxu0 0
      %628 = vmatpush2.bf16.msra.mxu0 %v467
      %629 = vmatprep.mubr.bf16.mxu0 %v594
      %630 = vmatmul.mubr.bf16.gmra.mxu0 %v593
      %v631 = vpop.f32.mrf.mxu0
      %v632 = vadd.f32 %v585, %v631
      %v633 = vpop.f32.mrf.mxu0
      %v634 = vpop.f32.mrf.mxu0
      %v635 = vpop.f32.mrf.mxu0
      %636 = vdwg.mxu0
      %v637 = vadd.f32 %v632, %v535
      %v638 = vmax.f32 %v637, 0.0
      %v639 = vpack.c.bf16 %v638, %v638
      %640 = vst [vmem:[%s175 + $0x4] sm:$0xf] %v639
      %v641 = vld [vmem:[%s169 + $0x20] sm:$0xff]
      %v642 = vld [vmem:[%s169 + $0x28] sm:$0xff]
      %v644 = vunpack.c.l.b16 %v642
      %v645 = vunpack.c.h.b16 %v642
      %v646 = vpack.c.b16 %v644, %v644
      %v647 = vpack.c.b16 %v645, %v645
      %650 = vmatprep.subr.bf16.mxu0 0
      %651 = vmatpush1.bf16.msra.mxu0 %v323
      %652 = vmatprep.subr.bf16.mxu0 0
      %653 = vmatpush1.bf16.msra.mxu0 %v322
      %654 = vmatprep.subr.bf16.mxu0 0
      %655 = vmatpush1.bf16.msra.mxu0 %v321
      %656 = vmatprep.subr.bf16.mxu0 0
      %657 = vmatpush1.bf16.msra.mxu0 %v320
      %658 = vmatprep.subr.bf16.mxu0 0
      %659 = vmatpush1.bf16.msra.mxu0 %v319
      %660 = vmatprep.subr.bf16.mxu0 0
      %661 = vmatpush1.bf16.msra.mxu0 %v318
      %662 = vmatprep.subr.bf16.mxu0 0
      %663 = vmatpush1.bf16.msra.mxu0 %v317
      %664 = vmatprep.subr.bf16.mxu0 0
      %665 = vmatpush1.bf16.msra.mxu0 %v316
      %666 = vmatprep.subr.bf16.mxu0 0
      %667 = vmatpush2.bf16.msra.mxu0 %v331
      %668 = vmatprep.subr.bf16.mxu0 0
      %669 = vmatpush2.bf16.msra.mxu0 %v330
      %670 = vmatprep.subr.bf16.mxu0 0
      %671 = vmatpush2.bf16.msra.mxu0 %v329
      %672 = vmatprep.subr.bf16.mxu0 0
      %673 = vmatpush2.bf16.msra.mxu0 %v328
      %674 = vmatprep.subr.bf16.mxu0 0
      %675 = vmatpush2.bf16.msra.mxu0 %v327
      %676 = vmatprep.subr.bf16.mxu0 0
      %677 = vmatpush2.bf16.msra.mxu0 %v326
      %678 = vmatprep.subr.bf16.mxu0 0
      %679 = vmatpush2.bf16.msra.mxu0 %v325
      %680 = vmatprep.subr.bf16.mxu0 0
      %681 = vmatpush2.bf16.msra.mxu0 %v324
      %682 = vmatprep.mubr.bf16.mxu0 %v647
      %683 = vmatmul.mubr.bf16.gmra.mxu0 %v646
      %v684 = vpop.f32.mrf.mxu0
      %v685 = vadd.f32 0.0, %v684
      %v686 = vpop.f32.mrf.mxu0
      %v687 = vpop.f32.mrf.mxu0
      %v688 = vpop.f32.mrf.mxu0
      %689 = vdwg.mxu0
      %v691 = vunpack.c.l.b16 %v641
      %v692 = vunpack.c.h.b16 %v641
      %v693 = vpack.c.b16 %v691, %v691
      %v694 = vpack.c.b16 %v692, %v692
      %697 = vmatprep.subr.bf16.mxu0 0
      %698 = vmatpush1.bf16.msra.mxu0 %v466
      %699 = vmatprep.subr.bf16.mxu0 0
      %700 = vmatpush1.bf16.msra.mxu0 %v465
      %701 = vmatprep.subr.bf16.mxu0 0
      %702 = vmatpush1.bf16.msra.mxu0 %v464
      %703 = vmatprep.subr.bf16.mxu0 0
      %704 = vmatpush1.bf16.msra.mxu0 %v463
      %705 = vmatprep.subr.bf16.mxu0 0
      %706 = vmatpush1.bf16.msra.mxu0 %v462
      %707 = vmatprep.subr.bf16.mxu0 0
      %708 = vmatpush1.bf16.msra.mxu0 %v461
      %709 = vmatprep.subr.bf16.mxu0 0
      %710 = vmatpush1.bf16.msra.mxu0 %v460
      %711 = vmatprep.subr.bf16.mxu0 0
      %712 = vmatpush1.bf16.msra.mxu0 %v459
      %713 = vmatprep.subr.bf16.mxu0 0
      %714 = vmatpush2.bf16.msra.mxu0 %v474
      %715 = vmatprep.subr.bf16.mxu0 0
      %716 = vmatpush2.bf16.msra.mxu0 %v473
      %717 = vmatprep.subr.bf16.mxu0 0
      %718 = vmatpush2.bf16.msra.mxu0 %v472
      %719 = vmatprep.subr.bf16.mxu0 0
      %720 = vmatpush2.bf16.msra.mxu0 %v471
      %721 = vmatprep.subr.bf16.mxu0 0
      %722 = vmatpush2.bf16.msra.mxu0 %v470
      %723 = vmatprep.subr.bf16.mxu0 0
      %724 = vmatpush2.bf16.msra.mxu0 %v469
      %725 = vmatprep.subr.bf16.mxu0 0
      %726 = vmatpush2.bf16.msra.mxu0 %v468
      %727 = vmatprep.subr.bf16.mxu0 0
      %728 = vmatpush2.bf16.msra.mxu0 %v467
      %729 = vmatprep.mubr.bf16.mxu0 %v694
      %730 = vmatmul.mubr.bf16.gmra.mxu0 %v693
      %v731 = vpop.f32.mrf.mxu0
      %v732 = vadd.f32 %v685, %v731
      %v733 = vpop.f32.mrf.mxu0
      %v734 = vpop.f32.mrf.mxu0
      %v735 = vpop.f32.mrf.mxu0
      %736 = vdwg.mxu0
      %v737 = vadd.f32 %v732, %v535
      %v738 = vmax.f32 %v737, 0.0
      %v739 = vpack.c.bf16 %v738, %v738
      %740 = vst [vmem:[%s175 + $0x8] sm:$0xf] %v739
      %v741 = vld [vmem:[%s169 + $0x30] sm:$0xff]
      %v742 = vld [vmem:[%s169 + $0x38] sm:$0xff]
      %v744 = vunpack.c.l.b16 %v742
      %v745 = vunpack.c.h.b16 %v742
      %v746 = vpack.c.b16 %v744, %v744
      %v747 = vpack.c.b16 %v745, %v745
      %750 = vmatprep.subr.bf16.mxu0 0
      %751 = vmatpush1.bf16.msra.mxu0 %v323
      %752 = vmatprep.subr.bf16.mxu0 0
      %753 = vmatpush1.bf16.msra.mxu0 %v322
      %754 = vmatprep.subr.bf16.mxu0 0
      %755 = vmatpush1.bf16.msra.mxu0 %v321
      %756 = vmatprep.subr.bf16.mxu0 0
      %757 = vmatpush1.bf16.msra.mxu0 %v320
      %758 = vmatprep.subr.bf16.mxu0 0
      %759 = vmatpush1.bf16.msra.mxu0 %v319
      %760 = vmatprep.subr.bf16.mxu0 0
      %761 = vmatpush1.bf16.msra.mxu0 %v318
      %762 = vmatprep.subr.bf16.mxu0 0
      %763 = vmatpush1.bf16.msra.mxu0 %v317
      %764 = vmatprep.subr.bf16.mxu0 0
      %765 = vmatpush1.bf16.msra.mxu0 %v316
      %766 = vmatprep.subr.bf16.mxu0 0
      %767 = vmatpush2.bf16.msra.mxu0 %v331
      %768 = vmatprep.subr.bf16.mxu0 0
      %769 = vmatpush2.bf16.msra.mxu0 %v330
      %770 = vmatprep.subr.bf16.mxu0 0
      %771 = vmatpush2.bf16.msra.mxu0 %v329
      %772 = vmatprep.subr.bf16.mxu0 0
      %773 = vmatpush2.bf16.msra.mxu0 %v328
      %774 = vmatprep.subr.bf16.mxu0 0
      %775 = vmatpush2.bf16.msra.mxu0 %v327
      %776 = vmatprep.subr.bf16.mxu0 0
      %777 = vmatpush2.bf16.msra.mxu0 %v326
      %778 = vmatprep.subr.bf16.mxu0 0
      %779 = vmatpush2.bf16.msra.mxu0 %v325
      %780 = vmatprep.subr.bf16.mxu0 0
      %781 = vmatpush2.bf16.msra.mxu0 %v324
      %782 = vmatprep.mubr.bf16.mxu0 %v747
      %783 = vmatmul.mubr.bf16.gmra.mxu0 %v746
      %v784 = vpop.f32.mrf.mxu0
      %v785 = vadd.f32 0.0, %v784
      %v786 = vpop.f32.mrf.mxu0
      %v787 = vpop.f32.mrf.mxu0
      %v788 = vpop.f32.mrf.mxu0
      %789 = vdwg.mxu0
      %v791 = vunpack.c.l.b16 %v741
      %v792 = vunpack.c.h.b16 %v741
      %v793 = vpack.c.b16 %v791, %v791
      %v794 = vpack.c.b16 %v792, %v792
      %797 = vmatprep.subr.bf16.mxu0 0
      %798 = vmatpush1.bf16.msra.mxu0 %v466
      %799 = vmatprep.subr.bf16.mxu0 0
      %800 = vmatpush1.bf16.msra.mxu0 %v465
      %801 = vmatprep.subr.bf16.mxu0 0
      %802 = vmatpush1.bf16.msra.mxu0 %v464
      %803 = vmatprep.subr.bf16.mxu0 0
      %804 = vmatpush1.bf16.msra.mxu0 %v463
      %805 = vmatprep.subr.bf16.mxu0 0
      %806 = vmatpush1.bf16.msra.mxu0 %v462
      %807 = vmatprep.subr.bf16.mxu0 0
      %808 = vmatpush1.bf16.msra.mxu0 %v461
      %809 = vmatprep.subr.bf16.mxu0 0
      %810 = vmatpush1.bf16.msra.mxu0 %v460
      %811 = vmatprep.subr.bf16.mxu0 0
      %812 = vmatpush1.bf16.msra.mxu0 %v459
      %813 = vmatprep.subr.bf16.mxu0 0
      %814 = vmatpush2.bf16.msra.mxu0 %v474
      %815 = vmatprep.subr.bf16.mxu0 0
      %816 = vmatpush2.bf16.msra.mxu0 %v473
      %817 = vmatprep.subr.bf16.mxu0 0
      %818 = vmatpush2.bf16.msra.mxu0 %v472
      %819 = vmatprep.subr.bf16.mxu0 0
      %820 = vmatpush2.bf16.msra.mxu0 %v471
      %821 = vmatprep.subr.bf16.mxu0 0
      %822 = vmatpush2.bf16.msra.mxu0 %v470
      %823 = vmatprep.subr.bf16.mxu0 0
      %824 = vmatpush2.bf16.msra.mxu0 %v469
      %825 = vmatprep.subr.bf16.mxu0 0
      %826 = vmatpush2.bf16.msra.mxu0 %v468
      %827 = vmatprep.subr.bf16.mxu0 0
      %828 = vmatpush2.bf16.msra.mxu0 %v467
      %829 = vmatprep.mubr.bf16.mxu0 %v794
      %830 = vmatmul.mubr.bf16.gmra.mxu0 %v793
      %v831 = vpop.f32.mrf.mxu0
      %v832 = vadd.f32 %v785, %v831
      %v833 = vpop.f32.mrf.mxu0
      %v834 = vpop.f32.mrf.mxu0
      %v835 = vpop.f32.mrf.mxu0
      %836 = vdwg.mxu0
      %v837 = vadd.f32 %v832, %v535
      %v838 = vmax.f32 %v837, 0.0
      %v839 = vpack.c.bf16 %v838, %v838
      %840 = vst [vmem:[%s175 + $0xc] sm:$0xf] %v839
      %v841 = vld [vmem:[%s169 + $0x40] sm:$0xff]
      %v842 = vld [vmem:[%s169 + $0x48] sm:$0xff]
      %v844 = vunpack.c.l.b16 %v842
      %v845 = vunpack.c.h.b16 %v842
      %v846 = vpack.c.b16 %v844, %v844
      %v847 = vpack.c.b16 %v845, %v845
      %850 = vmatprep.subr.bf16.mxu0 0
      %851 = vmatpush1.bf16.msra.mxu0 %v323
      %852 = vmatprep.subr.bf16.mxu0 0
      %853 = vmatpush1.bf16.msra.mxu0 %v322
      %854 = vmatprep.subr.bf16.mxu0 0
      %855 = vmatpush1.bf16.msra.mxu0 %v321
      %856 = vmatprep.subr.bf16.mxu0 0
      %857 = vmatpush1.bf16.msra.mxu0 %v320
      %858 = vmatprep.subr.bf16.mxu0 0
      %859 = vmatpush1.bf16.msra.mxu0 %v319
      %860 = vmatprep.subr.bf16.mxu0 0
      %861 = vmatpush1.bf16.msra.mxu0 %v318
      %862 = vmatprep.subr.bf16.mxu0 0
      %863 = vmatpush1.bf16.msra.mxu0 %v317
      %864 = vmatprep.subr.bf16.mxu0 0
      %865 = vmatpush1.bf16.msra.mxu0 %v316
      %866 = vmatprep.subr.bf16.mxu0 0
      %867 = vmatpush2.bf16.msra.mxu0 %v331
      %868 = vmatprep.subr.bf16.mxu0 0
      %869 = vmatpush2.bf16.msra.mxu0 %v330
      %870 = vmatprep.subr.bf16.mxu0 0
      %871 = vmatpush2.bf16.msra.mxu0 %v329
      %872 = vmatprep.subr.bf16.mxu0 0
      %873 = vmatpush2.bf16.msra.mxu0 %v328
      %874 = vmatprep.subr.bf16.mxu0 0
      %875 = vmatpush2.bf16.msra.mxu0 %v327
      %876 = vmatprep.subr.bf16.mxu0 0
      %877 = vmatpush2.bf16.msra.mxu0 %v326
      %878 = vmatprep.subr.bf16.mxu0 0
      %879 = vmatpush2.bf16.msra.mxu0 %v325
      %880 = vmatprep.subr.bf16.mxu0 0
      %881 = vmatpush2.bf16.msra.mxu0 %v324
      %882 = vmatprep.mubr.bf16.mxu0 %v847
      %883 = vmatmul.mubr.bf16.gmra.mxu0 %v846
      %v884 = vpop.f32.mrf.mxu0
      %v885 = vadd.f32 0.0, %v884
      %v886 = vpop.f32.mrf.mxu0
      %v887 = vpop.f32.mrf.mxu0
      %v888 = vpop.f32.mrf.mxu0
      %889 = vdwg.mxu0
      %v891 = vunpack.c.l.b16 %v841
      %v892 = vunpack.c.h.b16 %v841
      %v893 = vpack.c.b16 %v891, %v891
      %v894 = vpack.c.b16 %v892, %v892
      %897 = vmatprep.subr.bf16.mxu0 0
      %898 = vmatpush1.bf16.msra.mxu0 %v466
      %899 = vmatprep.subr.bf16.mxu0 0
      %900 = vmatpush1.bf16.msra.mxu0 %v465
      %901 = vmatprep.subr.bf16.mxu0 0
      %902 = vmatpush1.bf16.msra.mxu0 %v464
      %903 = vmatprep.subr.bf16.mxu0 0
      %904 = vmatpush1.bf16.msra.mxu0 %v463
      %905 = vmatprep.subr.bf16.mxu0 0
      %906 = vmatpush1.bf16.msra.mxu0 %v462
      %907 = vmatprep.subr.bf16.mxu0 0
      %908 = vmatpush1.bf16.msra.mxu0 %v461
      %909 = vmatprep.subr.bf16.mxu0 0
      %910 = vmatpush1.bf16.msra.mxu0 %v460
      %911 = vmatprep.subr.bf16.mxu0 0
      %912 = vmatpush1.bf16.msra.mxu0 %v459
      %913 = vmatprep.subr.bf16.mxu0 0
      %914 = vmatpush2.bf16.msra.mxu0 %v474
      %915 = vmatprep.subr.bf16.mxu0 0
      %916 = vmatpush2.bf16.msra.mxu0 %v473
      %917 = vmatprep.subr.bf16.mxu0 0
      %918 = vmatpush2.bf16.msra.mxu0 %v472
      %919 = vmatprep.subr.bf16.mxu0 0
      %920 = vmatpush2.bf16.msra.mxu0 %v471
      %921 = vmatprep.subr.bf16.mxu0 0
      %922 = vmatpush2.bf16.msra.mxu0 %v470
      %923 = vmatprep.subr.bf16.mxu0 0
      %924 = vmatpush2.bf16.msra.mxu0 %v469
      %925 = vmatprep.subr.bf16.mxu0 0
      %926 = vmatpush2.bf16.msra.mxu0 %v468
      %927 = vmatprep.subr.bf16.mxu0 0
      %928 = vmatpush2.bf16.msra.mxu0 %v467
      %929 = vmatprep.mubr.bf16.mxu0 %v894
      %930 = vmatmul.mubr.bf16.gmra.mxu0 %v893
      %v931 = vpop.f32.mrf.mxu0
      %v932 = vadd.f32 %v885, %v931
      %v933 = vpop.f32.mrf.mxu0
      %v934 = vpop.f32.mrf.mxu0
      %v935 = vpop.f32.mrf.mxu0
      %936 = vdwg.mxu0
      %v937 = vadd.f32 %v932, %v535
      %v938 = vmax.f32 %v937, 0.0
      %v939 = vpack.c.bf16 %v938, %v938
      %940 = vst [vmem:[%s175 + $0x10] sm:$0xf] %v939
      %v941 = vld [vmem:[%s169 + $0x50] sm:$0xff]
      %v942 = vld [vmem:[%s169 + $0x58] sm:$0xff]
      %v944 = vunpack.c.l.b16 %v942
      %v945 = vunpack.c.h.b16 %v942
      %v946 = vpack.c.b16 %v944, %v944
      %v947 = vpack.c.b16 %v945, %v945
      %950 = vmatprep.subr.bf16.mxu0 0
      %951 = vmatpush1.bf16.msra.mxu0 %v323
      %952 = vmatprep.subr.bf16.mxu0 0
      %953 = vmatpush1.bf16.msra.mxu0 %v322
      %954 = vmatprep.subr.bf16.mxu0 0
      %955 = vmatpush1.bf16.msra.mxu0 %v321
      %956 = vmatprep.subr.bf16.mxu0 0
      %957 = vmatpush1.bf16.msra.mxu0 %v320
      %958 = vmatprep.subr.bf16.mxu0 0
      %959 = vmatpush1.bf16.msra.mxu0 %v319
      %960 = vmatprep.subr.bf16.mxu0 0
      %961 = vmatpush1.bf16.msra.mxu0 %v318
      %962 = vmatprep.subr.bf16.mxu0 0
      %963 = vmatpush1.bf16.msra.mxu0 %v317
      %964 = vmatprep.subr.bf16.mxu0 0
      %965 = vmatpush1.bf16.msra.mxu0 %v316
      %966 = vmatprep.subr.bf16.mxu0 0
      %967 = vmatpush2.bf16.msra.mxu0 %v331
      %968 = vmatprep.subr.bf16.mxu0 0
      %969 = vmatpush2.bf16.msra.mxu0 %v330
      %970 = vmatprep.subr.bf16.mxu0 0
      %971 = vmatpush2.bf16.msra.mxu0 %v329
      %972 = vmatprep.subr.bf16.mxu0 0
      %973 = vmatpush2.bf16.msra.mxu0 %v328
      %974 = vmatprep.subr.bf16.mxu0 0
      %975 = vmatpush2.bf16.msra.mxu0 %v327
      %976 = vmatprep.subr.bf16.mxu0 0
      %977 = vmatpush2.bf16.msra.mxu0 %v326
      %978 = vmatprep.subr.bf16.mxu0 0
      %979 = vmatpush2.bf16.msra.mxu0 %v325
      %980 = vmatprep.subr.bf16.mxu0 0
      %981 = vmatpush2.bf16.msra.mxu0 %v324
      %982 = vmatprep.mubr.bf16.mxu0 %v947
      %983 = vmatmul.mubr.bf16.gmra.mxu0 %v946
      %v984 = vpop.f32.mrf.mxu0
      %v985 = vadd.f32 0.0, %v984
      %v986 = vpop.f32.mrf.mxu0
      %v987 = vpop.f32.mrf.mxu0
      %v988 = vpop.f32.mrf.mxu0
      %989 = vdwg.mxu0
      %v991 = vunpack.c.l.b16 %v941
      %v992 = vunpack.c.h.b16 %v941
      %v993 = vpack.c.b16 %v991, %v991
      %v994 = vpack.c.b16 %v992, %v992
      %997 = vmatprep.subr.bf16.mxu0 0
      %998 = vmatpush1.bf16.msra.mxu0 %v466
      %999 = vmatprep.subr.bf16.mxu0 0
      %1000 = vmatpush1.bf16.msra.mxu0 %v465
      %1001 = vmatprep.subr.bf16.mxu0 0
      %1002 = vmatpush1.bf16.msra.mxu0 %v464
      %1003 = vmatprep.subr.bf16.mxu0 0
      %1004 = vmatpush1.bf16.msra.mxu0 %v463
      %1005 = vmatprep.subr.bf16.mxu0 0
      %1006 = vmatpush1.bf16.msra.mxu0 %v462
      %1007 = vmatprep.subr.bf16.mxu0 0
      %1008 = vmatpush1.bf16.msra.mxu0 %v461
      %1009 = vmatprep.subr.bf16.mxu0 0
      %1010 = vmatpush1.bf16.msra.mxu0 %v460
      %1011 = vmatprep.subr.bf16.mxu0 0
      %1012 = vmatpush1.bf16.msra.mxu0 %v459
      %1013 = vmatprep.subr.bf16.mxu0 0
      %1014 = vmatpush2.bf16.msra.mxu0 %v474
      %1015 = vmatprep.subr.bf16.mxu0 0
      %1016 = vmatpush2.bf16.msra.mxu0 %v473
      %1017 = vmatprep.subr.bf16.mxu0 0
      %1018 = vmatpush2.bf16.msra.mxu0 %v472
      %1019 = vmatprep.subr.bf16.mxu0 0
      %1020 = vmatpush2.bf16.msra.mxu0 %v471
      %1021 = vmatprep.subr.bf16.mxu0 0
      %1022 = vmatpush2.bf16.msra.mxu0 %v470
      %1023 = vmatprep.subr.bf16.mxu0 0
      %1024 = vmatpush2.bf16.msra.mxu0 %v469
      %1025 = vmatprep.subr.bf16.mxu0 0
      %1026 = vmatpush2.bf16.msra.mxu0 %v468
      %1027 = vmatprep.subr.bf16.mxu0 0
      %1028 = vmatpush2.bf16.msra.mxu0 %v467
      %1029 = vmatprep.mubr.bf16.mxu0 %v994
      %1030 = vmatmul.mubr.bf16.gmra.mxu0 %v993
      %v1031 = vpop.f32.mrf.mxu0
      %v1032 = vadd.f32 %v985, %v1031
      %v1033 = vpop.f32.mrf.mxu0
      %v1034 = vpop.f32.mrf.mxu0
      %v1035 = vpop.f32.mrf.mxu0
      %1036 = vdwg.mxu0
      %v1037 = vadd.f32 %v1032, %v535
      %v1038 = vmax.f32 %v1037, 0.0
      %v1039 = vpack.c.bf16 %v1038, %v1038
      %1040 = vst [vmem:[%s175 + $0x14] sm:$0xf] %v1039
      %v1041 = vld [vmem:[%s169 + $0x60] sm:$0xff]
      %v1042 = vld [vmem:[%s169 + $0x68] sm:$0xff]
      %v1044 = vunpack.c.l.b16 %v1042
      %v1045 = vunpack.c.h.b16 %v1042
      %v1046 = vpack.c.b16 %v1044, %v1044
      %v1047 = vpack.c.b16 %v1045, %v1045
      %1050 = vmatprep.subr.bf16.mxu0 0
      %1051 = vmatpush1.bf16.msra.mxu0 %v323
      %1052 = vmatprep.subr.bf16.mxu0 0
      %1053 = vmatpush1.bf16.msra.mxu0 %v322
      %1054 = vmatprep.subr.bf16.mxu0 0
      %1055 = vmatpush1.bf16.msra.mxu0 %v321
      %1056 = vmatprep.subr.bf16.mxu0 0
      %1057 = vmatpush1.bf16.msra.mxu0 %v320
      %1058 = vmatprep.subr.bf16.mxu0 0
      %1059 = vmatpush1.bf16.msra.mxu0 %v319
      %1060 = vmatprep.subr.bf16.mxu0 0
      %1061 = vmatpush1.bf16.msra.mxu0 %v318
      %1062 = vmatprep.subr.bf16.mxu0 0
      %1063 = vmatpush1.bf16.msra.mxu0 %v317
      %1064 = vmatprep.subr.bf16.mxu0 0
      %1065 = vmatpush1.bf16.msra.mxu0 %v316
      %1066 = vmatprep.subr.bf16.mxu0 0
      %1067 = vmatpush2.bf16.msra.mxu0 %v331
      %1068 = vmatprep.subr.bf16.mxu0 0
      %1069 = vmatpush2.bf16.msra.mxu0 %v330
      %1070 = vmatprep.subr.bf16.mxu0 0
      %1071 = vmatpush2.bf16.msra.mxu0 %v329
      %1072 = vmatprep.subr.bf16.mxu0 0
      %1073 = vmatpush2.bf16.msra.mxu0 %v328
      %1074 = vmatprep.subr.bf16.mxu0 0
      %1075 = vmatpush2.bf16.msra.mxu0 %v327
      %1076 = vmatprep.subr.bf16.mxu0 0
      %1077 = vmatpush2.bf16.msra.mxu0 %v326
      %1078 = vmatprep.subr.bf16.mxu0 0
      %1079 = vmatpush2.bf16.msra.mxu0 %v325
      %1080 = vmatprep.subr.bf16.mxu0 0
      %1081 = vmatpush2.bf16.msra.mxu0 %v324
      %1082 = vmatprep.mubr.bf16.mxu0 %v1047
      %1083 = vmatmul.mubr.bf16.gmra.mxu0 %v1046
      %v1084 = vpop.f32.mrf.mxu0
      %v1085 = vadd.f32 0.0, %v1084
      %v1086 = vpop.f32.mrf.mxu0
      %v1087 = vpop.f32.mrf.mxu0
      %v1088 = vpop.f32.mrf.mxu0
      %1089 = vdwg.mxu0
      %v1091 = vunpack.c.l.b16 %v1041
      %v1092 = vunpack.c.h.b16 %v1041
      %v1093 = vpack.c.b16 %v1091, %v1091
      %v1094 = vpack.c.b16 %v1092, %v1092
      %1097 = vmatprep.subr.bf16.mxu0 0
      %1098 = vmatpush1.bf16.msra.mxu0 %v466
      %1099 = vmatprep.subr.bf16.mxu0 0
      %1100 = vmatpush1.bf16.msra.mxu0 %v465
      %1101 = vmatprep.subr.bf16.mxu0 0
      %1102 = vmatpush1.bf16.msra.mxu0 %v464
      %1103 = vmatprep.subr.bf16.mxu0 0
      %1104 = vmatpush1.bf16.msra.mxu0 %v463
      %1105 = vmatprep.subr.bf16.mxu0 0
      %1106 = vmatpush1.bf16.msra.mxu0 %v462
      %1107 = vmatprep.subr.bf16.mxu0 0
      %1108 = vmatpush1.bf16.msra.mxu0 %v461
      %1109 = vmatprep.subr.bf16.mxu0 0
      %1110 = vmatpush1.bf16.msra.mxu0 %v460
      %1111 = vmatprep.subr.bf16.mxu0 0
      %1112 = vmatpush1.bf16.msra.mxu0 %v459
      %1113 = vmatprep.subr.bf16.mxu0 0
      %1114 = vmatpush2.bf16.msra.mxu0 %v474
      %1115 = vmatprep.subr.bf16.mxu0 0
      %1116 = vmatpush2.bf16.msra.mxu0 %v473
      %1117 = vmatprep.subr.bf16.mxu0 0
      %1118 = vmatpush2.bf16.msra.mxu0 %v472
      %1119 = vmatprep.subr.bf16.mxu0 0
      %1120 = vmatpush2.bf16.msra.mxu0 %v471
      %1121 = vmatprep.subr.bf16.mxu0 0
      %1122 = vmatpush2.bf16.msra.mxu0 %v470
      %1123 = vmatprep.subr.bf16.mxu0 0
      %1124 = vmatpush2.bf16.msra.mxu0 %v469
      %1125 = vmatprep.subr.bf16.mxu0 0
      %1126 = vmatpush2.bf16.msra.mxu0 %v468
      %1127 = vmatprep.subr.bf16.mxu0 0
      %1128 = vmatpush2.bf16.msra.mxu0 %v467
      %1129 = vmatprep.mubr.bf16.mxu0 %v1094
      %1130 = vmatmul.mubr.bf16.gmra.mxu0 %v1093
      %v1131 = vpop.f32.mrf.mxu0
      %v1132 = vadd.f32 %v1085, %v1131
      %v1133 = vpop.f32.mrf.mxu0
      %v1134 = vpop.f32.mrf.mxu0
      %v1135 = vpop.f32.mrf.mxu0
      %1136 = vdwg.mxu0
      %v1137 = vadd.f32 %v1132, %v535
      %v1138 = vmax.f32 %v1137, 0.0
      %v1139 = vpack.c.bf16 %v1138, %v1138
      %1140 = vst [vmem:[%s175 + $0x18] sm:$0xf] %v1139
      %v1141 = vld [vmem:[%s169 + $0x70] sm:$0xff]
      %v1142 = vld [vmem:[%s169 + $0x78] sm:$0xff]
      %v1144 = vunpack.c.l.b16 %v1142
      %v1145 = vunpack.c.h.b16 %v1142
      %v1146 = vpack.c.b16 %v1144, %v1144
      %v1147 = vpack.c.b16 %v1145, %v1145
      %1150 = vmatprep.subr.bf16.mxu0 0
      %1151 = vmatpush1.bf16.msra.mxu0 %v323
      %1152 = vmatprep.subr.bf16.mxu0 0
      %1153 = vmatpush1.bf16.msra.mxu0 %v322
      %1154 = vmatprep.subr.bf16.mxu0 0
      %1155 = vmatpush1.bf16.msra.mxu0 %v321
      %1156 = vmatprep.subr.bf16.mxu0 0
      %1157 = vmatpush1.bf16.msra.mxu0 %v320
      %1158 = vmatprep.subr.bf16.mxu0 0
      %1159 = vmatpush1.bf16.msra.mxu0 %v319
      %1160 = vmatprep.subr.bf16.mxu0 0
      %1161 = vmatpush1.bf16.msra.mxu0 %v318
      %1162 = vmatprep.subr.bf16.mxu0 0
      %1163 = vmatpush1.bf16.msra.mxu0 %v317
      %1164 = vmatprep.subr.bf16.mxu0 0
      %1165 = vmatpush1.bf16.msra.mxu0 %v316
      %1166 = vmatprep.subr.bf16.mxu0 0
      %1167 = vmatpush2.bf16.msra.mxu0 %v331
      %1168 = vmatprep.subr.bf16.mxu0 0
      %1169 = vmatpush2.bf16.msra.mxu0 %v330
      %1170 = vmatprep.subr.bf16.mxu0 0
      %1171 = vmatpush2.bf16.msra.mxu0 %v329
      %1172 = vmatprep.subr.bf16.mxu0 0
      %1173 = vmatpush2.bf16.msra.mxu0 %v328
      %1174 = vmatprep.subr.bf16.mxu0 0
      %1175 = vmatpush2.bf16.msra.mxu0 %v327
      %1176 = vmatprep.subr.bf16.mxu0 0
      %1177 = vmatpush2.bf16.msra.mxu0 %v326
      %1178 = vmatprep.subr.bf16.mxu0 0
      %1179 = vmatpush2.bf16.msra.mxu0 %v325
      %1180 = vmatprep.subr.bf16.mxu0 0
      %1181 = vmatpush2.bf16.msra.mxu0 %v324
      %1182 = vmatprep.mubr.bf16.mxu0 %v1147
      %1183 = vmatmul.mubr.bf16.gmra.mxu0 %v1146
      %v1184 = vpop.f32.mrf.mxu0
      %v1185 = vadd.f32 0.0, %v1184
      %v1186 = vpop.f32.mrf.mxu0
      %v1187 = vpop.f32.mrf.mxu0
      %v1188 = vpop.f32.mrf.mxu0
      %1189 = vdwg.mxu0
      %v1191 = vunpack.c.l.b16 %v1141
      %v1192 = vunpack.c.h.b16 %v1141
      %v1193 = vpack.c.b16 %v1191, %v1191
      %v1194 = vpack.c.b16 %v1192, %v1192
      %1197 = vmatprep.subr.bf16.mxu0 0
      %1198 = vmatpush1.bf16.msra.mxu0 %v466
      %1199 = vmatprep.subr.bf16.mxu0 0
      %1200 = vmatpush1.bf16.msra.mxu0 %v465
      %1201 = vmatprep.subr.bf16.mxu0 0
      %1202 = vmatpush1.bf16.msra.mxu0 %v464
      %1203 = vmatprep.subr.bf16.mxu0 0
      %1204 = vmatpush1.bf16.msra.mxu0 %v463
      %1205 = vmatprep.subr.bf16.mxu0 0
      %1206 = vmatpush1.bf16.msra.mxu0 %v462
      %1207 = vmatprep.subr.bf16.mxu0 0
      %1208 = vmatpush1.bf16.msra.mxu0 %v461
      %1209 = vmatprep.subr.bf16.mxu0 0
      %1210 = vmatpush1.bf16.msra.mxu0 %v460
      %1211 = vmatprep.subr.bf16.mxu0 0
      %1212 = vmatpush1.bf16.msra.mxu0 %v459
      %1213 = vmatprep.subr.bf16.mxu0 0
      %1214 = vmatpush2.bf16.msra.mxu0 %v474
      %1215 = vmatprep.subr.bf16.mxu0 0
      %1216 = vmatpush2.bf16.msra.mxu0 %v473
      %1217 = vmatprep.subr.bf16.mxu0 0
      %1218 = vmatpush2.bf16.msra.mxu0 %v472
      %1219 = vmatprep.subr.bf16.mxu0 0
      %1220 = vmatpush2.bf16.msra.mxu0 %v471
      %1221 = vmatprep.subr.bf16.mxu0 0
      %1222 = vmatpush2.bf16.msra.mxu0 %v470
      %1223 = vmatprep.subr.bf16.mxu0 0
      %1224 = vmatpush2.bf16.msra.mxu0 %v469
      %1225 = vmatprep.subr.bf16.mxu0 0
      %1226 = vmatpush2.bf16.msra.mxu0 %v468
      %1227 = vmatprep.subr.bf16.mxu0 0
      %1228 = vmatpush2.bf16.msra.mxu0 %v467
      %1229 = vmatprep.mubr.bf16.mxu0 %v1194
      %1230 = vmatmul.mubr.bf16.gmra.mxu0 %v1193
      %v1231 = vpop.f32.mrf.mxu0
      %v1232 = vadd.f32 %v1185, %v1231
      %v1233 = vpop.f32.mrf.mxu0
      %v1234 = vpop.f32.mrf.mxu0
      %v1235 = vpop.f32.mrf.mxu0
      %1236 = vdwg.mxu0
      %v1237 = vadd.f32 %v1232, %v535
      %v1238 = vmax.f32 %v1237, 0.0
      %v1239 = vpack.c.bf16 %v1238, %v1238
      %1240 = vst [vmem:[%s175 + $0x1c] sm:$0xf] %v1239
      %s1241 = smul.u32 8, %s14
      %p1242 = scmp.lt.s32.totalorder %s1241, 31
      %s1243 = scalar_select %p1242, %s1241, 31
      %s1244 = smul.addr %s1243, 4
      %s1245 = scalar_lea.vmem %s3, %s1244
      // Predicated region
      $region33: #{task_loss.6} parent=31 // pred_check
        %p1246 = pneg %p100
      $region34: #{task_loss.6} parent=31 // pred_check_branch
        %1248 = sbr.rel (%p1246) target = $region36
      $region35: #{task_loss.6} parent=31 // pred_region
        %s1249 = smul.u32 8, %s14
      $region36: #{task_loss.6} parent=31 // pred_fallthru
        _
    $region32: #{task_loss.6} parent=5 // pred_fallthru
      _
    %p1250 = scmp.le.s32.totalorder 2, %s9
    // Predicated region
    $region37: #{task_loss.6} parent=5 // pred_check
      %p1251 = pneg %p1250
    $region38: #{task_loss.6} parent=5 // pred_check_branch
      %1253 = sbr.rel (%p1251) target = $region40
    $region39: #{task_loss.6} parent=5 // pred_region
      %s1254 = ssub.s32 %s9, 2
      // Predicated region
      $region41: #{task_loss.6} parent=39 // pred_check
        %p1255 = pneg %p106
      $region42: #{task_loss.6} parent=39 // pred_check_branch
        %1257 = sbr.rel (%p1255) target = $region44
      $region43: #{task_loss.6} parent=39 // pred_region
        %s1258 = smul.u32 8, %s15
        %p1259 = scmp.lt.s32.totalorder %s1258, 31
        %s1260 = scalar_select %p1259, %s1258, 31
        %s1261 = smul.addr %s1260, 4
        %s1262 = scalar_lea.vmem %s3, %s1261
      $region44: #{task_loss.6} parent=39 // pred_fallthru
        _
    $region40: #{task_loss.6} parent=5 // pred_fallthru
      _
  $region6: #{task_loss.6} parent=0 // loop_footer
    %s13 = sadd.s32 1, %s9
  $region7: #{task_loss.6} parent=0 // loop_footer_branch
    %8 = sbr.rel target = $region3
  $region8: #{task_loss.6} parent=0 // loop_exit
    _

// kernel: task_loss.7
$region0: #{task_loss.7}
  #allocation0 [shape = 'u32[]', space=smem, size = 0x4, offset = 0x4, fixed_abs, tag = 'smem constant byte address 0x4 - core index']
  #allocation1 [shape = 'u32[144,128]{1,0:T(1,128)}', space=vmem, size = 0x12000, scoped, tag = 'internal scratch']
  %s0 = inlined_call_operand.vmem [shape: bf16[128,256], index: 0, kind: input, shape index: {}]
  %s1 = inlined_call_operand.vmem [shape: bf16[512,128], index: 1, kind: input, shape index: {}]
  %s2 = inlined_call_operand.vmem [shape: f32[1,128], index: 2, kind: input, shape index: {}]
  %s3 = inlined_call_operand.vmem [shape: bf16[64,128], index: 3, kind: output, shape index: {}]
  %s4 = sld [smem:[#allocation0]]
  $region45: #{task_loss.7} parent=0
    _
  %s6 = ssub.s32 1, %s4
  %s7 = scalar_select 0, %s6, %s4
  loop: start=0, step=1, limit=4
  $region2: #{task_loss.7} parent=0 // loop_pre_header
    _
  $region3: #{task_loss.7} parent=0 // loop_header
    %s9 = sphi 0, %s13
    %p10 = scmp.ge.s32.totalorder %s9, 4
    %s19 = sphi 0, %s21
    %s22 = sphi 0, %s19
    %s23 = sphi 0, %s22
    %s39 = sphi 0, %s23
    %s43 = sphi 0, %s43
    %s45 = sphi 0, %s43
    %s46 = sphi 0, %s45
    %s60 = sphi 0, %s46
    %s64 = sphi 0, %s64
    %s66 = sphi 0, %s64
    %s67 = sphi 0, %s66
    %s81 = sphi 0, %s67
    %s87 = sphi 0, %s89
    %s90 = sphi 0, %s87
    %s91 = sphi 0, %s90
    %s107 = sphi 0, %s91
  $region4: #{task_loss.7} parent=0 // loop_header_branch
    %12 = sbr.rel (%p10) target = $region8
  $region5: #{task_loss.7} parent=0 // loop_body
    %s14 = ssub.s32 %s9, 1
    %s15 = ssub.s32 %s9, 2
    %s16 = sadd.s32 %s9, 1
    %s17 = ssub.s32 %s9, %s16
    %p18 = scmp.eq.s32.totalorder %s17, 0
    %s20 = sadd.s32 %s19, 1
    %s21 = scalar_select %p18, %s19, %s20
    %p24 = pneg %p18
    %p25 = scmp.eq.s32.totalorder %s9, 1
    %p26 = por %p24, %p25
    %p27 = scmp.ne.s32.totalorder %s19, %s22
    %p28 = scmp.eq.s32.totalorder %s9, 0
    %p29 = por %p27, %p28
    %p30 = scmp.ne.s32.totalorder %s19, %s22
    %p31 = scmp.eq.s32.totalorder %s14, 1
    %p32 = por %p30, %p31
    %p33 = scmp.ne.s32.totalorder %s22, %s23
    %p34 = scmp.eq.s32.totalorder %s14, 0
    %p35 = por %p33, %p34
    %p36 = scmp.ne.s32.totalorder %s22, %s23
    %p37 = scmp.eq.s32.totalorder %s15, 1
    %p38 = por %p36, %p37
    %p40 = scmp.ne.s32.totalorder %s23, %s39
    %p41 = scmp.eq.s32.totalorder %s15, 0
    %p42 = por %p40, %p41
    %s44 = sadd.s32 %s43, 1
    %p47 = scmp.eq.s32.totalorder %s9, 1
    %p48 = scmp.ne.s32.totalorder %s43, %s45
    %p49 = scmp.eq.s32.totalorder %s9, 0
    %p50 = por %p48, %p49
    %p51 = scmp.ne.s32.totalorder %s43, %s45
    %p52 = scmp.eq.s32.totalorder %s14, 1
    %p53 = por %p51, %p52
    %p54 = scmp.ne.s32.totalorder %s45, %s46
    %p55 = scmp.eq.s32.totalorder %s14, 0
    %p56 = por %p54, %p55
    %p57 = scmp.ne.s32.totalorder %s45, %s46
    %p58 = scmp.eq.s32.totalorder %s15, 1
    %p59 = por %p57, %p58
    %p61 = scmp.ne.s32.totalorder %s46, %s60
    %p62 = scmp.eq.s32.totalorder %s15, 0
    %p63 = por %p61, %p62
    %s65 = sadd.s32 %s64, 1
    %p68 = scmp.eq.s32.totalorder %s9, 1
    %p69 = scmp.ne.s32.totalorder %s64, %s66
    %p70 = scmp.eq.s32.totalorder %s9, 0
    %p71 = por %p69, %p70
    %p72 = scmp.ne.s32.totalorder %s64, %s66
    %p73 = scmp.eq.s32.totalorder %s14, 1
    %p74 = por %p72, %p73
    %p75 = scmp.ne.s32.totalorder %s66, %s67
    %p76 = scmp.eq.s32.totalorder %s14, 0
    %p77 = por %p75, %p76
    %p78 = scmp.ne.s32.totalorder %s66, %s67
    %p79 = scmp.eq.s32.totalorder %s15, 1
    %p80 = por %p78, %p79
    %p82 = scmp.ne.s32.totalorder %s67, %s81
    %p83 = scmp.eq.s32.totalorder %s15, 0
    %p84 = por %p82, %p83
    %s85 = ssub.s32 %s9, %s16
    %p86 = scmp.eq.s32.totalorder %s85, 0
    %s88 = sadd.s32 %s87, 1
    %s89 = scalar_select %p86, %s87, %s88
    %p92 = pneg %p86
    %p93 = scmp.eq.s32.totalorder %s9, 1
    %p94 = por %p92, %p93
    %p95 = scmp.ne.s32.totalorder %s87, %s90
    %p96 = scmp.eq.s32.totalorder %s9, 0
    %p97 = por %p95, %p96
    %p98 = scmp.ne.s32.totalorder %s87, %s90
    %p99 = scmp.eq.s32.totalorder %s14, 1
    %p100 = por %p98, %p99
    %p101 = scmp.ne.s32.totalorder %s90, %s91
    %p102 = scmp.eq.s32.totalorder %s14, 0
    %p103 = por %p101, %p102
    %p104 = scmp.ne.s32.totalorder %s90, %s91
    %p105 = scmp.eq.s32.totalorder %s15, 1
    %p106 = por %p104, %p105
    %p108 = scmp.ne.s32.totalorder %s91, %s107
    %p109 = scmp.eq.s32.totalorder %s15, 0
    %p110 = por %p108, %p109
    %p111 = scmp.le.s32.totalorder 1, %s9
    %p112 = scmp.lt.s32.totalorder %s9, 3
    %p113 = pnand %p111, %p112
    %p114 = pneg %p113
    // Predicated region
    $region9: #{task_loss.7} parent=5 // pred_check
      _
    $region10: #{task_loss.7} parent=5 // pred_check_branch
      %116 = sbr.rel (%p113) target = $region12
    $region11: #{task_loss.7} parent=5 // pred_region
      %s117 = ssub.s32 %s9, 1
      // Predicated region
      $region13: #{task_loss.7} parent=11 // pred_check
        %p118 = pneg %p56
      $region14: #{task_loss.7} parent=11 // pred_check_branch
        %120 = sbr.rel (%p118) target = $region16
      $region15: #{task_loss.7} parent=11 // pred_region
        _
      $region16: #{task_loss.7} parent=11 // pred_fallthru
        _
      // Predicated region
      $region17: #{task_loss.7} parent=11 // pred_check
        %p121 = pneg %p77
      $region18: #{task_loss.7} parent=11 // pred_check_branch
        %123 = sbr.rel (%p121) target = $region20
      $region19: #{task_loss.7} parent=11 // pred_region
        _
      $region20: #{task_loss.7} parent=11 // pred_fallthru
        _
    $region12: #{task_loss.7} parent=5 // pred_fallthru
      _
    %p124 = scmp.lt.s32.totalorder %s9, 2
    // Predicated region
    $region21: #{task_loss.7} parent=5 // pred_check
      %p125 = pneg %p124
    $region22: #{task_loss.7} parent=5 // pred_check_branch
      %127 = sbr.rel (%p125) target = $region24
    $region23: #{task_loss.7} parent=5 // pred_region
      // Predicated region
      $region25: #{task_loss.7} parent=23 // pred_check
        %p128 = pneg %p29
      $region26: #{task_loss.7} parent=23 // pred_check_branch
        %130 = sbr.rel (%p128) target = $region28
      $region27: #{task_loss.7} parent=23 // pred_region
        %s131 = smul.u32 8, %s9
        %p132 = scmp.lt.s32.totalorder %s131, 15
        %s133 = scalar_select %p132, %s131, 15
        %s134 = smul.addr %s133, 2
        %s135 = smul.addr %s134, 4
        %s136 = scalar_lea.vmem %s0, %s135
        %s137 = smul.u32 8, %s9
      $region28: #{task_loss.7} parent=23 // pred_fallthru
        _
    $region24: #{task_loss.7} parent=5 // pred_fallthru
      _
    %p138 = scmp.le.s32.totalorder 1, %s9
    %p139 = scmp.lt.s32.totalorder %s9, 3
    %p140 = pnand %p138, %p139
    %p141 = pneg %p140
    // Predicated region
    $region29: #{task_loss.7} parent=5 // pred_check
      _
    $region30: #{task_loss.7} parent=5 // pred_check_branch
      %143 = sbr.rel (%p140) target = $region32
    $region31: #{task_loss.7} parent=5 // pred_region
      %s144 = ssub.s32 %s9, 1
      %s145 = smul.u32 8, %s14
      %p146 = scmp.lt.s32.totalorder %s145, 15
      %s147 = scalar_select %p146, %s145, 15
      %s148 = smul.addr %s147, 2
      %s149 = smul.addr %s148, 4
      %s150 = scalar_lea.vmem %s0, %s149
      %p151 = pneg %p35
      %p152 = pneg %p32
      %p153 = pneg %p56
      %p154 = pneg %p53
      %p155 = pneg %p77
      %p156 = pneg %p74
      %p157 = pneg %p103
      %p158 = pneg %p100
      %s159 = smul.u32 4, %s14
      %p160 = scmp.lt.s32.totalorder %s159, 7
      %s161 = scalar_select %p160, %s159, 7
      %s162 = smul.addr %s161, 4
      %s163 = scalar_lea.vmem %s3, %s162
      %s164 = smul.u32 8, %s14
      %p165 = scmp.lt.s32.totalorder %s164, 15
      %s166 = scalar_select %p165, %s164, 15
      %s167 = smul.addr %s166, 2
      %s168 = smul.addr %s167, 4
      %s169 = scalar_lea.vmem %s0, %s168
      %s170 = smul.u32 8, %s14
      %s171 = smul.u32 4, %s14
      %p172 = scmp.lt.s32.totalorder %s171, 7
      %s173 = scalar_select %p172, %s171, 7
      %s174 = smul.addr %s173, 4
      %s175 = scalar_lea.vmem %s3, %s174
      %s176 = smul.u32 4, %s14
      %v178 = vld [vmem:[%s1] sm:$0xf]
      %v179 = vld [vmem:[%s1 + $0x4] sm:$0xf]
      %v180 = vld [vmem:[%s1 + $0x8] sm:$0xf]
      %v181 = vld [vmem:[%s1 + $0xc] sm:$0xf]
      %v182 = vld [vmem:[%s1 + $0x10] sm:$0xf]
      %v183 = vld [vmem:[%s1 + $0x14] sm:$0xf]
      %v184 = vld [vmem:[%s1 + $0x18] sm:$0xf]
      %v185 = vld [vmem:[%s1 + $0x1c] sm:$0xf]
      %v186 = vld [vmem:[%s1 + $0x20] sm:$0xf]
      %v187 = vld [vmem:[%s1 + $0x24] sm:$0xf]
      %v188 = vld [vmem:[%s1 + $0x28] sm:$0xf]
      %v189 = vld [vmem:[%s1 + $0x2c] sm:$0xf]
      %v190 = vld [vmem:[%s1 + $0x30] sm:$0xf]
      %v191 = vld [vmem:[%s1 + $0x34] sm:$0xf]
      %v192 = vld [vmem:[%s1 + $0x38] sm:$0xf]
      %v193 = vld [vmem:[%s1 + $0x3c] sm:$0xf]
      %v194 = vld [vmem:[%s1 + $0x40] sm:$0xf]
      %v195 = vld [vmem:[%s1 + $0x44] sm:$0xf]
      %v196 = vld [vmem:[%s1 + $0x48] sm:$0xf]
      %v197 = vld [vmem:[%s1 + $0x4c] sm:$0xf]
      %v198 = vld [vmem:[%s1 + $0x50] sm:$0xf]
      %v199 = vld [vmem:[%s1 + $0x54] sm:$0xf]
      %v200 = vld [vmem:[%s1 + $0x58] sm:$0xf]
      %v201 = vld [vmem:[%s1 + $0x5c] sm:$0xf]
      %v202 = vld [vmem:[%s1 + $0x60] sm:$0xf]
      %v203 = vld [vmem:[%s1 + $0x64] sm:$0xf]
      %v204 = vld [vmem:[%s1 + $0x68] sm:$0xf]
      %v205 = vld [vmem:[%s1 + $0x6c] sm:$0xf]
      %v206 = vld [vmem:[%s1 + $0x70] sm:$0xf]
      %v207 = vld [vmem:[%s1 + $0x74] sm:$0xf]
      %v208 = vld [vmem:[%s1 + $0x78] sm:$0xf]
      %v209 = vld [vmem:[%s1 + $0x7c] sm:$0xf]
      %v210 = vld [vmem:[%s1 + $0x80] sm:$0xf]
      %v211 = vld [vmem:[%s1 + $0x84] sm:$0xf]
      %v212 = vld [vmem:[%s1 + $0x88] sm:$0xf]
      %v213 = vld [vmem:[%s1 + $0x8c] sm:$0xf]
      %v214 = vld [vmem:[%s1 + $0x90] sm:$0xf]
      %v215 = vld [vmem:[%s1 + $0x94] sm:$0xf]
      %v216 = vld [vmem:[%s1 + $0x98] sm:$0xf]
      %v217 = vld [vmem:[%s1 + $0x9c] sm:$0xf]
      %v218 = vld [vmem:[%s1 + $0xa0] sm:$0xf]
      %v219 = vld [vmem:[%s1 + $0xa4] sm:$0xf]
      %v220 = vld [vmem:[%s1 + $0xa8] sm:$0xf]
      %v221 = vld [vmem:[%s1 + $0xac] sm:$0xf]
      %v222 = vld [vmem:[%s1 + $0xb0] sm:$0xf]
      %v223 = vld [vmem:[%s1 + $0xb4] sm:$0xf]
      %v224 = vld [vmem:[%s1 + $0xb8] sm:$0xf]
      %v225 = vld [vmem:[%s1 + $0xbc] sm:$0xf]
      %v226 = vld [vmem:[%s1 + $0xc0] sm:$0xf]
      %v227 = vld [vmem:[%s1 + $0xc4] sm:$0xf]
      %v228 = vld [vmem:[%s1 + $0xc8] sm:$0xf]
      %v229 = vld [vmem:[%s1 + $0xcc] sm:$0xf]
      %v230 = vld [vmem:[%s1 + $0xd0] sm:$0xf]
      %v231 = vld [vmem:[%s1 + $0xd4] sm:$0xf]
      %v232 = vld [vmem:[%s1 + $0xd8] sm:$0xf]
      %v233 = vld [vmem:[%s1 + $0xdc] sm:$0xf]
      %v234 = vld [vmem:[%s1 + $0xe0] sm:$0xf]
      %v235 = vld [vmem:[%s1 + $0xe4] sm:$0xf]
      %v236 = vld [vmem:[%s1 + $0xe8] sm:$0xf]
      %v237 = vld [vmem:[%s1 + $0xec] sm:$0xf]
      %v238 = vld [vmem:[%s1 + $0xf0] sm:$0xf]
      %v239 = vld [vmem:[%s1 + $0xf4] sm:$0xf]
      %v240 = vld [vmem:[%s1 + $0xf8] sm:$0xf]
      %v241 = vld [vmem:[%s1 + $0xfc] sm:$0xf]
      %v242 = vld [vmem:[%s2] sm:$0x1]
      %v243 = vld [vmem:[%s169] sm:$0x33]
      %v244 = vld [vmem:[%s169] sm:$0xcc]
      %v246 = vunpack.c.l.b16 %v244
      %v247 = vunpack.c.h.b16 %v244
      %v248 = vpack.c.b16 %v246, %v246
      %v249 = vpack.c.b16 %v247, %v247
      %v250 = vrot.slane %v248, 2
      %v251 = vrot.slane %v249, 2
      %v286 = vunpack.c.l.b16 %v210
      %v287 = vunpack.c.l.b16 %v211
      %v288 = vunpack.c.l.b16 %v212
      %v289 = vunpack.c.l.b16 %v213
      %v290 = vunpack.c.l.b16 %v214
      %v291 = vunpack.c.l.b16 %v215
      %v292 = vunpack.c.l.b16 %v216
      %v293 = vunpack.c.l.b16 %v217
      %v294 = vunpack.c.l.b16 %v218
      %v295 = vunpack.c.l.b16 %v219
      %v296 = vunpack.c.l.b16 %v220
      %v297 = vunpack.c.l.b16 %v221
      %v298 = vunpack.c.l.b16 %v222
      %v299 = vunpack.c.l.b16 %v223
      %v300 = vunpack.c.l.b16 %v224
      %v301 = vunpack.c.l.b16 %v225
      %v302 = vunpack.c.l.b16 %v226
      %v303 = vunpack.c.l.b16 %v227
      %v304 = vunpack.c.l.b16 %v228
      %v305 = vunpack.c.l.b16 %v229
      %v306 = vunpack.c.l.b16 %v230
      %v307 = vunpack.c.l.b16 %v231
      %v308 = vunpack.c.l.b16 %v232
      %v309 = vunpack.c.l.b16 %v233
      %v310 = vunpack.c.l.b16 %v234
      %v311 = vunpack.c.l.b16 %v235
      %v312 = vunpack.c.l.b16 %v236
      %v313 = vunpack.c.l.b16 %v237
      %v314 = vunpack.c.l.b16 %v238
      %v315 = vunpack.c.l.b16 %v239
      %v316 = vunpack.c.l.b16 %v240
      %v317 = vunpack.c.l.b16 %v241
      %v318 = vpack.c.b16 %v287, %v286
      %v319 = vpack.c.b16 %v289, %v288
      %v320 = vpack.c.b16 %v291, %v290
      %v321 = vpack.c.b16 %v293, %v292
      %v322 = vpack.c.b16 %v295, %v294
      %v323 = vpack.c.b16 %v297, %v296
      %v324 = vpack.c.b16 %v299, %v298
      %v325 = vpack.c.b16 %v301, %v300
      %v326 = vpack.c.b16 %v303, %v302
      %v327 = vpack.c.b16 %v305, %v304
      %v328 = vpack.c.b16 %v307, %v306
      %v329 = vpack.c.b16 %v309, %v308
      %v330 = vpack.c.b16 %v311, %v310
      %v331 = vpack.c.b16 %v313, %v312
      %v332 = vpack.c.b16 %v315, %v314
      %v333 = vpack.c.b16 %v317, %v316
      %350 = vmatprep.subr.bf16.mxu0 0
      %351 = vmatpush1.bf16.msra.mxu0 %v325
      %352 = vmatprep.subr.bf16.mxu0 0
      %353 = vmatpush1.bf16.msra.mxu0 %v324
      %354 = vmatprep.subr.bf16.mxu0 0
      %355 = vmatpush1.bf16.msra.mxu0 %v323
      %356 = vmatprep.subr.bf16.mxu0 0
      %357 = vmatpush1.bf16.msra.mxu0 %v322
      %358 = vmatprep.subr.bf16.mxu0 0
      %359 = vmatpush1.bf16.msra.mxu0 %v321
      %360 = vmatprep.subr.bf16.mxu0 0
      %361 = vmatpush1.bf16.msra.mxu0 %v320
      %362 = vmatprep.subr.bf16.mxu0 0
      %363 = vmatpush1.bf16.msra.mxu0 %v319
      %364 = vmatprep.subr.bf16.mxu0 0
      %365 = vmatpush1.bf16.msra.mxu0 %v318
      %366 = vmatprep.subr.bf16.mxu0 0
      %367 = vmatpush2.bf16.msra.mxu0 %v333
      %368 = vmatprep.subr.bf16.mxu0 0
      %369 = vmatpush2.bf16.msra.mxu0 %v332
      %370 = vmatprep.subr.bf16.mxu0 0
      %371 = vmatpush2.bf16.msra.mxu0 %v331
      %372 = vmatprep.subr.bf16.mxu0 0
      %373 = vmatpush2.bf16.msra.mxu0 %v330
      %374 = vmatprep.subr.bf16.mxu0 0
      %375 = vmatpush2.bf16.msra.mxu0 %v329
      %376 = vmatprep.subr.bf16.mxu0 0
      %377 = vmatpush2.bf16.msra.mxu0 %v328
      %378 = vmatprep.subr.bf16.mxu0 0
      %379 = vmatpush2.bf16.msra.mxu0 %v327
      %380 = vmatprep.subr.bf16.mxu0 0
      %381 = vmatpush2.bf16.msra.mxu0 %v326
      %382 = vmatprep.mubr.bf16.mxu0 %v251
      %383 = vmatmul.mubr.bf16.gmra.mxu0 %v250
      %v384 = vpop.f32.mrf.mxu0
      %v385 = vadd.f32 0.0, %v384
      %v386 = vpop.f32.mrf.mxu0
      %v387 = vpop.f32.mrf.mxu0
      %v388 = vpop.f32.mrf.mxu0
      %389 = vdwg.mxu0
      %v391 = vunpack.c.l.b16 %v243
      %v392 = vunpack.c.h.b16 %v243
      %v393 = vpack.c.b16 %v391, %v391
      %v394 = vpack.c.b16 %v392, %v392
      %v429 = vunpack.c.l.b16 %v178
      %v430 = vunpack.c.l.b16 %v179
      %v431 = vunpack.c.l.b16 %v180
      %v432 = vunpack.c.l.b16 %v181
      %v433 = vunpack.c.l.b16 %v182
      %v434 = vunpack.c.l.b16 %v183
      %v435 = vunpack.c.l.b16 %v184
      %v436 = vunpack.c.l.b16 %v185
      %v437 = vunpack.c.l.b16 %v186
      %v438 = vunpack.c.l.b16 %v187
      %v439 = vunpack.c.l.b16 %v188
      %v440 = vunpack.c.l.b16 %v189
      %v441 = vunpack.c.l.b16 %v190
      %v442 = vunpack.c.l.b16 %v191
      %v443 = vunpack.c.l.b16 %v192
      %v444 = vunpack.c.l.b16 %v193
      %v445 = vunpack.c.l.b16 %v194
      %v446 = vunpack.c.l.b16 %v195
      %v447 = vunpack.c.l.b16 %v196
      %v448 = vunpack.c.l.b16 %v197
      %v449 = vunpack.c.l.b16 %v198
      %v450 = vunpack.c.l.b16 %v199
      %v451 = vunpack.c.l.b16 %v200
      %v452 = vunpack.c.l.b16 %v201
      %v453 = vunpack.c.l.b16 %v202
      %v454 = vunpack.c.l.b16 %v203
      %v455 = vunpack.c.l.b16 %v204
      %v456 = vunpack.c.l.b16 %v205
      %v457 = vunpack.c.l.b16 %v206
      %v458 = vunpack.c.l.b16 %v207
      %v459 = vunpack.c.l.b16 %v208
      %v460 = vunpack.c.l.b16 %v209
      %v461 = vpack.c.b16 %v430, %v429
      %v462 = vpack.c.b16 %v432, %v431
      %v463 = vpack.c.b16 %v434, %v433
      %v464 = vpack.c.b16 %v436, %v435
      %v465 = vpack.c.b16 %v438, %v437
      %v466 = vpack.c.b16 %v440, %v439
      %v467 = vpack.c.b16 %v442, %v441
      %v468 = vpack.c.b16 %v444, %v443
      %v469 = vpack.c.b16 %v446, %v445
      %v470 = vpack.c.b16 %v448, %v447
      %v471 = vpack.c.b16 %v450, %v449
      %v472 = vpack.c.b16 %v452, %v451
      %v473 = vpack.c.b16 %v454, %v453
      %v474 = vpack.c.b16 %v456, %v455
      %v475 = vpack.c.b16 %v458, %v457
      %v476 = vpack.c.b16 %v460, %v459
      %493 = vmatprep.subr.bf16.mxu0 0
      %494 = vmatpush1.bf16.msra.mxu0 %v468
      %495 = vmatprep.subr.bf16.mxu0 0
      %496 = vmatpush1.bf16.msra.mxu0 %v467
      %497 = vmatprep.subr.bf16.mxu0 0
      %498 = vmatpush1.bf16.msra.mxu0 %v466
      %499 = vmatprep.subr.bf16.mxu0 0
      %500 = vmatpush1.bf16.msra.mxu0 %v465
      %501 = vmatprep.subr.bf16.mxu0 0
      %502 = vmatpush1.bf16.msra.mxu0 %v464
      %503 = vmatprep.subr.bf16.mxu0 0
      %504 = vmatpush1.bf16.msra.mxu0 %v463
      %505 = vmatprep.subr.bf16.mxu0 0
      %506 = vmatpush1.bf16.msra.mxu0 %v462
      %507 = vmatprep.subr.bf16.mxu0 0
      %508 = vmatpush1.bf16.msra.mxu0 %v461
      %509 = vmatprep.subr.bf16.mxu0 0
      %510 = vmatpush2.bf16.msra.mxu0 %v476
      %511 = vmatprep.subr.bf16.mxu0 0
      %512 = vmatpush2.bf16.msra.mxu0 %v475
      %513 = vmatprep.subr.bf16.mxu0 0
      %514 = vmatpush2.bf16.msra.mxu0 %v474
      %515 = vmatprep.subr.bf16.mxu0 0
      %516 = vmatpush2.bf16.msra.mxu0 %v473
      %517 = vmatprep.subr.bf16.mxu0 0
      %518 = vmatpush2.bf16.msra.mxu0 %v472
      %519 = vmatprep.subr.bf16.mxu0 0
      %520 = vmatpush2.bf16.msra.mxu0 %v471
      %521 = vmatprep.subr.bf16.mxu0 0
      %522 = vmatpush2.bf16.msra.mxu0 %v470
      %523 = vmatprep.subr.bf16.mxu0 0
      %524 = vmatpush2.bf16.msra.mxu0 %v469
      %525 = vmatprep.mubr.bf16.mxu0 %v394
      %526 = vmatmul.mubr.bf16.gmra.mxu0 %v393
      %v527 = vpop.f32.mrf.mxu0
      %v528 = vadd.f32 %v385, %v527
      %v529 = vpop.f32.mrf.mxu0
      %v530 = vpop.f32.mrf.mxu0
      %v531 = vpop.f32.mrf.mxu0
      %532 = vdwg.mxu0
      %v534 = vlaneseq
      %v535 = vshrl.u32 %v534, 7
      %v536 = vsub.s32 0, %v535
      %v537 = vrot.slane %v242, %v536
      %v539 = vadd.f32 %v528, %v537
      %v540 = vmax.f32 %v539, 0.0
      %v541 = vpack.c.bf16 %v540, %v540
      %542 = vst [vmem:[%s175] sm:$0x3] %v541
      %v543 = vld [vmem:[%s169 + $0x8] sm:$0x33]
      %v544 = vld [vmem:[%s169 + $0x8] sm:$0xcc]
      %v546 = vunpack.c.l.b16 %v544
      %v547 = vunpack.c.h.b16 %v544
      %v548 = vpack.c.b16 %v546, %v546
      %v549 = vpack.c.b16 %v547, %v547
      %v550 = vrot.slane %v548, 2
      %v551 = vrot.slane %v549, 2
      %554 = vmatprep.subr.bf16.mxu0 0
      %555 = vmatpush1.bf16.msra.mxu0 %v325
      %556 = vmatprep.subr.bf16.mxu0 0
      %557 = vmatpush1.bf16.msra.mxu0 %v324
      %558 = vmatprep.subr.bf16.mxu0 0
      %559 = vmatpush1.bf16.msra.mxu0 %v323
      %560 = vmatprep.subr.bf16.mxu0 0
      %561 = vmatpush1.bf16.msra.mxu0 %v322
      %562 = vmatprep.subr.bf16.mxu0 0
      %563 = vmatpush1.bf16.msra.mxu0 %v321
      %564 = vmatprep.subr.bf16.mxu0 0
      %565 = vmatpush1.bf16.msra.mxu0 %v320
      %566 = vmatprep.subr.bf16.mxu0 0
      %567 = vmatpush1.bf16.msra.mxu0 %v319
      %568 = vmatprep.subr.bf16.mxu0 0
      %569 = vmatpush1.bf16.msra.mxu0 %v318
      %570 = vmatprep.subr.bf16.mxu0 0
      %571 = vmatpush2.bf16.msra.mxu0 %v333
      %572 = vmatprep.subr.bf16.mxu0 0
      %573 = vmatpush2.bf16.msra.mxu0 %v332
      %574 = vmatprep.subr.bf16.mxu0 0
      %575 = vmatpush2.bf16.msra.mxu0 %v331
      %576 = vmatprep.subr.bf16.mxu0 0
      %577 = vmatpush2.bf16.msra.mxu0 %v330
      %578 = vmatprep.subr.bf16.mxu0 0
      %579 = vmatpush2.bf16.msra.mxu0 %v329
      %580 = vmatprep.subr.bf16.mxu0 0
      %581 = vmatpush2.bf16.msra.mxu0 %v328
      %582 = vmatprep.subr.bf16.mxu0 0
      %583 = vmatpush2.bf16.msra.mxu0 %v327
      %584 = vmatprep.subr.bf16.mxu0 0
      %585 = vmatpush2.bf16.msra.mxu0 %v326
      %586 = vmatprep.mubr.bf16.mxu0 %v551
      %587 = vmatmul.mubr.bf16.gmra.mxu0 %v550
      %v588 = vpop.f32.mrf.mxu0
      %v589 = vadd.f32 0.0, %v588
      %v590 = vpop.f32.mrf.mxu0
      %v591 = vpop.f32.mrf.mxu0
      %v592 = vpop.f32.mrf.mxu0
      %593 = vdwg.mxu0
      %v595 = vunpack.c.l.b16 %v543
      %v596 = vunpack.c.h.b16 %v543
      %v597 = vpack.c.b16 %v595, %v595
      %v598 = vpack.c.b16 %v596, %v596
      %601 = vmatprep.subr.bf16.mxu0 0
      %602 = vmatpush1.bf16.msra.mxu0 %v468
      %603 = vmatprep.subr.bf16.mxu0 0
      %604 = vmatpush1.bf16.msra.mxu0 %v467
      %605 = vmatprep.subr.bf16.mxu0 0
      %606 = vmatpush1.bf16.msra.mxu0 %v466
      %607 = vmatprep.subr.bf16.mxu0 0
      %608 = vmatpush1.bf16.msra.mxu0 %v465
      %609 = vmatprep.subr.bf16.mxu0 0
      %610 = vmatpush1.bf16.msra.mxu0 %v464
      %611 = vmatprep.subr.bf16.mxu0 0
      %612 = vmatpush1.bf16.msra.mxu0 %v463
      %613 = vmatprep.subr.bf16.mxu0 0
      %614 = vmatpush1.bf16.msra.mxu0 %v462
      %615 = vmatprep.subr.bf16.mxu0 0
      %616 = vmatpush1.bf16.msra.mxu0 %v461
      %617 = vmatprep.subr.bf16.mxu0 0
      %618 = vmatpush2.bf16.msra.mxu0 %v476
      %619 = vmatprep.subr.bf16.mxu0 0
      %620 = vmatpush2.bf16.msra.mxu0 %v475
      %621 = vmatprep.subr.bf16.mxu0 0
      %622 = vmatpush2.bf16.msra.mxu0 %v474
      %623 = vmatprep.subr.bf16.mxu0 0
      %624 = vmatpush2.bf16.msra.mxu0 %v473
      %625 = vmatprep.subr.bf16.mxu0 0
      %626 = vmatpush2.bf16.msra.mxu0 %v472
      %627 = vmatprep.subr.bf16.mxu0 0
      %628 = vmatpush2.bf16.msra.mxu0 %v471
      %629 = vmatprep.subr.bf16.mxu0 0
      %630 = vmatpush2.bf16.msra.mxu0 %v470
      %631 = vmatprep.subr.bf16.mxu0 0
      %632 = vmatpush2.bf16.msra.mxu0 %v469
      %633 = vmatprep.mubr.bf16.mxu0 %v598
      %634 = vmatmul.mubr.bf16.gmra.mxu0 %v597
      %v635 = vpop.f32.mrf.mxu0
      %v636 = vadd.f32 %v589, %v635
      %v637 = vpop.f32.mrf.mxu0
      %v638 = vpop.f32.mrf.mxu0
      %v639 = vpop.f32.mrf.mxu0
      %640 = vdwg.mxu0
      %v641 = vadd.f32 %v636, %v537
      %v642 = vmax.f32 %v641, 0.0
      %v643 = vpack.c.bf16 %v642, %v642
      %v645 = vunpack.c.l.b16 %v643
      %v646 = vpack.c.b16 %v645, %v645
      %v647 = vrot.slane %v646, 6
      %649 = vst [vmem:[%s175] sm:$0xc] %v647
      %v650 = vld [vmem:[%s169 + $0x10] sm:$0x33]
      %v651 = vld [vmem:[%s169 + $0x10] sm:$0xcc]
      %v653 = vunpack.c.l.b16 %v651
      %v654 = vunpack.c.h.b16 %v651
      %v655 = vpack.c.b16 %v653, %v653
      %v656 = vpack.c.b16 %v654, %v654
      %v657 = vrot.slane %v655, 2
      %v658 = vrot.slane %v656, 2
      %661 = vmatprep.subr.bf16.mxu0 0
      %662 = vmatpush1.bf16.msra.mxu0 %v325
      %663 = vmatprep.subr.bf16.mxu0 0
      %664 = vmatpush1.bf16.msra.mxu0 %v324
      %665 = vmatprep.subr.bf16.mxu0 0
      %666 = vmatpush1.bf16.msra.mxu0 %v323
      %667 = vmatprep.subr.bf16.mxu0 0
      %668 = vmatpush1.bf16.msra.mxu0 %v322
      %669 = vmatprep.subr.bf16.mxu0 0
      %670 = vmatpush1.bf16.msra.mxu0 %v321
      %671 = vmatprep.subr.bf16.mxu0 0
      %672 = vmatpush1.bf16.msra.mxu0 %v320
      %673 = vmatprep.subr.bf16.mxu0 0
      %674 = vmatpush1.bf16.msra.mxu0 %v319
      %675 = vmatprep.subr.bf16.mxu0 0
      %676 = vmatpush1.bf16.msra.mxu0 %v318
      %677 = vmatprep.subr.bf16.mxu0 0
      %678 = vmatpush2.bf16.msra.mxu0 %v333
      %679 = vmatprep.subr.bf16.mxu0 0
      %680 = vmatpush2.bf16.msra.mxu0 %v332
      %681 = vmatprep.subr.bf16.mxu0 0
      %682 = vmatpush2.bf16.msra.mxu0 %v331
      %683 = vmatprep.subr.bf16.mxu0 0
      %684 = vmatpush2.bf16.msra.mxu0 %v330
      %685 = vmatprep.subr.bf16.mxu0 0
      %686 = vmatpush2.bf16.msra.mxu0 %v329
      %687 = vmatprep.subr.bf16.mxu0 0
      %688 = vmatpush2.bf16.msra.mxu0 %v328
      %689 = vmatprep.subr.bf16.mxu0 0
      %690 = vmatpush2.bf16.msra.mxu0 %v327
      %691 = vmatprep.subr.bf16.mxu0 0
      %692 = vmatpush2.bf16.msra.mxu0 %v326
      %693 = vmatprep.mubr.bf16.mxu0 %v658
      %694 = vmatmul.mubr.bf16.gmra.mxu0 %v657
      %v695 = vpop.f32.mrf.mxu0
      %v696 = vadd.f32 0.0, %v695
      %v697 = vpop.f32.mrf.mxu0
      %v698 = vpop.f32.mrf.mxu0
      %v699 = vpop.f32.mrf.mxu0
      %700 = vdwg.mxu0
      %v702 = vunpack.c.l.b16 %v650
      %v703 = vunpack.c.h.b16 %v650
      %v704 = vpack.c.b16 %v702, %v702
      %v705 = vpack.c.b16 %v703, %v703
      %708 = vmatprep.subr.bf16.mxu0 0
      %709 = vmatpush1.bf16.msra.mxu0 %v468
      %710 = vmatprep.subr.bf16.mxu0 0
      %711 = vmatpush1.bf16.msra.mxu0 %v467
      %712 = vmatprep.subr.bf16.mxu0 0
      %713 = vmatpush1.bf16.msra.mxu0 %v466
      %714 = vmatprep.subr.bf16.mxu0 0
      %715 = vmatpush1.bf16.msra.mxu0 %v465
      %716 = vmatprep.subr.bf16.mxu0 0
      %717 = vmatpush1.bf16.msra.mxu0 %v464
      %718 = vmatprep.subr.bf16.mxu0 0
      %719 = vmatpush1.bf16.msra.mxu0 %v463
      %720 = vmatprep.subr.bf16.mxu0 0
      %721 = vmatpush1.bf16.msra.mxu0 %v462
      %722 = vmatprep.subr.bf16.mxu0 0
      %723 = vmatpush1.bf16.msra.mxu0 %v461
      %724 = vmatprep.subr.bf16.mxu0 0
      %725 = vmatpush2.bf16.msra.mxu0 %v476
      %726 = vmatprep.subr.bf16.mxu0 0
      %727 = vmatpush2.bf16.msra.mxu0 %v475
      %728 = vmatprep.subr.bf16.mxu0 0
      %729 = vmatpush2.bf16.msra.mxu0 %v474
      %730 = vmatprep.subr.bf16.mxu0 0
      %731 = vmatpush2.bf16.msra.mxu0 %v473
      %732 = vmatprep.subr.bf16.mxu0 0
      %733 = vmatpush2.bf16.msra.mxu0 %v472
      %734 = vmatprep.subr.bf16.mxu0 0
      %735 = vmatpush2.bf16.msra.mxu0 %v471
      %736 = vmatprep.subr.bf16.mxu0 0
      %737 = vmatpush2.bf16.msra.mxu0 %v470
      %738 = vmatprep.subr.bf16.mxu0 0
      %739 = vmatpush2.bf16.msra.mxu0 %v469
      %740 = vmatprep.mubr.bf16.mxu0 %v705
      %741 = vmatmul.mubr.bf16.gmra.mxu0 %v704
      %v742 = vpop.f32.mrf.mxu0
      %v743 = vadd.f32 %v696, %v742
      %v744 = vpop.f32.mrf.mxu0
      %v745 = vpop.f32.mrf.mxu0
      %v746 = vpop.f32.mrf.mxu0
      %747 = vdwg.mxu0
      %v748 = vadd.f32 %v743, %v537
      %v749 = vmax.f32 %v748, 0.0
      %v750 = vpack.c.bf16 %v749, %v749
      %751 = vst [vmem:[%s175 + $0x4] sm:$0x3] %v750
      %v752 = vld [vmem:[%s169 + $0x18] sm:$0x33]
      %v753 = vld [vmem:[%s169 + $0x18] sm:$0xcc]
      %v755 = vunpack.c.l.b16 %v753
      %v756 = vunpack.c.h.b16 %v753
      %v757 = vpack.c.b16 %v755, %v755
      %v758 = vpack.c.b16 %v756, %v756
      %v759 = vrot.slane %v757, 2
      %v760 = vrot.slane %v758, 2
      %763 = vmatprep.subr.bf16.mxu0 0
      %764 = vmatpush1.bf16.msra.mxu0 %v325
      %765 = vmatprep.subr.bf16.mxu0 0
      %766 = vmatpush1.bf16.msra.mxu0 %v324
      %767 = vmatprep.subr.bf16.mxu0 0
      %768 = vmatpush1.bf16.msra.mxu0 %v323
      %769 = vmatprep.subr.bf16.mxu0 0
      %770 = vmatpush1.bf16.msra.mxu0 %v322
      %771 = vmatprep.subr.bf16.mxu0 0
      %772 = vmatpush1.bf16.msra.mxu0 %v321
      %773 = vmatprep.subr.bf16.mxu0 0
      %774 = vmatpush1.bf16.msra.mxu0 %v320
      %775 = vmatprep.subr.bf16.mxu0 0
      %776 = vmatpush1.bf16.msra.mxu0 %v319
      %777 = vmatprep.subr.bf16.mxu0 0
      %778 = vmatpush1.bf16.msra.mxu0 %v318
      %779 = vmatprep.subr.bf16.mxu0 0
      %780 = vmatpush2.bf16.msra.mxu0 %v333
      %781 = vmatprep.subr.bf16.mxu0 0
      %782 = vmatpush2.bf16.msra.mxu0 %v332
      %783 = vmatprep.subr.bf16.mxu0 0
      %784 = vmatpush2.bf16.msra.mxu0 %v331
      %785 = vmatprep.subr.bf16.mxu0 0
      %786 = vmatpush2.bf16.msra.mxu0 %v330
      %787 = vmatprep.subr.bf16.mxu0 0
      %788 = vmatpush2.bf16.msra.mxu0 %v329
      %789 = vmatprep.subr.bf16.mxu0 0
      %790 = vmatpush2.bf16.msra.mxu0 %v328
      %791 = vmatprep.subr.bf16.mxu0 0
      %792 = vmatpush2.bf16.msra.mxu0 %v327
      %793 = vmatprep.subr.bf16.mxu0 0
      %794 = vmatpush2.bf16.msra.mxu0 %v326
      %795 = vmatprep.mubr.bf16.mxu0 %v760
      %796 = vmatmul.mubr.bf16.gmra.mxu0 %v759
      %v797 = vpop.f32.mrf.mxu0
      %v798 = vadd.f32 0.0, %v797
      %v799 = vpop.f32.mrf.mxu0
      %v800 = vpop.f32.mrf.mxu0
      %v801 = vpop.f32.mrf.mxu0
      %802 = vdwg.mxu0
      %v804 = vunpack.c.l.b16 %v752
      %v805 = vunpack.c.h.b16 %v752
      %v806 = vpack.c.b16 %v804, %v804
      %v807 = vpack.c.b16 %v805, %v805
      %810 = vmatprep.subr.bf16.mxu0 0
      %811 = vmatpush1.bf16.msra.mxu0 %v468
      %812 = vmatprep.subr.bf16.mxu0 0
      %813 = vmatpush1.bf16.msra.mxu0 %v467
      %814 = vmatprep.subr.bf16.mxu0 0
      %815 = vmatpush1.bf16.msra.mxu0 %v466
      %816 = vmatprep.subr.bf16.mxu0 0
      %817 = vmatpush1.bf16.msra.mxu0 %v465
      %818 = vmatprep.subr.bf16.mxu0 0
      %819 = vmatpush1.bf16.msra.mxu0 %v464
      %820 = vmatprep.subr.bf16.mxu0 0
      %821 = vmatpush1.bf16.msra.mxu0 %v463
      %822 = vmatprep.subr.bf16.mxu0 0
      %823 = vmatpush1.bf16.msra.mxu0 %v462
      %824 = vmatprep.subr.bf16.mxu0 0
      %825 = vmatpush1.bf16.msra.mxu0 %v461
      %826 = vmatprep.subr.bf16.mxu0 0
      %827 = vmatpush2.bf16.msra.mxu0 %v476
      %828 = vmatprep.subr.bf16.mxu0 0
      %829 = vmatpush2.bf16.msra.mxu0 %v475
      %830 = vmatprep.subr.bf16.mxu0 0
      %831 = vmatpush2.bf16.msra.mxu0 %v474
      %832 = vmatprep.subr.bf16.mxu0 0
      %833 = vmatpush2.bf16.msra.mxu0 %v473
      %834 = vmatprep.subr.bf16.mxu0 0
      %835 = vmatpush2.bf16.msra.mxu0 %v472
      %836 = vmatprep.subr.bf16.mxu0 0
      %837 = vmatpush2.bf16.msra.mxu0 %v471
      %838 = vmatprep.subr.bf16.mxu0 0
      %839 = vmatpush2.bf16.msra.mxu0 %v470
      %840 = vmatprep.subr.bf16.mxu0 0
      %841 = vmatpush2.bf16.msra.mxu0 %v469
      %842 = vmatprep.mubr.bf16.mxu0 %v807
      %843 = vmatmul.mubr.bf16.gmra.mxu0 %v806
      %v844 = vpop.f32.mrf.mxu0
      %v845 = vadd.f32 %v798, %v844
      %v846 = vpop.f32.mrf.mxu0
      %v847 = vpop.f32.mrf.mxu0
      %v848 = vpop.f32.mrf.mxu0
      %849 = vdwg.mxu0
      %v850 = vadd.f32 %v845, %v537
      %v851 = vmax.f32 %v850, 0.0
      %v852 = vpack.c.bf16 %v851, %v851
      %v854 = vunpack.c.l.b16 %v852
      %v855 = vpack.c.b16 %v854, %v854
      %v856 = vrot.slane %v855, 6
      %858 = vst [vmem:[%s175 + $0x4] sm:$0xc] %v856
      %v859 = vld [vmem:[%s169 + $0x20] sm:$0x33]
      %v860 = vld [vmem:[%s169 + $0x20] sm:$0xcc]
      %v862 = vunpack.c.l.b16 %v860
      %v863 = vunpack.c.h.b16 %v860
      %v864 = vpack.c.b16 %v862, %v862
      %v865 = vpack.c.b16 %v863, %v863
      %v866 = vrot.slane %v864, 2
      %v867 = vrot.slane %v865, 2
      %870 = vmatprep.subr.bf16.mxu0 0
      %871 = vmatpush1.bf16.msra.mxu0 %v325
      %872 = vmatprep.subr.bf16.mxu0 0
      %873 = vmatpush1.bf16.msra.mxu0 %v324
      %874 = vmatprep.subr.bf16.mxu0 0
      %875 = vmatpush1.bf16.msra.mxu0 %v323
      %876 = vmatprep.subr.bf16.mxu0 0
      %877 = vmatpush1.bf16.msra.mxu0 %v322
      %878 = vmatprep.subr.bf16.mxu0 0
      %879 = vmatpush1.bf16.msra.mxu0 %v321
      %880 = vmatprep.subr.bf16.mxu0 0
      %881 = vmatpush1.bf16.msra.mxu0 %v320
      %882 = vmatprep.subr.bf16.mxu0 0
      %883 = vmatpush1.bf16.msra.mxu0 %v319
      %884 = vmatprep.subr.bf16.mxu0 0
      %885 = vmatpush1.bf16.msra.mxu0 %v318
      %886 = vmatprep.subr.bf16.mxu0 0
      %887 = vmatpush2.bf16.msra.mxu0 %v333
      %888 = vmatprep.subr.bf16.mxu0 0
      %889 = vmatpush2.bf16.msra.mxu0 %v332
      %890 = vmatprep.subr.bf16.mxu0 0
      %891 = vmatpush2.bf16.msra.mxu0 %v331
      %892 = vmatprep.subr.bf16.mxu0 0
      %893 = vmatpush2.bf16.msra.mxu0 %v330
      %894 = vmatprep.subr.bf16.mxu0 0
      %895 = vmatpush2.bf16.msra.mxu0 %v329
      %896 = vmatprep.subr.bf16.mxu0 0
      %897 = vmatpush2.bf16.msra.mxu0 %v328
      %898 = vmatprep.subr.bf16.mxu0 0
      %899 = vmatpush2.bf16.msra.mxu0 %v327
      %900 = vmatprep.subr.bf16.mxu0 0
      %901 = vmatpush2.bf16.msra.mxu0 %v326
      %902 = vmatprep.mubr.bf16.mxu0 %v867
      %903 = vmatmul.mubr.bf16.gmra.mxu0 %v866
      %v904 = vpop.f32.mrf.mxu0
      %v905 = vadd.f32 0.0, %v904
      %v906 = vpop.f32.mrf.mxu0
      %v907 = vpop.f32.mrf.mxu0
      %v908 = vpop.f32.mrf.mxu0
      %909 = vdwg.mxu0
      %v911 = vunpack.c.l.b16 %v859
      %v912 = vunpack.c.h.b16 %v859
      %v913 = vpack.c.b16 %v911, %v911
      %v914 = vpack.c.b16 %v912, %v912
      %917 = vmatprep.subr.bf16.mxu0 0
      %918 = vmatpush1.bf16.msra.mxu0 %v468
      %919 = vmatprep.subr.bf16.mxu0 0
      %920 = vmatpush1.bf16.msra.mxu0 %v467
      %921 = vmatprep.subr.bf16.mxu0 0
      %922 = vmatpush1.bf16.msra.mxu0 %v466
      %923 = vmatprep.subr.bf16.mxu0 0
      %924 = vmatpush1.bf16.msra.mxu0 %v465
      %925 = vmatprep.subr.bf16.mxu0 0
      %926 = vmatpush1.bf16.msra.mxu0 %v464
      %927 = vmatprep.subr.bf16.mxu0 0
      %928 = vmatpush1.bf16.msra.mxu0 %v463
      %929 = vmatprep.subr.bf16.mxu0 0
      %930 = vmatpush1.bf16.msra.mxu0 %v462
      %931 = vmatprep.subr.bf16.mxu0 0
      %932 = vmatpush1.bf16.msra.mxu0 %v461
      %933 = vmatprep.subr.bf16.mxu0 0
      %934 = vmatpush2.bf16.msra.mxu0 %v476
      %935 = vmatprep.subr.bf16.mxu0 0
      %936 = vmatpush2.bf16.msra.mxu0 %v475
      %937 = vmatprep.subr.bf16.mxu0 0
      %938 = vmatpush2.bf16.msra.mxu0 %v474
      %939 = vmatprep.subr.bf16.mxu0 0
      %940 = vmatpush2.bf16.msra.mxu0 %v473
      %941 = vmatprep.subr.bf16.mxu0 0
      %942 = vmatpush2.bf16.msra.mxu0 %v472
      %943 = vmatprep.subr.bf16.mxu0 0
      %944 = vmatpush2.bf16.msra.mxu0 %v471
      %945 = vmatprep.subr.bf16.mxu0 0
      %946 = vmatpush2.bf16.msra.mxu0 %v470
      %947 = vmatprep.subr.bf16.mxu0 0
      %948 = vmatpush2.bf16.msra.mxu0 %v469
      %949 = vmatprep.mubr.bf16.mxu0 %v914
      %950 = vmatmul.mubr.bf16.gmra.mxu0 %v913
      %v951 = vpop.f32.mrf.mxu0
      %v952 = vadd.f32 %v905, %v951
      %v953 = vpop.f32.mrf.mxu0
      %v954 = vpop.f32.mrf.mxu0
      %v955 = vpop.f32.mrf.mxu0
      %956 = vdwg.mxu0
      %v957 = vadd.f32 %v952, %v537
      %v958 = vmax.f32 %v957, 0.0
      %v959 = vpack.c.bf16 %v958, %v958
      %960 = vst [vmem:[%s175 + $0x8] sm:$0x3] %v959
      %v961 = vld [vmem:[%s169 + $0x28] sm:$0x33]
      %v962 = vld [vmem:[%s169 + $0x28] sm:$0xcc]
      %v964 = vunpack.c.l.b16 %v962
      %v965 = vunpack.c.h.b16 %v962
      %v966 = vpack.c.b16 %v964, %v964
      %v967 = vpack.c.b16 %v965, %v965
      %v968 = vrot.slane %v966, 2
      %v969 = vrot.slane %v967, 2
      %972 = vmatprep.subr.bf16.mxu0 0
      %973 = vmatpush1.bf16.msra.mxu0 %v325
      %974 = vmatprep.subr.bf16.mxu0 0
      %975 = vmatpush1.bf16.msra.mxu0 %v324
      %976 = vmatprep.subr.bf16.mxu0 0
      %977 = vmatpush1.bf16.msra.mxu0 %v323
      %978 = vmatprep.subr.bf16.mxu0 0
      %979 = vmatpush1.bf16.msra.mxu0 %v322
      %980 = vmatprep.subr.bf16.mxu0 0
      %981 = vmatpush1.bf16.msra.mxu0 %v321
      %982 = vmatprep.subr.bf16.mxu0 0
      %983 = vmatpush1.bf16.msra.mxu0 %v320
      %984 = vmatprep.subr.bf16.mxu0 0
      %985 = vmatpush1.bf16.msra.mxu0 %v319
      %986 = vmatprep.subr.bf16.mxu0 0
      %987 = vmatpush1.bf16.msra.mxu0 %v318
      %988 = vmatprep.subr.bf16.mxu0 0
      %989 = vmatpush2.bf16.msra.mxu0 %v333
      %990 = vmatprep.subr.bf16.mxu0 0
      %991 = vmatpush2.bf16.msra.mxu0 %v332
      %992 = vmatprep.subr.bf16.mxu0 0
      %993 = vmatpush2.bf16.msra.mxu0 %v331
      %994 = vmatprep.subr.bf16.mxu0 0
      %995 = vmatpush2.bf16.msra.mxu0 %v330
      %996 = vmatprep.subr.bf16.mxu0 0
      %997 = vmatpush2.bf16.msra.mxu0 %v329
      %998 = vmatprep.subr.bf16.mxu0 0
      %999 = vmatpush2.bf16.msra.mxu0 %v328
      %1000 = vmatprep.subr.bf16.mxu0 0
      %1001 = vmatpush2.bf16.msra.mxu0 %v327
      %1002 = vmatprep.subr.bf16.mxu0 0
      %1003 = vmatpush2.bf16.msra.mxu0 %v326
      %1004 = vmatprep.mubr.bf16.mxu0 %v969
      %1005 = vmatmul.mubr.bf16.gmra.mxu0 %v968
      %v1006 = vpop.f32.mrf.mxu0
      %v1007 = vadd.f32 0.0, %v1006
      %v1008 = vpop.f32.mrf.mxu0
      %v1009 = vpop.f32.mrf.mxu0
      %v1010 = vpop.f32.mrf.mxu0
      %1011 = vdwg.mxu0
      %v1013 = vunpack.c.l.b16 %v961
      %v1014 = vunpack.c.h.b16 %v961
      %v1015 = vpack.c.b16 %v1013, %v1013
      %v1016 = vpack.c.b16 %v1014, %v1014
      %1019 = vmatprep.subr.bf16.mxu0 0
      %1020 = vmatpush1.bf16.msra.mxu0 %v468
      %1021 = vmatprep.subr.bf16.mxu0 0
      %1022 = vmatpush1.bf16.msra.mxu0 %v467
      %1023 = vmatprep.subr.bf16.mxu0 0
      %1024 = vmatpush1.bf16.msra.mxu0 %v466
      %1025 = vmatprep.subr.bf16.mxu0 0
      %1026 = vmatpush1.bf16.msra.mxu0 %v465
      %1027 = vmatprep.subr.bf16.mxu0 0
      %1028 = vmatpush1.bf16.msra.mxu0 %v464
      %1029 = vmatprep.subr.bf16.mxu0 0
      %1030 = vmatpush1.bf16.msra.mxu0 %v463
      %1031 = vmatprep.subr.bf16.mxu0 0
      %1032 = vmatpush1.bf16.msra.mxu0 %v462
      %1033 = vmatprep.subr.bf16.mxu0 0
      %1034 = vmatpush1.bf16.msra.mxu0 %v461
      %1035 = vmatprep.subr.bf16.mxu0 0
      %1036 = vmatpush2.bf16.msra.mxu0 %v476
      %1037 = vmatprep.subr.bf16.mxu0 0
      %1038 = vmatpush2.bf16.msra.mxu0 %v475
      %1039 = vmatprep.subr.bf16.mxu0 0
      %1040 = vmatpush2.bf16.msra.mxu0 %v474
      %1041 = vmatprep.subr.bf16.mxu0 0
      %1042 = vmatpush2.bf16.msra.mxu0 %v473
      %1043 = vmatprep.subr.bf16.mxu0 0
      %1044 = vmatpush2.bf16.msra.mxu0 %v472
      %1045 = vmatprep.subr.bf16.mxu0 0
      %1046 = vmatpush2.bf16.msra.mxu0 %v471
      %1047 = vmatprep.subr.bf16.mxu0 0
      %1048 = vmatpush2.bf16.msra.mxu0 %v470
      %1049 = vmatprep.subr.bf16.mxu0 0
      %1050 = vmatpush2.bf16.msra.mxu0 %v469
      %1051 = vmatprep.mubr.bf16.mxu0 %v1016
      %1052 = vmatmul.mubr.bf16.gmra.mxu0 %v1015
      %v1053 = vpop.f32.mrf.mxu0
      %v1054 = vadd.f32 %v1007, %v1053
      %v1055 = vpop.f32.mrf.mxu0
      %v1056 = vpop.f32.mrf.mxu0
      %v1057 = vpop.f32.mrf.mxu0
      %1058 = vdwg.mxu0
      %v1059 = vadd.f32 %v1054, %v537
      %v1060 = vmax.f32 %v1059, 0.0
      %v1061 = vpack.c.bf16 %v1060, %v1060
      %v1063 = vunpack.c.l.b16 %v1061
      %v1064 = vpack.c.b16 %v1063, %v1063
      %v1065 = vrot.slane %v1064, 6
      %1067 = vst [vmem:[%s175 + $0x8] sm:$0xc] %v1065
      %v1068 = vld [vmem:[%s169 + $0x30] sm:$0x33]
      %v1069 = vld [vmem:[%s169 + $0x30] sm:$0xcc]
      %v1071 = vunpack.c.l.b16 %v1069
      %v1072 = vunpack.c.h.b16 %v1069
      %v1073 = vpack.c.b16 %v1071, %v1071
      %v1074 = vpack.c.b16 %v1072, %v1072
      %v1075 = vrot.slane %v1073, 2
      %v1076 = vrot.slane %v1074, 2
      %1079 = vmatprep.subr.bf16.mxu0 0
      %1080 = vmatpush1.bf16.msra.mxu0 %v325
      %1081 = vmatprep.subr.bf16.mxu0 0
      %1082 = vmatpush1.bf16.msra.mxu0 %v324
      %1083 = vmatprep.subr.bf16.mxu0 0
      %1084 = vmatpush1.bf16.msra.mxu0 %v323
      %1085 = vmatprep.subr.bf16.mxu0 0
      %1086 = vmatpush1.bf16.msra.mxu0 %v322
      %1087 = vmatprep.subr.bf16.mxu0 0
      %1088 = vmatpush1.bf16.msra.mxu0 %v321
      %1089 = vmatprep.subr.bf16.mxu0 0
      %1090 = vmatpush1.bf16.msra.mxu0 %v320
      %1091 = vmatprep.subr.bf16.mxu0 0
      %1092 = vmatpush1.bf16.msra.mxu0 %v319
      %1093 = vmatprep.subr.bf16.mxu0 0
      %1094 = vmatpush1.bf16.msra.mxu0 %v318
      %1095 = vmatprep.subr.bf16.mxu0 0
      %1096 = vmatpush2.bf16.msra.mxu0 %v333
      %1097 = vmatprep.subr.bf16.mxu0 0
      %1098 = vmatpush2.bf16.msra.mxu0 %v332
      %1099 = vmatprep.subr.bf16.mxu0 0
      %1100 = vmatpush2.bf16.msra.mxu0 %v331
      %1101 = vmatprep.subr.bf16.mxu0 0
      %1102 = vmatpush2.bf16.msra.mxu0 %v330
      %1103 = vmatprep.subr.bf16.mxu0 0
      %1104 = vmatpush2.bf16.msra.mxu0 %v329
      %1105 = vmatprep.subr.bf16.mxu0 0
      %1106 = vmatpush2.bf16.msra.mxu0 %v328
      %1107 = vmatprep.subr.bf16.mxu0 0
      %1108 = vmatpush2.bf16.msra.mxu0 %v327
      %1109 = vmatprep.subr.bf16.mxu0 0
      %1110 = vmatpush2.bf16.msra.mxu0 %v326
      %1111 = vmatprep.mubr.bf16.mxu0 %v1076
      %1112 = vmatmul.mubr.bf16.gmra.mxu0 %v1075
      %v1113 = vpop.f32.mrf.mxu0
      %v1114 = vadd.f32 0.0, %v1113
      %v1115 = vpop.f32.mrf.mxu0
      %v1116 = vpop.f32.mrf.mxu0
      %v1117 = vpop.f32.mrf.mxu0
      %1118 = vdwg.mxu0
      %v1120 = vunpack.c.l.b16 %v1068
      %v1121 = vunpack.c.h.b16 %v1068
      %v1122 = vpack.c.b16 %v1120, %v1120
      %v1123 = vpack.c.b16 %v1121, %v1121
      %1126 = vmatprep.subr.bf16.mxu0 0
      %1127 = vmatpush1.bf16.msra.mxu0 %v468
      %1128 = vmatprep.subr.bf16.mxu0 0
      %1129 = vmatpush1.bf16.msra.mxu0 %v467
      %1130 = vmatprep.subr.bf16.mxu0 0
      %1131 = vmatpush1.bf16.msra.mxu0 %v466
      %1132 = vmatprep.subr.bf16.mxu0 0
      %1133 = vmatpush1.bf16.msra.mxu0 %v465
      %1134 = vmatprep.subr.bf16.mxu0 0
      %1135 = vmatpush1.bf16.msra.mxu0 %v464
      %1136 = vmatprep.subr.bf16.mxu0 0
      %1137 = vmatpush1.bf16.msra.mxu0 %v463
      %1138 = vmatprep.subr.bf16.mxu0 0
      %1139 = vmatpush1.bf16.msra.mxu0 %v462
      %1140 = vmatprep.subr.bf16.mxu0 0
      %1141 = vmatpush1.bf16.msra.mxu0 %v461
      %1142 = vmatprep.subr.bf16.mxu0 0
      %1143 = vmatpush2.bf16.msra.mxu0 %v476
      %1144 = vmatprep.subr.bf16.mxu0 0
      %1145 = vmatpush2.bf16.msra.mxu0 %v475
      %1146 = vmatprep.subr.bf16.mxu0 0
      %1147 = vmatpush2.bf16.msra.mxu0 %v474
      %1148 = vmatprep.subr.bf16.mxu0 0
      %1149 = vmatpush2.bf16.msra.mxu0 %v473
      %1150 = vmatprep.subr.bf16.mxu0 0
      %1151 = vmatpush2.bf16.msra.mxu0 %v472
      %1152 = vmatprep.subr.bf16.mxu0 0
      %1153 = vmatpush2.bf16.msra.mxu0 %v471
      %1154 = vmatprep.subr.bf16.mxu0 0
      %1155 = vmatpush2.bf16.msra.mxu0 %v470
      %1156 = vmatprep.subr.bf16.mxu0 0
      %1157 = vmatpush2.bf16.msra.mxu0 %v469
      %1158 = vmatprep.mubr.bf16.mxu0 %v1123
      %1159 = vmatmul.mubr.bf16.gmra.mxu0 %v1122
      %v1160 = vpop.f32.mrf.mxu0
      %v1161 = vadd.f32 %v1114, %v1160
      %v1162 = vpop.f32.mrf.mxu0
      %v1163 = vpop.f32.mrf.mxu0
      %v1164 = vpop.f32.mrf.mxu0
      %1165 = vdwg.mxu0
      %v1166 = vadd.f32 %v1161, %v537
      %v1167 = vmax.f32 %v1166, 0.0
      %v1168 = vpack.c.bf16 %v1167, %v1167
      %1169 = vst [vmem:[%s175 + $0xc] sm:$0x3] %v1168
      %v1170 = vld [vmem:[%s169 + $0x38] sm:$0x33]
      %v1171 = vld [vmem:[%s169 + $0x38] sm:$0xcc]
      %v1173 = vunpack.c.l.b16 %v1171
      %v1174 = vunpack.c.h.b16 %v1171
      %v1175 = vpack.c.b16 %v1173, %v1173
      %v1176 = vpack.c.b16 %v1174, %v1174
      %v1177 = vrot.slane %v1175, 2
      %v1178 = vrot.slane %v1176, 2
      %1181 = vmatprep.subr.bf16.mxu0 0
      %1182 = vmatpush1.bf16.msra.mxu0 %v325
      %1183 = vmatprep.subr.bf16.mxu0 0
      %1184 = vmatpush1.bf16.msra.mxu0 %v324
      %1185 = vmatprep.subr.bf16.mxu0 0
      %1186 = vmatpush1.bf16.msra.mxu0 %v323
      %1187 = vmatprep.subr.bf16.mxu0 0
      %1188 = vmatpush1.bf16.msra.mxu0 %v322
      %1189 = vmatprep.subr.bf16.mxu0 0
      %1190 = vmatpush1.bf16.msra.mxu0 %v321
      %1191 = vmatprep.subr.bf16.mxu0 0
      %1192 = vmatpush1.bf16.msra.mxu0 %v320
      %1193 = vmatprep.subr.bf16.mxu0 0
      %1194 = vmatpush1.bf16.msra.mxu0 %v319
      %1195 = vmatprep.subr.bf16.mxu0 0
      %1196 = vmatpush1.bf16.msra.mxu0 %v318
      %1197 = vmatprep.subr.bf16.mxu0 0
      %1198 = vmatpush2.bf16.msra.mxu0 %v333
      %1199 = vmatprep.subr.bf16.mxu0 0
      %1200 = vmatpush2.bf16.msra.mxu0 %v332
      %1201 = vmatprep.subr.bf16.mxu0 0
      %1202 = vmatpush2.bf16.msra.mxu0 %v331
      %1203 = vmatprep.subr.bf16.mxu0 0
      %1204 = vmatpush2.bf16.msra.mxu0 %v330
      %1205 = vmatprep.subr.bf16.mxu0 0
      %1206 = vmatpush2.bf16.msra.mxu0 %v329
      %1207 = vmatprep.subr.bf16.mxu0 0
      %1208 = vmatpush2.bf16.msra.mxu0 %v328
      %1209 = vmatprep.subr.bf16.mxu0 0
      %1210 = vmatpush2.bf16.msra.mxu0 %v327
      %1211 = vmatprep.subr.bf16.mxu0 0
      %1212 = vmatpush2.bf16.msra.mxu0 %v326
      %1213 = vmatprep.mubr.bf16.mxu0 %v1178
      %1214 = vmatmul.mubr.bf16.gmra.mxu0 %v1177
      %v1215 = vpop.f32.mrf.mxu0
      %v1216 = vadd.f32 0.0, %v1215
      %v1217 = vpop.f32.mrf.mxu0
      %v1218 = vpop.f32.mrf.mxu0
      %v1219 = vpop.f32.mrf.mxu0
      %1220 = vdwg.mxu0
      %v1222 = vunpack.c.l.b16 %v1170
      %v1223 = vunpack.c.h.b16 %v1170
      %v1224 = vpack.c.b16 %v1222, %v1222
      %v1225 = vpack.c.b16 %v1223, %v1223
      %1228 = vmatprep.subr.bf16.mxu0 0
      %1229 = vmatpush1.bf16.msra.mxu0 %v468
      %1230 = vmatprep.subr.bf16.mxu0 0
      %1231 = vmatpush1.bf16.msra.mxu0 %v467
      %1232 = vmatprep.subr.bf16.mxu0 0
      %1233 = vmatpush1.bf16.msra.mxu0 %v466
      %1234 = vmatprep.subr.bf16.mxu0 0
      %1235 = vmatpush1.bf16.msra.mxu0 %v465
      %1236 = vmatprep.subr.bf16.mxu0 0
      %1237 = vmatpush1.bf16.msra.mxu0 %v464
      %1238 = vmatprep.subr.bf16.mxu0 0
      %1239 = vmatpush1.bf16.msra.mxu0 %v463
      %1240 = vmatprep.subr.bf16.mxu0 0
      %1241 = vmatpush1.bf16.msra.mxu0 %v462
      %1242 = vmatprep.subr.bf16.mxu0 0
      %1243 = vmatpush1.bf16.msra.mxu0 %v461
      %1244 = vmatprep.subr.bf16.mxu0 0
      %1245 = vmatpush2.bf16.msra.mxu0 %v476
      %1246 = vmatprep.subr.bf16.mxu0 0
      %1247 = vmatpush2.bf16.msra.mxu0 %v475
      %1248 = vmatprep.subr.bf16.mxu0 0
      %1249 = vmatpush2.bf16.msra.mxu0 %v474
      %1250 = vmatprep.subr.bf16.mxu0 0
      %1251 = vmatpush2.bf16.msra.mxu0 %v473
      %1252 = vmatprep.subr.bf16.mxu0 0
      %1253 = vmatpush2.bf16.msra.mxu0 %v472
      %1254 = vmatprep.subr.bf16.mxu0 0
      %1255 = vmatpush2.bf16.msra.mxu0 %v471
      %1256 = vmatprep.subr.bf16.mxu0 0
      %1257 = vmatpush2.bf16.msra.mxu0 %v470
      %1258 = vmatprep.subr.bf16.mxu0 0
      %1259 = vmatpush2.bf16.msra.mxu0 %v469
      %1260 = vmatprep.mubr.bf16.mxu0 %v1225
      %1261 = vmatmul.mubr.bf16.gmra.mxu0 %v1224
      %v1262 = vpop.f32.mrf.mxu0
      %v1263 = vadd.f32 %v1216, %v1262
      %v1264 = vpop.f32.mrf.mxu0
      %v1265 = vpop.f32.mrf.mxu0
      %v1266 = vpop.f32.mrf.mxu0
      %1267 = vdwg.mxu0
      %v1268 = vadd.f32 %v1263, %v537
      %v1269 = vmax.f32 %v1268, 0.0
      %v1270 = vpack.c.bf16 %v1269, %v1269
      %v1272 = vunpack.c.l.b16 %v1270
      %v1273 = vpack.c.b16 %v1272, %v1272
      %v1274 = vrot.slane %v1273, 6
      %1276 = vst [vmem:[%s175 + $0xc] sm:$0xc] %v1274
      %s1277 = smul.u32 4, %s14
      %p1278 = scmp.lt.s32.totalorder %s1277, 7
      %s1279 = scalar_select %p1278, %s1277, 7
      %s1280 = smul.addr %s1279, 4
      %s1281 = scalar_lea.vmem %s3, %s1280
      // Predicated region
      $region33: #{task_loss.7} parent=31 // pred_check
        %p1282 = pneg %p100
      $region34: #{task_loss.7} parent=31 // pred_check_branch
        %1284 = sbr.rel (%p1282) target = $region36
      $region35: #{task_loss.7} parent=31 // pred_region
        %s1285 = smul.u32 4, %s14
      $region36: #{task_loss.7} parent=31 // pred_fallthru
        _
    $region32: #{task_loss.7} parent=5 // pred_fallthru
      _
    %p1286 = scmp.le.s32.totalorder 2, %s9
    // Predicated region
    $region37: #{task_loss.7} parent=5 // pred_check
      %p1287 = pneg %p1286
    $region38: #{task_loss.7} parent=5 // pred_check_branch
      %1289 = sbr.rel (%p1287) target = $region40
    $region39: #{task_loss.7} parent=5 // pred_region
      %s1290 = ssub.s32 %s9, 2
      // Predicated region
      $region41: #{task_loss.7} parent=39 // pred_check
        %p1291 = pneg %p106
      $region42: #{task_loss.7} parent=39 // pred_check_branch
        %1293 = sbr.rel (%p1291) target = $region44
      $region43: #{task_loss.7} parent=39 // pred_region
        %s1294 = smul.u32 4, %s15
        %p1295 = scmp.lt.s32.totalorder %s1294, 7
        %s1296 = scalar_select %p1295, %s1294, 7
        %s1297 = smul.addr %s1296, 4
        %s1298 = scalar_lea.vmem %s3, %s1297
      $region44: #{task_loss.7} parent=39 // pred_fallthru
        _
    $region40: #{task_loss.7} parent=5 // pred_fallthru
      _
  $region6: #{task_loss.7} parent=0 // loop_footer
    %s13 = sadd.s32 1, %s9
  $region7: #{task_loss.7} parent=0 // loop_footer_branch
    %8 = sbr.rel target = $region3
  $region8: #{task_loss.7} parent=0 // loop_exit
    _

// kernel: task_loss.8
$region0: #{task_loss.8}
  #allocation0 [shape = 'u32[]', space=smem, size = 0x4, offset = 0x4, fixed_abs, tag = 'smem constant byte address 0x4 - core index']
  #allocation1 [shape = 'u32[144,128]{1,0:T(1,128)}', space=vmem, size = 0x12000, scoped, tag = 'internal scratch']
  %s0 = inlined_call_operand.vmem [shape: bf16[32,256], index: 0, kind: input, shape index: {}]
  %s1 = inlined_call_operand.vmem [shape: bf16[512,128], index: 1, kind: input, shape index: {}]
  %s2 = inlined_call_operand.vmem [shape: f32[1,128], index: 2, kind: input, shape index: {}]
  %s3 = inlined_call_operand.vmem [shape: bf16[16,128], index: 3, kind: output, shape index: {}]
  %s4 = sld [smem:[#allocation0]]
  $region45: #{task_loss.8} parent=0
    _
  %s6 = ssub.s32 1, %s4
  %s7 = scalar_select 0, %s6, %s4
  loop: start=0, step=1, limit=4
  $region2: #{task_loss.8} parent=0 // loop_pre_header
    _
  $region3: #{task_loss.8} parent=0 // loop_header
    %s9 = sphi 0, %s13
    %p10 = scmp.ge.s32.totalorder %s9, 4
    %s19 = sphi 0, %s21
    %s22 = sphi 0, %s19
    %s23 = sphi 0, %s22
    %s39 = sphi 0, %s23
    %s43 = sphi 0, %s43
    %s45 = sphi 0, %s43
    %s46 = sphi 0, %s45
    %s60 = sphi 0, %s46
    %s64 = sphi 0, %s64
    %s66 = sphi 0, %s64
    %s67 = sphi 0, %s66
    %s81 = sphi 0, %s67
    %s87 = sphi 0, %s89
    %s90 = sphi 0, %s87
    %s91 = sphi 0, %s90
    %s107 = sphi 0, %s91
  $region4: #{task_loss.8} parent=0 // loop_header_branch
    %12 = sbr.rel (%p10) target = $region8
  $region5: #{task_loss.8} parent=0 // loop_body
    %s14 = ssub.s32 %s9, 1
    %s15 = ssub.s32 %s9, 2
    %s16 = sadd.s32 %s9, 1
    %s17 = ssub.s32 %s9, %s16
    %p18 = scmp.eq.s32.totalorder %s17, 0
    %s20 = sadd.s32 %s19, 1
    %s21 = scalar_select %p18, %s19, %s20
    %p24 = pneg %p18
    %p25 = scmp.eq.s32.totalorder %s9, 1
    %p26 = por %p24, %p25
    %p27 = scmp.ne.s32.totalorder %s19, %s22
    %p28 = scmp.eq.s32.totalorder %s9, 0
    %p29 = por %p27, %p28
    %p30 = scmp.ne.s32.totalorder %s19, %s22
    %p31 = scmp.eq.s32.totalorder %s14, 1
    %p32 = por %p30, %p31
    %p33 = scmp.ne.s32.totalorder %s22, %s23
    %p34 = scmp.eq.s32.totalorder %s14, 0
    %p35 = por %p33, %p34
    %p36 = scmp.ne.s32.totalorder %s22, %s23
    %p37 = scmp.eq.s32.totalorder %s15, 1
    %p38 = por %p36, %p37
    %p40 = scmp.ne.s32.totalorder %s23, %s39
    %p41 = scmp.eq.s32.totalorder %s15, 0
    %p42 = por %p40, %p41
    %s44 = sadd.s32 %s43, 1
    %p47 = scmp.eq.s32.totalorder %s9, 1
    %p48 = scmp.ne.s32.totalorder %s43, %s45
    %p49 = scmp.eq.s32.totalorder %s9, 0
    %p50 = por %p48, %p49
    %p51 = scmp.ne.s32.totalorder %s43, %s45
    %p52 = scmp.eq.s32.totalorder %s14, 1
    %p53 = por %p51, %p52
    %p54 = scmp.ne.s32.totalorder %s45, %s46
    %p55 = scmp.eq.s32.totalorder %s14, 0
    %p56 = por %p54, %p55
    %p57 = scmp.ne.s32.totalorder %s45, %s46
    %p58 = scmp.eq.s32.totalorder %s15, 1
    %p59 = por %p57, %p58
    %p61 = scmp.ne.s32.totalorder %s46, %s60
    %p62 = scmp.eq.s32.totalorder %s15, 0
    %p63 = por %p61, %p62
    %s65 = sadd.s32 %s64, 1
    %p68 = scmp.eq.s32.totalorder %s9, 1
    %p69 = scmp.ne.s32.totalorder %s64, %s66
    %p70 = scmp.eq.s32.totalorder %s9, 0
    %p71 = por %p69, %p70
    %p72 = scmp.ne.s32.totalorder %s64, %s66
    %p73 = scmp.eq.s32.totalorder %s14, 1
    %p74 = por %p72, %p73
    %p75 = scmp.ne.s32.totalorder %s66, %s67
    %p76 = scmp.eq.s32.totalorder %s14, 0
    %p77 = por %p75, %p76
    %p78 = scmp.ne.s32.totalorder %s66, %s67
    %p79 = scmp.eq.s32.totalorder %s15, 1
    %p80 = por %p78, %p79
    %p82 = scmp.ne.s32.totalorder %s67, %s81
    %p83 = scmp.eq.s32.totalorder %s15, 0
    %p84 = por %p82, %p83
    %s85 = ssub.s32 %s9, %s16
    %p86 = scmp.eq.s32.totalorder %s85, 0
    %s88 = sadd.s32 %s87, 1
    %s89 = scalar_select %p86, %s87, %s88
    %p92 = pneg %p86
    %p93 = scmp.eq.s32.totalorder %s9, 1
    %p94 = por %p92, %p93
    %p95 = scmp.ne.s32.totalorder %s87, %s90
    %p96 = scmp.eq.s32.totalorder %s9, 0
    %p97 = por %p95, %p96
    %p98 = scmp.ne.s32.totalorder %s87, %s90
    %p99 = scmp.eq.s32.totalorder %s14, 1
    %p100 = por %p98, %p99
    %p101 = scmp.ne.s32.totalorder %s90, %s91
    %p102 = scmp.eq.s32.totalorder %s14, 0
    %p103 = por %p101, %p102
    %p104 = scmp.ne.s32.totalorder %s90, %s91
    %p105 = scmp.eq.s32.totalorder %s15, 1
    %p106 = por %p104, %p105
    %p108 = scmp.ne.s32.totalorder %s91, %s107
    %p109 = scmp.eq.s32.totalorder %s15, 0
    %p110 = por %p108, %p109
    %p111 = scmp.le.s32.totalorder 1, %s9
    %p112 = scmp.lt.s32.totalorder %s9, 3
    %p113 = pnand %p111, %p112
    %p114 = pneg %p113
    // Predicated region
    $region9: #{task_loss.8} parent=5 // pred_check
      _
    $region10: #{task_loss.8} parent=5 // pred_check_branch
      %116 = sbr.rel (%p113) target = $region12
    $region11: #{task_loss.8} parent=5 // pred_region
      %s117 = ssub.s32 %s9, 1
      // Predicated region
      $region13: #{task_loss.8} parent=11 // pred_check
        %p118 = pneg %p56
      $region14: #{task_loss.8} parent=11 // pred_check_branch
        %120 = sbr.rel (%p118) target = $region16
      $region15: #{task_loss.8} parent=11 // pred_region
        _
      $region16: #{task_loss.8} parent=11 // pred_fallthru
        _
      // Predicated region
      $region17: #{task_loss.8} parent=11 // pred_check
        %p121 = pneg %p77
      $region18: #{task_loss.8} parent=11 // pred_check_branch
        %123 = sbr.rel (%p121) target = $region20
      $region19: #{task_loss.8} parent=11 // pred_region
        _
      $region20: #{task_loss.8} parent=11 // pred_fallthru
        _
    $region12: #{task_loss.8} parent=5 // pred_fallthru
      _
    %p124 = scmp.lt.s32.totalorder %s9, 2
    // Predicated region
    $region21: #{task_loss.8} parent=5 // pred_check
      %p125 = pneg %p124
    $region22: #{task_loss.8} parent=5 // pred_check_branch
      %127 = sbr.rel (%p125) target = $region24
    $region23: #{task_loss.8} parent=5 // pred_region
      // Predicated region
      $region25: #{task_loss.8} parent=23 // pred_check
        %p128 = pneg %p29
      $region26: #{task_loss.8} parent=23 // pred_check_branch
        %130 = sbr.rel (%p128) target = $region28
      $region27: #{task_loss.8} parent=23 // pred_region
        %s131 = smul.u32 2, %s9
        %p132 = scmp.lt.s32.totalorder %s131, 3
        %s133 = scalar_select %p132, %s131, 3
        %s134 = smul.addr %s133, 2
        %s135 = smul.addr %s134, 4
        %s136 = scalar_lea.vmem %s0, %s135
        %s137 = smul.u32 2, %s9
      $region28: #{task_loss.8} parent=23 // pred_fallthru
        _
    $region24: #{task_loss.8} parent=5 // pred_fallthru
      _
    %p138 = scmp.le.s32.totalorder 1, %s9
    %p139 = scmp.lt.s32.totalorder %s9, 3
    %p140 = pnand %p138, %p139
    %p141 = pneg %p140
    // Predicated region
    $region29: #{task_loss.8} parent=5 // pred_check
      _
    $region30: #{task_loss.8} parent=5 // pred_check_branch
      %143 = sbr.rel (%p140) target = $region32
    $region31: #{task_loss.8} parent=5 // pred_region
      %s144 = ssub.s32 %s9, 1
      %s145 = smul.u32 2, %s14
      %p146 = scmp.lt.s32.totalorder %s145, 3
      %s147 = scalar_select %p146, %s145, 3
      %s148 = smul.addr %s147, 2
      %s149 = smul.addr %s148, 4
      %s150 = scalar_lea.vmem %s0, %s149
      %p151 = pneg %p35
      %p152 = pneg %p32
      %p153 = pneg %p56
      %p154 = pneg %p53
      %p155 = pneg %p77
      %p156 = pneg %p74
      %p157 = pneg %p103
      %p158 = pneg %p100
      %p159 = scmp.lt.s32.totalorder %s14, 1
      %s160 = scalar_select %p159, %s14, 1
      %s161 = smul.addr %s160, 4
      %s162 = scalar_lea.vmem %s3, %s161
      %s163 = smul.u32 2, %s14
      %p164 = scmp.lt.s32.totalorder %s163, 3
      %s165 = scalar_select %p164, %s163, 3
      %s166 = smul.addr %s165, 2
      %s167 = smul.addr %s166, 4
      %s168 = scalar_lea.vmem %s0, %s167
      %s169 = smul.u32 2, %s14
      %p170 = scmp.lt.s32.totalorder %s14, 1
      %s171 = scalar_select %p170, %s14, 1
      %s172 = smul.addr %s171, 4
      %s173 = scalar_lea.vmem %s3, %s172
      %v175 = vld [vmem:[%s1] sm:$0xf]
      %v176 = vld [vmem:[%s1 + $0x4] sm:$0xf]
      %v177 = vld [vmem:[%s1 + $0x8] sm:$0xf]
      %v178 = vld [vmem:[%s1 + $0xc] sm:$0xf]
      %v179 = vld [vmem:[%s1 + $0x10] sm:$0xf]
      %v180 = vld [vmem:[%s1 + $0x14] sm:$0xf]
      %v181 = vld [vmem:[%s1 + $0x18] sm:$0xf]
      %v182 = vld [vmem:[%s1 + $0x1c] sm:$0xf]
      %v183 = vld [vmem:[%s1 + $0x20] sm:$0xf]
      %v184 = vld [vmem:[%s1 + $0x24] sm:$0xf]
      %v185 = vld [vmem:[%s1 + $0x28] sm:$0xf]
      %v186 = vld [vmem:[%s1 + $0x2c] sm:$0xf]
      %v187 = vld [vmem:[%s1 + $0x30] sm:$0xf]
      %v188 = vld [vmem:[%s1 + $0x34] sm:$0xf]
      %v189 = vld [vmem:[%s1 + $0x38] sm:$0xf]
      %v190 = vld [vmem:[%s1 + $0x3c] sm:$0xf]
      %v191 = vld [vmem:[%s1 + $0x40] sm:$0xf]
      %v192 = vld [vmem:[%s1 + $0x44] sm:$0xf]
      %v193 = vld [vmem:[%s1 + $0x48] sm:$0xf]
      %v194 = vld [vmem:[%s1 + $0x4c] sm:$0xf]
      %v195 = vld [vmem:[%s1 + $0x50] sm:$0xf]
      %v196 = vld [vmem:[%s1 + $0x54] sm:$0xf]
      %v197 = vld [vmem:[%s1 + $0x58] sm:$0xf]
      %v198 = vld [vmem:[%s1 + $0x5c] sm:$0xf]
      %v199 = vld [vmem:[%s1 + $0x60] sm:$0xf]
      %v200 = vld [vmem:[%s1 + $0x64] sm:$0xf]
      %v201 = vld [vmem:[%s1 + $0x68] sm:$0xf]
      %v202 = vld [vmem:[%s1 + $0x6c] sm:$0xf]
      %v203 = vld [vmem:[%s1 + $0x70] sm:$0xf]
      %v204 = vld [vmem:[%s1 + $0x74] sm:$0xf]
      %v205 = vld [vmem:[%s1 + $0x78] sm:$0xf]
      %v206 = vld [vmem:[%s1 + $0x7c] sm:$0xf]
      %v207 = vld [vmem:[%s1 + $0x80] sm:$0xf]
      %v208 = vld [vmem:[%s1 + $0x84] sm:$0xf]
      %v209 = vld [vmem:[%s1 + $0x88] sm:$0xf]
      %v210 = vld [vmem:[%s1 + $0x8c] sm:$0xf]
      %v211 = vld [vmem:[%s1 + $0x90] sm:$0xf]
      %v212 = vld [vmem:[%s1 + $0x94] sm:$0xf]
      %v213 = vld [vmem:[%s1 + $0x98] sm:$0xf]
      %v214 = vld [vmem:[%s1 + $0x9c] sm:$0xf]
      %v215 = vld [vmem:[%s1 + $0xa0] sm:$0xf]
      %v216 = vld [vmem:[%s1 + $0xa4] sm:$0xf]
      %v217 = vld [vmem:[%s1 + $0xa8] sm:$0xf]
      %v218 = vld [vmem:[%s1 + $0xac] sm:$0xf]
      %v219 = vld [vmem:[%s1 + $0xb0] sm:$0xf]
      %v220 = vld [vmem:[%s1 + $0xb4] sm:$0xf]
      %v221 = vld [vmem:[%s1 + $0xb8] sm:$0xf]
      %v222 = vld [vmem:[%s1 + $0xbc] sm:$0xf]
      %v223 = vld [vmem:[%s1 + $0xc0] sm:$0xf]
      %v224 = vld [vmem:[%s1 + $0xc4] sm:$0xf]
      %v225 = vld [vmem:[%s1 + $0xc8] sm:$0xf]
      %v226 = vld [vmem:[%s1 + $0xcc] sm:$0xf]
      %v227 = vld [vmem:[%s1 + $0xd0] sm:$0xf]
      %v228 = vld [vmem:[%s1 + $0xd4] sm:$0xf]
      %v229 = vld [vmem:[%s1 + $0xd8] sm:$0xf]
      %v230 = vld [vmem:[%s1 + $0xdc] sm:$0xf]
      %v231 = vld [vmem:[%s1 + $0xe0] sm:$0xf]
      %v232 = vld [vmem:[%s1 + $0xe4] sm:$0xf]
      %v233 = vld [vmem:[%s1 + $0xe8] sm:$0xf]
      %v234 = vld [vmem:[%s1 + $0xec] sm:$0xf]
      %v235 = vld [vmem:[%s1 + $0xf0] sm:$0xf]
      %v236 = vld [vmem:[%s1 + $0xf4] sm:$0xf]
      %v237 = vld [vmem:[%s1 + $0xf8] sm:$0xf]
      %v238 = vld [vmem:[%s1 + $0xfc] sm:$0xf]
      %v239 = vld [vmem:[%s2] sm:$0x1]
      %v240 = vld [vmem:[%s168] sm:$0x11]
      %v241 = vld [vmem:[%s168] sm:$0x22]
      %v243 = vunpack.c.l.b16 %v241
      %v244 = vunpack.c.h.b16 %v241
      %v245 = vpack.c.b16 %v243, %v243
      %v246 = vpack.c.b16 %v244, %v244
      %v247 = vrot.slane %v245, 1
      %v248 = vrot.slane %v246, 1
      %v283 = vunpack.c.l.b16 %v207
      %v284 = vunpack.c.l.b16 %v208
      %v285 = vunpack.c.l.b16 %v209
      %v286 = vunpack.c.l.b16 %v210
      %v287 = vunpack.c.l.b16 %v211
      %v288 = vunpack.c.l.b16 %v212
      %v289 = vunpack.c.l.b16 %v213
      %v290 = vunpack.c.l.b16 %v214
      %v291 = vunpack.c.l.b16 %v215
      %v292 = vunpack.c.l.b16 %v216
      %v293 = vunpack.c.l.b16 %v217
      %v294 = vunpack.c.l.b16 %v218
      %v295 = vunpack.c.l.b16 %v219
      %v296 = vunpack.c.l.b16 %v220
      %v297 = vunpack.c.l.b16 %v221
      %v298 = vunpack.c.l.b16 %v222
      %v299 = vunpack.c.l.b16 %v223
      %v300 = vunpack.c.l.b16 %v224
      %v301 = vunpack.c.l.b16 %v225
      %v302 = vunpack.c.l.b16 %v226
      %v303 = vunpack.c.l.b16 %v227
      %v304 = vunpack.c.l.b16 %v228
      %v305 = vunpack.c.l.b16 %v229
      %v306 = vunpack.c.l.b16 %v230
      %v307 = vunpack.c.l.b16 %v231
      %v308 = vunpack.c.l.b16 %v232
      %v309 = vunpack.c.l.b16 %v233
      %v310 = vunpack.c.l.b16 %v234
      %v311 = vunpack.c.l.b16 %v235
      %v312 = vunpack.c.l.b16 %v236
      %v313 = vunpack.c.l.b16 %v237
      %v314 = vunpack.c.l.b16 %v238
      %v315 = vpack.c.b16 %v284, %v283
      %v316 = vpack.c.b16 %v286, %v285
      %v317 = vpack.c.b16 %v288, %v287
      %v318 = vpack.c.b16 %v290, %v289
      %v319 = vpack.c.b16 %v292, %v291
      %v320 = vpack.c.b16 %v294, %v293
      %v321 = vpack.c.b16 %v296, %v295
      %v322 = vpack.c.b16 %v298, %v297
      %v323 = vpack.c.b16 %v300, %v299
      %v324 = vpack.c.b16 %v302, %v301
      %v325 = vpack.c.b16 %v304, %v303
      %v326 = vpack.c.b16 %v306, %v305
      %v327 = vpack.c.b16 %v308, %v307
      %v328 = vpack.c.b16 %v310, %v309
      %v329 = vpack.c.b16 %v312, %v311
      %v330 = vpack.c.b16 %v314, %v313
      %347 = vmatprep.subr.bf16.mxu0 0
      %348 = vmatpush1.bf16.msra.mxu0 %v322
      %349 = vmatprep.subr.bf16.mxu0 0
      %350 = vmatpush1.bf16.msra.mxu0 %v321
      %351 = vmatprep.subr.bf16.mxu0 0
      %352 = vmatpush1.bf16.msra.mxu0 %v320
      %353 = vmatprep.subr.bf16.mxu0 0
      %354 = vmatpush1.bf16.msra.mxu0 %v319
      %355 = vmatprep.subr.bf16.mxu0 0
      %356 = vmatpush1.bf16.msra.mxu0 %v318
      %357 = vmatprep.subr.bf16.mxu0 0
      %358 = vmatpush1.bf16.msra.mxu0 %v317
      %359 = vmatprep.subr.bf16.mxu0 0
      %360 = vmatpush1.bf16.msra.mxu0 %v316
      %361 = vmatprep.subr.bf16.mxu0 0
      %362 = vmatpush1.bf16.msra.mxu0 %v315
      %363 = vmatprep.subr.bf16.mxu0 0
      %364 = vmatpush2.bf16.msra.mxu0 %v330
      %365 = vmatprep.subr.bf16.mxu0 0
      %366 = vmatpush2.bf16.msra.mxu0 %v329
      %367 = vmatprep.subr.bf16.mxu0 0
      %368 = vmatpush2.bf16.msra.mxu0 %v328
      %369 = vmatprep.subr.bf16.mxu0 0
      %370 = vmatpush2.bf16.msra.mxu0 %v327
      %371 = vmatprep.subr.bf16.mxu0 0
      %372 = vmatpush2.bf16.msra.mxu0 %v326
      %373 = vmatprep.subr.bf16.mxu0 0
      %374 = vmatpush2.bf16.msra.mxu0 %v325
      %375 = vmatprep.subr.bf16.mxu0 0
      %376 = vmatpush2.bf16.msra.mxu0 %v324
      %377 = vmatprep.subr.bf16.mxu0 0
      %378 = vmatpush2.bf16.msra.mxu0 %v323
      %379 = vmatprep.mubr.bf16.mxu0 %v248
      %380 = vmatmul.mubr.bf16.gmra.mxu0 %v247
      %v381 = vpop.f32.mrf.mxu0
      %v382 = vadd.f32 0.0, %v381
      %v383 = vpop.f32.mrf.mxu0
      %v384 = vpop.f32.mrf.mxu0
      %v385 = vpop.f32.mrf.mxu0
      %386 = vdwg.mxu0
      %v388 = vunpack.c.l.b16 %v240
      %v389 = vunpack.c.h.b16 %v240
      %v390 = vpack.c.b16 %v388, %v388
      %v391 = vpack.c.b16 %v389, %v389
      %v426 = vunpack.c.l.b16 %v175
      %v427 = vunpack.c.l.b16 %v176
      %v428 = vunpack.c.l.b16 %v177
      %v429 = vunpack.c.l.b16 %v178
      %v430 = vunpack.c.l.b16 %v179
      %v431 = vunpack.c.l.b16 %v180
      %v432 = vunpack.c.l.b16 %v181
      %v433 = vunpack.c.l.b16 %v182
      %v434 = vunpack.c.l.b16 %v183
      %v435 = vunpack.c.l.b16 %v184
      %v436 = vunpack.c.l.b16 %v185
      %v437 = vunpack.c.l.b16 %v186
      %v438 = vunpack.c.l.b16 %v187
      %v439 = vunpack.c.l.b16 %v188
      %v440 = vunpack.c.l.b16 %v189
      %v441 = vunpack.c.l.b16 %v190
      %v442 = vunpack.c.l.b16 %v191
      %v443 = vunpack.c.l.b16 %v192
      %v444 = vunpack.c.l.b16 %v193
      %v445 = vunpack.c.l.b16 %v194
      %v446 = vunpack.c.l.b16 %v195
      %v447 = vunpack.c.l.b16 %v196
      %v448 = vunpack.c.l.b16 %v197
      %v449 = vunpack.c.l.b16 %v198
      %v450 = vunpack.c.l.b16 %v199
      %v451 = vunpack.c.l.b16 %v200
      %v452 = vunpack.c.l.b16 %v201
      %v453 = vunpack.c.l.b16 %v202
      %v454 = vunpack.c.l.b16 %v203
      %v455 = vunpack.c.l.b16 %v204
      %v456 = vunpack.c.l.b16 %v205
      %v457 = vunpack.c.l.b16 %v206
      %v458 = vpack.c.b16 %v427, %v426
      %v459 = vpack.c.b16 %v429, %v428
      %v460 = vpack.c.b16 %v431, %v430
      %v461 = vpack.c.b16 %v433, %v432
      %v462 = vpack.c.b16 %v435, %v434
      %v463 = vpack.c.b16 %v437, %v436
      %v464 = vpack.c.b16 %v439, %v438
      %v465 = vpack.c.b16 %v441, %v440
      %v466 = vpack.c.b16 %v443, %v442
      %v467 = vpack.c.b16 %v445, %v444
      %v468 = vpack.c.b16 %v447, %v446
      %v469 = vpack.c.b16 %v449, %v448
      %v470 = vpack.c.b16 %v451, %v450
      %v471 = vpack.c.b16 %v453, %v452
      %v472 = vpack.c.b16 %v455, %v454
      %v473 = vpack.c.b16 %v457, %v456
      %490 = vmatprep.subr.bf16.mxu0 0
      %491 = vmatpush1.bf16.msra.mxu0 %v465
      %492 = vmatprep.subr.bf16.mxu0 0
      %493 = vmatpush1.bf16.msra.mxu0 %v464
      %494 = vmatprep.subr.bf16.mxu0 0
      %495 = vmatpush1.bf16.msra.mxu0 %v463
      %496 = vmatprep.subr.bf16.mxu0 0
      %497 = vmatpush1.bf16.msra.mxu0 %v462
      %498 = vmatprep.subr.bf16.mxu0 0
      %499 = vmatpush1.bf16.msra.mxu0 %v461
      %500 = vmatprep.subr.bf16.mxu0 0
      %501 = vmatpush1.bf16.msra.mxu0 %v460
      %502 = vmatprep.subr.bf16.mxu0 0
      %503 = vmatpush1.bf16.msra.mxu0 %v459
      %504 = vmatprep.subr.bf16.mxu0 0
      %505 = vmatpush1.bf16.msra.mxu0 %v458
      %506 = vmatprep.subr.bf16.mxu0 0
      %507 = vmatpush2.bf16.msra.mxu0 %v473
      %508 = vmatprep.subr.bf16.mxu0 0
      %509 = vmatpush2.bf16.msra.mxu0 %v472
      %510 = vmatprep.subr.bf16.mxu0 0
      %511 = vmatpush2.bf16.msra.mxu0 %v471
      %512 = vmatprep.subr.bf16.mxu0 0
      %513 = vmatpush2.bf16.msra.mxu0 %v470
      %514 = vmatprep.subr.bf16.mxu0 0
      %515 = vmatpush2.bf16.msra.mxu0 %v469
      %516 = vmatprep.subr.bf16.mxu0 0
      %517 = vmatpush2.bf16.msra.mxu0 %v468
      %518 = vmatprep.subr.bf16.mxu0 0
      %519 = vmatpush2.bf16.msra.mxu0 %v467
      %520 = vmatprep.subr.bf16.mxu0 0
      %521 = vmatpush2.bf16.msra.mxu0 %v466
      %522 = vmatprep.mubr.bf16.mxu0 %v391
      %523 = vmatmul.mubr.bf16.gmra.mxu0 %v390
      %v524 = vpop.f32.mrf.mxu0
      %v525 = vadd.f32 %v382, %v524
      %v526 = vpop.f32.mrf.mxu0
      %v527 = vpop.f32.mrf.mxu0
      %v528 = vpop.f32.mrf.mxu0
      %529 = vdwg.mxu0
      %v531 = vlaneseq
      %v532 = vshrl.u32 %v531, 7
      %v533 = vsub.s32 0, %v532
      %v534 = vrot.slane %v239, %v533
      %v536 = vadd.f32 %v525, %v534
      %v537 = vmax.f32 %v536, 0.0
      %v538 = vpack.c.bf16 %v537, %v537
      %539 = vst [vmem:[%s173] sm:$0x1] %v538
      %v540 = vld [vmem:[%s168] sm:$0x44]
      %v541 = vld [vmem:[%s168] sm:$0x88]
      %v543 = vunpack.c.l.b16 %v541
      %v544 = vunpack.c.h.b16 %v541
      %v545 = vpack.c.b16 %v543, %v543
      %v546 = vpack.c.b16 %v544, %v544
      %v547 = vrot.slane %v545, 3
      %v548 = vrot.slane %v546, 3
      %551 = vmatprep.subr.bf16.mxu0 0
      %552 = vmatpush1.bf16.msra.mxu0 %v322
      %553 = vmatprep.subr.bf16.mxu0 0
      %554 = vmatpush1.bf16.msra.mxu0 %v321
      %555 = vmatprep.subr.bf16.mxu0 0
      %556 = vmatpush1.bf16.msra.mxu0 %v320
      %557 = vmatprep.subr.bf16.mxu0 0
      %558 = vmatpush1.bf16.msra.mxu0 %v319
      %559 = vmatprep.subr.bf16.mxu0 0
      %560 = vmatpush1.bf16.msra.mxu0 %v318
      %561 = vmatprep.subr.bf16.mxu0 0
      %562 = vmatpush1.bf16.msra.mxu0 %v317
      %563 = vmatprep.subr.bf16.mxu0 0
      %564 = vmatpush1.bf16.msra.mxu0 %v316
      %565 = vmatprep.subr.bf16.mxu0 0
      %566 = vmatpush1.bf16.msra.mxu0 %v315
      %567 = vmatprep.subr.bf16.mxu0 0
      %568 = vmatpush2.bf16.msra.mxu0 %v330
      %569 = vmatprep.subr.bf16.mxu0 0
      %570 = vmatpush2.bf16.msra.mxu0 %v329
      %571 = vmatprep.subr.bf16.mxu0 0
      %572 = vmatpush2.bf16.msra.mxu0 %v328
      %573 = vmatprep.subr.bf16.mxu0 0
      %574 = vmatpush2.bf16.msra.mxu0 %v327
      %575 = vmatprep.subr.bf16.mxu0 0
      %576 = vmatpush2.bf16.msra.mxu0 %v326
      %577 = vmatprep.subr.bf16.mxu0 0
      %578 = vmatpush2.bf16.msra.mxu0 %v325
      %579 = vmatprep.subr.bf16.mxu0 0
      %580 = vmatpush2.bf16.msra.mxu0 %v324
      %581 = vmatprep.subr.bf16.mxu0 0
      %582 = vmatpush2.bf16.msra.mxu0 %v323
      %583 = vmatprep.mubr.bf16.mxu0 %v548
      %584 = vmatmul.mubr.bf16.gmra.mxu0 %v547
      %v585 = vpop.f32.mrf.mxu0
      %v586 = vadd.f32 0.0, %v585
      %v587 = vpop.f32.mrf.mxu0
      %v588 = vpop.f32.mrf.mxu0
      %v589 = vpop.f32.mrf.mxu0
      %590 = vdwg.mxu0
      %v592 = vunpack.c.l.b16 %v540
      %v593 = vunpack.c.h.b16 %v540
      %v594 = vpack.c.b16 %v592, %v592
      %v595 = vpack.c.b16 %v593, %v593
      %v596 = vrot.slane %v594, 2
      %v597 = vrot.slane %v595, 2
      %600 = vmatprep.subr.bf16.mxu0 0
      %601 = vmatpush1.bf16.msra.mxu0 %v465
      %602 = vmatprep.subr.bf16.mxu0 0
      %603 = vmatpush1.bf16.msra.mxu0 %v464
      %604 = vmatprep.subr.bf16.mxu0 0
      %605 = vmatpush1.bf16.msra.mxu0 %v463
      %606 = vmatprep.subr.bf16.mxu0 0
      %607 = vmatpush1.bf16.msra.mxu0 %v462
      %608 = vmatprep.subr.bf16.mxu0 0
      %609 = vmatpush1.bf16.msra.mxu0 %v461
      %610 = vmatprep.subr.bf16.mxu0 0
      %611 = vmatpush1.bf16.msra.mxu0 %v460
      %612 = vmatprep.subr.bf16.mxu0 0
      %613 = vmatpush1.bf16.msra.mxu0 %v459
      %614 = vmatprep.subr.bf16.mxu0 0
      %615 = vmatpush1.bf16.msra.mxu0 %v458
      %616 = vmatprep.subr.bf16.mxu0 0
      %617 = vmatpush2.bf16.msra.mxu0 %v473
      %618 = vmatprep.subr.bf16.mxu0 0
      %619 = vmatpush2.bf16.msra.mxu0 %v472
      %620 = vmatprep.subr.bf16.mxu0 0
      %621 = vmatpush2.bf16.msra.mxu0 %v471
      %622 = vmatprep.subr.bf16.mxu0 0
      %623 = vmatpush2.bf16.msra.mxu0 %v470
      %624 = vmatprep.subr.bf16.mxu0 0
      %625 = vmatpush2.bf16.msra.mxu0 %v469
      %626 = vmatprep.subr.bf16.mxu0 0
      %627 = vmatpush2.bf16.msra.mxu0 %v468
      %628 = vmatprep.subr.bf16.mxu0 0
      %629 = vmatpush2.bf16.msra.mxu0 %v467
      %630 = vmatprep.subr.bf16.mxu0 0
      %631 = vmatpush2.bf16.msra.mxu0 %v466
      %632 = vmatprep.mubr.bf16.mxu0 %v597
      %633 = vmatmul.mubr.bf16.gmra.mxu0 %v596
      %v634 = vpop.f32.mrf.mxu0
      %v635 = vadd.f32 %v586, %v634
      %v636 = vpop.f32.mrf.mxu0
      %v637 = vpop.f32.mrf.mxu0
      %v638 = vpop.f32.mrf.mxu0
      %639 = vdwg.mxu0
      %v640 = vadd.f32 %v635, %v534
      %v641 = vmax.f32 %v640, 0.0
      %v642 = vpack.c.bf16 %v641, %v641
      %v644 = vunpack.c.l.b16 %v642
      %v645 = vpack.c.b16 %v644, %v644
      %v646 = vrot.slane %v645, 7
      %648 = vst [vmem:[%s173] sm:$0x2] %v646
      %v649 = vld [vmem:[%s168 + $0x8] sm:$0x11]
      %v650 = vld [vmem:[%s168 + $0x8] sm:$0x22]
      %v652 = vunpack.c.l.b16 %v650
      %v653 = vunpack.c.h.b16 %v650
      %v654 = vpack.c.b16 %v652, %v652
      %v655 = vpack.c.b16 %v653, %v653
      %v656 = vrot.slane %v654, 1
      %v657 = vrot.slane %v655, 1
      %660 = vmatprep.subr.bf16.mxu0 0
      %661 = vmatpush1.bf16.msra.mxu0 %v322
      %662 = vmatprep.subr.bf16.mxu0 0
      %663 = vmatpush1.bf16.msra.mxu0 %v321
      %664 = vmatprep.subr.bf16.mxu0 0
      %665 = vmatpush1.bf16.msra.mxu0 %v320
      %666 = vmatprep.subr.bf16.mxu0 0
      %667 = vmatpush1.bf16.msra.mxu0 %v319
      %668 = vmatprep.subr.bf16.mxu0 0
      %669 = vmatpush1.bf16.msra.mxu0 %v318
      %670 = vmatprep.subr.bf16.mxu0 0
      %671 = vmatpush1.bf16.msra.mxu0 %v317
      %672 = vmatprep.subr.bf16.mxu0 0
      %673 = vmatpush1.bf16.msra.mxu0 %v316
      %674 = vmatprep.subr.bf16.mxu0 0
      %675 = vmatpush1.bf16.msra.mxu0 %v315
      %676 = vmatprep.subr.bf16.mxu0 0
      %677 = vmatpush2.bf16.msra.mxu0 %v330
      %678 = vmatprep.subr.bf16.mxu0 0
      %679 = vmatpush2.bf16.msra.mxu0 %v329
      %680 = vmatprep.subr.bf16.mxu0 0
      %681 = vmatpush2.bf16.msra.mxu0 %v328
      %682 = vmatprep.subr.bf16.mxu0 0
      %683 = vmatpush2.bf16.msra.mxu0 %v327
      %684 = vmatprep.subr.bf16.mxu0 0
      %685 = vmatpush2.bf16.msra.mxu0 %v326
      %686 = vmatprep.subr.bf16.mxu0 0
      %687 = vmatpush2.bf16.msra.mxu0 %v325
      %688 = vmatprep.subr.bf16.mxu0 0
      %689 = vmatpush2.bf16.msra.mxu0 %v324
      %690 = vmatprep.subr.bf16.mxu0 0
      %691 = vmatpush2.bf16.msra.mxu0 %v323
      %692 = vmatprep.mubr.bf16.mxu0 %v657
      %693 = vmatmul.mubr.bf16.gmra.mxu0 %v656
      %v694 = vpop.f32.mrf.mxu0
      %v695 = vadd.f32 0.0, %v694
      %v696 = vpop.f32.mrf.mxu0
      %v697 = vpop.f32.mrf.mxu0
      %v698 = vpop.f32.mrf.mxu0
      %699 = vdwg.mxu0
      %v701 = vunpack.c.l.b16 %v649
      %v702 = vunpack.c.h.b16 %v649
      %v703 = vpack.c.b16 %v701, %v701
      %v704 = vpack.c.b16 %v702, %v702
      %707 = vmatprep.subr.bf16.mxu0 0
      %708 = vmatpush1.bf16.msra.mxu0 %v465
      %709 = vmatprep.subr.bf16.mxu0 0
      %710 = vmatpush1.bf16.msra.mxu0 %v464
      %711 = vmatprep.subr.bf16.mxu0 0
      %712 = vmatpush1.bf16.msra.mxu0 %v463
      %713 = vmatprep.subr.bf16.mxu0 0
      %714 = vmatpush1.bf16.msra.mxu0 %v462
      %715 = vmatprep.subr.bf16.mxu0 0
      %716 = vmatpush1.bf16.msra.mxu0 %v461
      %717 = vmatprep.subr.bf16.mxu0 0
      %718 = vmatpush1.bf16.msra.mxu0 %v460
      %719 = vmatprep.subr.bf16.mxu0 0
      %720 = vmatpush1.bf16.msra.mxu0 %v459
      %721 = vmatprep.subr.bf16.mxu0 0
      %722 = vmatpush1.bf16.msra.mxu0 %v458
      %723 = vmatprep.subr.bf16.mxu0 0
      %724 = vmatpush2.bf16.msra.mxu0 %v473
      %725 = vmatprep.subr.bf16.mxu0 0
      %726 = vmatpush2.bf16.msra.mxu0 %v472
      %727 = vmatprep.subr.bf16.mxu0 0
      %728 = vmatpush2.bf16.msra.mxu0 %v471
      %729 = vmatprep.subr.bf16.mxu0 0
      %730 = vmatpush2.bf16.msra.mxu0 %v470
      %731 = vmatprep.subr.bf16.mxu0 0
      %732 = vmatpush2.bf16.msra.mxu0 %v469
      %733 = vmatprep.subr.bf16.mxu0 0
      %734 = vmatpush2.bf16.msra.mxu0 %v468
      %735 = vmatprep.subr.bf16.mxu0 0
      %736 = vmatpush2.bf16.msra.mxu0 %v467
      %737 = vmatprep.subr.bf16.mxu0 0
      %738 = vmatpush2.bf16.msra.mxu0 %v466
      %739 = vmatprep.mubr.bf16.mxu0 %v704
      %740 = vmatmul.mubr.bf16.gmra.mxu0 %v703
      %v741 = vpop.f32.mrf.mxu0
      %v742 = vadd.f32 %v695, %v741
      %v743 = vpop.f32.mrf.mxu0
      %v744 = vpop.f32.mrf.mxu0
      %v745 = vpop.f32.mrf.mxu0
      %746 = vdwg.mxu0
      %v747 = vadd.f32 %v742, %v534
      %v748 = vmax.f32 %v747, 0.0
      %v749 = vpack.c.bf16 %v748, %v748
      %v751 = vunpack.c.l.b16 %v749
      %v752 = vpack.c.b16 %v751, %v751
      %v753 = vrot.slane %v752, 6
      %755 = vst [vmem:[%s173] sm:$0x4] %v753
      %v756 = vld [vmem:[%s168 + $0x8] sm:$0x44]
      %v757 = vld [vmem:[%s168 + $0x8] sm:$0x88]
      %v759 = vunpack.c.l.b16 %v757
      %v760 = vunpack.c.h.b16 %v757
      %v761 = vpack.c.b16 %v759, %v759
      %v762 = vpack.c.b16 %v760, %v760
      %v763 = vrot.slane %v761, 3
      %v764 = vrot.slane %v762, 3
      %767 = vmatprep.subr.bf16.mxu0 0
      %768 = vmatpush1.bf16.msra.mxu0 %v322
      %769 = vmatprep.subr.bf16.mxu0 0
      %770 = vmatpush1.bf16.msra.mxu0 %v321
      %771 = vmatprep.subr.bf16.mxu0 0
      %772 = vmatpush1.bf16.msra.mxu0 %v320
      %773 = vmatprep.subr.bf16.mxu0 0
      %774 = vmatpush1.bf16.msra.mxu0 %v319
      %775 = vmatprep.subr.bf16.mxu0 0
      %776 = vmatpush1.bf16.msra.mxu0 %v318
      %777 = vmatprep.subr.bf16.mxu0 0
      %778 = vmatpush1.bf16.msra.mxu0 %v317
      %779 = vmatprep.subr.bf16.mxu0 0
      %780 = vmatpush1.bf16.msra.mxu0 %v316
      %781 = vmatprep.subr.bf16.mxu0 0
      %782 = vmatpush1.bf16.msra.mxu0 %v315
      %783 = vmatprep.subr.bf16.mxu0 0
      %784 = vmatpush2.bf16.msra.mxu0 %v330
      %785 = vmatprep.subr.bf16.mxu0 0
      %786 = vmatpush2.bf16.msra.mxu0 %v329
      %787 = vmatprep.subr.bf16.mxu0 0
      %788 = vmatpush2.bf16.msra.mxu0 %v328
      %789 = vmatprep.subr.bf16.mxu0 0
      %790 = vmatpush2.bf16.msra.mxu0 %v327
      %791 = vmatprep.subr.bf16.mxu0 0
      %792 = vmatpush2.bf16.msra.mxu0 %v326
      %793 = vmatprep.subr.bf16.mxu0 0
      %794 = vmatpush2.bf16.msra.mxu0 %v325
      %795 = vmatprep.subr.bf16.mxu0 0
      %796 = vmatpush2.bf16.msra.mxu0 %v324
      %797 = vmatprep.subr.bf16.mxu0 0
      %798 = vmatpush2.bf16.msra.mxu0 %v323
      %799 = vmatprep.mubr.bf16.mxu0 %v764
      %800 = vmatmul.mubr.bf16.gmra.mxu0 %v763
      %v801 = vpop.f32.mrf.mxu0
      %v802 = vadd.f32 0.0, %v801
      %v803 = vpop.f32.mrf.mxu0
      %v804 = vpop.f32.mrf.mxu0
      %v805 = vpop.f32.mrf.mxu0
      %806 = vdwg.mxu0
      %v808 = vunpack.c.l.b16 %v756
      %v809 = vunpack.c.h.b16 %v756
      %v810 = vpack.c.b16 %v808, %v808
      %v811 = vpack.c.b16 %v809, %v809
      %v812 = vrot.slane %v810, 2
      %v813 = vrot.slane %v811, 2
      %816 = vmatprep.subr.bf16.mxu0 0
      %817 = vmatpush1.bf16.msra.mxu0 %v465
      %818 = vmatprep.subr.bf16.mxu0 0
      %819 = vmatpush1.bf16.msra.mxu0 %v464
      %820 = vmatprep.subr.bf16.mxu0 0
      %821 = vmatpush1.bf16.msra.mxu0 %v463
      %822 = vmatprep.subr.bf16.mxu0 0
      %823 = vmatpush1.bf16.msra.mxu0 %v462
      %824 = vmatprep.subr.bf16.mxu0 0
      %825 = vmatpush1.bf16.msra.mxu0 %v461
      %826 = vmatprep.subr.bf16.mxu0 0
      %827 = vmatpush1.bf16.msra.mxu0 %v460
      %828 = vmatprep.subr.bf16.mxu0 0
      %829 = vmatpush1.bf16.msra.mxu0 %v459
      %830 = vmatprep.subr.bf16.mxu0 0
      %831 = vmatpush1.bf16.msra.mxu0 %v458
      %832 = vmatprep.subr.bf16.mxu0 0
      %833 = vmatpush2.bf16.msra.mxu0 %v473
      %834 = vmatprep.subr.bf16.mxu0 0
      %835 = vmatpush2.bf16.msra.mxu0 %v472
      %836 = vmatprep.subr.bf16.mxu0 0
      %837 = vmatpush2.bf16.msra.mxu0 %v471
      %838 = vmatprep.subr.bf16.mxu0 0
      %839 = vmatpush2.bf16.msra.mxu0 %v470
      %840 = vmatprep.subr.bf16.mxu0 0
      %841 = vmatpush2.bf16.msra.mxu0 %v469
      %842 = vmatprep.subr.bf16.mxu0 0
      %843 = vmatpush2.bf16.msra.mxu0 %v468
      %844 = vmatprep.subr.bf16.mxu0 0
      %845 = vmatpush2.bf16.msra.mxu0 %v467
      %846 = vmatprep.subr.bf16.mxu0 0
      %847 = vmatpush2.bf16.msra.mxu0 %v466
      %848 = vmatprep.mubr.bf16.mxu0 %v813
      %849 = vmatmul.mubr.bf16.gmra.mxu0 %v812
      %v850 = vpop.f32.mrf.mxu0
      %v851 = vadd.f32 %v802, %v850
      %v852 = vpop.f32.mrf.mxu0
      %v853 = vpop.f32.mrf.mxu0
      %v854 = vpop.f32.mrf.mxu0
      %855 = vdwg.mxu0
      %v856 = vadd.f32 %v851, %v534
      %v857 = vmax.f32 %v856, 0.0
      %v858 = vpack.c.bf16 %v857, %v857
      %v860 = vunpack.c.l.b16 %v858
      %v861 = vpack.c.b16 %v860, %v860
      %v862 = vrot.slane %v861, 5
      %864 = vst [vmem:[%s173] sm:$0x8] %v862
      %p865 = scmp.lt.s32.totalorder %s14, 1
      %s866 = scalar_select %p865, %s14, 1
      %s867 = smul.addr %s866, 4
      %s868 = scalar_lea.vmem %s3, %s867
      // Predicated region
      $region33: #{task_loss.8} parent=31 // pred_check
        %p869 = pneg %p100
      $region34: #{task_loss.8} parent=31 // pred_check_branch
        %871 = sbr.rel (%p869) target = $region36
      $region35: #{task_loss.8} parent=31 // pred_region
        _
      $region36: #{task_loss.8} parent=31 // pred_fallthru
        _
    $region32: #{task_loss.8} parent=5 // pred_fallthru
      _
    %p872 = scmp.le.s32.totalorder 2, %s9
    // Predicated region
    $region37: #{task_loss.8} parent=5 // pred_check
      %p873 = pneg %p872
    $region38: #{task_loss.8} parent=5 // pred_check_branch
      %875 = sbr.rel (%p873) target = $region40
    $region39: #{task_loss.8} parent=5 // pred_region
      %s876 = ssub.s32 %s9, 2
      // Predicated region
      $region41: #{task_loss.8} parent=39 // pred_check
        %p877 = pneg %p106
      $region42: #{task_loss.8} parent=39 // pred_check_branch
        %879 = sbr.rel (%p877) target = $region44
      $region43: #{task_loss.8} parent=39 // pred_region
        %p880 = scmp.lt.s32.totalorder %s15, 1
        %s881 = scalar_select %p880, %s15, 1
        %s882 = smul.addr %s881, 4
        %s883 = scalar_lea.vmem %s3, %s882
      $region44: #{task_loss.8} parent=39 // pred_fallthru
        _
    $region40: #{task_loss.8} parent=5 // pred_fallthru
      _
  $region6: #{task_loss.8} parent=0 // loop_footer
    %s13 = sadd.s32 1, %s9
  $region7: #{task_loss.8} parent=0 // loop_footer_branch
    %8 = sbr.rel target = $region3
  $region8: #{task_loss.8} parent=0 // loop_exit
    _

// kernel: task_loss.9
$region0: #{task_loss.9}
  #allocation0 [shape = 'u32[]', space=smem, size = 0x4, offset = 0x4, fixed_abs, tag = 'smem constant byte address 0x4 - core index']
  #allocation1 [shape = 'u32[144,128]{1,0:T(1,128)}', space=vmem, size = 0x12000, scoped, tag = 'internal scratch']
  #allocation2 [shape = 'f32[512,128]{1,0:T(8,128)}', space=vmem, size = 0x40000, scoped, tag = 'scratch operand']
  #allocation3 [shape = 'f32[256,128]{1,0:T(8,128)}', space=vmem, size = 0x20000, scoped, tag = 'scratch operand']
  #allocation4 [shape = 'f32[8,128]{1,0:T(8,128)}', space=vmem, size = 0x1000, scoped, tag = 'scratch operand']
  %s0 = inlined_call_operand.vmem [shape: bf16[1024,128], index: 0, kind: input, shape index: {}, may-alias: {0,1}]
  %s1 = inlined_call_operand.vmem [shape: bf16[1024,128], index: 1, kind: input, shape index: {}, may-alias: {0,1}]
  %s2 = inlined_call_operand.vmem [shape: bf16[256,128], index: 2, kind: input, shape index: {}, may-alias: {2,3}]
  %s3 = inlined_call_operand.vmem [shape: bf16[256,128], index: 3, kind: input, shape index: {}, may-alias: {2,3}]
  %s4 = inlined_call_operand.vmem [shape: bf16[64,128], index: 4, kind: input, shape index: {}, may-alias: {4,5}]
  %s5 = inlined_call_operand.vmem [shape: bf16[64,128], index: 5, kind: input, shape index: {}, may-alias: {4,5}]
  %s6 = inlined_call_operand.vmem [shape: bf16[16,128], index: 6, kind: input, shape index: {}, may-alias: {6,7}]
  %s7 = inlined_call_operand.vmem [shape: bf16[16,128], index: 7, kind: input, shape index: {}, may-alias: {6,7}]
  %s8 = inlined_call_operand.vmem [shape: bf16[4,128,128], index: 8, kind: input, shape index: {}]
  %s9 = inlined_call_operand.vmem [shape: f32[1,8,128], index: 9, kind: output, shape index: {}]
  %s10 = sld [smem:[#allocation0]]
  $region46: #{task_loss.9} parent=0
    _
  %s12 = ssub.s32 1, %s10
  %s13 = scalar_select 0, %s12, %s10
  // Predicated region
  $region2: #{task_loss.9} parent=0 // pred_check
    _
  $region3: #{task_loss.9} parent=0 // pred_check_branch
    %15 = sbr.rel (0) target = $region5
  $region4: #{task_loss.9} parent=0 // pred_region
    _
  $region5: #{task_loss.9} parent=0 // pred_fallthru
    _
  // Predicated region
  $region6: #{task_loss.9} parent=0 // pred_check
    _
  $region7: #{task_loss.9} parent=0 // pred_check_branch
    %17 = sbr.rel (0) target = $region9
  $region8: #{task_loss.9} parent=0 // pred_region
    %s18 = sadd.s32 0, 1
    %s19 = smul.u32 64, %s18
    %p20 = scmp.lt.s32.totalorder %s19, 127
    %s21 = scalar_select %p20, %s19, 127
    %s22 = smul.addr %s21, 4
    %s23 = scalar_lea.vmem %s1, %s22
    %s24 = sadd.s32 0, 1
    %s25 = smul.u32 64, %s24
  $region9: #{task_loss.9} parent=0 // pred_fallthru
    _
  // Predicated region
  $region10: #{task_loss.9} parent=0 // pred_check
    _
  $region11: #{task_loss.9} parent=0 // pred_check_branch
    %27 = sbr.rel (0) target = $region13
  $region12: #{task_loss.9} parent=0 // pred_region
    _
  $region13: #{task_loss.9} parent=0 // pred_fallthru
    _
  // Predicated region
  $region14: #{task_loss.9} parent=0 // pred_check
    _
  $region15: #{task_loss.9} parent=0 // pred_check_branch
    %29 = sbr.rel (0) target = $region17
  $region16: #{task_loss.9} parent=0 // pred_region
    %s30 = sadd.s32 0, 1
    %s31 = smul.u32 16, %s30
    %p32 = scmp.lt.s32.totalorder %s31, 31
    %s33 = scalar_select %p32, %s31, 31
    %s34 = smul.addr %s33, 4
    %s35 = scalar_lea.vmem %s3, %s34
    %s36 = sadd.s32 0, 1
    %s37 = smul.u32 16, %s36
  $region17: #{task_loss.9} parent=0 // pred_fallthru
    _
  // Predicated region
  $region18: #{task_loss.9} parent=0 // pred_check
    _
  $region19: #{task_loss.9} parent=0 // pred_check_branch
    %39 = sbr.rel (0) target = $region21
  $region20: #{task_loss.9} parent=0 // pred_region
    _
  $region21: #{task_loss.9} parent=0 // pred_fallthru
    _
  // Predicated region
  $region22: #{task_loss.9} parent=0 // pred_check
    _
  $region23: #{task_loss.9} parent=0 // pred_check_branch
    %41 = sbr.rel (0) target = $region25
  $region24: #{task_loss.9} parent=0 // pred_region
    %s42 = sadd.s32 0, 1
    %s43 = smul.u32 4, %s42
    %p44 = scmp.lt.s32.totalorder %s43, 7
    %s45 = scalar_select %p44, %s43, 7
    %s46 = smul.addr %s45, 4
    %s47 = scalar_lea.vmem %s5, %s46
    %s48 = sadd.s32 0, 1
    %s49 = smul.u32 4, %s48
  $region25: #{task_loss.9} parent=0 // pred_fallthru
    _
  // Predicated region
  $region26: #{task_loss.9} parent=0 // pred_check
    _
  $region27: #{task_loss.9} parent=0 // pred_check_branch
    %51 = sbr.rel (0) target = $region29
  $region28: #{task_loss.9} parent=0 // pred_region
    _
  $region29: #{task_loss.9} parent=0 // pred_fallthru
    _
  // Predicated region
  $region30: #{task_loss.9} parent=0 // pred_check
    _
  $region31: #{task_loss.9} parent=0 // pred_check_branch
    %53 = sbr.rel (0) target = $region33
  $region32: #{task_loss.9} parent=0 // pred_region
    %s54 = sadd.s32 0, 1
    %p55 = scmp.lt.s32.totalorder %s54, 1
    %s56 = scalar_select %p55, %s54, 1
    %s57 = smul.addr %s56, 4
    %s58 = scalar_lea.vmem %s7, %s57
    %s59 = sadd.s32 0, 1
  $region33: #{task_loss.9} parent=0 // pred_fallthru
    _
  // Predicated region
  $region34: #{task_loss.9} parent=0 // pred_check
    _
  $region35: #{task_loss.9} parent=0 // pred_check_branch
    %61 = sbr.rel (0) target = $region37
  $region36: #{task_loss.9} parent=0 // pred_region
    _
  $region37: #{task_loss.9} parent=0 // pred_fallthru
    _
  %s62 = sadd.s32 0, 1
  %s63 = smul.u32 64, %s62
  %p64 = scmp.lt.s32.totalorder %s63, 127
  %s65 = scalar_select %p64, %s63, 127
  %s66 = smul.addr %s65, 4
  %s67 = scalar_lea.vmem %s1, %s66
  %s68 = sadd.s32 0, 1
  %s69 = smul.u32 16, %s68
  %p70 = scmp.lt.s32.totalorder %s69, 31
  %s71 = scalar_select %p70, %s69, 31
  %s72 = smul.addr %s71, 4
  %s73 = scalar_lea.vmem %s3, %s72
  %s74 = sadd.s32 0, 1
  %s75 = smul.u32 4, %s74
  %p76 = scmp.lt.s32.totalorder %s75, 7
  %s77 = scalar_select %p76, %s75, 7
  %s78 = smul.addr %s77, 4
  %s79 = scalar_lea.vmem %s5, %s78
  %s80 = sadd.s32 0, 1
  %p81 = scmp.lt.s32.totalorder %s80, 1
  %s82 = scalar_select %p81, %s80, 1
  %s83 = smul.addr %s82, 4
  %s84 = scalar_lea.vmem %s7, %s83
  %s85 = sadd.s32 0, 1
  %s86 = smul.u32 64, %s85
  %p87 = scmp.lt.s32.totalorder %s86, 127
  %s88 = scalar_select %p87, %s86, 127
  %s89 = smul.addr %s88, 4
  %s90 = scalar_lea.vmem %s1, %s89
  %s91 = sadd.s32 0, 1
  %s92 = smul.u32 64, %s91
  %s93 = sadd.s32 0, 1
  %s94 = smul.u32 16, %s93
  %p95 = scmp.lt.s32.totalorder %s94, 31
  %s96 = scalar_select %p95, %s94, 31
  %s97 = smul.addr %s96, 4
  %s98 = scalar_lea.vmem %s3, %s97
  %s99 = sadd.s32 0, 1
  %s100 = smul.u32 16, %s99
  %s101 = sadd.s32 0, 1
  %s102 = smul.u32 4, %s101
  %p103 = scmp.lt.s32.totalorder %s102, 7
  %s104 = scalar_select %p103, %s102, 7
  %s105 = smul.addr %s104, 4
  %s106 = scalar_lea.vmem %s5, %s105
  %s107 = sadd.s32 0, 1
  %s108 = smul.u32 4, %s107
  %s109 = sadd.s32 0, 1
  %p110 = scmp.lt.s32.totalorder %s109, 1
  %s111 = scalar_select %p110, %s109, 1
  %s112 = smul.addr %s111, 4
  %s113 = scalar_lea.vmem %s7, %s112
  %s114 = sadd.s32 0, 1
  %v116 = vld [vmem:[%s6] sm:$0xf]
  %v117 = vunpack.c.l.bf16 %v116
  %v118 = vld [vmem:[%s113] sm:$0xf]
  %v119 = vunpack.c.l.bf16 %v118
  %v120 = vsub.f32 %v117, %v119
  %v121 = vpack.c.bf16 %v120, %v120
  %s122 = scalar_lea.vmem %s8, 192
  %v123 = vld [vmem:[%s122] sm:$0xf]
  %v124 = vld [vmem:[%s122 + $0x4] sm:$0xf]
  %v125 = vld [vmem:[%s122 + $0x8] sm:$0xf]
  %v126 = vld [vmem:[%s122 + $0xc] sm:$0xf]
  %v127 = vld [vmem:[%s122 + $0x10] sm:$0xf]
  %v128 = vld [vmem:[%s122 + $0x14] sm:$0xf]
  %v129 = vld [vmem:[%s122 + $0x18] sm:$0xf]
  %v130 = vld [vmem:[%s122 + $0x1c] sm:$0xf]
  %v131 = vld [vmem:[%s122 + $0x20] sm:$0xf]
  %v132 = vld [vmem:[%s122 + $0x24] sm:$0xf]
  %v133 = vld [vmem:[%s122 + $0x28] sm:$0xf]
  %v134 = vld [vmem:[%s122 + $0x2c] sm:$0xf]
  %v135 = vld [vmem:[%s122 + $0x30] sm:$0xf]
  %v136 = vld [vmem:[%s122 + $0x34] sm:$0xf]
  %v137 = vld [vmem:[%s122 + $0x38] sm:$0xf]
  %v138 = vld [vmem:[%s122 + $0x3c] sm:$0xf]
  %v155 = vunpack.c.l.b16 %v123
  %v156 = vunpack.c.l.b16 %v124
  %v157 = vunpack.c.l.b16 %v125
  %v158 = vunpack.c.l.b16 %v126
  %v159 = vunpack.c.l.b16 %v127
  %v160 = vunpack.c.l.b16 %v128
  %v161 = vunpack.c.l.b16 %v129
  %v162 = vunpack.c.l.b16 %v130
  %v163 = vunpack.c.l.b16 %v131
  %v164 = vunpack.c.l.b16 %v132
  %v165 = vunpack.c.l.b16 %v133
  %v166 = vunpack.c.l.b16 %v134
  %v167 = vunpack.c.l.b16 %v135
  %v168 = vunpack.c.l.b16 %v136
  %v169 = vunpack.c.l.b16 %v137
  %v170 = vunpack.c.l.b16 %v138
  %v171 = vpack.c.b16 %v156, %v155
  %v172 = vpack.c.b16 %v158, %v157
  %v173 = vpack.c.b16 %v160, %v159
  %v174 = vpack.c.b16 %v162, %v161
  %v175 = vpack.c.b16 %v164, %v163
  %v176 = vpack.c.b16 %v166, %v165
  %v177 = vpack.c.b16 %v168, %v167
  %v178 = vpack.c.b16 %v170, %v169
  %187 = vmatprep.subr.bf16.mxu0 0
  %188 = vmatpush1.bf16.msra.mxu0 %v178
  %189 = vmatprep.subr.bf16.mxu0 0
  %190 = vmatpush1.bf16.msra.mxu0 %v177
  %191 = vmatprep.subr.bf16.mxu0 0
  %192 = vmatpush1.bf16.msra.mxu0 %v176
  %193 = vmatprep.subr.bf16.mxu0 0
  %194 = vmatpush1.bf16.msra.mxu0 %v175
  %195 = vmatprep.subr.bf16.mxu0 0
  %196 = vmatpush1.bf16.msra.mxu0 %v174
  %197 = vmatprep.subr.bf16.mxu0 0
  %198 = vmatpush1.bf16.msra.mxu0 %v173
  %199 = vmatprep.subr.bf16.mxu0 0
  %200 = vmatpush1.bf16.msra.mxu0 %v172
  %201 = vmatprep.subr.bf16.mxu0 0
  %202 = vmatpush1.bf16.msra.mxu0 %v171
  %203 = vmatprep.subr.bf16.mxu0 0
  %204 = vmatpush2.bf16.msra.mxu0 0
  %205 = vmatprep.subr.bf16.mxu0 0
  %206 = vmatpush2.bf16.msra.mxu0 0
  %207 = vmatprep.subr.bf16.mxu0 0
  %208 = vmatpush2.bf16.msra.mxu0 0
  %209 = vmatprep.subr.bf16.mxu0 0
  %210 = vmatpush2.bf16.msra.mxu0 0
  %211 = vmatprep.subr.bf16.mxu0 0
  %212 = vmatpush2.bf16.msra.mxu0 0
  %213 = vmatprep.subr.bf16.mxu0 0
  %214 = vmatpush2.bf16.msra.mxu0 0
  %215 = vmatprep.subr.bf16.mxu0 0
  %216 = vmatpush2.bf16.msra.mxu0 0
  %217 = vmatprep.subr.bf16.mxu0 0
  %218 = vmatpush2.bf16.msra.mxu0 0
  %219 = vmatprep.mubr.bf16.mxu0 0
  %220 = vmatmul.mubr.bf16.gmra.mxu0 %v121
  %v221 = vpop.f32.mrf.mxu0
  %v222 = vadd.f32 0.0, %v221
  %v223 = vpop.f32.mrf.mxu0
  %v224 = vpop.f32.mrf.mxu0
  %v225 = vpop.f32.mrf.mxu0
  %226 = vdwg.mxu0
  %227 = vst [vmem:[#allocation4] sm:$0xff] %v222
  %v228 = vmul.f32 %v222, %v222
  %229 = vadd.xlane.f32.xlu0 %v228
  %v230 = vpop.xlane.xlu0 %229
  %v231 = vrot.slane %v230, 4
  %v232 = vadd.f32 %v230, %v231
  %v233 = vrot.slane %v232, 2
  %v234 = vadd.f32 %v232, %v233
  %v235 = vrot.slane %v234, 1
  %v236 = vadd.f32 %v234, %v235
  %s237 = vtos %v236
  %v238 = vld [vmem:[#allocation4] ss:$2 sm:$0x1]
  %v239 = vmul.f32 %v238, %v238
  %vm240 = vcmask 1040384
  %v241 = vsel %vm240, %v239, 0.0
  %242 = vadd.xlane.f32.xlu0 %v241
  %v243 = vpop.xlane.xlu0 %242
  %v244 = vrot.slane %v243, 4
  %v245 = vadd.f32 %v243, %v244
  %v246 = vrot.slane %v245, 2
  %v247 = vadd.f32 %v245, %v246
  %v248 = vrot.slane %v247, 1
  %v249 = vadd.f32 %v247, %v248
  %s250 = vtos %v249
  %s251 = sadd.f32 %s250, 0.0
  %s252 = scalar_lea.vmem [#allocation4], 4
  %v253 = vld [vmem:[%s252] ss:$2 sm:$0x1]
  %v254 = vmul.f32 %v253, %v253
  %v255 = vsel %vm240, %v254, 0.0
  %256 = vadd.xlane.f32.xlu0 %v255
  %v257 = vpop.xlane.xlu0 %256
  %v258 = vrot.slane %v257, 4
  %v259 = vadd.f32 %v257, %v258
  %v260 = vrot.slane %v259, 2
  %v261 = vadd.f32 %v259, %v260
  %v262 = vrot.slane %v261, 1
  %v263 = vadd.f32 %v261, %v262
  %s264 = vtos %v263
  %s265 = sadd.f32 %s251, %s264
  %v266 = vld [vmem:[%s4] sm:$0xf]
  %v267 = vld [vmem:[%s4 + $0x4] sm:$0xf]
  %v268 = vld [vmem:[%s4 + $0x8] sm:$0xf]
  %v269 = vld [vmem:[%s4 + $0xc] sm:$0xf]
  %v270 = vunpack.c.l.bf16 %v266
  %v271 = vunpack.c.l.bf16 %v267
  %v272 = vunpack.c.l.bf16 %v268
  %v273 = vunpack.c.l.bf16 %v269
  %v274 = vld [vmem:[%s106] sm:$0xf]
  %v275 = vld [vmem:[%s106 + $0x4] sm:$0xf]
  %v276 = vld [vmem:[%s106 + $0x8] sm:$0xf]
  %v277 = vld [vmem:[%s106 + $0xc] sm:$0xf]
  %v278 = vunpack.c.l.bf16 %v274
  %v279 = vunpack.c.l.bf16 %v275
  %v280 = vunpack.c.l.bf16 %v276
  %v281 = vunpack.c.l.bf16 %v277
  %v282 = vsub.f32 %v270, %v278
  %v283 = vsub.f32 %v271, %v279
  %v284 = vsub.f32 %v272, %v280
  %v285 = vsub.f32 %v273, %v281
  %v286 = vpack.c.bf16 %v283, %v282
  %v287 = vpack.c.bf16 %v285, %v284
  %s288 = scalar_lea.vmem %s8, 128
  %v289 = vld [vmem:[%s288] sm:$0xf]
  %v290 = vld [vmem:[%s288 + $0x4] sm:$0xf]
  %v291 = vld [vmem:[%s288 + $0x8] sm:$0xf]
  %v292 = vld [vmem:[%s288 + $0xc] sm:$0xf]
  %v293 = vld [vmem:[%s288 + $0x10] sm:$0xf]
  %v294 = vld [vmem:[%s288 + $0x14] sm:$0xf]
  %v295 = vld [vmem:[%s288 + $0x18] sm:$0xf]
  %v296 = vld [vmem:[%s288 + $0x1c] sm:$0xf]
  %v297 = vld [vmem:[%s288 + $0x20] sm:$0xf]
  %v298 = vld [vmem:[%s288 + $0x24] sm:$0xf]
  %v299 = vld [vmem:[%s288 + $0x28] sm:$0xf]
  %v300 = vld [vmem:[%s288 + $0x2c] sm:$0xf]
  %v301 = vld [vmem:[%s288 + $0x30] sm:$0xf]
  %v302 = vld [vmem:[%s288 + $0x34] sm:$0xf]
  %v303 = vld [vmem:[%s288 + $0x38] sm:$0xf]
  %v304 = vld [vmem:[%s288 + $0x3c] sm:$0xf]
  %305 = vst [vmem:[#allocation3] sm:$0x3] %v222
  %306 = vst [vmem:[#allocation3 + $0x2] sm:$0x3] %v222
  %307 = vst [vmem:[#allocation3 + $0x2] sm:$0xc] %v222
  %308 = vst [vmem:[#allocation3 + $0x4] sm:$0xc] %v222
  %309 = vst [vmem:[#allocation3 + $0x4] sm:$0x30] %v222
  %310 = vst [vmem:[#allocation3 + $0x6] sm:$0x30] %v222
  %311 = vst [vmem:[#allocation3 + $0x6] sm:$0xc0] %v222
  %312 = vst [vmem:[#allocation3 + $0x8] sm:$0xc0] %v222
  %v313 = vld [vmem:[#allocation3] sm:$0xff]
  %v314 = vld [vmem:[#allocation3 + $0x8] sm:$0xff]
  %315 = vst [vmem:[#allocation2] ss:$2 sm:$0xff] %v313
  %s316 = scalar_lea.vmem [#allocation2], 16
  %317 = vst [vmem:[%s316] ss:$2 sm:$0xff] %v314
  %s318 = scalar_lea.vmem [#allocation2], 1
  %319 = vst [vmem:[%s318] ss:$2 sm:$0xff] %v313
  %s320 = scalar_lea.vmem [#allocation2], 17
  %321 = vst [vmem:[%s320] ss:$2 sm:$0xff] %v314
  %v322 = vld [vmem:[#allocation2] sm:$0xff]
  %v323 = vld [vmem:[#allocation2 + $0x8] sm:$0xff]
  %v324 = vld [vmem:[#allocation2 + $0x10] sm:$0xff]
  %v325 = vld [vmem:[#allocation2 + $0x18] sm:$0xff]
  %v342 = vunpack.c.l.b16 %v289
  %v343 = vunpack.c.l.b16 %v290
  %v344 = vunpack.c.l.b16 %v291
  %v345 = vunpack.c.l.b16 %v292
  %v346 = vunpack.c.l.b16 %v293
  %v347 = vunpack.c.l.b16 %v294
  %v348 = vunpack.c.l.b16 %v295
  %v349 = vunpack.c.l.b16 %v296
  %v350 = vunpack.c.l.b16 %v297
  %v351 = vunpack.c.l.b16 %v298
  %v352 = vunpack.c.l.b16 %v299
  %v353 = vunpack.c.l.b16 %v300
  %v354 = vunpack.c.l.b16 %v301
  %v355 = vunpack.c.l.b16 %v302
  %v356 = vunpack.c.l.b16 %v303
  %v357 = vunpack.c.l.b16 %v304
  %v358 = vpack.c.b16 %v343, %v342
  %v359 = vpack.c.b16 %v345, %v344
  %v360 = vpack.c.b16 %v347, %v346
  %v361 = vpack.c.b16 %v349, %v348
  %v362 = vpack.c.b16 %v351, %v350
  %v363 = vpack.c.b16 %v353, %v352
  %v364 = vpack.c.b16 %v355, %v354
  %v365 = vpack.c.b16 %v357, %v356
  %374 = vmatprep.subr.bf16.mxu0 0
  %375 = vmatpush1.bf16.msra.mxu0 %v365
  %376 = vmatprep.subr.bf16.mxu0 0
  %377 = vmatpush1.bf16.msra.mxu0 %v364
  %378 = vmatprep.subr.bf16.mxu0 0
  %379 = vmatpush1.bf16.msra.mxu0 %v363
  %380 = vmatprep.subr.bf16.mxu0 0
  %381 = vmatpush1.bf16.msra.mxu0 %v362
  %382 = vmatprep.subr.bf16.mxu0 0
  %383 = vmatpush1.bf16.msra.mxu0 %v361
  %384 = vmatprep.subr.bf16.mxu0 0
  %385 = vmatpush1.bf16.msra.mxu0 %v360
  %386 = vmatprep.subr.bf16.mxu0 0
  %387 = vmatpush1.bf16.msra.mxu0 %v359
  %388 = vmatprep.subr.bf16.mxu0 0
  %389 = vmatpush1.bf16.msra.mxu0 %v358
  %390 = vmatprep.subr.bf16.mxu0 0
  %391 = vmatpush2.bf16.msra.mxu0 0
  %392 = vmatprep.subr.bf16.mxu0 0
  %393 = vmatpush2.bf16.msra.mxu0 0
  %394 = vmatprep.subr.bf16.mxu0 0
  %395 = vmatpush2.bf16.msra.mxu0 0
  %396 = vmatprep.subr.bf16.mxu0 0
  %397 = vmatpush2.bf16.msra.mxu0 0
  %398 = vmatprep.subr.bf16.mxu0 0
  %399 = vmatpush2.bf16.msra.mxu0 0
  %400 = vmatprep.subr.bf16.mxu0 0
  %401 = vmatpush2.bf16.msra.mxu0 0
  %402 = vmatprep.subr.bf16.mxu0 0
  %403 = vmatpush2.bf16.msra.mxu0 0
  %404 = vmatprep.subr.bf16.mxu0 0
  %405 = vmatpush2.bf16.msra.mxu0 0
  %406 = vmatprep.mubr.bf16.mxu0 0
  %407 = vmatmul.mubr.bf16.gmra.mxu0 %v286
  %v408 = vpop.f32.mrf.mxu0
  %v409 = vadd.f32 %v322, %v408
  %v410 = vpop.f32.mrf.mxu0
  %v411 = vpop.f32.mrf.mxu0
  %v412 = vadd.f32 %v323, %v411
  %v413 = vpop.f32.mrf.mxu0
  %414 = vmatprep.mubr.bf16.mxu0 0
  %415 = vmatmul.mubr.bf16.gmra.mxu0 %v287
  %v416 = vpop.f32.mrf.mxu0
  %v417 = vadd.f32 %v324, %v416
  %v418 = vpop.f32.mrf.mxu0
  %v419 = vpop.f32.mrf.mxu0
  %v420 = vadd.f32 %v325, %v419
  %v421 = vpop.f32.mrf.mxu0
  %422 = vdwg.mxu0
  %v423 = vmul.f32 %v409, %v409
  %v424 = vmul.f32 %v412, %v412
  %v425 = vmul.f32 %v417, %v417
  %v426 = vmul.f32 %v420, %v420
  %v427 = vadd.f32 %v423, %v424
  %v428 = vadd.f32 %v427, %v425
  %v429 = vadd.f32 %v428, %v426
  %430 = vadd.xlane.f32.xlu0 %v429
  %v431 = vpop.xlane.xlu0 %430
  %v432 = vrot.slane %v431, 4
  %v433 = vadd.f32 %v431, %v432
  %v434 = vrot.slane %v433, 2
  %v435 = vadd.f32 %v433, %v434
  %v436 = vrot.slane %v435, 1
  %v437 = vadd.f32 %v435, %v436
  %s438 = vtos %v437
  %v439 = vld [vmem:[%s2] sm:$0xf]
  %v440 = vld [vmem:[%s2 + $0x4] sm:$0xf]
  %v441 = vld [vmem:[%s2 + $0x8] sm:$0xf]
  %v442 = vld [vmem:[%s2 + $0xc] sm:$0xf]
  %v443 = vld [vmem:[%s2 + $0x10] sm:$0xf]
  %v444 = vld [vmem:[%s2 + $0x14] sm:$0xf]
  %v445 = vld [vmem:[%s2 + $0x18] sm:$0xf]
  %v446 = vld [vmem:[%s2 + $0x1c] sm:$0xf]
  %v447 = vld [vmem:[%s2 + $0x20] sm:$0xf]
  %v448 = vld [vmem:[%s2 + $0x24] sm:$0xf]
  %v449 = vld [vmem:[%s2 + $0x28] sm:$0xf]
  %v450 = vld [vmem:[%s2 + $0x2c] sm:$0xf]
  %v451 = vld [vmem:[%s2 + $0x30] sm:$0xf]
  %v452 = vld [vmem:[%s2 + $0x34] sm:$0xf]
  %v453 = vld [vmem:[%s2 + $0x38] sm:$0xf]
  %v454 = vld [vmem:[%s2 + $0x3c] sm:$0xf]
  %v455 = vunpack.c.l.bf16 %v439
  %v456 = vunpack.c.l.bf16 %v440
  %v457 = vunpack.c.l.bf16 %v441
  %v458 = vunpack.c.l.bf16 %v442
  %v459 = vunpack.c.l.bf16 %v443
  %v460 = vunpack.c.l.bf16 %v444
  %v461 = vunpack.c.l.bf16 %v445
  %v462 = vunpack.c.l.bf16 %v446
  %v463 = vunpack.c.l.bf16 %v447
  %v464 = vunpack.c.l.bf16 %v448
  %v465 = vunpack.c.l.bf16 %v449
  %v466 = vunpack.c.l.bf16 %v450
  %v467 = vunpack.c.l.bf16 %v451
  %v468 = vunpack.c.l.bf16 %v452
  %v469 = vunpack.c.l.bf16 %v453
  %v470 = vunpack.c.l.bf16 %v454
  %v471 = vld [vmem:[%s98] sm:$0xf]
  %v472 = vld [vmem:[%s98 + $0x4] sm:$0xf]
  %v473 = vld [vmem:[%s98 + $0x8] sm:$0xf]
  %v474 = vld [vmem:[%s98 + $0xc] sm:$0xf]
  %v475 = vld [vmem:[%s98 + $0x10] sm:$0xf]
  %v476 = vld [vmem:[%s98 + $0x14] sm:$0xf]
  %v477 = vld [vmem:[%s98 + $0x18] sm:$0xf]
  %v478 = vld [vmem:[%s98 + $0x1c] sm:$0xf]
  %v479 = vld [vmem:[%s98 + $0x20] sm:$0xf]
  %v480 = vld [vmem:[%s98 + $0x24] sm:$0xf]
  %v481 = vld [vmem:[%s98 + $0x28] sm:$0xf]
  %v482 = vld [vmem:[%s98 + $0x2c] sm:$0xf]
  %v483 = vld [vmem:[%s98 + $0x30] sm:$0xf]
  %v484 = vld [vmem:[%s98 + $0x34] sm:$0xf]
  %v485 = vld [vmem:[%s98 + $0x38] sm:$0xf]
  %v486 = vld [vmem:[%s98 + $0x3c] sm:$0xf]
  %v487 = vunpack.c.l.bf16 %v471
  %v488 = vunpack.c.l.bf16 %v472
  %v489 = vunpack.c.l.bf16 %v473
  %v490 = vunpack.c.l.bf16 %v474
  %v491 = vunpack.c.l.bf16 %v475
  %v492 = vunpack.c.l.bf16 %v476
  %v493 = vunpack.c.l.bf16 %v477
  %v494 = vunpack.c.l.bf16 %v478
  %v495 = vunpack.c.l.bf16 %v479
  %v496 = vunpack.c.l.bf16 %v480
  %v497 = vunpack.c.l.bf16 %v481
  %v498 = vunpack.c.l.bf16 %v482
  %v499 = vunpack.c.l.bf16 %v483
  %v500 = vunpack.c.l.bf16 %v484
  %v501 = vunpack.c.l.bf16 %v485
  %v502 = vunpack.c.l.bf16 %v486
  %v503 = vsub.f32 %v455, %v487
  %v504 = vsub.f32 %v456, %v488
  %v505 = vsub.f32 %v457, %v489
  %v506 = vsub.f32 %v458, %v490
  %v507 = vsub.f32 %v459, %v491
  %v508 = vsub.f32 %v460, %v492
  %v509 = vsub.f32 %v461, %v493
  %v510 = vsub.f32 %v462, %v494
  %v511 = vsub.f32 %v463, %v495
  %v512 = vsub.f32 %v464, %v496
  %v513 = vsub.f32 %v465, %v497
  %v514 = vsub.f32 %v466, %v498
  %v515 = vsub.f32 %v467, %v499
  %v516 = vsub.f32 %v468, %v500
  %v517 = vsub.f32 %v469, %v501
  %v518 = vsub.f32 %v470, %v502
  %v519 = vpack.c.bf16 %v504, %v503
  %v520 = vpack.c.bf16 %v506, %v505
  %v521 = vpack.c.bf16 %v508, %v507
  %v522 = vpack.c.bf16 %v510, %v509
  %v523 = vpack.c.bf16 %v512, %v511
  %v524 = vpack.c.bf16 %v514, %v513
  %v525 = vpack.c.bf16 %v516, %v515
  %v526 = vpack.c.bf16 %v518, %v517
  %s527 = scalar_lea.vmem %s8, 64
  %v528 = vld [vmem:[%s527] sm:$0xf]
  %v529 = vld [vmem:[%s527 + $0x4] sm:$0xf]
  %v530 = vld [vmem:[%s527 + $0x8] sm:$0xf]
  %v531 = vld [vmem:[%s527 + $0xc] sm:$0xf]
  %v532 = vld [vmem:[%s527 + $0x10] sm:$0xf]
  %v533 = vld [vmem:[%s527 + $0x14] sm:$0xf]
  %v534 = vld [vmem:[%s527 + $0x18] sm:$0xf]
  %v535 = vld [vmem:[%s527 + $0x1c] sm:$0xf]
  %v536 = vld [vmem:[%s527 + $0x20] sm:$0xf]
  %v537 = vld [vmem:[%s527 + $0x24] sm:$0xf]
  %v538 = vld [vmem:[%s527 + $0x28] sm:$0xf]
  %v539 = vld [vmem:[%s527 + $0x2c] sm:$0xf]
  %v540 = vld [vmem:[%s527 + $0x30] sm:$0xf]
  %v541 = vld [vmem:[%s527 + $0x34] sm:$0xf]
  %v542 = vld [vmem:[%s527 + $0x38] sm:$0xf]
  %v543 = vld [vmem:[%s527 + $0x3c] sm:$0xf]
  %544 = vst [vmem:[#allocation3] sm:$0xf] %v409
  %545 = vst [vmem:[#allocation3 + $0x4] sm:$0xf] %v409
  %546 = vst [vmem:[#allocation3 + $0x4] sm:$0xf0] %v409
  %547 = vst [vmem:[#allocation3 + $0x8] sm:$0xf0] %v409
  %548 = vst [vmem:[#allocation3 + $0x10] sm:$0xf] %v412
  %549 = vst [vmem:[#allocation3 + $0x14] sm:$0xf] %v412
  %550 = vst [vmem:[#allocation3 + $0x14] sm:$0xf0] %v412
  %551 = vst [vmem:[#allocation3 + $0x18] sm:$0xf0] %v412
  %552 = vst [vmem:[#allocation3 + $0x20] sm:$0xf] %v417
  %553 = vst [vmem:[#allocation3 + $0x24] sm:$0xf] %v417
  %554 = vst [vmem:[#allocation3 + $0x24] sm:$0xf0] %v417
  %555 = vst [vmem:[#allocation3 + $0x28] sm:$0xf0] %v417
  %556 = vst [vmem:[#allocation3 + $0x30] sm:$0xf] %v420
  %557 = vst [vmem:[#allocation3 + $0x34] sm:$0xf] %v420
  %558 = vst [vmem:[#allocation3 + $0x34] sm:$0xf0] %v420
  %559 = vst [vmem:[#allocation3 + $0x38] sm:$0xf0] %v420
  %v560 = vld [vmem:[#allocation3] sm:$0xff]
  %v561 = vld [vmem:[#allocation3 + $0x8] sm:$0xff]
  %v562 = vld [vmem:[#allocation3 + $0x10] sm:$0xff]
  %v563 = vld [vmem:[#allocation3 + $0x18] sm:$0xff]
  %v564 = vld [vmem:[#allocation3 + $0x20] sm:$0xff]
  %v565 = vld [vmem:[#allocation3 + $0x28] sm:$0xff]
  %v566 = vld [vmem:[#allocation3 + $0x30] sm:$0xff]
  %v567 = vld [vmem:[#allocation3 + $0x38] sm:$0xff]
  %568 = vst [vmem:[#allocation2] ss:$2 sm:$0xff] %v560
  %569 = vst [vmem:[%s316] ss:$2 sm:$0xff] %v561
  %s570 = scalar_lea.vmem [#allocation2], 32
  %571 = vst [vmem:[%s570] ss:$2 sm:$0xff] %v562
  %s572 = scalar_lea.vmem [#allocation2], 48
  %573 = vst [vmem:[%s572] ss:$2 sm:$0xff] %v563
  %s574 = scalar_lea.vmem [#allocation2], 64
  %575 = vst [vmem:[%s574] ss:$2 sm:$0xff] %v564
  %s576 = scalar_lea.vmem [#allocation2], 80
  %577 = vst [vmem:[%s576] ss:$2 sm:$0xff] %v565
  %s578 = scalar_lea.vmem [#allocation2], 96
  %579 = vst [vmem:[%s578] ss:$2 sm:$0xff] %v566
  %s580 = scalar_lea.vmem [#allocation2], 112
  %581 = vst [vmem:[%s580] ss:$2 sm:$0xff] %v567
  %582 = vst [vmem:[%s318] ss:$2 sm:$0xff] %v560
  %583 = vst [vmem:[%s320] ss:$2 sm:$0xff] %v561
  %s584 = scalar_lea.vmem [#allocation2], 33
  %585 = vst [vmem:[%s584] ss:$2 sm:$0xff] %v562
  %s586 = scalar_lea.vmem [#allocation2], 49
  %587 = vst [vmem:[%s586] ss:$2 sm:$0xff] %v563
  %s588 = scalar_lea.vmem [#allocation2], 65
  %589 = vst [vmem:[%s588] ss:$2 sm:$0xff] %v564
  %s590 = scalar_lea.vmem [#allocation2], 81
  %591 = vst [vmem:[%s590] ss:$2 sm:$0xff] %v565
  %s592 = scalar_lea.vmem [#allocation2], 97
  %593 = vst [vmem:[%s592] ss:$2 sm:$0xff] %v566
  %s594 = scalar_lea.vmem [#allocation2], 113
  %595 = vst [vmem:[%s594] ss:$2 sm:$0xff] %v567
  %v596 = vld [vmem:[#allocation2] sm:$0xff]
  %v597 = vld [vmem:[#allocation2 + $0x8] sm:$0xff]
  %v598 = vld [vmem:[#allocation2 + $0x10] sm:$0xff]
  %v599 = vld [vmem:[#allocation2 + $0x18] sm:$0xff]
  %v600 = vld [vmem:[#allocation2 + $0x20] sm:$0xff]
  %v601 = vld [vmem:[#allocation2 + $0x28] sm:$0xff]
  %v602 = vld [vmem:[#allocation2 + $0x30] sm:$0xff]
  %v603 = vld [vmem:[#allocation2 + $0x38] sm:$0xff]
  %v604 = vld [vmem:[#allocation2 + $0x40] sm:$0xff]
  %v605 = vld [vmem:[#allocation2 + $0x48] sm:$0xff]
  %v606 = vld [vmem:[#allocation2 + $0x50] sm:$0xff]
  %v607 = vld [vmem:[#allocation2 + $0x58] sm:$0xff]
  %v608 = vld [vmem:[#allocation2 + $0x60] sm:$0xff]
  %v609 = vld [vmem:[#allocation2 + $0x68] sm:$0xff]
  %v610 = vld [vmem:[#allocation2 + $0x70] sm:$0xff]
  %v611 = vld [vmem:[#allocation2 + $0x78] sm:$0xff]
  %v628 = vunpack.c.l.b16 %v528
  %v629 = vunpack.c.l.b16 %v529
  %v630 = vunpack.c.l.b16 %v530
  %v631 = vunpack.c.l.b16 %v531
  %v632 = vunpack.c.l.b16 %v532
  %v633 = vunpack.c.l.b16 %v533
  %v634 = vunpack.c.l.b16 %v534
  %v635 = vunpack.c.l.b16 %v535
  %v636 = vunpack.c.l.b16 %v536
  %v637 = vunpack.c.l.b16 %v537
  %v638 = vunpack.c.l.b16 %v538
  %v639 = vunpack.c.l.b16 %v539
  %v640 = vunpack.c.l.b16 %v540
  %v641 = vunpack.c.l.b16 %v541
  %v642 = vunpack.c.l.b16 %v542
  %v643 = vunpack.c.l.b16 %v543
  %v644 = vpack.c.b16 %v629, %v628
  %v645 = vpack.c.b16 %v631, %v630
  %v646 = vpack.c.b16 %v633, %v632
  %v647 = vpack.c.b16 %v635, %v634
  %v648 = vpack.c.b16 %v637, %v636
  %v649 = vpack.c.b16 %v639, %v638
  %v650 = vpack.c.b16 %v641, %v640
  %v651 = vpack.c.b16 %v643, %v642
  %660 = vmatprep.subr.bf16.mxu0 0
  %661 = vmatpush1.bf16.msra.mxu0 %v651
  %662 = vmatprep.subr.bf16.mxu0 0
  %663 = vmatpush1.bf16.msra.mxu0 %v650
  %664 = vmatprep.subr.bf16.mxu0 0
  %665 = vmatpush1.bf16.msra.mxu0 %v649
  %666 = vmatprep.subr.bf16.mxu0 0
  %667 = vmatpush1.bf16.msra.mxu0 %v648
  %668 = vmatprep.subr.bf16.mxu0 0
  %669 = vmatpush1.bf16.msra.mxu0 %v647
  %670 = vmatprep.subr.bf16.mxu0 0
  %671 = vmatpush1.bf16.msra.mxu0 %v646
  %672 = vmatprep.subr.bf16.mxu0 0
  %673 = vmatpush1.bf16.msra.mxu0 %v645
  %674 = vmatprep.subr.bf16.mxu0 0
  %675 = vmatpush1.bf16.msra.mxu0 %v644
  %676 = vmatprep.subr.bf16.mxu0 0
  %677 = vmatpush2.bf16.msra.mxu0 0
  %678 = vmatprep.subr.bf16.mxu0 0
  %679 = vmatpush2.bf16.msra.mxu0 0
  %680 = vmatprep.subr.bf16.mxu0 0
  %681 = vmatpush2.bf16.msra.mxu0 0
  %682 = vmatprep.subr.bf16.mxu0 0
  %683 = vmatpush2.bf16.msra.mxu0 0
  %684 = vmatprep.subr.bf16.mxu0 0
  %685 = vmatpush2.bf16.msra.mxu0 0
  %686 = vmatprep.subr.bf16.mxu0 0
  %687 = vmatpush2.bf16.msra.mxu0 0
  %688 = vmatprep.subr.bf16.mxu0 0
  %689 = vmatpush2.bf16.msra.mxu0 0
  %690 = vmatprep.subr.bf16.mxu0 0
  %691 = vmatpush2.bf16.msra.mxu0 0
  %692 = vmatprep.mubr.bf16.mxu0 0
  %693 = vmatmul.mubr.bf16.gmra.mxu0 %v519
  %v694 = vpop.f32.mrf.mxu0
  %v695 = vadd.f32 %v596, %v694
  %v696 = vpop.f32.mrf.mxu0
  %v697 = vpop.f32.mrf.mxu0
  %v698 = vadd.f32 %v597, %v697
  %v699 = vpop.f32.mrf.mxu0
  %700 = vmatprep.mubr.bf16.mxu0 0
  %701 = vmatmul.mubr.bf16.gmra.mxu0 %v520
  %v702 = vpop.f32.mrf.mxu0
  %v703 = vadd.f32 %v598, %v702
  %v704 = vpop.f32.mrf.mxu0
  %v705 = vpop.f32.mrf.mxu0
  %v706 = vadd.f32 %v599, %v705
  %v707 = vpop.f32.mrf.mxu0
  %708 = vmatprep.mubr.bf16.mxu0 0
  %709 = vmatmul.mubr.bf16.gmra.mxu0 %v521
  %v710 = vpop.f32.mrf.mxu0
  %v711 = vadd.f32 %v600, %v710
  %v712 = vpop.f32.mrf.mxu0
  %v713 = vpop.f32.mrf.mxu0
  %v714 = vadd.f32 %v601, %v713
  %v715 = vpop.f32.mrf.mxu0
  %716 = vmatprep.mubr.bf16.mxu0 0
  %717 = vmatmul.mubr.bf16.gmra.mxu0 %v522
  %v718 = vpop.f32.mrf.mxu0
  %v719 = vadd.f32 %v602, %v718
  %v720 = vpop.f32.mrf.mxu0
  %v721 = vpop.f32.mrf.mxu0
  %v722 = vadd.f32 %v603, %v721
  %v723 = vpop.f32.mrf.mxu0
  %724 = vmatprep.mubr.bf16.mxu0 0
  %725 = vmatmul.mubr.bf16.gmra.mxu0 %v523
  %v726 = vpop.f32.mrf.mxu0
  %v727 = vadd.f32 %v604, %v726
  %v728 = vpop.f32.mrf.mxu0
  %v729 = vpop.f32.mrf.mxu0
  %v730 = vadd.f32 %v605, %v729
  %v731 = vpop.f32.mrf.mxu0
  %732 = vmatprep.mubr.bf16.mxu0 0
  %733 = vmatmul.mubr.bf16.gmra.mxu0 %v524
  %v734 = vpop.f32.mrf.mxu0
  %v735 = vadd.f32 %v606, %v734
  %v736 = vpop.f32.mrf.mxu0
  %v737 = vpop.f32.mrf.mxu0
  %v738 = vadd.f32 %v607, %v737
  %v739 = vpop.f32.mrf.mxu0
  %740 = vmatprep.mubr.bf16.mxu0 0
  %741 = vmatmul.mubr.bf16.gmra.mxu0 %v525
  %v742 = vpop.f32.mrf.mxu0
  %v743 = vadd.f32 %v608, %v742
  %v744 = vpop.f32.mrf.mxu0
  %v745 = vpop.f32.mrf.mxu0
  %v746 = vadd.f32 %v609, %v745
  %v747 = vpop.f32.mrf.mxu0
  %748 = vmatprep.mubr.bf16.mxu0 0
  %749 = vmatmul.mubr.bf16.gmra.mxu0 %v526
  %v750 = vpop.f32.mrf.mxu0
  %v751 = vadd.f32 %v610, %v750
  %v752 = vpop.f32.mrf.mxu0
  %v753 = vpop.f32.mrf.mxu0
  %v754 = vadd.f32 %v611, %v753
  %v755 = vpop.f32.mrf.mxu0
  %756 = vdwg.mxu0
  %v757 = vmul.f32 %v695, %v695
  %v758 = vmul.f32 %v698, %v698
  %v759 = vmul.f32 %v703, %v703
  %v760 = vmul.f32 %v706, %v706
  %v761 = vmul.f32 %v711, %v711
  %v762 = vmul.f32 %v714, %v714
  %v763 = vmul.f32 %v719, %v719
  %v764 = vmul.f32 %v722, %v722
  %v765 = vmul.f32 %v727, %v727
  %v766 = vmul.f32 %v730, %v730
  %v767 = vmul.f32 %v735, %v735
  %v768 = vmul.f32 %v738, %v738
  %v769 = vmul.f32 %v743, %v743
  %v770 = vmul.f32 %v746, %v746
  %v771 = vmul.f32 %v751, %v751
  %v772 = vmul.f32 %v754, %v754
  %v773 = vadd.f32 %v757, %v758
  %v774 = vadd.f32 %v773, %v759
  %v775 = vadd.f32 %v774, %v760
  %v776 = vadd.f32 %v775, %v761
  %v777 = vadd.f32 %v776, %v762
  %v778 = vadd.f32 %v777, %v763
  %v779 = vadd.f32 %v778, %v764
  %v780 = vadd.f32 %v779, %v765
  %v781 = vadd.f32 %v780, %v766
  %v782 = vadd.f32 %v781, %v767
  %v783 = vadd.f32 %v782, %v768
  %v784 = vadd.f32 %v783, %v769
  %v785 = vadd.f32 %v784, %v770
  %v786 = vadd.f32 %v785, %v771
  %v787 = vadd.f32 %v786, %v772
  %788 = vadd.xlane.f32.xlu0 %v787
  %v789 = vpop.xlane.xlu0 %788
  %v790 = vrot.slane %v789, 4
  %v791 = vadd.f32 %v789, %v790
  %v792 = vrot.slane %v791, 2
  %v793 = vadd.f32 %v791, %v792
  %v794 = vrot.slane %v793, 1
  %v795 = vadd.f32 %v793, %v794
  %s796 = vtos %v795
  %v797 = vld [vmem:[%s0] sm:$0xf]
  %v798 = vld [vmem:[%s0 + $0x4] sm:$0xf]
  %v799 = vld [vmem:[%s0 + $0x8] sm:$0xf]
  %v800 = vld [vmem:[%s0 + $0xc] sm:$0xf]
  %v801 = vld [vmem:[%s0 + $0x10] sm:$0xf]
  %v802 = vld [vmem:[%s0 + $0x14] sm:$0xf]
  %v803 = vld [vmem:[%s0 + $0x18] sm:$0xf]
  %v804 = vld [vmem:[%s0 + $0x1c] sm:$0xf]
  %v805 = vld [vmem:[%s0 + $0x20] sm:$0xf]
  %v806 = vld [vmem:[%s0 + $0x24] sm:$0xf]
  %v807 = vld [vmem:[%s0 + $0x28] sm:$0xf]
  %v808 = vld [vmem:[%s0 + $0x2c] sm:$0xf]
  %v809 = vld [vmem:[%s0 + $0x30] sm:$0xf]
  %v810 = vld [vmem:[%s0 + $0x34] sm:$0xf]
  %v811 = vld [vmem:[%s0 + $0x38] sm:$0xf]
  %v812 = vld [vmem:[%s0 + $0x3c] sm:$0xf]
  %v813 = vld [vmem:[%s0 + $0x40] sm:$0xf]
  %v814 = vld [vmem:[%s0 + $0x44] sm:$0xf]
  %v815 = vld [vmem:[%s0 + $0x48] sm:$0xf]
  %v816 = vld [vmem:[%s0 + $0x4c] sm:$0xf]
  %v817 = vld [vmem:[%s0 + $0x50] sm:$0xf]
  %v818 = vld [vmem:[%s0 + $0x54] sm:$0xf]
  %v819 = vld [vmem:[%s0 + $0x58] sm:$0xf]
  %v820 = vld [vmem:[%s0 + $0x5c] sm:$0xf]
  %v821 = vld [vmem:[%s0 + $0x60] sm:$0xf]
  %v822 = vld [vmem:[%s0 + $0x64] sm:$0xf]
  %v823 = vld [vmem:[%s0 + $0x68] sm:$0xf]
  %v824 = vld [vmem:[%s0 + $0x6c] sm:$0xf]
  %v825 = vld [vmem:[%s0 + $0x70] sm:$0xf]
  %v826 = vld [vmem:[%s0 + $0x74] sm:$0xf]
  %v827 = vld [vmem:[%s0 + $0x78] sm:$0xf]
  %v828 = vld [vmem:[%s0 + $0x7c] sm:$0xf]
  %v829 = vld [vmem:[%s0 + $0x80] sm:$0xf]
  %v830 = vld [vmem:[%s0 + $0x84] sm:$0xf]
  %v831 = vld [vmem:[%s0 + $0x88] sm:$0xf]
  %v832 = vld [vmem:[%s0 + $0x8c] sm:$0xf]
  %v833 = vld [vmem:[%s0 + $0x90] sm:$0xf]
  %v834 = vld [vmem:[%s0 + $0x94] sm:$0xf]
  %v835 = vld [vmem:[%s0 + $0x98] sm:$0xf]
  %v836 = vld [vmem:[%s0 + $0x9c] sm:$0xf]
  %v837 = vld [vmem:[%s0 + $0xa0] sm:$0xf]
  %v838 = vld [vmem:[%s0 + $0xa4] sm:$0xf]
  %v839 = vld [vmem:[%s0 + $0xa8] sm:$0xf]
  %v840 = vld [vmem:[%s0 + $0xac] sm:$0xf]
  %v841 = vld [vmem:[%s0 + $0xb0] sm:$0xf]
  %v842 = vld [vmem:[%s0 + $0xb4] sm:$0xf]
  %v843 = vld [vmem:[%s0 + $0xb8] sm:$0xf]
  %v844 = vld [vmem:[%s0 + $0xbc] sm:$0xf]
  %v845 = vld [vmem:[%s0 + $0xc0] sm:$0xf]
  %v846 = vld [vmem:[%s0 + $0xc4] sm:$0xf]
  %v847 = vld [vmem:[%s0 + $0xc8] sm:$0xf]
  %v848 = vld [vmem:[%s0 + $0xcc] sm:$0xf]
  %v849 = vld [vmem:[%s0 + $0xd0] sm:$0xf]
  %v850 = vld [vmem:[%s0 + $0xd4] sm:$0xf]
  %v851 = vld [vmem:[%s0 + $0xd8] sm:$0xf]
  %v852 = vld [vmem:[%s0 + $0xdc] sm:$0xf]
  %v853 = vld [vmem:[%s0 + $0xe0] sm:$0xf]
  %v854 = vld [vmem:[%s0 + $0xe4] sm:$0xf]
  %v855 = vld [vmem:[%s0 + $0xe8] sm:$0xf]
  %v856 = vld [vmem:[%s0 + $0xec] sm:$0xf]
  %v857 = vld [vmem:[%s0 + $0xf0] sm:$0xf]
  %v858 = vld [vmem:[%s0 + $0xf4] sm:$0xf]
  %v859 = vld [vmem:[%s0 + $0xf8] sm:$0xf]
  %v860 = vld [vmem:[%s0 + $0xfc] sm:$0xf]
  %v861 = vunpack.c.l.bf16 %v797
  %v862 = vunpack.c.l.bf16 %v798
  %v863 = vunpack.c.l.bf16 %v799
  %v864 = vunpack.c.l.bf16 %v800
  %v865 = vunpack.c.l.bf16 %v801
  %v866 = vunpack.c.l.bf16 %v802
  %v867 = vunpack.c.l.bf16 %v803
  %v868 = vunpack.c.l.bf16 %v804
  %v869 = vunpack.c.l.bf16 %v805
  %v870 = vunpack.c.l.bf16 %v806
  %v871 = vunpack.c.l.bf16 %v807
  %v872 = vunpack.c.l.bf16 %v808
  %v873 = vunpack.c.l.bf16 %v809
  %v874 = vunpack.c.l.bf16 %v810
  %v875 = vunpack.c.l.bf16 %v811
  %v876 = vunpack.c.l.bf16 %v812
  %v877 = vunpack.c.l.bf16 %v813
  %v878 = vunpack.c.l.bf16 %v814
  %v879 = vunpack.c.l.bf16 %v815
  %v880 = vunpack.c.l.bf16 %v816
  %v881 = vunpack.c.l.bf16 %v817
  %v882 = vunpack.c.l.bf16 %v818
  %v883 = vunpack.c.l.bf16 %v819
  %v884 = vunpack.c.l.bf16 %v820
  %v885 = vunpack.c.l.bf16 %v821
  %v886 = vunpack.c.l.bf16 %v822
  %v887 = vunpack.c.l.bf16 %v823
  %v888 = vunpack.c.l.bf16 %v824
  %v889 = vunpack.c.l.bf16 %v825
  %v890 = vunpack.c.l.bf16 %v826
  %v891 = vunpack.c.l.bf16 %v827
  %v892 = vunpack.c.l.bf16 %v828
  %v893 = vunpack.c.l.bf16 %v829
  %v894 = vunpack.c.l.bf16 %v830
  %v895 = vunpack.c.l.bf16 %v831
  %v896 = vunpack.c.l.bf16 %v832
  %v897 = vunpack.c.l.bf16 %v833
  %v898 = vunpack.c.l.bf16 %v834
  %v899 = vunpack.c.l.bf16 %v835
  %v900 = vunpack.c.l.bf16 %v836
  %v901 = vunpack.c.l.bf16 %v837
  %v902 = vunpack.c.l.bf16 %v838
  %v903 = vunpack.c.l.bf16 %v839
  %v904 = vunpack.c.l.bf16 %v840
  %v905 = vunpack.c.l.bf16 %v841
  %v906 = vunpack.c.l.bf16 %v842
  %v907 = vunpack.c.l.bf16 %v843
  %v908 = vunpack.c.l.bf16 %v844
  %v909 = vunpack.c.l.bf16 %v845
  %v910 = vunpack.c.l.bf16 %v846
  %v911 = vunpack.c.l.bf16 %v847
  %v912 = vunpack.c.l.bf16 %v848
  %v913 = vunpack.c.l.bf16 %v849
  %v914 = vunpack.c.l.bf16 %v850
  %v915 = vunpack.c.l.bf16 %v851
  %v916 = vunpack.c.l.bf16 %v852
  %v917 = vunpack.c.l.bf16 %v853
  %v918 = vunpack.c.l.bf16 %v854
  %v919 = vunpack.c.l.bf16 %v855
  %v920 = vunpack.c.l.bf16 %v856
  %v921 = vunpack.c.l.bf16 %v857
  %v922 = vunpack.c.l.bf16 %v858
  %v923 = vunpack.c.l.bf16 %v859
  %v924 = vunpack.c.l.bf16 %v860
  %v925 = vld [vmem:[%s90] sm:$0xf]
  %v926 = vld [vmem:[%s90 + $0x4] sm:$0xf]
  %v927 = vld [vmem:[%s90 + $0x8] sm:$0xf]
  %v928 = vld [vmem:[%s90 + $0xc] sm:$0xf]
  %v929 = vld [vmem:[%s90 + $0x10] sm:$0xf]
  %v930 = vld [vmem:[%s90 + $0x14] sm:$0xf]
  %v931 = vld [vmem:[%s90 + $0x18] sm:$0xf]
  %v932 = vld [vmem:[%s90 + $0x1c] sm:$0xf]
  %v933 = vld [vmem:[%s90 + $0x20] sm:$0xf]
  %v934 = vld [vmem:[%s90 + $0x24] sm:$0xf]
  %v935 = vld [vmem:[%s90 + $0x28] sm:$0xf]
  %v936 = vld [vmem:[%s90 + $0x2c] sm:$0xf]
  %v937 = vld [vmem:[%s90 + $0x30] sm:$0xf]
  %v938 = vld [vmem:[%s90 + $0x34] sm:$0xf]
  %v939 = vld [vmem:[%s90 + $0x38] sm:$0xf]
  %v940 = vld [vmem:[%s90 + $0x3c] sm:$0xf]
  %v941 = vld [vmem:[%s90 + $0x40] sm:$0xf]
  %v942 = vld [vmem:[%s90 + $0x44] sm:$0xf]
  %v943 = vld [vmem:[%s90 + $0x48] sm:$0xf]
  %v944 = vld [vmem:[%s90 + $0x4c] sm:$0xf]
  %v945 = vld [vmem:[%s90 + $0x50] sm:$0xf]
  %v946 = vld [vmem:[%s90 + $0x54] sm:$0xf]
  %v947 = vld [vmem:[%s90 + $0x58] sm:$0xf]
  %v948 = vld [vmem:[%s90 + $0x5c] sm:$0xf]
  %v949 = vld [vmem:[%s90 + $0x60] sm:$0xf]
  %v950 = vld [vmem:[%s90 + $0x64] sm:$0xf]
  %v951 = vld [vmem:[%s90 + $0x68] sm:$0xf]
  %v952 = vld [vmem:[%s90 + $0x6c] sm:$0xf]
  %v953 = vld [vmem:[%s90 + $0x70] sm:$0xf]
  %v954 = vld [vmem:[%s90 + $0x74] sm:$0xf]
  %v955 = vld [vmem:[%s90 + $0x78] sm:$0xf]
  %v956 = vld [vmem:[%s90 + $0x7c] sm:$0xf]
  %v957 = vld [vmem:[%s90 + $0x80] sm:$0xf]
  %v958 = vld [vmem:[%s90 + $0x84] sm:$0xf]
  %v959 = vld [vmem:[%s90 + $0x88] sm:$0xf]
  %v960 = vld [vmem:[%s90 + $0x8c] sm:$0xf]
  %v961 = vld [vmem:[%s90 + $0x90] sm:$0xf]
  %v962 = vld [vmem:[%s90 + $0x94] sm:$0xf]
  %v963 = vld [vmem:[%s90 + $0x98] sm:$0xf]
  %v964 = vld [vmem:[%s90 + $0x9c] sm:$0xf]
  %v965 = vld [vmem:[%s90 + $0xa0] sm:$0xf]
  %v966 = vld [vmem:[%s90 + $0xa4] sm:$0xf]
  %v967 = vld [vmem:[%s90 + $0xa8] sm:$0xf]
  %v968 = vld [vmem:[%s90 + $0xac] sm:$0xf]
  %v969 = vld [vmem:[%s90 + $0xb0] sm:$0xf]
  %v970 = vld [vmem:[%s90 + $0xb4] sm:$0xf]
  %v971 = vld [vmem:[%s90 + $0xb8] sm:$0xf]
  %v972 = vld [vmem:[%s90 + $0xbc] sm:$0xf]
  %v973 = vld [vmem:[%s90 + $0xc0] sm:$0xf]
  %v974 = vld [vmem:[%s90 + $0xc4] sm:$0xf]
  %v975 = vld [vmem:[%s90 + $0xc8] sm:$0xf]
  %v976 = vld [vmem:[%s90 + $0xcc] sm:$0xf]
  %v977 = vld [vmem:[%s90 + $0xd0] sm:$0xf]
  %v978 = vld [vmem:[%s90 + $0xd4] sm:$0xf]
  %v979 = vld [vmem:[%s90 + $0xd8] sm:$0xf]
  %v980 = vld [vmem:[%s90 + $0xdc] sm:$0xf]
  %v981 = vld [vmem:[%s90 + $0xe0] sm:$0xf]
  %v982 = vld [vmem:[%s90 + $0xe4] sm:$0xf]
  %v983 = vld [vmem:[%s90 + $0xe8] sm:$0xf]
  %v984 = vld [vmem:[%s90 + $0xec] sm:$0xf]
  %v985 = vld [vmem:[%s90 + $0xf0] sm:$0xf]
  %v986 = vld [vmem:[%s90 + $0xf4] sm:$0xf]
  %v987 = vld [vmem:[%s90 + $0xf8] sm:$0xf]
  %v988 = vld [vmem:[%s90 + $0xfc] sm:$0xf]
  %v989 = vunpack.c.l.bf16 %v925
  %v990 = vunpack.c.l.bf16 %v926
  %v991 = vunpack.c.l.bf16 %v927
  %v992 = vunpack.c.l.bf16 %v928
  %v993 = vunpack.c.l.bf16 %v929
  %v994 = vunpack.c.l.bf16 %v930
  %v995 = vunpack.c.l.bf16 %v931
  %v996 = vunpack.c.l.bf16 %v932
  %v997 = vunpack.c.l.bf16 %v933
  %v998 = vunpack.c.l.bf16 %v934
  %v999 = vunpack.c.l.bf16 %v935
  %v1000 = vunpack.c.l.bf16 %v936
  %v1001 = vunpack.c.l.bf16 %v937
  %v1002 = vunpack.c.l.bf16 %v938
  %v1003 = vunpack.c.l.bf16 %v939
  %v1004 = vunpack.c.l.bf16 %v940
  %v1005 = vunpack.c.l.bf16 %v941
  %v1006 = vunpack.c.l.bf16 %v942
  %v1007 = vunpack.c.l.bf16 %v943
  %v1008 = vunpack.c.l.bf16 %v944
  %v1009 = vunpack.c.l.bf16 %v945
  %v1010 = vunpack.c.l.bf16 %v946
  %v1011 = vunpack.c.l.bf16 %v947
  %v1012 = vunpack.c.l.bf16 %v948
  %v1013 = vunpack.c.l.bf16 %v949
  %v1014 = vunpack.c.l.bf16 %v950
  %v1015 = vunpack.c.l.bf16 %v951
  %v1016 = vunpack.c.l.bf16 %v952
  %v1017 = vunpack.c.l.bf16 %v953
  %v1018 = vunpack.c.l.bf16 %v954
  %v1019 = vunpack.c.l.bf16 %v955
  %v1020 = vunpack.c.l.bf16 %v956
  %v1021 = vunpack.c.l.bf16 %v957
  %v1022 = vunpack.c.l.bf16 %v958
  %v1023 = vunpack.c.l.bf16 %v959
  %v1024 = vunpack.c.l.bf16 %v960
  %v1025 = vunpack.c.l.bf16 %v961
  %v1026 = vunpack.c.l.bf16 %v962
  %v1027 = vunpack.c.l.bf16 %v963
  %v1028 = vunpack.c.l.bf16 %v964
  %v1029 = vunpack.c.l.bf16 %v965
  %v1030 = vunpack.c.l.bf16 %v966
  %v1031 = vunpack.c.l.bf16 %v967
  %v1032 = vunpack.c.l.bf16 %v968
  %v1033 = vunpack.c.l.bf16 %v969
  %v1034 = vunpack.c.l.bf16 %v970
  %v1035 = vunpack.c.l.bf16 %v971
  %v1036 = vunpack.c.l.bf16 %v972
  %v1037 = vunpack.c.l.bf16 %v973
  %v1038 = vunpack.c.l.bf16 %v974
  %v1039 = vunpack.c.l.bf16 %v975
  %v1040 = vunpack.c.l.bf16 %v976
  %v1041 = vunpack.c.l.bf16 %v977
  %v1042 = vunpack.c.l.bf16 %v978
  %v1043 = vunpack.c.l.bf16 %v979
  %v1044 = vunpack.c.l.bf16 %v980
  %v1045 = vunpack.c.l.bf16 %v981
  %v1046 = vunpack.c.l.bf16 %v982
  %v1047 = vunpack.c.l.bf16 %v983
  %v1048 = vunpack.c.l.bf16 %v984
  %v1049 = vunpack.c.l.bf16 %v985
  %v1050 = vunpack.c.l.bf16 %v986
  %v1051 = vunpack.c.l.bf16 %v987
  %v1052 = vunpack.c.l.bf16 %v988
  %v1053 = vsub.f32 %v861, %v989
  %v1054 = vsub.f32 %v862, %v990
  %v1055 = vsub.f32 %v863, %v991
  %v1056 = vsub.f32 %v864, %v992
  %v1057 = vsub.f32 %v865, %v993
  %v1058 = vsub.f32 %v866, %v994
  %v1059 = vsub.f32 %v867, %v995
  %v1060 = vsub.f32 %v868, %v996
  %v1061 = vsub.f32 %v869, %v997
  %v1062 = vsub.f32 %v870, %v998
  %v1063 = vsub.f32 %v871, %v999
  %v1064 = vsub.f32 %v872, %v1000
  %v1065 = vsub.f32 %v873, %v1001
  %v1066 = vsub.f32 %v874, %v1002
  %v1067 = vsub.f32 %v875, %v1003
  %v1068 = vsub.f32 %v876, %v1004
  %v1069 = vsub.f32 %v877, %v1005
  %v1070 = vsub.f32 %v878, %v1006
  %v1071 = vsub.f32 %v879, %v1007
  %v1072 = vsub.f32 %v880, %v1008
  %v1073 = vsub.f32 %v881, %v1009
  %v1074 = vsub.f32 %v882, %v1010
  %v1075 = vsub.f32 %v883, %v1011
  %v1076 = vsub.f32 %v884, %v1012
  %v1077 = vsub.f32 %v885, %v1013
  %v1078 = vsub.f32 %v886, %v1014
  %v1079 = vsub.f32 %v887, %v1015
  %v1080 = vsub.f32 %v888, %v1016
  %v1081 = vsub.f32 %v889, %v1017
  %v1082 = vsub.f32 %v890, %v1018
  %v1083 = vsub.f32 %v891, %v1019
  %v1084 = vsub.f32 %v892, %v1020
  %v1085 = vsub.f32 %v893, %v1021
  %v1086 = vsub.f32 %v894, %v1022
  %v1087 = vsub.f32 %v895, %v1023
  %v1088 = vsub.f32 %v896, %v1024
  %v1089 = vsub.f32 %v897, %v1025
  %v1090 = vsub.f32 %v898, %v1026
  %v1091 = vsub.f32 %v899, %v1027
  %v1092 = vsub.f32 %v900, %v1028
  %v1093 = vsub.f32 %v901, %v1029
  %v1094 = vsub.f32 %v902, %v1030
  %v1095 = vsub.f32 %v903, %v1031
  %v1096 = vsub.f32 %v904, %v1032
  %v1097 = vsub.f32 %v905, %v1033
  %v1098 = vsub.f32 %v906, %v1034
  %v1099 = vsub.f32 %v907, %v1035
  %v1100 = vsub.f32 %v908, %v1036
  %v1101 = vsub.f32 %v909, %v1037
  %v1102 = vsub.f32 %v910, %v1038
  %v1103 = vsub.f32 %v911, %v1039
  %v1104 = vsub.f32 %v912, %v1040
  %v1105 = vsub.f32 %v913, %v1041
  %v1106 = vsub.f32 %v914, %v1042
  %v1107 = vsub.f32 %v915, %v1043
  %v1108 = vsub.f32 %v916, %v1044
  %v1109 = vsub.f32 %v917, %v1045
  %v1110 = vsub.f32 %v918, %v1046
  %v1111 = vsub.f32 %v919, %v1047
  %v1112 = vsub.f32 %v920, %v1048
  %v1113 = vsub.f32 %v921, %v1049
  %v1114 = vsub.f32 %v922, %v1050
  %v1115 = vsub.f32 %v923, %v1051
  %v1116 = vsub.f32 %v924, %v1052
  %v1117 = vpack.c.bf16 %v1054, %v1053
  %v1118 = vpack.c.bf16 %v1056, %v1055
  %v1119 = vpack.c.bf16 %v1058, %v1057
  %v1120 = vpack.c.bf16 %v1060, %v1059
  %v1121 = vpack.c.bf16 %v1062, %v1061
  %v1122 = vpack.c.bf16 %v1064, %v1063
  %v1123 = vpack.c.bf16 %v1066, %v1065
  %v1124 = vpack.c.bf16 %v1068, %v1067
  %v1125 = vpack.c.bf16 %v1070, %v1069
  %v1126 = vpack.c.bf16 %v1072, %v1071
  %v1127 = vpack.c.bf16 %v1074, %v1073
  %v1128 = vpack.c.bf16 %v1076, %v1075
  %v1129 = vpack.c.bf16 %v1078, %v1077
  %v1130 = vpack.c.bf16 %v1080, %v1079
  %v1131 = vpack.c.bf16 %v1082, %v1081
  %v1132 = vpack.c.bf16 %v1084, %v1083
  %v1133 = vpack.c.bf16 %v1086, %v1085
  %v1134 = vpack.c.bf16 %v1088, %v1087
  %v1135 = vpack.c.bf16 %v1090, %v1089
  %v1136 = vpack.c.bf16 %v1092, %v1091
  %v1137 = vpack.c.bf16 %v1094, %v1093
  %v1138 = vpack.c.bf16 %v1096, %v1095
  %v1139 = vpack.c.bf16 %v1098, %v1097
  %v1140 = vpack.c.bf16 %v1100, %v1099
  %v1141 = vpack.c.bf16 %v1102, %v1101
  %v1142 = vpack.c.bf16 %v1104, %v1103
  %v1143 = vpack.c.bf16 %v1106, %v1105
  %v1144 = vpack.c.bf16 %v1108, %v1107
  %v1145 = vpack.c.bf16 %v1110, %v1109
  %v1146 = vpack.c.bf16 %v1112, %v1111
  %v1147 = vpack.c.bf16 %v1114, %v1113
  %v1148 = vpack.c.bf16 %v1116, %v1115
  %v1149 = vld [vmem:[%s8] sm:$0xf]
  %v1150 = vld [vmem:[%s8 + $0x4] sm:$0xf]
  %v1151 = vld [vmem:[%s8 + $0x8] sm:$0xf]
  %v1152 = vld [vmem:[%s8 + $0xc] sm:$0xf]
  %v1153 = vld [vmem:[%s8 + $0x10] sm:$0xf]
  %v1154 = vld [vmem:[%s8 + $0x14] sm:$0xf]
  %v1155 = vld [vmem:[%s8 + $0x18] sm:$0xf]
  %v1156 = vld [vmem:[%s8 + $0x1c] sm:$0xf]
  %v1157 = vld [vmem:[%s8 + $0x20] sm:$0xf]
  %v1158 = vld [vmem:[%s8 + $0x24] sm:$0xf]
  %v1159 = vld [vmem:[%s8 + $0x28] sm:$0xf]
  %v1160 = vld [vmem:[%s8 + $0x2c] sm:$0xf]
  %v1161 = vld [vmem:[%s8 + $0x30] sm:$0xf]
  %v1162 = vld [vmem:[%s8 + $0x34] sm:$0xf]
  %v1163 = vld [vmem:[%s8 + $0x38] sm:$0xf]
  %v1164 = vld [vmem:[%s8 + $0x3c] sm:$0xf]
  %1165 = vst [vmem:[#allocation3] sm:$0xff] %v695
  %1166 = vst [vmem:[#allocation3 + $0x8] sm:$0xff] %v695
  %1167 = vst [vmem:[#allocation3 + $0x10] sm:$0xff] %v698
  %1168 = vst [vmem:[#allocation3 + $0x18] sm:$0xff] %v698
  %1169 = vst [vmem:[#allocation3 + $0x20] sm:$0xff] %v703
  %1170 = vst [vmem:[#allocation3 + $0x28] sm:$0xff] %v703
  %1171 = vst [vmem:[#allocation3 + $0x30] sm:$0xff] %v706
  %1172 = vst [vmem:[#allocation3 + $0x38] sm:$0xff] %v706
  %1173 = vst [vmem:[#allocation3 + $0x40] sm:$0xff] %v711
  %1174 = vst [vmem:[#allocation3 + $0x48] sm:$0xff] %v711
  %1175 = vst [vmem:[#allocation3 + $0x50] sm:$0xff] %v714
  %1176 = vst [vmem:[#allocation3 + $0x58] sm:$0xff] %v714
  %1177 = vst [vmem:[#allocation3 + $0x60] sm:$0xff] %v719
  %1178 = vst [vmem:[#allocation3 + $0x68] sm:$0xff] %v719
  %1179 = vst [vmem:[#allocation3 + $0x70] sm:$0xff] %v722
  %1180 = vst [vmem:[#allocation3 + $0x78] sm:$0xff] %v722
  %1181 = vst [vmem:[#allocation3 + $0x80] sm:$0xff] %v727
  %1182 = vst [vmem:[#allocation3 + $0x88] sm:$0xff] %v727
  %1183 = vst [vmem:[#allocation3 + $0x90] sm:$0xff] %v730
  %1184 = vst [vmem:[#allocation3 + $0x98] sm:$0xff] %v730
  %1185 = vst [vmem:[#allocation3 + $0xa0] sm:$0xff] %v735
  %1186 = vst [vmem:[#allocation3 + $0xa8] sm:$0xff] %v735
  %1187 = vst [vmem:[#allocation3 + $0xb0] sm:$0xff] %v738
  %1188 = vst [vmem:[#allocation3 + $0xb8] sm:$0xff] %v738
  %1189 = vst [vmem:[#allocation3 + $0xc0] sm:$0xff] %v743
  %1190 = vst [vmem:[#allocation3 + $0xc8] sm:$0xff] %v743
  %1191 = vst [vmem:[#allocation3 + $0xd0] sm:$0xff] %v746
  %1192 = vst [vmem:[#allocation3 + $0xd8] sm:$0xff] %v746
  %1193 = vst [vmem:[#allocation3 + $0xe0] sm:$0xff] %v751
  %1194 = vst [vmem:[#allocation3 + $0xe8] sm:$0xff] %v751
  %1195 = vst [vmem:[#allocation3 + $0xf0] sm:$0xff] %v754
  %1196 = vst [vmem:[#allocation3 + $0xf8] sm:$0xff] %v754
  %v1197 = vld [vmem:[#allocation3] sm:$0xff]
  %v1198 = vld [vmem:[#allocation3 + $0x8] sm:$0xff]
  %v1199 = vld [vmem:[#allocation3 + $0x10] sm:$0xff]
  %v1200 = vld [vmem:[#allocation3 + $0x18] sm:$0xff]
  %v1201 = vld [vmem:[#allocation3 + $0x20] sm:$0xff]
  %v1202 = vld [vmem:[#allocation3 + $0x28] sm:$0xff]
  %v1203 = vld [vmem:[#allocation3 + $0x30] sm:$0xff]
  %v1204 = vld [vmem:[#allocation3 + $0x38] sm:$0xff]
  %v1205 = vld [vmem:[#allocation3 + $0x40] sm:$0xff]
  %v1206 = vld [vmem:[#allocation3 + $0x48] sm:$0xff]
  %v1207 = vld [vmem:[#allocation3 + $0x50] sm:$0xff]
  %v1208 = vld [vmem:[#allocation3 + $0x58] sm:$0xff]
  %v1209 = vld [vmem:[#allocation3 + $0x60] sm:$0xff]
  %v1210 = vld [vmem:[#allocation3 + $0x68] sm:$0xff]
  %v1211 = vld [vmem:[#allocation3 + $0x70] sm:$0xff]
  %v1212 = vld [vmem:[#allocation3 + $0x78] sm:$0xff]
  %v1213 = vld [vmem:[#allocation3 + $0x80] sm:$0xff]
  %v1214 = vld [vmem:[#allocation3 + $0x88] sm:$0xff]
  %v1215 = vld [vmem:[#allocation3 + $0x90] sm:$0xff]
  %v1216 = vld [vmem:[#allocation3 + $0x98] sm:$0xff]
  %v1217 = vld [vmem:[#allocation3 + $0xa0] sm:$0xff]
  %v1218 = vld [vmem:[#allocation3 + $0xa8] sm:$0xff]
  %v1219 = vld [vmem:[#allocation3 + $0xb0] sm:$0xff]
  %v1220 = vld [vmem:[#allocation3 + $0xb8] sm:$0xff]
  %v1221 = vld [vmem:[#allocation3 + $0xc0] sm:$0xff]
  %v1222 = vld [vmem:[#allocation3 + $0xc8] sm:$0xff]
  %v1223 = vld [vmem:[#allocation3 + $0xd0] sm:$0xff]
  %v1224 = vld [vmem:[#allocation3 + $0xd8] sm:$0xff]
  %v1225 = vld [vmem:[#allocation3 + $0xe0] sm:$0xff]
  %v1226 = vld [vmem:[#allocation3 + $0xe8] sm:$0xff]
  %v1227 = vld [vmem:[#allocation3 + $0xf0] sm:$0xff]
  %v1228 = vld [vmem:[#allocation3 + $0xf8] sm:$0xff]
  %1229 = vst [vmem:[#allocation2] ss:$2 sm:$0xff] %v1197
  %s1230 = scalar_lea.vmem [#allocation2], 16
  %1231 = vst [vmem:[%s1230] ss:$2 sm:$0xff] %v1198
  %s1232 = scalar_lea.vmem [#allocation2], 32
  %1233 = vst [vmem:[%s1232] ss:$2 sm:$0xff] %v1199
  %s1234 = scalar_lea.vmem [#allocation2], 48
  %1235 = vst [vmem:[%s1234] ss:$2 sm:$0xff] %v1200
  %s1236 = scalar_lea.vmem [#allocation2], 64
  %1237 = vst [vmem:[%s1236] ss:$2 sm:$0xff] %v1201
  %s1238 = scalar_lea.vmem [#allocation2], 80
  %1239 = vst [vmem:[%s1238] ss:$2 sm:$0xff] %v1202
  %s1240 = scalar_lea.vmem [#allocation2], 96
  %1241 = vst [vmem:[%s1240] ss:$2 sm:$0xff] %v1203
  %s1242 = scalar_lea.vmem [#allocation2], 112
  %1243 = vst [vmem:[%s1242] ss:$2 sm:$0xff] %v1204
  %s1244 = scalar_lea.vmem [#allocation2], 128
  %1245 = vst [vmem:[%s1244] ss:$2 sm:$0xff] %v1205
  %s1246 = scalar_lea.vmem [#allocation2], 144
  %1247 = vst [vmem:[%s1246] ss:$2 sm:$0xff] %v1206
  %s1248 = scalar_lea.vmem [#allocation2], 160
  %1249 = vst [vmem:[%s1248] ss:$2 sm:$0xff] %v1207
  %s1250 = scalar_lea.vmem [#allocation2], 176
  %1251 = vst [vmem:[%s1250] ss:$2 sm:$0xff] %v1208
  %s1252 = scalar_lea.vmem [#allocation2], 192
  %1253 = vst [vmem:[%s1252] ss:$2 sm:$0xff] %v1209
  %s1254 = scalar_lea.vmem [#allocation2], 208
  %1255 = vst [vmem:[%s1254] ss:$2 sm:$0xff] %v1210
  %s1256 = scalar_lea.vmem [#allocation2], 224
  %1257 = vst [vmem:[%s1256] ss:$2 sm:$0xff] %v1211
  %s1258 = scalar_lea.vmem [#allocation2], 240
  %1259 = vst [vmem:[%s1258] ss:$2 sm:$0xff] %v1212
  %s1260 = scalar_lea.vmem [#allocation2], 256
  %1261 = vst [vmem:[%s1260] ss:$2 sm:$0xff] %v1213
  %s1262 = scalar_lea.vmem [#allocation2], 272
  %1263 = vst [vmem:[%s1262] ss:$2 sm:$0xff] %v1214
  %s1264 = scalar_lea.vmem [#allocation2], 288
  %1265 = vst [vmem:[%s1264] ss:$2 sm:$0xff] %v1215
  %s1266 = scalar_lea.vmem [#allocation2], 304
  %1267 = vst [vmem:[%s1266] ss:$2 sm:$0xff] %v1216
  %s1268 = scalar_lea.vmem [#allocation2], 320
  %1269 = vst [vmem:[%s1268] ss:$2 sm:$0xff] %v1217
  %s1270 = scalar_lea.vmem [#allocation2], 336
  %1271 = vst [vmem:[%s1270] ss:$2 sm:$0xff] %v1218
  %s1272 = scalar_lea.vmem [#allocation2], 352
  %1273 = vst [vmem:[%s1272] ss:$2 sm:$0xff] %v1219
  %s1274 = scalar_lea.vmem [#allocation2], 368
  %1275 = vst [vmem:[%s1274] ss:$2 sm:$0xff] %v1220
  %s1276 = scalar_lea.vmem [#allocation2], 384
  %1277 = vst [vmem:[%s1276] ss:$2 sm:$0xff] %v1221
  %s1278 = scalar_lea.vmem [#allocation2], 400
  %1279 = vst [vmem:[%s1278] ss:$2 sm:$0xff] %v1222
  %s1280 = scalar_lea.vmem [#allocation2], 416
  %1281 = vst [vmem:[%s1280] ss:$2 sm:$0xff] %v1223
  %s1282 = scalar_lea.vmem [#allocation2], 432
  %1283 = vst [vmem:[%s1282] ss:$2 sm:$0xff] %v1224
  %s1284 = scalar_lea.vmem [#allocation2], 448
  %1285 = vst [vmem:[%s1284] ss:$2 sm:$0xff] %v1225
  %s1286 = scalar_lea.vmem [#allocation2], 464
  %1287 = vst [vmem:[%s1286] ss:$2 sm:$0xff] %v1226
  %s1288 = scalar_lea.vmem [#allocation2], 480
  %1289 = vst [vmem:[%s1288] ss:$2 sm:$0xff] %v1227
  %s1290 = scalar_lea.vmem [#allocation2], 496
  %1291 = vst [vmem:[%s1290] ss:$2 sm:$0xff] %v1228
  %1292 = vst [vmem:[%s318] ss:$2 sm:$0xff] %v1197
  %1293 = vst [vmem:[%s320] ss:$2 sm:$0xff] %v1198
  %1294 = vst [vmem:[%s584] ss:$2 sm:$0xff] %v1199
  %1295 = vst [vmem:[%s586] ss:$2 sm:$0xff] %v1200
  %1296 = vst [vmem:[%s588] ss:$2 sm:$0xff] %v1201
  %1297 = vst [vmem:[%s590] ss:$2 sm:$0xff] %v1202
  %1298 = vst [vmem:[%s592] ss:$2 sm:$0xff] %v1203
  %1299 = vst [vmem:[%s594] ss:$2 sm:$0xff] %v1204
  %s1300 = scalar_lea.vmem [#allocation2], 129
  %1301 = vst [vmem:[%s1300] ss:$2 sm:$0xff] %v1205
  %s1302 = scalar_lea.vmem [#allocation2], 145
  %1303 = vst [vmem:[%s1302] ss:$2 sm:$0xff] %v1206
  %s1304 = scalar_lea.vmem [#allocation2], 161
  %1305 = vst [vmem:[%s1304] ss:$2 sm:$0xff] %v1207
  %s1306 = scalar_lea.vmem [#allocation2], 177
  %1307 = vst [vmem:[%s1306] ss:$2 sm:$0xff] %v1208
  %s1308 = scalar_lea.vmem [#allocation2], 193
  %1309 = vst [vmem:[%s1308] ss:$2 sm:$0xff] %v1209
  %s1310 = scalar_lea.vmem [#allocation2], 209
  %1311 = vst [vmem:[%s1310] ss:$2 sm:$0xff] %v1210
  %s1312 = scalar_lea.vmem [#allocation2], 225
  %1313 = vst [vmem:[%s1312] ss:$2 sm:$0xff] %v1211
  %s1314 = scalar_lea.vmem [#allocation2], 241
  %1315 = vst [vmem:[%s1314] ss:$2 sm:$0xff] %v1212
  %s1316 = scalar_lea.vmem [#allocation2], 257
  %1317 = vst [vmem:[%s1316] ss:$2 sm:$0xff] %v1213
  %s1318 = scalar_lea.vmem [#allocation2], 273
  %1319 = vst [vmem:[%s1318] ss:$2 sm:$0xff] %v1214
  %s1320 = scalar_lea.vmem [#allocation2], 289
  %1321 = vst [vmem:[%s1320] ss:$2 sm:$0xff] %v1215
  %s1322 = scalar_lea.vmem [#allocation2], 305
  %1323 = vst [vmem:[%s1322] ss:$2 sm:$0xff] %v1216
  %s1324 = scalar_lea.vmem [#allocation2], 321
  %1325 = vst [vmem:[%s1324] ss:$2 sm:$0xff] %v1217
  %s1326 = scalar_lea.vmem [#allocation2], 337
  %1327 = vst [vmem:[%s1326] ss:$2 sm:$0xff] %v1218
  %s1328 = scalar_lea.vmem [#allocation2], 353
  %1329 = vst [vmem:[%s1328] ss:$2 sm:$0xff] %v1219
  %s1330 = scalar_lea.vmem [#allocation2], 369
  %1331 = vst [vmem:[%s1330] ss:$2 sm:$0xff] %v1220
  %s1332 = scalar_lea.vmem [#allocation2], 385
  %1333 = vst [vmem:[%s1332] ss:$2 sm:$0xff] %v1221
  %s1334 = scalar_lea.vmem [#allocation2], 401
  %1335 = vst [vmem:[%s1334] ss:$2 sm:$0xff] %v1222
  %s1336 = scalar_lea.vmem [#allocation2], 417
  %1337 = vst [vmem:[%s1336] ss:$2 sm:$0xff] %v1223
  %s1338 = scalar_lea.vmem [#allocation2], 433
  %1339 = vst [vmem:[%s1338] ss:$2 sm:$0xff] %v1224
  %s1340 = scalar_lea.vmem [#allocation2], 449
  %1341 = vst [vmem:[%s1340] ss:$2 sm:$0xff] %v1225
  %s1342 = scalar_lea.vmem [#allocation2], 465
  %1343 = vst [vmem:[%s1342] ss:$2 sm:$0xff] %v1226
  %s1344 = scalar_lea.vmem [#allocation2], 481
  %1345 = vst [vmem:[%s1344] ss:$2 sm:$0xff] %v1227
  %s1346 = scalar_lea.vmem [#allocation2], 497
  %1347 = vst [vmem:[%s1346] ss:$2 sm:$0xff] %v1228
  %v1348 = vld [vmem:[#allocation2] sm:$0xff]
  %v1349 = vld [vmem:[#allocation2 + $0x8] sm:$0xff]
  %v1350 = vld [vmem:[#allocation2 + $0x10] sm:$0xff]
  %v1351 = vld [vmem:[#allocation2 + $0x18] sm:$0xff]
  %v1352 = vld [vmem:[#allocation2 + $0x20] sm:$0xff]
  %v1353 = vld [vmem:[#allocation2 + $0x28] sm:$0xff]
  %v1354 = vld [vmem:[#allocation2 + $0x30] sm:$0xff]
  %v1355 = vld [vmem:[#allocation2 + $0x38] sm:$0xff]
  %v1356 = vld [vmem:[#allocation2 + $0x40] sm:$0xff]
  %v1357 = vld [vmem:[#allocation2 + $0x48] sm:$0xff]
  %v1358 = vld [vmem:[#allocation2 + $0x50] sm:$0xff]
  %v1359 = vld [vmem:[#allocation2 + $0x58] sm:$0xff]
  %v1360 = vld [vmem:[#allocation2 + $0x60] sm:$0xff]
  %v1361 = vld [vmem:[#allocation2 + $0x68] sm:$0xff]
  %v1362 = vld [vmem:[#allocation2 + $0x70] sm:$0xff]
  %v1363 = vld [vmem:[#allocation2 + $0x78] sm:$0xff]
  %v1364 = vld [vmem:[#allocation2 + $0x80] sm:$0xff]
  %v1365 = vld [vmem:[#allocation2 + $0x88] sm:$0xff]
  %v1366 = vld [vmem:[#allocation2 + $0x90] sm:$0xff]
  %v1367 = vld [vmem:[#allocation2 + $0x98] sm:$0xff]
  %v1368 = vld [vmem:[#allocation2 + $0xa0] sm:$0xff]
  %v1369 = vld [vmem:[#allocation2 + $0xa8] sm:$0xff]
  %v1370 = vld [vmem:[#allocation2 + $0xb0] sm:$0xff]
  %v1371 = vld [vmem:[#allocation2 + $0xb8] sm:$0xff]
  %v1372 = vld [vmem:[#allocation2 + $0xc0] sm:$0xff]
  %v1373 = vld [vmem:[#allocation2 + $0xc8] sm:$0xff]
  %v1374 = vld [vmem:[#allocation2 + $0xd0] sm:$0xff]
  %v1375 = vld [vmem:[#allocation2 + $0xd8] sm:$0xff]
  %v1376 = vld [vmem:[#allocation2 + $0xe0] sm:$0xff]
  %v1377 = vld [vmem:[#allocation2 + $0xe8] sm:$0xff]
  %v1378 = vld [vmem:[#allocation2 + $0xf0] sm:$0xff]
  %v1379 = vld [vmem:[#allocation2 + $0xf8] sm:$0xff]
  %v1380 = vld [vmem:[#allocation2 + $0x100] sm:$0xff]
  %v1381 = vld [vmem:[#allocation2 + $0x108] sm:$0xff]
  %v1382 = vld [vmem:[#allocation2 + $0x110] sm:$0xff]
  %v1383 = vld [vmem:[#allocation2 + $0x118] sm:$0xff]
  %v1384 = vld [vmem:[#allocation2 + $0x120] sm:$0xff]
  %v1385 = vld [vmem:[#allocation2 + $0x128] sm:$0xff]
  %v1386 = vld [vmem:[#allocation2 + $0x130] sm:$0xff]
  %v1387 = vld [vmem:[#allocation2 + $0x138] sm:$0xff]
  %v1388 = vld [vmem:[#allocation2 + $0x140] sm:$0xff]
  %v1389 = vld [vmem:[#allocation2 + $0x148] sm:$0xff]
  %v1390 = vld [vmem:[#allocation2 + $0x150] sm:$0xff]
  %v1391 = vld [vmem:[#allocation2 + $0x158] sm:$0xff]
  %v1392 = vld [vmem:[#allocation2 + $0x160] sm:$0xff]
  %v1393 = vld [vmem:[#allocation2 + $0x168] sm:$0xff]
  %v1394 = vld [vmem:[#allocation2 + $0x170] sm:$0xff]
  %v1395 = vld [vmem:[#allocation2 + $0x178] sm:$0xff]
  %v1396 = vld [vmem:[#allocation2 + $0x180] sm:$0xff]
  %v1397 = vld [vmem:[#allocation2 + $0x188] sm:$0xff]
  %v1398 = vld [vmem:[#allocation2 + $0x190] sm:$0xff]
  %v1399 = vld [vmem:[#allocation2 + $0x198] sm:$0xff]
  %v1400 = vld [vmem:[#allocation2 + $0x1a0] sm:$0xff]
  %v1401 = vld [vmem:[#allocation2 + $0x1a8] sm:$0xff]
  %v1402 = vld [vmem:[#allocation2 + $0x1b0] sm:$0xff]
  %v1403 = vld [vmem:[#allocation2 + $0x1b8] sm:$0xff]
  %v1404 = vld [vmem:[#allocation2 + $0x1c0] sm:$0xff]
  %v1405 = vld [vmem:[#allocation2 + $0x1c8] sm:$0xff]
  %v1406 = vld [vmem:[#allocation2 + $0x1d0] sm:$0xff]
  %v1407 = vld [vmem:[#allocation2 + $0x1d8] sm:$0xff]
  %v1408 = vld [vmem:[#allocation2 + $0x1e0] sm:$0xff]
  %v1409 = vld [vmem:[#allocation2 + $0x1e8] sm:$0xff]
  %v1410 = vld [vmem:[#allocation2 + $0x1f0] sm:$0xff]
  %v1411 = vld [vmem:[#allocation2 + $0x1f8] sm:$0xff]
  %v1428 = vunpack.c.l.b16 %v1149
  %v1429 = vunpack.c.l.b16 %v1150
  %v1430 = vunpack.c.l.b16 %v1151
  %v1431 = vunpack.c.l.b16 %v1152
  %v1432 = vunpack.c.l.b16 %v1153
  %v1433 = vunpack.c.l.b16 %v1154
  %v1434 = vunpack.c.l.b16 %v1155
  %v1435 = vunpack.c.l.b16 %v1156
  %v1436 = vunpack.c.l.b16 %v1157
  %v1437 = vunpack.c.l.b16 %v1158
  %v1438 = vunpack.c.l.b16 %v1159
  %v1439 = vunpack.c.l.b16 %v1160
  %v1440 = vunpack.c.l.b16 %v1161
  %v1441 = vunpack.c.l.b16 %v1162
  %v1442 = vunpack.c.l.b16 %v1163
  %v1443 = vunpack.c.l.b16 %v1164
  %v1444 = vpack.c.b16 %v1429, %v1428
  %v1445 = vpack.c.b16 %v1431, %v1430
  %v1446 = vpack.c.b16 %v1433, %v1432
  %v1447 = vpack.c.b16 %v1435, %v1434
  %v1448 = vpack.c.b16 %v1437, %v1436
  %v1449 = vpack.c.b16 %v1439, %v1438
  %v1450 = vpack.c.b16 %v1441, %v1440
  %v1451 = vpack.c.b16 %v1443, %v1442
  %1460 = vmatprep.subr.bf16.mxu0 0
  %1461 = vmatpush1.bf16.msra.mxu0 %v1451
  %1462 = vmatprep.subr.bf16.mxu0 0
  %1463 = vmatpush1.bf16.msra.mxu0 %v1450
  %1464 = vmatprep.subr.bf16.mxu0 0
  %1465 = vmatpush1.bf16.msra.mxu0 %v1449
  %1466 = vmatprep.subr.bf16.mxu0 0
  %1467 = vmatpush1.bf16.msra.mxu0 %v1448
  %1468 = vmatprep.subr.bf16.mxu0 0
  %1469 = vmatpush1.bf16.msra.mxu0 %v1447
  %1470 = vmatprep.subr.bf16.mxu0 0
  %1471 = vmatpush1.bf16.msra.mxu0 %v1446
  %1472 = vmatprep.subr.bf16.mxu0 0
  %1473 = vmatpush1.bf16.msra.mxu0 %v1445
  %1474 = vmatprep.subr.bf16.mxu0 0
  %1475 = vmatpush1.bf16.msra.mxu0 %v1444
  %1476 = vmatprep.subr.bf16.mxu0 0
  %1477 = vmatpush2.bf16.msra.mxu0 0
  %1478 = vmatprep.subr.bf16.mxu0 0
  %1479 = vmatpush2.bf16.msra.mxu0 0
  %1480 = vmatprep.subr.bf16.mxu0 0
  %1481 = vmatpush2.bf16.msra.mxu0 0
  %1482 = vmatprep.subr.bf16.mxu0 0
  %1483 = vmatpush2.bf16.msra.mxu0 0
  %1484 = vmatprep.subr.bf16.mxu0 0
  %1485 = vmatpush2.bf16.msra.mxu0 0
  %1486 = vmatprep.subr.bf16.mxu0 0
  %1487 = vmatpush2.bf16.msra.mxu0 0
  %1488 = vmatprep.subr.bf16.mxu0 0
  %1489 = vmatpush2.bf16.msra.mxu0 0
  %1490 = vmatprep.subr.bf16.mxu0 0
  %1491 = vmatpush2.bf16.msra.mxu0 0
  %1492 = vmatprep.mubr.bf16.mxu0 0
  %1493 = vmatmul.mubr.bf16.gmra.mxu0 %v1117
  %v1494 = vpop.f32.mrf.mxu0
  %v1495 = vadd.f32 %v1348, %v1494
  %v1496 = vpop.f32.mrf.mxu0
  %v1497 = vpop.f32.mrf.mxu0
  %v1498 = vadd.f32 %v1349, %v1497
  %v1499 = vpop.f32.mrf.mxu0
  %1500 = vmatprep.mubr.bf16.mxu0 0
  %1501 = vmatmul.mubr.bf16.gmra.mxu0 %v1118
  %v1502 = vpop.f32.mrf.mxu0
  %v1503 = vadd.f32 %v1350, %v1502
  %v1504 = vpop.f32.mrf.mxu0
  %v1505 = vpop.f32.mrf.mxu0
  %v1506 = vadd.f32 %v1351, %v1505
  %v1507 = vpop.f32.mrf.mxu0
  %1508 = vmatprep.mubr.bf16.mxu0 0
  %1509 = vmatmul.mubr.bf16.gmra.mxu0 %v1119
  %v1510 = vpop.f32.mrf.mxu0
  %v1511 = vadd.f32 %v1352, %v1510
  %v1512 = vpop.f32.mrf.mxu0
  %v1513 = vpop.f32.mrf.mxu0
  %v1514 = vadd.f32 %v1353, %v1513
  %v1515 = vpop.f32.mrf.mxu0
  %1516 = vmatprep.mubr.bf16.mxu0 0
  %1517 = vmatmul.mubr.bf16.gmra.mxu0 %v1120
  %v1518 = vpop.f32.mrf.mxu0
  %v1519 = vadd.f32 %v1354, %v1518
  %v1520 = vpop.f32.mrf.mxu0
  %v1521 = vpop.f32.mrf.mxu0
  %v1522 = vadd.f32 %v1355, %v1521
  %v1523 = vpop.f32.mrf.mxu0
  %1524 = vmatprep.mubr.bf16.mxu0 0
  %1525 = vmatmul.mubr.bf16.gmra.mxu0 %v1121
  %v1526 = vpop.f32.mrf.mxu0
  %v1527 = vadd.f32 %v1356, %v1526
  %v1528 = vpop.f32.mrf.mxu0
  %v1529 = vpop.f32.mrf.mxu0
  %v1530 = vadd.f32 %v1357, %v1529
  %v1531 = vpop.f32.mrf.mxu0
  %1532 = vmatprep.mubr.bf16.mxu0 0
  %1533 = vmatmul.mubr.bf16.gmra.mxu0 %v1122
  %v1534 = vpop.f32.mrf.mxu0
  %v1535 = vadd.f32 %v1358, %v1534
  %v1536 = vpop.f32.mrf.mxu0
  %v1537 = vpop.f32.mrf.mxu0
  %v1538 = vadd.f32 %v1359, %v1537
  %v1539 = vpop.f32.mrf.mxu0
  %1540 = vmatprep.mubr.bf16.mxu0 0
  %1541 = vmatmul.mubr.bf16.gmra.mxu0 %v1123
  %v1542 = vpop.f32.mrf.mxu0
  %v1543 = vadd.f32 %v1360, %v1542
  %v1544 = vpop.f32.mrf.mxu0
  %v1545 = vpop.f32.mrf.mxu0
  %v1546 = vadd.f32 %v1361, %v1545
  %v1547 = vpop.f32.mrf.mxu0
  %1548 = vmatprep.mubr.bf16.mxu0 0
  %1549 = vmatmul.mubr.bf16.gmra.mxu0 %v1124
  %v1550 = vpop.f32.mrf.mxu0
  %v1551 = vadd.f32 %v1362, %v1550
  %v1552 = vpop.f32.mrf.mxu0
  %v1553 = vpop.f32.mrf.mxu0
  %v1554 = vadd.f32 %v1363, %v1553
  %v1555 = vpop.f32.mrf.mxu0
  %1556 = vmatprep.mubr.bf16.mxu0 0
  %1557 = vmatmul.mubr.bf16.gmra.mxu0 %v1125
  %v1558 = vpop.f32.mrf.mxu0
  %v1559 = vadd.f32 %v1364, %v1558
  %v1560 = vpop.f32.mrf.mxu0
  %v1561 = vpop.f32.mrf.mxu0
  %v1562 = vadd.f32 %v1365, %v1561
  %v1563 = vpop.f32.mrf.mxu0
  %1564 = vmatprep.mubr.bf16.mxu0 0
  %1565 = vmatmul.mubr.bf16.gmra.mxu0 %v1126
  %v1566 = vpop.f32.mrf.mxu0
  %v1567 = vadd.f32 %v1366, %v1566
  %v1568 = vpop.f32.mrf.mxu0
  %v1569 = vpop.f32.mrf.mxu0
  %v1570 = vadd.f32 %v1367, %v1569
  %v1571 = vpop.f32.mrf.mxu0
  %1572 = vmatprep.mubr.bf16.mxu0 0
  %1573 = vmatmul.mubr.bf16.gmra.mxu0 %v1127
  %v1574 = vpop.f32.mrf.mxu0
  %v1575 = vadd.f32 %v1368, %v1574
  %v1576 = vpop.f32.mrf.mxu0
  %v1577 = vpop.f32.mrf.mxu0
  %v1578 = vadd.f32 %v1369, %v1577
  %v1579 = vpop.f32.mrf.mxu0
  %1580 = vmatprep.mubr.bf16.mxu0 0
  %1581 = vmatmul.mubr.bf16.gmra.mxu0 %v1128
  %v1582 = vpop.f32.mrf.mxu0
  %v1583 = vadd.f32 %v1370, %v1582
  %v1584 = vpop.f32.mrf.mxu0
  %v1585 = vpop.f32.mrf.mxu0
  %v1586 = vadd.f32 %v1371, %v1585
  %v1587 = vpop.f32.mrf.mxu0
  %1588 = vmatprep.mubr.bf16.mxu0 0
  %1589 = vmatmul.mubr.bf16.gmra.mxu0 %v1129
  %v1590 = vpop.f32.mrf.mxu0
  %v1591 = vadd.f32 %v1372, %v1590
  %v1592 = vpop.f32.mrf.mxu0
  %v1593 = vpop.f32.mrf.mxu0
  %v1594 = vadd.f32 %v1373, %v1593
  %v1595 = vpop.f32.mrf.mxu0
  %1596 = vmatprep.mubr.bf16.mxu0 0
  %1597 = vmatmul.mubr.bf16.gmra.mxu0 %v1130
  %v1598 = vpop.f32.mrf.mxu0
  %v1599 = vadd.f32 %v1374, %v1598
  %v1600 = vpop.f32.mrf.mxu0
  %v1601 = vpop.f32.mrf.mxu0
  %v1602 = vadd.f32 %v1375, %v1601
  %v1603 = vpop.f32.mrf.mxu0
  %1604 = vmatprep.mubr.bf16.mxu0 0
  %1605 = vmatmul.mubr.bf16.gmra.mxu0 %v1131
  %v1606 = vpop.f32.mrf.mxu0
  %v1607 = vadd.f32 %v1376, %v1606
  %v1608 = vpop.f32.mrf.mxu0
  %v1609 = vpop.f32.mrf.mxu0
  %v1610 = vadd.f32 %v1377, %v1609
  %v1611 = vpop.f32.mrf.mxu0
  %1612 = vmatprep.mubr.bf16.mxu0 0
  %1613 = vmatmul.mubr.bf16.gmra.mxu0 %v1132
  %v1614 = vpop.f32.mrf.mxu0
  %v1615 = vadd.f32 %v1378, %v1614
  %v1616 = vpop.f32.mrf.mxu0
  %v1617 = vpop.f32.mrf.mxu0
  %v1618 = vadd.f32 %v1379, %v1617
  %v1619 = vpop.f32.mrf.mxu0
  %1620 = vmatprep.mubr.bf16.mxu0 0
  %1621 = vmatmul.mubr.bf16.gmra.mxu0 %v1133
  %v1622 = vpop.f32.mrf.mxu0
  %v1623 = vadd.f32 %v1380, %v1622
  %v1624 = vpop.f32.mrf.mxu0
  %v1625 = vpop.f32.mrf.mxu0
  %v1626 = vadd.f32 %v1381, %v1625
  %v1627 = vpop.f32.mrf.mxu0
  %1628 = vmatprep.mubr.bf16.mxu0 0
  %1629 = vmatmul.mubr.bf16.gmra.mxu0 %v1134
  %v1630 = vpop.f32.mrf.mxu0
  %v1631 = vadd.f32 %v1382, %v1630
  %v1632 = vpop.f32.mrf.mxu0
  %v1633 = vpop.f32.mrf.mxu0
  %v1634 = vadd.f32 %v1383, %v1633
  %v1635 = vpop.f32.mrf.mxu0
  %1636 = vmatprep.mubr.bf16.mxu0 0
  %1637 = vmatmul.mubr.bf16.gmra.mxu0 %v1135
  %v1638 = vpop.f32.mrf.mxu0
  %v1639 = vadd.f32 %v1384, %v1638
  %v1640 = vpop.f32.mrf.mxu0
  %v1641 = vpop.f32.mrf.mxu0
  %v1642 = vadd.f32 %v1385, %v1641
  %v1643 = vpop.f32.mrf.mxu0
  %1644 = vmatprep.mubr.bf16.mxu0 0
  %1645 = vmatmul.mubr.bf16.gmra.mxu0 %v1136
  %v1646 = vpop.f32.mrf.mxu0
  %v1647 = vadd.f32 %v1386, %v1646
  %v1648 = vpop.f32.mrf.mxu0
  %v1649 = vpop.f32.mrf.mxu0
  %v1650 = vadd.f32 %v1387, %v1649
  %v1651 = vpop.f32.mrf.mxu0
  %1652 = vmatprep.mubr.bf16.mxu0 0
  %1653 = vmatmul.mubr.bf16.gmra.mxu0 %v1137
  %v1654 = vpop.f32.mrf.mxu0
  %v1655 = vadd.f32 %v1388, %v1654
  %v1656 = vpop.f32.mrf.mxu0
  %v1657 = vpop.f32.mrf.mxu0
  %v1658 = vadd.f32 %v1389, %v1657
  %v1659 = vpop.f32.mrf.mxu0
  %1660 = vmatprep.mubr.bf16.mxu0 0
  %1661 = vmatmul.mubr.bf16.gmra.mxu0 %v1138
  %v1662 = vpop.f32.mrf.mxu0
  %v1663 = vadd.f32 %v1390, %v1662
  %v1664 = vpop.f32.mrf.mxu0
  %v1665 = vpop.f32.mrf.mxu0
  %v1666 = vadd.f32 %v1391, %v1665
  %v1667 = vpop.f32.mrf.mxu0
  %1668 = vmatprep.mubr.bf16.mxu0 0
  %1669 = vmatmul.mubr.bf16.gmra.mxu0 %v1139
  %v1670 = vpop.f32.mrf.mxu0
  %v1671 = vadd.f32 %v1392, %v1670
  %v1672 = vpop.f32.mrf.mxu0
  %v1673 = vpop.f32.mrf.mxu0
  %v1674 = vadd.f32 %v1393, %v1673
  %v1675 = vpop.f32.mrf.mxu0
  %1676 = vmatprep.mubr.bf16.mxu0 0
  %1677 = vmatmul.mubr.bf16.gmra.mxu0 %v1140
  %v1678 = vpop.f32.mrf.mxu0
  %v1679 = vadd.f32 %v1394, %v1678
  %v1680 = vpop.f32.mrf.mxu0
  %v1681 = vpop.f32.mrf.mxu0
  %v1682 = vadd.f32 %v1395, %v1681
  %v1683 = vpop.f32.mrf.mxu0
  %1684 = vmatprep.mubr.bf16.mxu0 0
  %1685 = vmatmul.mubr.bf16.gmra.mxu0 %v1141
  %v1686 = vpop.f32.mrf.mxu0
  %v1687 = vadd.f32 %v1396, %v1686
  %v1688 = vpop.f32.mrf.mxu0
  %v1689 = vpop.f32.mrf.mxu0
  %v1690 = vadd.f32 %v1397, %v1689
  %v1691 = vpop.f32.mrf.mxu0
  %1692 = vmatprep.mubr.bf16.mxu0 0
  %1693 = vmatmul.mubr.bf16.gmra.mxu0 %v1142
  %v1694 = vpop.f32.mrf.mxu0
  %v1695 = vadd.f32 %v1398, %v1694
  %v1696 = vpop.f32.mrf.mxu0
  %v1697 = vpop.f32.mrf.mxu0
  %v1698 = vadd.f32 %v1399, %v1697
  %v1699 = vpop.f32.mrf.mxu0
  %1700 = vmatprep.mubr.bf16.mxu0 0
  %1701 = vmatmul.mubr.bf16.gmra.mxu0 %v1143
  %v1702 = vpop.f32.mrf.mxu0
  %v1703 = vadd.f32 %v1400, %v1702
  %v1704 = vpop.f32.mrf.mxu0
  %v1705 = vpop.f32.mrf.mxu0
  %v1706 = vadd.f32 %v1401, %v1705
  %v1707 = vpop.f32.mrf.mxu0
  %1708 = vmatprep.mubr.bf16.mxu0 0
  %1709 = vmatmul.mubr.bf16.gmra.mxu0 %v1144
  %v1710 = vpop.f32.mrf.mxu0
  %v1711 = vadd.f32 %v1402, %v1710
  %v1712 = vpop.f32.mrf.mxu0
  %v1713 = vpop.f32.mrf.mxu0
  %v1714 = vadd.f32 %v1403, %v1713
  %v1715 = vpop.f32.mrf.mxu0
  %1716 = vmatprep.mubr.bf16.mxu0 0
  %1717 = vmatmul.mubr.bf16.gmra.mxu0 %v1145
  %v1718 = vpop.f32.mrf.mxu0
  %v1719 = vadd.f32 %v1404, %v1718
  %v1720 = vpop.f32.mrf.mxu0
  %v1721 = vpop.f32.mrf.mxu0
  %v1722 = vadd.f32 %v1405, %v1721
  %v1723 = vpop.f32.mrf.mxu0
  %1724 = vmatprep.mubr.bf16.mxu0 0
  %1725 = vmatmul.mubr.bf16.gmra.mxu0 %v1146
  %v1726 = vpop.f32.mrf.mxu0
  %v1727 = vadd.f32 %v1406, %v1726
  %v1728 = vpop.f32.mrf.mxu0
  %v1729 = vpop.f32.mrf.mxu0
  %v1730 = vadd.f32 %v1407, %v1729
  %v1731 = vpop.f32.mrf.mxu0
  %1732 = vmatprep.mubr.bf16.mxu0 0
  %1733 = vmatmul.mubr.bf16.gmra.mxu0 %v1147
  %v1734 = vpop.f32.mrf.mxu0
  %v1735 = vadd.f32 %v1408, %v1734
  %v1736 = vpop.f32.mrf.mxu0
  %v1737 = vpop.f32.mrf.mxu0
  %v1738 = vadd.f32 %v1409, %v1737
  %v1739 = vpop.f32.mrf.mxu0
  %1740 = vmatprep.mubr.bf16.mxu0 0
  %1741 = vmatmul.mubr.bf16.gmra.mxu0 %v1148
  %v1742 = vpop.f32.mrf.mxu0
  %v1743 = vadd.f32 %v1410, %v1742
  %v1744 = vpop.f32.mrf.mxu0
  %v1745 = vpop.f32.mrf.mxu0
  %v1746 = vadd.f32 %v1411, %v1745
  %v1747 = vpop.f32.mrf.mxu0
  %1748 = vdwg.mxu0
  %v1749 = vmul.f32 %v1495, %v1495
  %v1750 = vmul.f32 %v1498, %v1498
  %v1751 = vmul.f32 %v1503, %v1503
  %v1752 = vmul.f32 %v1506, %v1506
  %v1753 = vmul.f32 %v1511, %v1511
  %v1754 = vmul.f32 %v1514, %v1514
  %v1755 = vmul.f32 %v1519, %v1519
  %v1756 = vmul.f32 %v1522, %v1522
  %v1757 = vmul.f32 %v1527, %v1527
  %v1758 = vmul.f32 %v1530, %v1530
  %v1759 = vmul.f32 %v1535, %v1535
  %v1760 = vmul.f32 %v1538, %v1538
  %v1761 = vmul.f32 %v1543, %v1543
  %v1762 = vmul.f32 %v1546, %v1546
  %v1763 = vmul.f32 %v1551, %v1551
  %v1764 = vmul.f32 %v1554, %v1554
  %v1765 = vmul.f32 %v1559, %v1559
  %v1766 = vmul.f32 %v1562, %v1562
  %v1767 = vmul.f32 %v1567, %v1567
  %v1768 = vmul.f32 %v1570, %v1570
  %v1769 = vmul.f32 %v1575, %v1575
  %v1770 = vmul.f32 %v1578, %v1578
  %v1771 = vmul.f32 %v1583, %v1583
  %v1772 = vmul.f32 %v1586, %v1586
  %v1773 = vmul.f32 %v1591, %v1591
  %v1774 = vmul.f32 %v1594, %v1594
  %v1775 = vmul.f32 %v1599, %v1599
  %v1776 = vmul.f32 %v1602, %v1602
  %v1777 = vmul.f32 %v1607, %v1607
  %v1778 = vmul.f32 %v1610, %v1610
  %v1779 = vmul.f32 %v1615, %v1615
  %v1780 = vmul.f32 %v1618, %v1618
  %v1781 = vmul.f32 %v1623, %v1623
  %v1782 = vmul.f32 %v1626, %v1626
  %v1783 = vmul.f32 %v1631, %v1631
  %v1784 = vmul.f32 %v1634, %v1634
  %v1785 = vmul.f32 %v1639, %v1639
  %v1786 = vmul.f32 %v1642, %v1642
  %v1787 = vmul.f32 %v1647, %v1647
  %v1788 = vmul.f32 %v1650, %v1650
  %v1789 = vmul.f32 %v1655, %v1655
  %v1790 = vmul.f32 %v1658, %v1658
  %v1791 = vmul.f32 %v1663, %v1663
  %v1792 = vmul.f32 %v1666, %v1666
  %v1793 = vmul.f32 %v1671, %v1671
  %v1794 = vmul.f32 %v1674, %v1674
  %v1795 = vmul.f32 %v1679, %v1679
  %v1796 = vmul.f32 %v1682, %v1682
  %v1797 = vmul.f32 %v1687, %v1687
  %v1798 = vmul.f32 %v1690, %v1690
  %v1799 = vmul.f32 %v1695, %v1695
  %v1800 = vmul.f32 %v1698, %v1698
  %v1801 = vmul.f32 %v1703, %v1703
  %v1802 = vmul.f32 %v1706, %v1706
  %v1803 = vmul.f32 %v1711, %v1711
  %v1804 = vmul.f32 %v1714, %v1714
  %v1805 = vmul.f32 %v1719, %v1719
  %v1806 = vmul.f32 %v1722, %v1722
  %v1807 = vmul.f32 %v1727, %v1727
  %v1808 = vmul.f32 %v1730, %v1730
  %v1809 = vmul.f32 %v1735, %v1735
  %v1810 = vmul.f32 %v1738, %v1738
  %v1811 = vmul.f32 %v1743, %v1743
  %v1812 = vmul.f32 %v1746, %v1746
  %v1813 = vadd.f32 %v1749, %v1750
  %v1814 = vadd.f32 %v1813, %v1751
  %v1815 = vadd.f32 %v1814, %v1752
  %v1816 = vadd.f32 %v1815, %v1753
  %v1817 = vadd.f32 %v1816, %v1754
  %v1818 = vadd.f32 %v1817, %v1755
  %v1819 = vadd.f32 %v1818, %v1756
  %v1820 = vadd.f32 %v1819, %v1757
  %v1821 = vadd.f32 %v1820, %v1758
  %v1822 = vadd.f32 %v1821, %v1759
  %v1823 = vadd.f32 %v1822, %v1760
  %v1824 = vadd.f32 %v1823, %v1761
  %v1825 = vadd.f32 %v1824, %v1762
  %v1826 = vadd.f32 %v1825, %v1763
  %v1827 = vadd.f32 %v1826, %v1764
  %v1828 = vadd.f32 %v1827, %v1765
  %v1829 = vadd.f32 %v1828, %v1766
  %v1830 = vadd.f32 %v1829, %v1767
  %v1831 = vadd.f32 %v1830, %v1768
  %v1832 = vadd.f32 %v1831, %v1769
  %v1833 = vadd.f32 %v1832, %v1770
  %v1834 = vadd.f32 %v1833, %v1771
  %v1835 = vadd.f32 %v1834, %v1772
  %v1836 = vadd.f32 %v1835, %v1773
  %v1837 = vadd.f32 %v1836, %v1774
  %v1838 = vadd.f32 %v1837, %v1775
  %v1839 = vadd.f32 %v1838, %v1776
  %v1840 = vadd.f32 %v1839, %v1777
  %v1841 = vadd.f32 %v1840, %v1778
  %v1842 = vadd.f32 %v1841, %v1779
  %v1843 = vadd.f32 %v1842, %v1780
  %v1844 = vadd.f32 %v1843, %v1781
  %v1845 = vadd.f32 %v1844, %v1782
  %v1846 = vadd.f32 %v1845, %v1783
  %v1847 = vadd.f32 %v1846, %v1784
  %v1848 = vadd.f32 %v1847, %v1785
  %v1849 = vadd.f32 %v1848, %v1786
  %v1850 = vadd.f32 %v1849, %v1787
  %v1851 = vadd.f32 %v1850, %v1788
  %v1852 = vadd.f32 %v1851, %v1789
  %v1853 = vadd.f32 %v1852, %v1790
  %v1854 = vadd.f32 %v1853, %v1791
  %v1855 = vadd.f32 %v1854, %v1792
  %v1856 = vadd.f32 %v1855, %v1793
  %v1857 = vadd.f32 %v1856, %v1794
  %v1858 = vadd.f32 %v1857, %v1795
  %v1859 = vadd.f32 %v1858, %v1796
  %v1860 = vadd.f32 %v1859, %v1797
  %v1861 = vadd.f32 %v1860, %v1798
  %v1862 = vadd.f32 %v1861, %v1799
  %v1863 = vadd.f32 %v1862, %v1800
  %v1864 = vadd.f32 %v1863, %v1801
  %v1865 = vadd.f32 %v1864, %v1802
  %v1866 = vadd.f32 %v1865, %v1803
  %v1867 = vadd.f32 %v1866, %v1804
  %v1868 = vadd.f32 %v1867, %v1805
  %v1869 = vadd.f32 %v1868, %v1806
  %v1870 = vadd.f32 %v1869, %v1807
  %v1871 = vadd.f32 %v1870, %v1808
  %v1872 = vadd.f32 %v1871, %v1809
  %v1873 = vadd.f32 %v1872, %v1810
  %v1874 = vadd.f32 %v1873, %v1811
  %v1875 = vadd.f32 %v1874, %v1812
  %1876 = vadd.xlane.f32.xlu0 %v1875
  %v1877 = vpop.xlane.xlu0 %1876
  %v1878 = vrot.slane %v1877, 4
  %v1879 = vadd.f32 %v1877, %v1878
  %v1880 = vrot.slane %v1879, 2
  %v1881 = vadd.f32 %v1879, %v1880
  %v1882 = vrot.slane %v1881, 1
  %v1883 = vadd.f32 %v1881, %v1882
  %s1884 = vtos %v1883
  %v1885 = vlaneseq
  %v1886 = vand.u32 %v1885, 127
  %vm1887 = vcmp.eq.s32.totalorder %v1886, 0
  %v1888 = vstv %s1884
  %v1889 = vsel %vm1887, %v1888, 0.0
  %vm1890 = vcmp.eq.s32.totalorder %v1886, 1
  %v1891 = vstv %s796
  %v1892 = vsel %vm1890, %v1891, 0.0
  %v1893 = vadd.f32 %v1889, %v1892
  %vm1894 = vcmp.eq.s32.totalorder %v1886, 2
  %v1895 = vstv %s438
  %v1896 = vsel %vm1894, %v1895, 0.0
  %v1897 = vadd.f32 %v1893, %v1896
  %vm1898 = vcmp.eq.s32.totalorder %v1886, 3
  %v1899 = vstv %s237
  %v1900 = vsel %vm1898, %v1899, 0.0
  %v1901 = vadd.f32 %v1897, %v1900
  %vm1902 = vcmp.eq.s32.totalorder %v1886, 4
  %v1903 = vstv %s265
  %v1904 = vsel %vm1902, %v1903, 0.0
  %v1905 = vadd.f32 %v1901, %v1904
  %1906 = vst [vmem:[%s9] sm:$0xff] %v1905
  // Predicated region
  $region38: #{task_loss.9} parent=0 // pred_check
    _
  $region39: #{task_loss.9} parent=0 // pred_check_branch
    %1908 = sbr.rel (0) target = $region41
  $region40: #{task_loss.9} parent=0 // pred_region
    _
  $region41: #{task_loss.9} parent=0 // pred_fallthru
    _
  // Predicated region
  $region42: #{task_loss.9} parent=0 // pred_check
    _
  $region43: #{task_loss.9} parent=0 // pred_check_branch
    %1910 = sbr.rel (0) target = $region45
  $region44: #{task_loss.9} parent=0 // pred_region
    _
  $region45: #{task_loss.9} parent=0 // pred_fallthru
    _

</llo_original>
